<compile_context>
chip_gen: v5e
topology: v5e:2x2
jax: 0.10.0
libtpu: 0.0.40
codegen_flags: <defaults>
</compile_context>

<pallas_src>
import functools

import jax
import jax.numpy as jnp
from jax import lax
from jax.experimental import pallas as pl
from jax.experimental.pallas import tpu as pltpu

F32 = jnp.float32
BF16 = jnp.bfloat16

# MXU operand dtype (accumulation is always f32).
MATMUL_DTYPE = jnp.bfloat16

VMEM_TILE_BUDGET = 8 * 1024 * 1024        # bytes of double-buffered row streams per kernel
VMEM_LIMIT_BYTES = 32 * 1024 * 1024       # safe on v5e/v6e (128 MiB phys) and v7x (64 MiB)


# ----------------------------- small helpers ------------------------------
def _round_up(x, m):
    return (x + m - 1) // m * m


def _pick_tile(n, row_bytes, budget=VMEM_TILE_BUDGET):
    """Largest row tile that divides n and keeps ~2x(tile*row_bytes) under the budget."""
    cap = max(budget // (2 * max(row_bytes, 1)), 16)
    if n <= cap:
        return n
    for t in (8192, 4096, 2048, 1024, 512, 256, 128, 64, 32, 16, 8):
        if t <= cap and n % t == 0:
            return t
    return n


def _pick_group(m):
    """Modes per grid step for the spectral mix (needs %8==0 or the full mode count)."""
    for g in (32, 16, 8):
        if m % g == 0:
            return g
    return m


def _silu(x):
    return x * jax.nn.sigmoid(x)


def _gelu(x):
    # tanh-approx GELU: exp/tanh run on the EUP (separate VLIW slot) instead of a long
    # erf polynomial on the VALU.  ~1e-3 max abs diff vs torch's exact gelu.
    c = 0.7978845608028654  # sqrt(2/pi)
    return 0.5 * x * (1.0 + jnp.tanh(c * (x + 0.044715 * x * x * x)))


def _identity(x):
    return x


def _dot(a, b):
    return jnp.dot(a.astype(MATMUL_DTYPE), b.astype(MATMUL_DTYPE),
                   preferred_element_type=jnp.float32)


# --------------------------------- Pallas kernels ----------------------------------
def _lift_kernel(xc_ref, w_ref, gb_ref, tb_ref, o_ref, mean_ref, rstd_ref, *, inv_n):
    # lifting p with the feature concat fused, plus fused InstanceNorm statistics of the
    # produced h (accumulated across the "arbitrary" spatial grid axis).
    s = pl.program_id(1)
    y = _dot(xc_ref[0], w_ref[...]) + gb_ref[...] + tb_ref[0]      # (ts, wpad) f32
    o_ref[0] = y.astype(o_ref.dtype)

    @pl.when(s == 0)
    def _():
        mean_ref[...] = jnp.zeros_like(mean_ref)
        rstd_ref[...] = jnp.zeros_like(rstd_ref)

    mean_ref[0] += jnp.sum(y, axis=0, keepdims=True)
    rstd_ref[0] += jnp.sum(y * y, axis=0, keepdims=True)

    @pl.when(s == pl.num_programs(1) - 1)
    def _():
        m = mean_ref[...] * inv_n
        v = rstd_ref[...] * inv_n - m * m
        mean_ref[...] = m
        rstd_ref[...] = lax.rsqrt(jnp.maximum(v, 0.0) + 1e-5)


def lift(xc_bsc, w_xc, gb, tb):
    B, S, cxc = xc_bsc.shape
    wpad = w_xc.shape[1]
    row_bytes = cxc * 4 + wpad * 4 + wpad * 2
    ts = _pick_tile(S, row_bytes)
    out_shape = (jax.ShapeDtypeStruct((B, S, wpad), BF16),
                 jax.ShapeDtypeStruct((B, 1, wpad), F32),
                 jax.ShapeDtypeStruct((B, 1, wpad), F32))
    return pl.pallas_call(
        functools.partial(_lift_kernel, inv_n=1.0 / S),
        out_shape=out_shape,
        grid=(B, S // ts),
        in_specs=[pl.BlockSpec((1, ts, cxc), lambda b, s: (b, s, 0)),
                  pl.BlockSpec((cxc, wpad), lambda b, s: (0, 0)),
                  pl.BlockSpec((ts, wpad), lambda b, s: (s, 0)),
                  pl.BlockSpec((1, 1, wpad), lambda b, s: (b, 0, 0))],
        out_specs=(pl.BlockSpec((1, ts, wpad), lambda b, s: (b, s, 0)),
                   pl.BlockSpec((1, 1, wpad), lambda b, s: (b, 0, 0)),
                   pl.BlockSpec((1, 1, wpad), lambda b, s: (b, 0, 0))),
        compiler_params=pltpu.CompilerParams(
            dimension_semantics=("parallel", "arbitrary"),
            vmem_limit_bytes=VMEM_LIMIT_BYTES),
    )(xc_bsc, w_xc, gb, tb)


def _cmix_kernel(x_ref, w_ref, o_ref):
    # stacked complex multiply: [xr xi] @ [[wr wi],[-wi wr]] = [out_r out_i], batched
    # over a group of Fourier modes (each mode has its own weight matrix).
    o_ref[...] = jnp.einsum('gbi,gio->gbo',
                            x_ref[...].astype(MATMUL_DTYPE),
                            w_ref[...],
                            preferred_element_type=jnp.float32)


def complex_mode_mix(xs, w_stack):
    """xs: (M, B, kpad) f32, w_stack: (M, kpad, 2*cpad) bf16 -> (M, B, 2*cpad) f32."""
    M, B, k = xs.shape
    n = w_stack.shape[2]
    g = _pick_group(M)
    return pl.pallas_call(
        _cmix_kernel,
        out_shape=jax.ShapeDtypeStruct((M, B, n), F32),
        grid=(M // g,),
        in_specs=[pl.BlockSpec((g, B, k), lambda i: (i, 0, 0)),
                  pl.BlockSpec((g, k, n), lambda i: (i, 0, 0))],
        out_specs=pl.BlockSpec((g, B, n), lambda i: (i, 0, 0)),
        compiler_params=pltpu.CompilerParams(dimension_semantics=("parallel",)),
    )(xs, w_stack)


def _tail_kernel(sc_ref, scm_ref, scr_ref, h_ref, c_ref,
                 m1w_ref, m1b_ref, m2w_ref, m2b_ref,
                 wh_ref, wc_ref, wb_ref,
                 o_ref, mean_ref, rstd_ref, *, act, inv_n):
    # fused: x1 = mlp(instance_norm(sc)); x2 = w([h, cond]); out = act(x1 + x2)
    # plus fused InstanceNorm statistics of the produced out (used by the next layer).
    s = pl.program_id(1)
    xn = (sc_ref[0] - scm_ref[0]) * scr_ref[0]                      # f32 (ts, width)
    tmid = _gelu(_dot(xn, m1w_ref[...]) + m1b_ref[...])             # f32 (ts, wpad)
    x1 = _dot(tmid, m2w_ref[...]) + m2b_ref[...]
    x2 = _dot(h_ref[0], wh_ref[...]) + _dot(c_ref[0], wc_ref[...]) + wb_ref[...]
    y = act(x1 + x2)                                                # f32 (ts, wpad)
    o_ref[0] = y.astype(o_ref.dtype)

    @pl.when(s == 0)
    def _():
        mean_ref[...] = jnp.zeros_like(mean_ref)
        rstd_ref[...] = jnp.zeros_like(rstd_ref)

    mean_ref[0] += jnp.sum(y, axis=0, keepdims=True)
    rstd_ref[0] += jnp.sum(y * y, axis=0, keepdims=True)

    @pl.when(s == pl.num_programs(1) - 1)
    def _():
        m = mean_ref[...] * inv_n
        v = rstd_ref[...] * inv_n - m * m
        mean_ref[...] = m
        rstd_ref[...] = lax.rsqrt(jnp.maximum(v, 0.0) + 1e-5)


def fourier_tail(sc, sc_mean, sc_rstd, h, cond, mw1, mb1, mw2, mb2, wh, wc, wb, act):
    B, S, width = sc.shape
    wpad = h.shape[2]
    cin = cond.shape[2]
    row_bytes = width * 4 + wpad * 2 + cin * 4 + wpad * 2
    ts = _pick_tile(S, row_bytes)
    out_shape = (jax.ShapeDtypeStruct((B, S, wpad), BF16),
                 jax.ShapeDtypeStruct((B, 1, wpad), F32),
                 jax.ShapeDtypeStruct((B, 1, wpad), F32))
    return pl.pallas_call(
        functools.partial(_tail_kernel, act=act, inv_n=1.0 / S),
        out_shape=out_shape,
        grid=(B, S // ts),
        in_specs=[pl.BlockSpec((1, ts, width), lambda b, s: (b, s, 0)),
                  pl.BlockSpec((1, 1, width), lambda b, s: (b, 0, 0)),
                  pl.BlockSpec((1, 1, width), lambda b, s: (b, 0, 0)),
                  pl.BlockSpec((1, ts, wpad), lambda b, s: (b, s, 0)),
                  pl.BlockSpec((1, ts, cin), lambda b, s: (b, s, 0)),
                  pl.BlockSpec((width, wpad), lambda b, s: (0, 0)),
                  pl.BlockSpec((1, wpad), lambda b, s: (0, 0)),
                  pl.BlockSpec((wpad, wpad), lambda b, s: (0, 0)),
                  pl.BlockSpec((1, wpad), lambda b, s: (0, 0)),
                  pl.BlockSpec((wpad, wpad), lambda b, s: (0, 0)),
                  pl.BlockSpec((cin, wpad), lambda b, s: (0, 0)),
                  pl.BlockSpec((1, wpad), lambda b, s: (0, 0))],
        out_specs=(pl.BlockSpec((1, ts, wpad), lambda b, s: (b, s, 0)),
                   pl.BlockSpec((1, 1, wpad), lambda b, s: (b, 0, 0)),
                   pl.BlockSpec((1, 1, wpad), lambda b, s: (b, 0, 0))),
        compiler_params=pltpu.CompilerParams(
            dimension_semantics=("parallel", "arbitrary"),
            vmem_limit_bytes=VMEM_LIMIT_BYTES),
    )(sc, sc_mean, sc_rstd, h, cond, mw1, mb1, mw2, mb2, wh, wc, wb)


def _qproj_kernel(x_ref, w1_ref, b1_ref, w2_ref, b2_ref, o_ref):
    hmid = _gelu(_dot(x_ref[0], w1_ref[...]) + b1_ref[...])
    o_ref[0] = _dot(hmid, w2_ref[...]) + b2_ref[...]


def q_projection(h, w1, b1, w2p, b2p):
    """Final q MLP; the output channel dim is pre-padded to a multiple of 128 so the
    stores are lane-dense; the wrapper slices back to out_ch."""
    B, S, wpad = h.shape
    midp = w1.shape[1]
    opad = w2p.shape[1]
    row_bytes = wpad * 2 + opad * 4
    ts = _pick_tile(S, row_bytes)
    return pl.pallas_call(
        _qproj_kernel,
        out_shape=jax.ShapeDtypeStruct((B, S, opad), F32),
        grid=(B, S // ts),
        in_specs=[pl.BlockSpec((1, ts, wpad), lambda b, s: (b, s, 0)),
                  pl.BlockSpec((wpad, midp), lambda b, s: (0, 0)),
                  pl.BlockSpec((1, midp), lambda b, s: (0, 0)),
                  pl.BlockSpec((midp, opad), lambda b, s: (0, 0)),
                  pl.BlockSpec((1, opad), lambda b, s: (0, 0))],
        out_specs=pl.BlockSpec((1, ts, opad), lambda b, s: (b, s, 0)),
        compiler_params=pltpu.CompilerParams(
            dimension_semantics=("parallel", "parallel"),
            vmem_limit_bytes=VMEM_LIMIT_BYTES),
    )(h, w1, b1, w2p, b2p)


# --------------------------------- XLA glue pieces ----------------------------------
def get_time_embedding(t, temb_dim):
    half = temb_dim // 2
    factor = 10000.0 ** (jnp.arange(half, dtype=F32) / half)
    te = t.astype(F32)[:, None] / factor[None, :]
    return jnp.concatenate([jnp.sin(te), jnp.cos(te)], axis=-1)


def cond_conv5x5(x_nhwc, w_oihw, b):
    # TODO(synk): 5x5 'same' conv runs as an XLA conv (MXU-backed).
    w_hwio = jnp.transpose(w_oihw, (2, 3, 1, 0))
    y = lax.conv_general_dilated(x_nhwc, w_hwio, window_strides=(1, 1),
                                 padding='SAME',
                                 dimension_numbers=('NHWC', 'HWIO', 'NHWC'))
    return y + b[None, None, None, :]


def normalized_modes(x_bsc, mean, rstd, H, W, m1, m2):
    """rfft2 of the raw field, then apply the instance-norm in the spectral domain on the
    retained modes only:  FFT((x-m)*r) = r*FFT(x) everywhere, minus r*m*H*W at DC."""
    B, S, C = x_bsc.shape
    x_ft = jnp.fft.rfft2(x_bsc.reshape(B, H, W, C), axes=(1, 2))     # (B, H, W//2+1, C)
    xm = jnp.concatenate([x_ft[:, :m1, :m2, :], x_ft[:, H - m1:, :m2, :]],
                         axis=1).reshape(B, 2 * m1 * m2, C)          # (B, M, C) complex
    xr = jnp.real(xm) * rstd
    xi = jnp.imag(xm) * rstd
    xr = xr.at[:, 0, :].add(-(mean * rstd)[:, 0, :] * float(H * W))  # DC correction
    return xr, xi


def spectral_stats(o_r, o_i, H, W, m1, m2):
    """Exact InstanceNorm mean/rstd of irfft2(out_ft) computed from the retained modes
    only (Parseval); sc has zero energy outside them.  Assumes m2 <= W//2 (Nyquist
    column not retained) and 2*m1 <= H, as in the reference FNO configuration.
    o_r/o_i: (B, 2*m1, m2, C) real/imag of the retained rfft2 coefficients."""
    hw = float(H * W)
    mean = o_r[:, 0, 0, :] / hw                                      # DC / (H*W)
    abs2 = o_r * o_r + o_i * o_i
    energy = 2.0 * jnp.sum(abs2[:, :, 1:, :], axis=(1, 2))           # cols 1..m2-1 (+mirror)
    a_r, a_i = o_r[:, :, 0, :], o_i[:, :, 0, :]                      # column 0 (B, 2m1, C)
    # irfft drops Im of the last-axis DC bin -> effective col-0 spectrum is
    # d[k] = (a_k + conj(a_{-k})) / 2.
    e0 = 0.5 * jnp.sum(a_r * a_r + a_i * a_i, axis=1)
    e0 = e0 + 0.5 * (a_r[:, 0, :] ** 2 - a_i[:, 0, :] ** 2)
    if m1 > 1:
        pk_r = a_r[:, m1 + 1:, :][:, ::-1, :]                        # rows 2m1-1 .. m1+1
        pk_i = a_i[:, m1 + 1:, :][:, ::-1, :]
        e0 = e0 + jnp.sum(a_r[:, 1:m1, :] * pk_r - a_i[:, 1:m1, :] * pk_i, axis=1)
    e2 = (energy + e0) / (hw * hw)                                    # E[sc^2]
    var = jnp.maximum(e2 - mean * mean, 0.0)
    rstd = lax.rsqrt(var + 1e-5)
    return mean[:, None, :], rstd[:, None, :]                         # (B, 1, C)


def spectral_block(hr, hi, cr, ci, w_stack, H, W, m1, m2, width, cpad, kpad):
    """norm0 + SpectralConv2d: stacked real/imag batched channel mix (Pallas) on the
    retained modes, Parseval norm stats, scatter into the rfft2 grid, inverse FFT."""
    B, M, _ = hr.shape
    xs = jnp.concatenate([hr, cr, hi, ci], axis=-1)                   # (B, M, 2*Cext)
    xs = jnp.pad(xs, ((0, 0), (0, 0), (0, kpad - xs.shape[-1])))
    xs = jnp.transpose(xs, (1, 0, 2))                                 # tiny (M,B,kpad)
    om = jnp.transpose(complex_mode_mix(xs, w_stack), (1, 0, 2))      # (B, M, 2*cpad)
    o_r = om[:, :, :width].reshape(B, 2 * m1, m2, width)
    o_i = om[:, :, cpad:cpad + width].reshape(B, 2 * m1, m2, width)
    sc_mean, sc_rstd = spectral_stats(o_r, o_i, H, W, m1, m2)
    oc = lax.complex(o_r, o_i)
    out_ft = jnp.zeros((B, H, W // 2 + 1, width), jnp.complex64)
    out_ft = out_ft.at[:, :m1, :m2, :].set(oc[:, :m1])
    out_ft = out_ft.at[:, H - m1:, :m2, :].set(oc[:, m1:])
    sc = jnp.fft.irfft2(out_ft, s=(H, W), axes=(1, 2)).reshape(B, H * W, width)
    return sc, sc_mean, sc_rstd


# --------------------------------- parameter init ----------------------------------
def init_params(key, in_ch, out_ch, width, m1, m2, temb_dim):
    keys = iter(jax.random.split(key, 64))
    p = {}

    def lin(cin, cout):
        bound = float(cin) ** -0.5
        w = jax.random.uniform(next(keys), (cin, cout), F32, -bound, bound)
        b = jax.random.uniform(next(keys), (1, cout), F32, -bound, bound)
        return w, b

    def spec(cin, cout):
        scale = 1.0 / (cin * cout)
        wr = scale * jax.random.uniform(next(keys), (cin, cout, m1, m2), F32)
        wi = scale * jax.random.uniform(next(keys), (cin, cout, m1, m2), F32)
        return wr, wi

    # lifting p : Linear(out_ch + in_ch + temb + 2 -> width), feature order
    # [x(out_ch), cond(in_ch), temb, gridx, gridy]
    p['p_w'], p['p_b'] = lin(in_ch + out_ch + temb_dim + 2, width)
    p['tproj_w1'], p['tproj_b1'] = lin(temb_dim, temb_dim)
    p['tproj_w2'], p['tproj_b2'] = lin(temb_dim, temb_dim)
    cbound = (in_ch * 25.0) ** -0.5
    p['cond_conv_w'] = jax.random.uniform(next(keys), (in_ch, in_ch, 5, 5), F32, -cbound, cbound)
    p['cond_conv_b'] = jax.random.uniform(next(keys), (in_ch,), F32, -cbound, cbound)
    cin_ext = width + in_ch
    for l in range(4):
        p[f'conv{l}_w1r'], p[f'conv{l}_w1i'] = spec(cin_ext, width)
        p[f'conv{l}_w2r'], p[f'conv{l}_w2i'] = spec(cin_ext, width)
        p[f'mlp{l}_w1'], p[f'mlp{l}_b1'] = lin(width, width)
        p[f'mlp{l}_w2'], p[f'mlp{l}_b2'] = lin(width, width)
        p[f'w{l}_w'], p[f'w{l}_b'] = lin(cin_ext, width)
    p['q_w1'], p['q_b1'] = lin(width, width * 4)
    p['q_w2'], p['q_b2'] = lin(width * 4, out_ch)
    return p


def _pack_spectral(w1r, w1i, w2r, w2i, cpad, kpad):
    """(Cin, Cout, m1, m2) x4 -> (M, kpad, 2*cpad) stacked real/imag block matrix in bf16.
    Rows are [real rows | imag rows | zero pad] and columns [out_r | out_i] padded so the
    cmix kernel loads/stores are MXU/lane aligned."""
    wr = jnp.concatenate([w1r, w2r], axis=2)                   # (Cin, Cout, 2m1, m2)
    wi = jnp.concatenate([w1i, w2i], axis=2)
    cin, cout = wr.shape[0], wr.shape[1]
    wr = wr.transpose(2, 3, 0, 1).reshape(-1, cin, cout)       # (M, Cin, Cout)
    wi = wi.transpose(2, 3, 0, 1).reshape(-1, cin, cout)
    pad = cpad - cout
    wrp = jnp.pad(wr, ((0, 0), (0, 0), (0, pad)))
    wip = jnp.pad(wi, ((0, 0), (0, 0), (0, pad)))
    top = jnp.concatenate([wrp, wip], axis=-1)                 # rows for the real part
    bot = jnp.concatenate([-wip, wrp], axis=-1)                # rows for the imag part
    w = jnp.concatenate([top, bot], axis=1)                    # (M, 2*Cin, 2*cpad)
    w = jnp.pad(w, ((0, 0), (0, kpad - 2 * cin), (0, 0)))
    return w.astype(BF16)


def pack_params(p, in_ch, out_ch, width, m1, m2, temb_dim):
    """One-time repack of the raw (torch-layout) params into the layouts the Pallas
    kernels consume: channel dims zero-padded to 128, MXU weights in bf16."""
    wpad = _round_up(width, 128)
    cpad = _round_up(width, 64)
    kpad = _round_up(2 * (width + in_ch), 128)
    midp = _round_up(4 * width, 128)
    qpad = _round_up(out_ch, 128)

    def padc(a, n):
        return jnp.pad(a, ((0, 0), (0, n - a.shape[1])))

    def padrc(a, nr, nc):
        return jnp.pad(a, ((0, nr - a.shape[0]), (0, nc - a.shape[1])))

    q = {
        'cond_conv_w': p['cond_conv_w'], 'cond_conv_b': p['cond_conv_b'],
        'tproj_w1': p['tproj_w1'], 'tproj_b1': p['tproj_b1'],
        'tproj_w2': p['tproj_w2'], 'tproj_b2': p['tproj_b2'],
    }
    pw = p['p_w']
    q['p_w_xc'] = padc(pw[:out_ch + in_ch], wpad).astype(BF16)       # (out_ch+in_ch, wpad)
    q['p_w_t'] = padc(pw[out_ch + in_ch:out_ch + in_ch + temb_dim], wpad)   # f32 (XLA)
    q['p_w_g'] = padc(pw[out_ch + in_ch + temb_dim:], wpad)                 # f32 (XLA)
    q['p_b'] = padc(p['p_b'], wpad)                                          # f32
    for l in range(4):
        q[f'spec{l}_w'] = _pack_spectral(p[f'conv{l}_w1r'], p[f'conv{l}_w1i'],
                                         p[f'conv{l}_w2r'], p[f'conv{l}_w2i'], cpad, kpad)
        q[f'mlp{l}_w1'] = padc(p[f'mlp{l}_w1'], wpad).astype(BF16)            # (width, wpad)
        q[f'mlp{l}_b1'] = padc(p[f'mlp{l}_b1'], wpad)
        q[f'mlp{l}_w2'] = padrc(p[f'mlp{l}_w2'], wpad, wpad).astype(BF16)
        q[f'mlp{l}_b2'] = padc(p[f'mlp{l}_b2'], wpad)
        q[f'w{l}_wh'] = padrc(p[f'w{l}_w'][:width], wpad, wpad).astype(BF16)  # h rows of skip
        q[f'w{l}_wc'] = padc(p[f'w{l}_w'][width:], wpad).astype(BF16)         # cond rows
        q[f'w{l}_b'] = padc(p[f'w{l}_b'], wpad)
    q['q_w1'] = padrc(p['q_w1'], wpad, midp).astype(BF16)
    q['q_b1'] = padc(p['q_b1'], midp)
    q['q_w2p'] = padrc(p['q_w2'], midp, qpad).astype(BF16)
    q['q_b2p'] = padc(p['q_b2'], qpad)
    return q


# ----------------------------------- forward ---------------------------------------
def fno2d_forward(params, x, t, cond_input, cfg):
    B, out_ch, H, W = x.shape
    in_ch = cond_input.shape[1]
    width = cfg['width']
    temb_dim = cfg['time_emb_dim']
    m1, m2 = cfg['modes1'], cfg['modes2']
    S = H * W
    wpad = params['p_b'].shape[-1]
    kpad = params['spec0_w'].shape[1]
    cpad = params['spec0_w'].shape[2] // 2

    # conditioning branch (5x5 'same' conv) + its InstanceNorm stats -- XLA, done once
    cond_nhwc = cond_conv5x5(jnp.transpose(cond_input, (0, 2, 3, 1)),
                             params['cond_conv_w'], params['cond_conv_b'])
    cond_hwc = cond_nhwc.reshape(B, S, in_ch)
    c_mean = jnp.mean(cond_hwc, axis=1, keepdims=True)
    c_var = jnp.mean(jnp.square(cond_hwc - c_mean), axis=1, keepdims=True)
    c_rstd = lax.rsqrt(c_var + 1e-5)
    c_mr, c_mi = normalized_modes(cond_hwc, c_mean, c_rstd, H, W, m1, m2)

    # time embedding -> t_proj -> p's time rows (+ p bias): tiny, plain XLA
    temb = get_time_embedding(t, temb_dim)
    tp = _silu(temb @ params['tproj_w1'] + params['tproj_b1']) @ params['tproj_w2'] \
        + params['tproj_b2']
    tb = (tp @ params['p_w_t'] + params['p_b'])[:, None, :]           # (B, 1, wpad)

    # lifting p with feature concat fused; its h stats are produced by the same kernel
    gridx = jnp.broadcast_to(jnp.linspace(0.0, 1.0, H, dtype=F32)[:, None, None], (H, W, 1))
    gridy = jnp.broadcast_to(jnp.linspace(0.0, 1.0, W, dtype=F32)[None, :, None], (H, W, 1))
    grid2 = jnp.concatenate([gridx, gridy], axis=-1).reshape(S, 2)
    gb = grid2 @ params['p_w_g']                                      # (S, wpad) f32
    x_hwc = jnp.transpose(x, (0, 2, 3, 1)).reshape(B, S, out_ch)
    xc = jnp.concatenate([x_hwc, cond_hwc], axis=-1)                  # (B, S, out_ch+in_ch)
    h, h_mean, h_rstd = lift(xc, params['p_w_xc'], gb, tb)            # h: (B, S, wpad) bf16

    for l in range(4):
        h_mr, h_mi = normalized_modes(h[:, :, :width].astype(F32),
                                      h_mean[:, :, :width], h_rstd[:, :, :width],
                                      H, W, m1, m2)
        sc, sc_mean, sc_rstd = spectral_block(h_mr, h_mi, c_mr, c_mi,
                                              params[f'spec{l}_w'],
                                              H, W, m1, m2, width, cpad, kpad)
        act = _gelu if l < 3 else _identity                           # no gelu on last block
        h, h_mean, h_rstd = fourier_tail(
            sc, sc_mean, sc_rstd, h, cond_hwc,
            params[f'mlp{l}_w1'], params[f'mlp{l}_b1'],
            params[f'mlp{l}_w2'], params[f'mlp{l}_b2'],
            params[f'w{l}_wh'], params[f'w{l}_wc'], params[f'w{l}_b'], act)

    out = q_projection(h, params['q_w1'], params['q_b1'],
                       params['q_w2p'], params['q_b2p'])              # (B, S, qpad) f32
    out = out[:, :, :out_ch].reshape(B, H, W, out_ch)
    return jnp.transpose(out, (0, 3, 1, 2))                           # NCHW like PyTorch


# ------------------------------------- main -----------------------------------------
if __name__ == "__main__":
    B, H, W = 2, 16, 16
    in_ch, out_ch = 4, 1
    cfg = dict(modes1=4, modes2=4, width=32, time_emb_dim=32)

    key = jax.random.PRNGKey(0)
    kp, kx, kc = jax.random.split(key, 3)
    raw = init_params(kp, in_ch, out_ch, cfg['width'], cfg['modes1'],
                      cfg['modes2'], cfg['time_emb_dim'])
    params = pack_params(raw, in_ch, out_ch, cfg['width'], cfg['modes1'],
                         cfg['modes2'], cfg['time_emb_dim'])

    x = jax.random.normal(kx, (B, out_ch, H, W), F32)      # noisy sample (output_channels)
    cond = jax.random.normal(kc, (B, in_ch, H, W), F32)    # conditioning (input_channels)
    t = jnp.array([3, 700], dtype=jnp.int32)               # diffusion timesteps

    fwd = jax.jit(lambda p, xx, tt, cc: fno2d_forward(p, xx, tt, cc, cfg))
    out = jax.block_until_ready(fwd(params, x, t, cond))
    assert out.shape == (B, out_ch, H, W), out.shape
    assert bool(jnp.all(jnp.isfinite(out)))
    print("KERNEL_OK")
</pallas_src>

<mosaic_0001>
module attributes {stable_mosaic.version = 11 : i64} {
  func.func @_lift_kernel(%arg0: i32, %arg1: i32, %arg2: memref<1x256x5xf32, #tpu.memory_space<vmem>>, %arg3: memref<5x128xbf16, #tpu.memory_space<vmem>>, %arg4: memref<256x128xf32, #tpu.memory_space<vmem>>, %arg5: memref<1x1x128xf32, #tpu.memory_space<vmem>>, %arg6: memref<1x256x128xbf16, #tpu.memory_space<vmem>>, %arg7: memref<1x1x128xf32, #tpu.memory_space<vmem>>, %arg8: memref<1x1x128xf32, #tpu.memory_space<vmem>>) attributes {dimension_semantics = [#tpu.dimension_semantics<parallel>, #tpu.dimension_semantics<arbitrary>], iteration_bounds = array<i64: 2, 1>, scalar_prefetch = 0 : i64, scratch_operands = 0 : i64, tpu.core_type = #tpu.core_type<tc>, window_params = [{transform_indices = @transform_0, window_bounds = array<i64: 1, 256, 5>}, {pipeline_mode = #tpu.pipeline_mode<synchronous>, transform_indices = @transform_1, window_bounds = array<i64: 5, 128>}, {transform_indices = @transform_2, window_bounds = array<i64: 256, 128>}, {transform_indices = @transform_3, window_bounds = array<i64: 1, 1, 128>}, {transform_indices = @transform_4, window_bounds = array<i64: 1, 256, 128>}, {transform_indices = @transform_5, window_bounds = array<i64: 1, 1, 128>}, {transform_indices = @transform_6, window_bounds = array<i64: 1, 1, 128>}]} {
    %c0 = arith.constant 0 : index
    %c0_0 = arith.constant 0 : index
    %c0_1 = arith.constant 0 : index
    %0 = vector.load %arg2[%c0, %c0_0, %c0_1] : memref<1x256x5xf32, #tpu.memory_space<vmem>>, vector<1x256x5xf32>
    %1 = vector.shape_cast %0 : vector<1x256x5xf32> to vector<256x5xf32>
    %c0_2 = arith.constant 0 : index
    %c0_3 = arith.constant 0 : index
    %2 = vector.load %arg3[%c0_2, %c0_3] : memref<5x128xbf16, #tpu.memory_space<vmem>>, vector<5x128xbf16>
    %3 = arith.truncf %1 : vector<256x5xf32> to vector<256x5xbf16>
    %cst = arith.constant dense<0.000000e+00> : vector<256x128xf32>
    %4 = tpu.matmul %3, %2, %cst {dimension_numbers = #tpu.dot_dimension_numbers<[1], [0], [0], [1], [0, 0, 1, 1], [], []>} : vector<256x5xbf16>, vector<5x128xbf16>, vector<256x128xf32> -> vector<256x128xf32>
    %c0_4 = arith.constant 0 : index
    %c0_5 = arith.constant 0 : index
    %5 = vector.load %arg4[%c0_4, %c0_5] : memref<256x128xf32, #tpu.memory_space<vmem>>, vector<256x128xf32>
    %6 = arith.addf %4, %5 : vector<256x128xf32>
    %c0_6 = arith.constant 0 : index
    %c0_7 = arith.constant 0 : index
    %c0_8 = arith.constant 0 : index
    %7 = vector.load %arg5[%c0_6, %c0_7, %c0_8] : memref<1x1x128xf32, #tpu.memory_space<vmem>>, vector<1x1x128xf32>
    %8 = vector.shape_cast %7 : vector<1x1x128xf32> to vector<1x128xf32>
    %9 = vector.broadcast %8 : vector<1x128xf32> to vector<256x128xf32>
    %10 = arith.addf %6, %9 : vector<256x128xf32>
    %11 = arith.truncf %10 : vector<256x128xf32> to vector<256x128xbf16>
    %c0_9 = arith.constant 0 : index
    %c0_10 = arith.constant 0 : index
    %c0_11 = arith.constant 0 : index
    %12 = vector.load %arg6[%c0_9, %c0_10, %c0_11] : memref<1x256x128xbf16, #tpu.memory_space<vmem>>, vector<1x256x128xbf16>
    %13 = vector.shape_cast %12 : vector<1x256x128xbf16> to vector<256x128xbf16>
    %14 = vector.shape_cast %11 : vector<256x128xbf16> to vector<1x256x128xbf16>
    tpu.vector_store %arg6[%c0_9, %c0_10, %c0_11], %14 {strides = array<i32>} : memref<1x256x128xbf16, #tpu.memory_space<vmem>>, vector<1x256x128xbf16>,
    %c0_i32 = arith.constant 0 : i32
    %15 = arith.cmpi eq, %arg1, %c0_i32 : i32
    %16 = arith.extui %15 : i1 to i32
    %c0_i32_12 = arith.constant 0 : i32
    %17 = arith.cmpi ne, %16, %c0_i32_12 : i32
    scf.if %17 {
      %cst_29 = arith.constant 0.000000e+00 : f32
      %38 = vector.broadcast %cst_29 : f32 to vector<1x1x128xf32>
      %c0_30 = arith.constant 0 : index
      %c0_31 = arith.constant 0 : index
      %c0_32 = arith.constant 0 : index
      %39 = vector.load %arg7[%c0_30, %c0_31, %c0_32] : memref<1x1x128xf32, #tpu.memory_space<vmem>>, vector<1x1x128xf32>
      tpu.vector_store %arg7[%c0_30, %c0_31, %c0_32], %38 {strides = array<i32>} : memref<1x1x128xf32, #tpu.memory_space<vmem>>, vector<1x1x128xf32>,
      %cst_33 = arith.constant 0.000000e+00 : f32
      %40 = vector.broadcast %cst_33 : f32 to vector<1x1x128xf32>
      %c0_34 = arith.constant 0 : index
      %c0_35 = arith.constant 0 : index
      %c0_36 = arith.constant 0 : index
      %41 = vector.load %arg8[%c0_34, %c0_35, %c0_36] : memref<1x1x128xf32, #tpu.memory_space<vmem>>, vector<1x1x128xf32>
      tpu.vector_store %arg8[%c0_34, %c0_35, %c0_36], %40 {strides = array<i32>} : memref<1x1x128xf32, #tpu.memory_space<vmem>>, vector<1x1x128xf32>,
    } else {
    }
    %c0_13 = arith.constant 0 : index
    %c0_14 = arith.constant 0 : index
    %c0_15 = arith.constant 0 : index
    %18 = vector.load %arg7[%c0_13, %c0_14, %c0_15] : memref<1x1x128xf32, #tpu.memory_space<vmem>>, vector<1x1x128xf32>
    %19 = vector.shape_cast %18 : vector<1x1x128xf32> to vector<1x128xf32>
    %cst_16 = arith.constant dense<0.000000e+00> : vector<128xf32>
    %20 = vector.multi_reduction <add>, %10, %cst_16 [0] : vector<256x128xf32> to vector<128xf32>
    %21 = vector.shape_cast %20 : vector<128xf32> to vector<1x128xf32>
    %22 = arith.addf %19, %21 : vector<1x128xf32>
    %c0_17 = arith.constant 0 : index
    %c0_18 = arith.constant 0 : index
    %c0_19 = arith.constant 0 : index
    %23 = vector.load %arg7[%c0_17, %c0_18, %c0_19] : memref<1x1x128xf32, #tpu.memory_space<vmem>>, vector<1x1x128xf32>
    %24 = vector.shape_cast %23 : vector<1x1x128xf32> to vector<1x128xf32>
    %25 = vector.shape_cast %22 : vector<1x128xf32> to vector<1x1x128xf32>
    tpu.vector_store %arg7[%c0_17, %c0_18, %c0_19], %25 {strides = array<i32>} : memref<1x1x128xf32, #tpu.memory_space<vmem>>, vector<1x1x128xf32>,
    %c0_20 = arith.constant 0 : index
    %c0_21 = arith.constant 0 : index
    %c0_22 = arith.constant 0 : index
    %26 = vector.load %arg8[%c0_20, %c0_21, %c0_22] : memref<1x1x128xf32, #tpu.memory_space<vmem>>, vector<1x1x128xf32>
    %27 = vector.shape_cast %26 : vector<1x1x128xf32> to vector<1x128xf32>
    %28 = arith.mulf %10, %10 : vector<256x128xf32>
    %cst_23 = arith.constant dense<0.000000e+00> : vector<128xf32>
    %29 = vector.multi_reduction <add>, %28, %cst_23 [0] : vector<256x128xf32> to vector<128xf32>
    %30 = vector.shape_cast %29 : vector<128xf32> to vector<1x128xf32>
    %31 = arith.addf %27, %30 : vector<1x128xf32>
    %c0_24 = arith.constant 0 : index
    %c0_25 = arith.constant 0 : index
    %c0_26 = arith.constant 0 : index
    %32 = vector.load %arg8[%c0_24, %c0_25, %c0_26] : memref<1x1x128xf32, #tpu.memory_space<vmem>>, vector<1x1x128xf32>
    %33 = vector.shape_cast %32 : vector<1x1x128xf32> to vector<1x128xf32>
    %34 = vector.shape_cast %31 : vector<1x128xf32> to vector<1x1x128xf32>
    tpu.vector_store %arg8[%c0_24, %c0_25, %c0_26], %34 {strides = array<i32>} : memref<1x1x128xf32, #tpu.memory_space<vmem>>, vector<1x1x128xf32>,
    %c0_i32_27 = arith.constant 0 : i32
    %35 = arith.cmpi eq, %arg1, %c0_i32_27 : i32
    %36 = arith.extui %35 : i1 to i32
    %c0_i32_28 = arith.constant 0 : i32
    %37 = arith.cmpi ne, %36, %c0_i32_28 : i32
    scf.if %37 {
      %c0_29 = arith.constant 0 : index
      %c0_30 = arith.constant 0 : index
      %c0_31 = arith.constant 0 : index
      %38 = vector.load %arg7[%c0_29, %c0_30, %c0_31] : memref<1x1x128xf32, #tpu.memory_space<vmem>>, vector<1x1x128xf32>
      %cst_32 = arith.constant 3.906250e-03 : f32
      %39 = vector.broadcast %cst_32 : f32 to vector<1x1x128xf32>
      %40 = arith.mulf %38, %39 : vector<1x1x128xf32>
      %c0_33 = arith.constant 0 : index
      %c0_34 = arith.constant 0 : index
      %c0_35 = arith.constant 0 : index
      %41 = vector.load %arg8[%c0_33, %c0_34, %c0_35] : memref<1x1x128xf32, #tpu.memory_space<vmem>>, vector<1x1x128xf32>
      %cst_36 = arith.constant 3.906250e-03 : f32
      %42 = vector.broadcast %cst_36 : f32 to vector<1x1x128xf32>
      %43 = arith.mulf %41, %42 : vector<1x1x128xf32>
      %44 = arith.mulf %40, %40 : vector<1x1x128xf32>
      %45 = arith.subf %43, %44 : vector<1x1x128xf32>
      %c0_37 = arith.constant 0 : index
      %c0_38 = arith.constant 0 : index
      %c0_39 = arith.constant 0 : index
      %46 = vector.load %arg7[%c0_37, %c0_38, %c0_39] : memref<1x1x128xf32, #tpu.memory_space<vmem>>, vector<1x1x128xf32>
      tpu.vector_store %arg7[%c0_37, %c0_38, %c0_39], %40 {strides = array<i32>} : memref<1x1x128xf32, #tpu.memory_space<vmem>>, vector<1x1x128xf32>,
      %cst_40 = arith.constant 0.000000e+00 : f32
      %47 = vector.broadcast %cst_40 : f32 to vector<1x1x128xf32>
      %48 = arith.maximumf %45, %47 : vector<1x1x128xf32>
      %cst_41 = arith.constant 9.99999974E-6 : f32
      %49 = vector.broadcast %cst_41 : f32 to vector<1x1x128xf32>
      %50 = arith.addf %48, %49 : vector<1x1x128xf32>
      %51 = math.rsqrt %50 : vector<1x1x128xf32>
      %c0_42 = arith.constant 0 : index
      %c0_43 = arith.constant 0 : index
      %c0_44 = arith.constant 0 : index
      %52 = vector.load %arg8[%c0_42, %c0_43, %c0_44] : memref<1x1x128xf32, #tpu.memory_space<vmem>>, vector<1x1x128xf32>
      tpu.vector_store %arg8[%c0_42, %c0_43, %c0_44], %51 {strides = array<i32>} : memref<1x1x128xf32, #tpu.memory_space<vmem>>, vector<1x1x128xf32>,
    } else {
    }
    return
  }
  func.func @transform_0(%arg0: i32, %arg1: i32) -> (i32, i32, i32) {
    %c0_i32 = arith.constant 0 : i32
    %c0_i32_0 = arith.constant 0 : i32
    return %arg0, %arg1, %c0_i32 : i32, i32, i32
  }
  func.func @transform_1(%arg0: i32, %arg1: i32) -> (i32, i32) {
    %c0_i32 = arith.constant 0 : i32
    %c0_i32_0 = arith.constant 0 : i32
    %c0_i32_1 = arith.constant 0 : i32
    return %c0_i32, %c0_i32_0 : i32, i32
  }
  func.func @transform_2(%arg0: i32, %arg1: i32) -> (i32, i32) {
    %c0_i32 = arith.constant 0 : i32
    %c0_i32_0 = arith.constant 0 : i32
    return %arg1, %c0_i32 : i32, i32
  }
  func.func @transform_3(%arg0: i32, %arg1: i32) -> (i32, i32, i32) {
    %c0_i32 = arith.constant 0 : i32
    %c0_i32_0 = arith.constant 0 : i32
    %c0_i32_1 = arith.constant 0 : i32
    return %arg0, %c0_i32, %c0_i32_0 : i32, i32, i32
  }
  func.func @transform_4(%arg0: i32, %arg1: i32) -> (i32, i32, i32) {
    %c0_i32 = arith.constant 0 : i32
    %c0_i32_0 = arith.constant 0 : i32
    return %arg0, %arg1, %c0_i32 : i32, i32, i32
  }
  func.func @transform_5(%arg0: i32, %arg1: i32) -> (i32, i32, i32) {
    %c0_i32 = arith.constant 0 : i32
    %c0_i32_0 = arith.constant 0 : i32
    %c0_i32_1 = arith.constant 0 : i32
    return %arg0, %c0_i32, %c0_i32_0 : i32, i32, i32
  }
  func.func @transform_6(%arg0: i32, %arg1: i32) -> (i32, i32, i32) {
    %c0_i32 = arith.constant 0 : i32
    %c0_i32_0 = arith.constant 0 : i32
    %c0_i32_1 = arith.constant 0 : i32
    return %arg0, %c0_i32, %c0_i32_0 : i32, i32, i32
  }
}

module attributes {stable_mosaic.version = 11 : i64} {
  func.func @_cmix_kernel(%arg0: i32, %arg1: memref<32x2x128xf32, #tpu.memory_space<vmem>>, %arg2: memref<32x128x128xbf16, #tpu.memory_space<vmem>>, %arg3: memref<32x2x128xf32, #tpu.memory_space<vmem>>) attributes {dimension_semantics = [#tpu.dimension_semantics<parallel>], iteration_bounds = array<i64: 1>, scalar_prefetch = 0 : i64, scratch_operands = 0 : i64, tpu.core_type = #tpu.core_type<tc>, window_params = [{transform_indices = @transform_0, window_bounds = array<i64: 32, 2, 128>}, {transform_indices = @transform_1, window_bounds = array<i64: 32, 128, 128>}, {transform_indices = @transform_2, window_bounds = array<i64: 32, 2, 128>}]} {
    %c0 = arith.constant 0 : index
    %c0_0 = arith.constant 0 : index
    %c0_1 = arith.constant 0 : index
    %0 = vector.load %arg1[%c0, %c0_0, %c0_1] : memref<32x2x128xf32, #tpu.memory_space<vmem>>, vector<32x2x128xf32>
    %1 = arith.truncf %0 : vector<32x2x128xf32> to vector<32x2x128xbf16>
    %c0_2 = arith.constant 0 : index
    %c0_3 = arith.constant 0 : index
    %c0_4 = arith.constant 0 : index
    %2 = vector.load %arg2[%c0_2, %c0_3, %c0_4] : memref<32x128x128xbf16, #tpu.memory_space<vmem>>, vector<32x128x128xbf16>
    "tpu.trace_start"() <{level = 10 : i32, message = "gbi,gio->gbo"}> : () -> ()
    %cst = arith.constant dense<0.000000e+00> : vector<32x2x128xf32>
    %3 = tpu.matmul %1, %2, %cst {dimension_numbers = #tpu.dot_dimension_numbers<[2], [1], [1], [2], [0, 0, 0, 1, 1, 2], [0], [0]>} : vector<32x2x128xbf16>, vector<32x128x128xbf16>, vector<32x2x128xf32> -> vector<32x2x128xf32>
    "tpu.trace_stop"() : () -> ()
    %c0_5 = arith.constant 0 : index
    %c0_6 = arith.constant 0 : index
    %c0_7 = arith.constant 0 : index
    %4 = vector.load %arg3[%c0_5, %c0_6, %c0_7] : memref<32x2x128xf32, #tpu.memory_space<vmem>>, vector<32x2x128xf32>
    tpu.vector_store %arg3[%c0_5, %c0_6, %c0_7], %3 {strides = array<i32>} : memref<32x2x128xf32, #tpu.memory_space<vmem>>, vector<32x2x128xf32>,
    return
  }
  func.func @transform_0(%arg0: i32) -> (i32, i32, i32) {
    %c0_i32 = arith.constant 0 : i32
    %c0_i32_0 = arith.constant 0 : i32
    %c0_i32_1 = arith.constant 0 : i32
    return %arg0, %c0_i32, %c0_i32_0 : i32, i32, i32
  }
  func.func @transform_1(%arg0: i32) -> (i32, i32, i32) {
    %c0_i32 = arith.constant 0 : i32
    %c0_i32_0 = arith.constant 0 : i32
    %c0_i32_1 = arith.constant 0 : i32
    return %arg0, %c0_i32, %c0_i32_0 : i32, i32, i32
  }
  func.func @transform_2(%arg0: i32) -> (i32, i32, i32) {
    %c0_i32 = arith.constant 0 : i32
    %c0_i32_0 = arith.constant 0 : i32
    %c0_i32_1 = arith.constant 0 : i32
    return %arg0, %c0_i32, %c0_i32_0 : i32, i32, i32
  }
}

module attributes {stable_mosaic.version = 11 : i64} {
  func.func @_tail_kernel(%arg0: i32, %arg1: i32, %arg2: memref<1x256x32xf32, #tpu.memory_space<vmem>>, %arg3: memref<1x1x32xf32, #tpu.memory_space<vmem>>, %arg4: memref<1x1x32xf32, #tpu.memory_space<vmem>>, %arg5: memref<1x256x128xbf16, #tpu.memory_space<vmem>>, %arg6: memref<1x256x4xf32, #tpu.memory_space<vmem>>, %arg7: memref<32x128xbf16, #tpu.memory_space<vmem>>, %arg8: memref<1x128xf32, #tpu.memory_space<vmem>>, %arg9: memref<128x128xbf16, #tpu.memory_space<vmem>>, %arg10: memref<1x128xf32, #tpu.memory_space<vmem>>, %arg11: memref<128x128xbf16, #tpu.memory_space<vmem>>, %arg12: memref<4x128xbf16, #tpu.memory_space<vmem>>, %arg13: memref<1x128xf32, #tpu.memory_space<vmem>>, %arg14: memref<1x256x128xbf16, #tpu.memory_space<vmem>>, %arg15: memref<1x1x128xf32, #tpu.memory_space<vmem>>, %arg16: memref<1x1x128xf32, #tpu.memory_space<vmem>>) attributes {dimension_semantics = [#tpu.dimension_semantics<parallel>, #tpu.dimension_semantics<arbitrary>], iteration_bounds = array<i64: 2, 1>, scalar_prefetch = 0 : i64, scratch_operands = 0 : i64, tpu.core_type = #tpu.core_type<tc>, window_params = [{transform_indices = @transform_0, window_bounds = array<i64: 1, 256, 32>}, {transform_indices = @transform_1, window_bounds = array<i64: 1, 1, 32>}, {transform_indices = @transform_2, window_bounds = array<i64: 1, 1, 32>}, {transform_indices = @transform_3, window_bounds = array<i64: 1, 256, 128>}, {transform_indices = @transform_4, window_bounds = array<i64: 1, 256, 4>}, {pipeline_mode = #tpu.pipeline_mode<synchronous>, transform_indices = @transform_5, window_bounds = array<i64: 32, 128>}, {pipeline_mode = #tpu.pipeline_mode<synchronous>, transform_indices = @transform_6, window_bounds = array<i64: 1, 128>}, {pipeline_mode = #tpu.pipeline_mode<synchronous>, transform_indices = @transform_7, window_bounds = array<i64: 128, 128>}, {pipeline_mode = #tpu.pipeline_mode<synchronous>, transform_indices = @transform_8, window_bounds = array<i64: 1, 128>}, {pipeline_mode = #tpu.pipeline_mode<synchronous>, transform_indices = @transform_9, window_bounds = array<i64: 128, 128>}, {pipeline_mode = #tpu.pipeline_mode<synchronous>, transform_indices = @transform_10, window_bounds = array<i64: 4, 128>}, {pipeline_mode = #tpu.pipeline_mode<synchronous>, transform_indices = @transform_11, window_bounds = array<i64: 1, 128>}, {transform_indices = @transform_12, window_bounds = array<i64: 1, 256, 128>}, {transform_indices = @transform_13, window_bounds = array<i64: 1, 1, 128>}, {transform_indices = @transform_14, window_bounds = array<i64: 1, 1, 128>}]} {
    %c0 = arith.constant 0 : index
    %c0_0 = arith.constant 0 : index
    %c0_1 = arith.constant 0 : index
    %0 = vector.load %arg2[%c0, %c0_0, %c0_1] : memref<1x256x32xf32, #tpu.memory_space<vmem>>, vector<1x256x32xf32>
    %1 = vector.shape_cast %0 : vector<1x256x32xf32> to vector<256x32xf32>
    %c0_2 = arith.constant 0 : index
    %c0_3 = arith.constant 0 : index
    %c0_4 = arith.constant 0 : index
    %2 = vector.load %arg3[%c0_2, %c0_3, %c0_4] : memref<1x1x32xf32, #tpu.memory_space<vmem>>, vector<1x1x32xf32>
    %3 = vector.shape_cast %2 : vector<1x1x32xf32> to vector<1x32xf32>
    %4 = vector.broadcast %3 : vector<1x32xf32> to vector<256x32xf32>
    %5 = arith.subf %1, %4 : vector<256x32xf32>
    %c0_5 = arith.constant 0 : index
    %c0_6 = arith.constant 0 : index
    %c0_7 = arith.constant 0 : index
    %6 = vector.load %arg4[%c0_5, %c0_6, %c0_7] : memref<1x1x32xf32, #tpu.memory_space<vmem>>, vector<1x1x32xf32>
    %7 = vector.shape_cast %6 : vector<1x1x32xf32> to vector<1x32xf32>
    %8 = vector.broadcast %7 : vector<1x32xf32> to vector<256x32xf32>
    %9 = arith.mulf %5, %8 : vector<256x32xf32>
    %c0_8 = arith.constant 0 : index
    %c0_9 = arith.constant 0 : index
    %10 = vector.load %arg7[%c0_8, %c0_9] : memref<32x128xbf16, #tpu.memory_space<vmem>>, vector<32x128xbf16>
    %11 = arith.truncf %9 : vector<256x32xf32> to vector<256x32xbf16>
    %cst = arith.constant dense<0.000000e+00> : vector<256x128xf32>
    %12 = tpu.matmul %11, %10, %cst {dimension_numbers = #tpu.dot_dimension_numbers<[1], [0], [0], [1], [0, 0, 1, 1], [], []>} : vector<256x32xbf16>, vector<32x128xbf16>, vector<256x128xf32> -> vector<256x128xf32>
    %c0_10 = arith.constant 0 : index
    %c0_11 = arith.constant 0 : index
    %13 = vector.load %arg8[%c0_10, %c0_11] : memref<1x128xf32, #tpu.memory_space<vmem>>, vector<1x128xf32>
    %14 = vector.broadcast %13 : vector<1x128xf32> to vector<256x128xf32>
    %15 = arith.addf %12, %14 : vector<256x128xf32>
    %cst_12 = arith.constant 5.000000e-01 : f32
    %16 = vector.broadcast %cst_12 : f32 to vector<256x128xf32>
    %17 = arith.mulf %16, %15 : vector<256x128xf32>
    %cst_13 = arith.constant 4.471500e-02 : f32
    %18 = vector.broadcast %cst_13 : f32 to vector<256x128xf32>
    %19 = arith.mulf %18, %15 : vector<256x128xf32>
    %20 = arith.mulf %19, %15 : vector<256x128xf32>
    %21 = arith.mulf %20, %15 : vector<256x128xf32>
    %22 = arith.addf %15, %21 : vector<256x128xf32>
    %cst_14 = arith.constant 0.797884583 : f32
    %23 = vector.broadcast %cst_14 : f32 to vector<256x128xf32>
    %24 = arith.mulf %23, %22 : vector<256x128xf32>
    %25 = math.tanh %24 : vector<256x128xf32>
    %cst_15 = arith.constant 1.000000e+00 : f32
    %26 = vector.broadcast %cst_15 : f32 to vector<256x128xf32>
    %27 = arith.addf %26, %25 : vector<256x128xf32>
    %28 = arith.mulf %17, %27 : vector<256x128xf32>
    %c0_16 = arith.constant 0 : index
    %c0_17 = arith.constant 0 : index
    %29 = vector.load %arg9[%c0_16, %c0_17] : memref<128x128xbf16, #tpu.memory_space<vmem>>, vector<128x128xbf16>
    %30 = arith.truncf %28 : vector<256x128xf32> to vector<256x128xbf16>
    %cst_18 = arith.constant dense<0.000000e+00> : vector<256x128xf32>
    %31 = tpu.matmul %30, %29, %cst_18 {dimension_numbers = #tpu.dot_dimension_numbers<[1], [0], [0], [1], [0, 0, 1, 1], [], []>} : vector<256x128xbf16>, vector<128x128xbf16>, vector<256x128xf32> -> vector<256x128xf32>
    %c0_19 = arith.constant 0 : index
    %c0_20 = arith.constant 0 : index
    %32 = vector.load %arg10[%c0_19, %c0_20] : memref<1x128xf32, #tpu.memory_space<vmem>>, vector<1x128xf32>
    %33 = vector.broadcast %32 : vector<1x128xf32> to vector<256x128xf32>
    %34 = arith.addf %31, %33 : vector<256x128xf32>
    %c0_21 = arith.constant 0 : index
    %c0_22 = arith.constant 0 : index
    %c0_23 = arith.constant 0 : index
    %35 = vector.load %arg5[%c0_21, %c0_22, %c0_23] : memref<1x256x128xbf16, #tpu.memory_space<vmem>>, vector<1x256x128xbf16>
    %36 = vector.shape_cast %35 : vector<1x256x128xbf16> to vector<256x128xbf16>
    %c0_24 = arith.constant 0 : index
    %c0_25 = arith.constant 0 : index
    %37 = vector.load %arg11[%c0_24, %c0_25] : memref<128x128xbf16, #tpu.memory_space<vmem>>, vector<128x128xbf16>
    %cst_26 = arith.constant dense<0.000000e+00> : vector<256x128xf32>
    %38 = tpu.matmul %36, %37, %cst_26 {dimension_numbers = #tpu.dot_dimension_numbers<[1], [0], [0], [1], [0, 0, 1, 1], [], []>} : vector<256x128xbf16>, vector<128x128xbf16>, vector<256x128xf32> -> vector<256x128xf32>
    %c0_27 = arith.constant 0 : index
    %c0_28 = arith.constant 0 : index
    %c0_29 = arith.constant 0 : index
    %39 = vector.load %arg6[%c0_27, %c0_28, %c0_29] : memref<1x256x4xf32, #tpu.memory_space<vmem>>, vector<1x256x4xf32>
    %40 = vector.shape_cast %39 : vector<1x256x4xf32> to vector<256x4xf32>
    %c0_30 = arith.constant 0 : index
    %c0_31 = arith.constant 0 : index
    %41 = vector.load %arg12[%c0_30, %c0_31] : memref<4x128xbf16, #tpu.memory_space<vmem>>, vector<4x128xbf16>
    %42 = arith.truncf %40 : vector<256x4xf32> to vector<256x4xbf16>
    %cst_32 = arith.constant dense<0.000000e+00> : vector<256x128xf32>
    %43 = tpu.matmul %42, %41, %cst_32 {dimension_numbers = #tpu.dot_dimension_numbers<[1], [0], [0], [1], [0, 0, 1, 1], [], []>} : vector<256x4xbf16>, vector<4x128xbf16>, vector<256x128xf32> -> vector<256x128xf32>
    %44 = arith.addf %38, %43 : vector<256x128xf32>
    %c0_33 = arith.constant 0 : index
    %c0_34 = arith.constant 0 : index
    %45 = vector.load %arg13[%c0_33, %c0_34] : memref<1x128xf32, #tpu.memory_space<vmem>>, vector<1x128xf32>
    %46 = vector.broadcast %45 : vector<1x128xf32> to vector<256x128xf32>
    %47 = arith.addf %44, %46 : vector<256x128xf32>
    %48 = arith.addf %34, %47 : vector<256x128xf32>
    %cst_35 = arith.constant 5.000000e-01 : f32
    %49 = vector.broadcast %cst_35 : f32 to vector<256x128xf32>
    %50 = arith.mulf %49, %48 : vector<256x128xf32>
    %cst_36 = arith.constant 4.471500e-02 : f32
    %51 = vector.broadcast %cst_36 : f32 to vector<256x128xf32>
    %52 = arith.mulf %51, %48 : vector<256x128xf32>
    %53 = arith.mulf %52, %48 : vector<256x128xf32>
    %54 = arith.mulf %53, %48 : vector<256x128xf32>
    %55 = arith.addf %48, %54 : vector<256x128xf32>
    %cst_37 = arith.constant 0.797884583 : f32
    %56 = vector.broadcast %cst_37 : f32 to vector<256x128xf32>
    %57 = arith.mulf %56, %55 : vector<256x128xf32>
    %58 = math.tanh %57 : vector<256x128xf32>
    %cst_38 = arith.constant 1.000000e+00 : f32
    %59 = vector.broadcast %cst_38 : f32 to vector<256x128xf32>
    %60 = arith.addf %59, %58 : vector<256x128xf32>
    %61 = arith.mulf %50, %60 : vector<256x128xf32>
    %62 = arith.truncf %61 : vector<256x128xf32> to vector<256x128xbf16>
    %c0_39 = arith.constant 0 : index
    %c0_40 = arith.constant 0 : index
    %c0_41 = arith.constant 0 : index
    %63 = vector.load %arg14[%c0_39, %c0_40, %c0_41] : memref<1x256x128xbf16, #tpu.memory_space<vmem>>, vector<1x256x128xbf16>
    %64 = vector.shape_cast %63 : vector<1x256x128xbf16> to vector<256x128xbf16>
    %65 = vector.shape_cast %62 : vector<256x128xbf16> to vector<1x256x128xbf16>
    tpu.vector_store %arg14[%c0_39, %c0_40, %c0_41], %65 {strides = array<i32>} : memref<1x256x128xbf16, #tpu.memory_space<vmem>>, vector<1x256x128xbf16>,
    %c0_i32 = arith.constant 0 : i32
    %66 = arith.cmpi eq, %arg1, %c0_i32 : i32
    %67 = arith.extui %66 : i1 to i32
    %c0_i32_42 = arith.constant 0 : i32
    %68 = arith.cmpi ne, %67, %c0_i32_42 : i32
    scf.if %68 {
      %cst_59 = arith.constant 0.000000e+00 : f32
      %89 = vector.broadcast %cst_59 : f32 to vector<1x1x128xf32>
      %c0_60 = arith.constant 0 : index
      %c0_61 = arith.constant 0 : index
      %c0_62 = arith.constant 0 : index
      %90 = vector.load %arg15[%c0_60, %c0_61, %c0_62] : memref<1x1x128xf32, #tpu.memory_space<vmem>>, vector<1x1x128xf32>
      tpu.vector_store %arg15[%c0_60, %c0_61, %c0_62], %89 {strides = array<i32>} : memref<1x1x128xf32, #tpu.memory_space<vmem>>, vector<1x1x128xf32>,
      %cst_63 = arith.constant 0.000000e+00 : f32
      %91 = vector.broadcast %cst_63 : f32 to vector<1x1x128xf32>
      %c0_64 = arith.constant 0 : index
      %c0_65 = arith.constant 0 : index
      %c0_66 = arith.constant 0 : index
      %92 = vector.load %arg16[%c0_64, %c0_65, %c0_66] : memref<1x1x128xf32, #tpu.memory_space<vmem>>, vector<1x1x128xf32>
      tpu.vector_store %arg16[%c0_64, %c0_65, %c0_66], %91 {strides = array<i32>} : memref<1x1x128xf32, #tpu.memory_space<vmem>>, vector<1x1x128xf32>,
    } else {
    }
    %c0_43 = arith.constant 0 : index
    %c0_44 = arith.constant 0 : index
    %c0_45 = arith.constant 0 : index
    %69 = vector.load %arg15[%c0_43, %c0_44, %c0_45] : memref<1x1x128xf32, #tpu.memory_space<vmem>>, vector<1x1x128xf32>
    %70 = vector.shape_cast %69 : vector<1x1x128xf32> to vector<1x128xf32>
    %cst_46 = arith.constant dense<0.000000e+00> : vector<128xf32>
    %71 = vector.multi_reduction <add>, %61, %cst_46 [0] : vector<256x128xf32> to vector<128xf32>
    %72 = vector.shape_cast %71 : vector<128xf32> to vector<1x128xf32>
    %73 = arith.addf %70, %72 : vector<1x128xf32>
    %c0_47 = arith.constant 0 : index
    %c0_48 = arith.constant 0 : index
    %c0_49 = arith.constant 0 : index
    %74 = vector.load %arg15[%c0_47, %c0_48, %c0_49] : memref<1x1x128xf32, #tpu.memory_space<vmem>>, vector<1x1x128xf32>
    %75 = vector.shape_cast %74 : vector<1x1x128xf32> to vector<1x128xf32>
    %76 = vector.shape_cast %73 : vector<1x128xf32> to vector<1x1x128xf32>
    tpu.vector_store %arg15[%c0_47, %c0_48, %c0_49], %76 {strides = array<i32>} : memref<1x1x128xf32, #tpu.memory_space<vmem>>, vector<1x1x128xf32>,
    %c0_50 = arith.constant 0 : index
    %c0_51 = arith.constant 0 : index
    %c0_52 = arith.constant 0 : index
    %77 = vector.load %arg16[%c0_50, %c0_51, %c0_52] : memref<1x1x128xf32, #tpu.memory_space<vmem>>, vector<1x1x128xf32>
    %78 = vector.shape_cast %77 : vector<1x1x128xf32> to vector<1x128xf32>
    %79 = arith.mulf %61, %61 : vector<256x128xf32>
    %cst_53 = arith.constant dense<0.000000e+00> : vector<128xf32>
    %80 = vector.multi_reduction <add>, %79, %cst_53 [0] : vector<256x128xf32> to vector<128xf32>
    %81 = vector.shape_cast %80 : vector<128xf32> to vector<1x128xf32>
    %82 = arith.addf %78, %81 : vector<1x128xf32>
    %c0_54 = arith.constant 0 : index
    %c0_55 = arith.constant 0 : index
    %c0_56 = arith.constant 0 : index
    %83 = vector.load %arg16[%c0_54, %c0_55, %c0_56] : memref<1x1x128xf32, #tpu.memory_space<vmem>>, vector<1x1x128xf32>
    %84 = vector.shape_cast %83 : vector<1x1x128xf32> to vector<1x128xf32>
    %85 = vector.shape_cast %82 : vector<1x128xf32> to vector<1x1x128xf32>
    tpu.vector_store %arg16[%c0_54, %c0_55, %c0_56], %85 {strides = array<i32>} : memref<1x1x128xf32, #tpu.memory_space<vmem>>, vector<1x1x128xf32>,
    %c0_i32_57 = arith.constant 0 : i32
    %86 = arith.cmpi eq, %arg1, %c0_i32_57 : i32
    %87 = arith.extui %86 : i1 to i32
    %c0_i32_58 = arith.constant 0 : i32
    %88 = arith.cmpi ne, %87, %c0_i32_58 : i32
    scf.if %88 {
      %c0_59 = arith.constant 0 : index
      %c0_60 = arith.constant 0 : index
      %c0_61 = arith.constant 0 : index
      %89 = vector.load %arg15[%c0_59, %c0_60, %c0_61] : memref<1x1x128xf32, #tpu.memory_space<vmem>>, vector<1x1x128xf32>
      %cst_62 = arith.constant 3.906250e-03 : f32
      %90 = vector.broadcast %cst_62 : f32 to vector<1x1x128xf32>
      %91 = arith.mulf %89, %90 : vector<1x1x128xf32>
      %c0_63 = arith.constant 0 : index
      %c0_64 = arith.constant 0 : index
      %c0_65 = arith.constant 0 : index
      %92 = vector.load %arg16[%c0_63, %c0_64, %c0_65] : memref<1x1x128xf32, #tpu.memory_space<vmem>>, vector<1x1x128xf32>
      %cst_66 = arith.constant 3.906250e-03 : f32
      %93 = vector.broadcast %cst_66 : f32 to vector<1x1x128xf32>
      %94 = arith.mulf %92, %93 : vector<1x1x128xf32>
      %95 = arith.mulf %91, %91 : vector<1x1x128xf32>
      %96 = arith.subf %94, %95 : vector<1x1x128xf32>
      %c0_67 = arith.constant 0 : index
      %c0_68 = arith.constant 0 : index
      %c0_69 = arith.constant 0 : index
      %97 = vector.load %arg15[%c0_67, %c0_68, %c0_69] : memref<1x1x128xf32, #tpu.memory_space<vmem>>, vector<1x1x128xf32>
      tpu.vector_store %arg15[%c0_67, %c0_68, %c0_69], %91 {strides = array<i32>} : memref<1x1x128xf32, #tpu.memory_space<vmem>>, vector<1x1x128xf32>,
      %cst_70 = arith.constant 0.000000e+00 : f32
      %98 = vector.broadcast %cst_70 : f32 to vector<1x1x128xf32>
      %99 = arith.maximumf %96, %98 : vector<1x1x128xf32>
      %cst_71 = arith.constant 9.99999974E-6 : f32
      %100 = vector.broadcast %cst_71 : f32 to vector<1x1x128xf32>
      %101 = arith.addf %99, %100 : vector<1x1x128xf32>
      %102 = math.rsqrt %101 : vector<1x1x128xf32>
      %c0_72 = arith.constant 0 : index
      %c0_73 = arith.constant 0 : index
      %c0_74 = arith.constant 0 : index
      %103 = vector.load %arg16[%c0_72, %c0_73, %c0_74] : memref<1x1x128xf32, #tpu.memory_space<vmem>>, vector<1x1x128xf32>
      tpu.vector_store %arg16[%c0_72, %c0_73, %c0_74], %102 {strides = array<i32>} : memref<1x1x128xf32, #tpu.memory_space<vmem>>, vector<1x1x128xf32>,
    } else {
    }
    return
  }
  func.func @transform_0(%arg0: i32, %arg1: i32) -> (i32, i32, i32) {
    %c0_i32 = arith.constant 0 : i32
    %c0_i32_0 = arith.constant 0 : i32
    return %arg0, %arg1, %c0_i32 : i32, i32, i32
  }
  func.func @transform_1(%arg0: i32, %arg1: i32) -> (i32, i32, i32) {
    %c0_i32 = arith.constant 0 : i32
    %c0_i32_0 = arith.constant 0 : i32
    %c0_i32_1 = arith.constant 0 : i32
    return %arg0, %c0_i32, %c0_i32_0 : i32, i32, i32
  }
  func.func @transform_2(%arg0: i32, %arg1: i32) -> (i32, i32, i32) {
    %c0_i32 = arith.constant 0 : i32
    %c0_i32_0 = arith.constant 0 : i32
    %c0_i32_1 = arith.constant 0 : i32
    return %arg0, %c0_i32, %c0_i32_0 : i32, i32, i32
  }
  func.func @transform_3(%arg0: i32, %arg1: i32) -> (i32, i32, i32) {
    %c0_i32 = arith.constant 0 : i32
    %c0_i32_0 = arith.constant 0 : i32
    return %arg0, %arg1, %c0_i32 : i32, i32, i32
  }
  func.func @transform_4(%arg0: i32, %arg1: i32) -> (i32, i32, i32) {
    %c0_i32 = arith.constant 0 : i32
    %c0_i32_0 = arith.constant 0 : i32
    return %arg0, %arg1, %c0_i32 : i32, i32, i32
  }
  func.func @transform_5(%arg0: i32, %arg1: i32) -> (i32, i32) {
    %c0_i32 = arith.constant 0 : i32
    %c0_i32_0 = arith.constant 0 : i32
    %c0_i32_1 = arith.constant 0 : i32
    return %c0_i32, %c0_i32_0 : i32, i32
  }
  func.func @transform_6(%arg0: i32, %arg1: i32) -> (i32, i32) {
    %c0_i32 = arith.constant 0 : i32
    %c0_i32_0 = arith.constant 0 : i32
    %c0_i32_1 = arith.constant 0 : i32
    return %c0_i32, %c0_i32_0 : i32, i32
  }
  func.func @transform_7(%arg0: i32, %arg1: i32) -> (i32, i32) {
    %c0_i32 = arith.constant 0 : i32
    %c0_i32_0 = arith.constant 0 : i32
    %c0_i32_1 = arith.constant 0 : i32
    return %c0_i32, %c0_i32_0 : i32, i32
  }
  func.func @transform_8(%arg0: i32, %arg1: i32) -> (i32, i32) {
    %c0_i32 = arith.constant 0 : i32
    %c0_i32_0 = arith.constant 0 : i32
    %c0_i32_1 = arith.constant 0 : i32
    return %c0_i32, %c0_i32_0 : i32, i32
  }
  func.func @transform_9(%arg0: i32, %arg1: i32) -> (i32, i32) {
    %c0_i32 = arith.constant 0 : i32
    %c0_i32_0 = arith.constant 0 : i32
    %c0_i32_1 = arith.constant 0 : i32
    return %c0_i32, %c0_i32_0 : i32, i32
  }
  func.func @transform_10(%arg0: i32, %arg1: i32) -> (i32, i32) {
    %c0_i32 = arith.constant 0 : i32
    %c0_i32_0 = arith.constant 0 : i32
    %c0_i32_1 = arith.constant 0 : i32
    return %c0_i32, %c0_i32_0 : i32, i32
  }
  func.func @transform_11(%arg0: i32, %arg1: i32) -> (i32, i32) {
    %c0_i32 = arith.constant 0 : i32
    %c0_i32_0 = arith.constant 0 : i32
    %c0_i32_1 = arith.constant 0 : i32
    return %c0_i32, %c0_i32_0 : i32, i32
  }
  func.func @transform_12(%arg0: i32, %arg1: i32) -> (i32, i32, i32) {
    %c0_i32 = arith.constant 0 : i32
    %c0_i32_0 = arith.constant 0 : i32
    return %arg0, %arg1, %c0_i32 : i32, i32, i32
  }
  func.func @transform_13(%arg0: i32, %arg1: i32) -> (i32, i32, i32) {
    %c0_i32 = arith.constant 0 : i32
    %c0_i32_0 = arith.constant 0 : i32
    %c0_i32_1 = arith.constant 0 : i32
    return %arg0, %c0_i32, %c0_i32_0 : i32, i32, i32
  }
  func.func @transform_14(%arg0: i32, %arg1: i32) -> (i32, i32, i32) {
    %c0_i32 = arith.constant 0 : i32
    %c0_i32_0 = arith.constant 0 : i32
    %c0_i32_1 = arith.constant 0 : i32
    return %arg0, %c0_i32, %c0_i32_0 : i32, i32, i32
  }
}

module attributes {stable_mosaic.version = 11 : i64} {
  func.func @_qproj_kernel(%arg0: i32, %arg1: i32, %arg2: memref<1x256x128xbf16, #tpu.memory_space<vmem>>, %arg3: memref<128x128xbf16, #tpu.memory_space<vmem>>, %arg4: memref<1x128xf32, #tpu.memory_space<vmem>>, %arg5: memref<128x128xbf16, #tpu.memory_space<vmem>>, %arg6: memref<1x128xf32, #tpu.memory_space<vmem>>, %arg7: memref<1x256x128xf32, #tpu.memory_space<vmem>>) attributes {dimension_semantics = [#tpu.dimension_semantics<parallel>, #tpu.dimension_semantics<parallel>], iteration_bounds = array<i64: 2, 1>, scalar_prefetch = 0 : i64, scratch_operands = 0 : i64, tpu.core_type = #tpu.core_type<tc>, window_params = [{transform_indices = @transform_0, window_bounds = array<i64: 1, 256, 128>}, {pipeline_mode = #tpu.pipeline_mode<synchronous>, transform_indices = @transform_1, window_bounds = array<i64: 128, 128>}, {pipeline_mode = #tpu.pipeline_mode<synchronous>, transform_indices = @transform_2, window_bounds = array<i64: 1, 128>}, {pipeline_mode = #tpu.pipeline_mode<synchronous>, transform_indices = @transform_3, window_bounds = array<i64: 128, 128>}, {pipeline_mode = #tpu.pipeline_mode<synchronous>, transform_indices = @transform_4, window_bounds = array<i64: 1, 128>}, {transform_indices = @transform_5, window_bounds = array<i64: 1, 256, 128>}]} {
    %c0 = arith.constant 0 : index
    %c0_0 = arith.constant 0 : index
    %c0_1 = arith.constant 0 : index
    %0 = vector.load %arg2[%c0, %c0_0, %c0_1] : memref<1x256x128xbf16, #tpu.memory_space<vmem>>, vector<1x256x128xbf16>
    %1 = vector.shape_cast %0 : vector<1x256x128xbf16> to vector<256x128xbf16>
    %c0_2 = arith.constant 0 : index
    %c0_3 = arith.constant 0 : index
    %2 = vector.load %arg3[%c0_2, %c0_3] : memref<128x128xbf16, #tpu.memory_space<vmem>>, vector<128x128xbf16>
    %cst = arith.constant dense<0.000000e+00> : vector<256x128xf32>
    %3 = tpu.matmul %1, %2, %cst {dimension_numbers = #tpu.dot_dimension_numbers<[1], [0], [0], [1], [0, 0, 1, 1], [], []>} : vector<256x128xbf16>, vector<128x128xbf16>, vector<256x128xf32> -> vector<256x128xf32>
    %c0_4 = arith.constant 0 : index
    %c0_5 = arith.constant 0 : index
    %4 = vector.load %arg4[%c0_4, %c0_5] : memref<1x128xf32, #tpu.memory_space<vmem>>, vector<1x128xf32>
    %5 = vector.broadcast %4 : vector<1x128xf32> to vector<256x128xf32>
    %6 = arith.addf %3, %5 : vector<256x128xf32>
    %cst_6 = arith.constant 5.000000e-01 : f32
    %7 = vector.broadcast %cst_6 : f32 to vector<256x128xf32>
    %8 = arith.mulf %7, %6 : vector<256x128xf32>
    %cst_7 = arith.constant 4.471500e-02 : f32
    %9 = vector.broadcast %cst_7 : f32 to vector<256x128xf32>
    %10 = arith.mulf %9, %6 : vector<256x128xf32>
    %11 = arith.mulf %10, %6 : vector<256x128xf32>
    %12 = arith.mulf %11, %6 : vector<256x128xf32>
    %13 = arith.addf %6, %12 : vector<256x128xf32>
    %cst_8 = arith.constant 0.797884583 : f32
    %14 = vector.broadcast %cst_8 : f32 to vector<256x128xf32>
    %15 = arith.mulf %14, %13 : vector<256x128xf32>
    %16 = math.tanh %15 : vector<256x128xf32>
    %cst_9 = arith.constant 1.000000e+00 : f32
    %17 = vector.broadcast %cst_9 : f32 to vector<256x128xf32>
    %18 = arith.addf %17, %16 : vector<256x128xf32>
    %19 = arith.mulf %8, %18 : vector<256x128xf32>
    %c0_10 = arith.constant 0 : index
    %c0_11 = arith.constant 0 : index
    %20 = vector.load %arg5[%c0_10, %c0_11] : memref<128x128xbf16, #tpu.memory_space<vmem>>, vector<128x128xbf16>
    %21 = arith.truncf %19 : vector<256x128xf32> to vector<256x128xbf16>
    %cst_12 = arith.constant dense<0.000000e+00> : vector<256x128xf32>
    %22 = tpu.matmul %21, %20, %cst_12 {dimension_numbers = #tpu.dot_dimension_numbers<[1], [0], [0], [1], [0, 0, 1, 1], [], []>} : vector<256x128xbf16>, vector<128x128xbf16>, vector<256x128xf32> -> vector<256x128xf32>
    %c0_13 = arith.constant 0 : index
    %c0_14 = arith.constant 0 : index
    %23 = vector.load %arg6[%c0_13, %c0_14] : memref<1x128xf32, #tpu.memory_space<vmem>>, vector<1x128xf32>
    %24 = vector.broadcast %23 : vector<1x128xf32> to vector<256x128xf32>
    %25 = arith.addf %22, %24 : vector<256x128xf32>
    %c0_15 = arith.constant 0 : index
    %c0_16 = arith.constant 0 : index
    %c0_17 = arith.constant 0 : index
    %26 = vector.load %arg7[%c0_15, %c0_16, %c0_17] : memref<1x256x128xf32, #tpu.memory_space<vmem>>, vector<1x256x128xf32>
    %27 = vector.shape_cast %26 : vector<1x256x128xf32> to vector<256x128xf32>
    %28 = vector.shape_cast %25 : vector<256x128xf32> to vector<1x256x128xf32>
    tpu.vector_store %arg7[%c0_15, %c0_16, %c0_17], %28 {strides = array<i32>} : memref<1x256x128xf32, #tpu.memory_space<vmem>>, vector<1x256x128xf32>,
    return
  }
  func.func @transform_0(%arg0: i32, %arg1: i32) -> (i32, i32, i32) {
    %c0_i32 = arith.constant 0 : i32
    %c0_i32_0 = arith.constant 0 : i32
    return %arg0, %arg1, %c0_i32 : i32, i32, i32
  }
  func.func @transform_1(%arg0: i32, %arg1: i32) -> (i32, i32) {
    %c0_i32 = arith.constant 0 : i32
    %c0_i32_0 = arith.constant 0 : i32
    %c0_i32_1 = arith.constant 0 : i32
    return %c0_i32, %c0_i32_0 : i32, i32
  }
  func.func @transform_2(%arg0: i32, %arg1: i32) -> (i32, i32) {
    %c0_i32 = arith.constant 0 : i32
    %c0_i32_0 = arith.constant 0 : i32
    %c0_i32_1 = arith.constant 0 : i32
    return %c0_i32, %c0_i32_0 : i32, i32
  }
  func.func @transform_3(%arg0: i32, %arg1: i32) -> (i32, i32) {
    %c0_i32 = arith.constant 0 : i32
    %c0_i32_0 = arith.constant 0 : i32
    %c0_i32_1 = arith.constant 0 : i32
    return %c0_i32, %c0_i32_0 : i32, i32
  }
  func.func @transform_4(%arg0: i32, %arg1: i32) -> (i32, i32) {
    %c0_i32 = arith.constant 0 : i32
    %c0_i32_0 = arith.constant 0 : i32
    %c0_i32_1 = arith.constant 0 : i32
    return %c0_i32, %c0_i32_0 : i32, i32
  }
  func.func @transform_5(%arg0: i32, %arg1: i32) -> (i32, i32, i32) {
    %c0_i32 = arith.constant 0 : i32
    %c0_i32_0 = arith.constant 0 : i32
    return %arg0, %arg1, %c0_i32 : i32, i32, i32
  }
}

module attributes {stable_mosaic.version = 11 : i64} {
  func.func @_tail_kernel(%arg0: i32, %arg1: i32, %arg2: memref<1x256x32xf32, #tpu.memory_space<vmem>>, %arg3: memref<1x1x32xf32, #tpu.memory_space<vmem>>, %arg4: memref<1x1x32xf32, #tpu.memory_space<vmem>>, %arg5: memref<1x256x128xbf16, #tpu.memory_space<vmem>>, %arg6: memref<1x256x4xf32, #tpu.memory_space<vmem>>, %arg7: memref<32x128xbf16, #tpu.memory_space<vmem>>, %arg8: memref<1x128xf32, #tpu.memory_space<vmem>>, %arg9: memref<128x128xbf16, #tpu.memory_space<vmem>>, %arg10: memref<1x128xf32, #tpu.memory_space<vmem>>, %arg11: memref<128x128xbf16, #tpu.memory_space<vmem>>, %arg12: memref<4x128xbf16, #tpu.memory_space<vmem>>, %arg13: memref<1x128xf32, #tpu.memory_space<vmem>>, %arg14: memref<1x256x128xbf16, #tpu.memory_space<vmem>>, %arg15: memref<1x1x128xf32, #tpu.memory_space<vmem>>, %arg16: memref<1x1x128xf32, #tpu.memory_space<vmem>>) attributes {dimension_semantics = [#tpu.dimension_semantics<parallel>, #tpu.dimension_semantics<arbitrary>], iteration_bounds = array<i64: 2, 1>, scalar_prefetch = 0 : i64, scratch_operands = 0 : i64, tpu.core_type = #tpu.core_type<tc>, window_params = [{transform_indices = @transform_0, window_bounds = array<i64: 1, 256, 32>}, {transform_indices = @transform_1, window_bounds = array<i64: 1, 1, 32>}, {transform_indices = @transform_2, window_bounds = array<i64: 1, 1, 32>}, {transform_indices = @transform_3, window_bounds = array<i64: 1, 256, 128>}, {transform_indices = @transform_4, window_bounds = array<i64: 1, 256, 4>}, {pipeline_mode = #tpu.pipeline_mode<synchronous>, transform_indices = @transform_5, window_bounds = array<i64: 32, 128>}, {pipeline_mode = #tpu.pipeline_mode<synchronous>, transform_indices = @transform_6, window_bounds = array<i64: 1, 128>}, {pipeline_mode = #tpu.pipeline_mode<synchronous>, transform_indices = @transform_7, window_bounds = array<i64: 128, 128>}, {pipeline_mode = #tpu.pipeline_mode<synchronous>, transform_indices = @transform_8, window_bounds = array<i64: 1, 128>}, {pipeline_mode = #tpu.pipeline_mode<synchronous>, transform_indices = @transform_9, window_bounds = array<i64: 128, 128>}, {pipeline_mode = #tpu.pipeline_mode<synchronous>, transform_indices = @transform_10, window_bounds = array<i64: 4, 128>}, {pipeline_mode = #tpu.pipeline_mode<synchronous>, transform_indices = @transform_11, window_bounds = array<i64: 1, 128>}, {transform_indices = @transform_12, window_bounds = array<i64: 1, 256, 128>}, {transform_indices = @transform_13, window_bounds = array<i64: 1, 1, 128>}, {transform_indices = @transform_14, window_bounds = array<i64: 1, 1, 128>}]} {
    %c0 = arith.constant 0 : index
    %c0_0 = arith.constant 0 : index
    %c0_1 = arith.constant 0 : index
    %0 = vector.load %arg2[%c0, %c0_0, %c0_1] : memref<1x256x32xf32, #tpu.memory_space<vmem>>, vector<1x256x32xf32>
    %1 = vector.shape_cast %0 : vector<1x256x32xf32> to vector<256x32xf32>
    %c0_2 = arith.constant 0 : index
    %c0_3 = arith.constant 0 : index
    %c0_4 = arith.constant 0 : index
    %2 = vector.load %arg3[%c0_2, %c0_3, %c0_4] : memref<1x1x32xf32, #tpu.memory_space<vmem>>, vector<1x1x32xf32>
    %3 = vector.shape_cast %2 : vector<1x1x32xf32> to vector<1x32xf32>
    %4 = vector.broadcast %3 : vector<1x32xf32> to vector<256x32xf32>
    %5 = arith.subf %1, %4 : vector<256x32xf32>
    %c0_5 = arith.constant 0 : index
    %c0_6 = arith.constant 0 : index
    %c0_7 = arith.constant 0 : index
    %6 = vector.load %arg4[%c0_5, %c0_6, %c0_7] : memref<1x1x32xf32, #tpu.memory_space<vmem>>, vector<1x1x32xf32>
    %7 = vector.shape_cast %6 : vector<1x1x32xf32> to vector<1x32xf32>
    %8 = vector.broadcast %7 : vector<1x32xf32> to vector<256x32xf32>
    %9 = arith.mulf %5, %8 : vector<256x32xf32>
    %c0_8 = arith.constant 0 : index
    %c0_9 = arith.constant 0 : index
    %10 = vector.load %arg7[%c0_8, %c0_9] : memref<32x128xbf16, #tpu.memory_space<vmem>>, vector<32x128xbf16>
    %11 = arith.truncf %9 : vector<256x32xf32> to vector<256x32xbf16>
    %cst = arith.constant dense<0.000000e+00> : vector<256x128xf32>
    %12 = tpu.matmul %11, %10, %cst {dimension_numbers = #tpu.dot_dimension_numbers<[1], [0], [0], [1], [0, 0, 1, 1], [], []>} : vector<256x32xbf16>, vector<32x128xbf16>, vector<256x128xf32> -> vector<256x128xf32>
    %c0_10 = arith.constant 0 : index
    %c0_11 = arith.constant 0 : index
    %13 = vector.load %arg8[%c0_10, %c0_11] : memref<1x128xf32, #tpu.memory_space<vmem>>, vector<1x128xf32>
    %14 = vector.broadcast %13 : vector<1x128xf32> to vector<256x128xf32>
    %15 = arith.addf %12, %14 : vector<256x128xf32>
    %cst_12 = arith.constant 5.000000e-01 : f32
    %16 = vector.broadcast %cst_12 : f32 to vector<256x128xf32>
    %17 = arith.mulf %16, %15 : vector<256x128xf32>
    %cst_13 = arith.constant 4.471500e-02 : f32
    %18 = vector.broadcast %cst_13 : f32 to vector<256x128xf32>
    %19 = arith.mulf %18, %15 : vector<256x128xf32>
    %20 = arith.mulf %19, %15 : vector<256x128xf32>
    %21 = arith.mulf %20, %15 : vector<256x128xf32>
    %22 = arith.addf %15, %21 : vector<256x128xf32>
    %cst_14 = arith.constant 0.797884583 : f32
    %23 = vector.broadcast %cst_14 : f32 to vector<256x128xf32>
    %24 = arith.mulf %23, %22 : vector<256x128xf32>
    %25 = math.tanh %24 : vector<256x128xf32>
    %cst_15 = arith.constant 1.000000e+00 : f32
    %26 = vector.broadcast %cst_15 : f32 to vector<256x128xf32>
    %27 = arith.addf %26, %25 : vector<256x128xf32>
    %28 = arith.mulf %17, %27 : vector<256x128xf32>
    %c0_16 = arith.constant 0 : index
    %c0_17 = arith.constant 0 : index
    %29 = vector.load %arg9[%c0_16, %c0_17] : memref<128x128xbf16, #tpu.memory_space<vmem>>, vector<128x128xbf16>
    %30 = arith.truncf %28 : vector<256x128xf32> to vector<256x128xbf16>
    %cst_18 = arith.constant dense<0.000000e+00> : vector<256x128xf32>
    %31 = tpu.matmul %30, %29, %cst_18 {dimension_numbers = #tpu.dot_dimension_numbers<[1], [0], [0], [1], [0, 0, 1, 1], [], []>} : vector<256x128xbf16>, vector<128x128xbf16>, vector<256x128xf32> -> vector<256x128xf32>
    %c0_19 = arith.constant 0 : index
    %c0_20 = arith.constant 0 : index
    %32 = vector.load %arg10[%c0_19, %c0_20] : memref<1x128xf32, #tpu.memory_space<vmem>>, vector<1x128xf32>
    %33 = vector.broadcast %32 : vector<1x128xf32> to vector<256x128xf32>
    %34 = arith.addf %31, %33 : vector<256x128xf32>
    %c0_21 = arith.constant 0 : index
    %c0_22 = arith.constant 0 : index
    %c0_23 = arith.constant 0 : index
    %35 = vector.load %arg5[%c0_21, %c0_22, %c0_23] : memref<1x256x128xbf16, #tpu.memory_space<vmem>>, vector<1x256x128xbf16>
    %36 = vector.shape_cast %35 : vector<1x256x128xbf16> to vector<256x128xbf16>
    %c0_24 = arith.constant 0 : index
    %c0_25 = arith.constant 0 : index
    %37 = vector.load %arg11[%c0_24, %c0_25] : memref<128x128xbf16, #tpu.memory_space<vmem>>, vector<128x128xbf16>
    %cst_26 = arith.constant dense<0.000000e+00> : vector<256x128xf32>
    %38 = tpu.matmul %36, %37, %cst_26 {dimension_numbers = #tpu.dot_dimension_numbers<[1], [0], [0], [1], [0, 0, 1, 1], [], []>} : vector<256x128xbf16>, vector<128x128xbf16>, vector<256x128xf32> -> vector<256x128xf32>
    %c0_27 = arith.constant 0 : index
    %c0_28 = arith.constant 0 : index
    %c0_29 = arith.constant 0 : index
    %39 = vector.load %arg6[%c0_27, %c0_28, %c0_29] : memref<1x256x4xf32, #tpu.memory_space<vmem>>, vector<1x256x4xf32>
    %40 = vector.shape_cast %39 : vector<1x256x4xf32> to vector<256x4xf32>
    %c0_30 = arith.constant 0 : index
    %c0_31 = arith.constant 0 : index
    %41 = vector.load %arg12[%c0_30, %c0_31] : memref<4x128xbf16, #tpu.memory_space<vmem>>, vector<4x128xbf16>
    %42 = arith.truncf %40 : vector<256x4xf32> to vector<256x4xbf16>
    %cst_32 = arith.constant dense<0.000000e+00> : vector<256x128xf32>
    %43 = tpu.matmul %42, %41, %cst_32 {dimension_numbers = #tpu.dot_dimension_numbers<[1], [0], [0], [1], [0, 0, 1, 1], [], []>} : vector<256x4xbf16>, vector<4x128xbf16>, vector<256x128xf32> -> vector<256x128xf32>
    %44 = arith.addf %38, %43 : vector<256x128xf32>
    %c0_33 = arith.constant 0 : index
    %c0_34 = arith.constant 0 : index
    %45 = vector.load %arg13[%c0_33, %c0_34] : memref<1x128xf32, #tpu.memory_space<vmem>>, vector<1x128xf32>
    %46 = vector.broadcast %45 : vector<1x128xf32> to vector<256x128xf32>
    %47 = arith.addf %44, %46 : vector<256x128xf32>
    %48 = arith.addf %34, %47 : vector<256x128xf32>
    %49 = arith.truncf %48 : vector<256x128xf32> to vector<256x128xbf16>
    %c0_35 = arith.constant 0 : index
    %c0_36 = arith.constant 0 : index
    %c0_37 = arith.constant 0 : index
    %50 = vector.load %arg14[%c0_35, %c0_36, %c0_37] : memref<1x256x128xbf16, #tpu.memory_space<vmem>>, vector<1x256x128xbf16>
    %51 = vector.shape_cast %50 : vector<1x256x128xbf16> to vector<256x128xbf16>
    %52 = vector.shape_cast %49 : vector<256x128xbf16> to vector<1x256x128xbf16>
    tpu.vector_store %arg14[%c0_35, %c0_36, %c0_37], %52 {strides = array<i32>} : memref<1x256x128xbf16, #tpu.memory_space<vmem>>, vector<1x256x128xbf16>,
    %c0_i32 = arith.constant 0 : i32
    %53 = arith.cmpi eq, %arg1, %c0_i32 : i32
    %54 = arith.extui %53 : i1 to i32
    %c0_i32_38 = arith.constant 0 : i32
    %55 = arith.cmpi ne, %54, %c0_i32_38 : i32
    scf.if %55 {
      %cst_55 = arith.constant 0.000000e+00 : f32
      %76 = vector.broadcast %cst_55 : f32 to vector<1x1x128xf32>
      %c0_56 = arith.constant 0 : index
      %c0_57 = arith.constant 0 : index
      %c0_58 = arith.constant 0 : index
      %77 = vector.load %arg15[%c0_56, %c0_57, %c0_58] : memref<1x1x128xf32, #tpu.memory_space<vmem>>, vector<1x1x128xf32>
      tpu.vector_store %arg15[%c0_56, %c0_57, %c0_58], %76 {strides = array<i32>} : memref<1x1x128xf32, #tpu.memory_space<vmem>>, vector<1x1x128xf32>,
      %cst_59 = arith.constant 0.000000e+00 : f32
      %78 = vector.broadcast %cst_59 : f32 to vector<1x1x128xf32>
      %c0_60 = arith.constant 0 : index
      %c0_61 = arith.constant 0 : index
      %c0_62 = arith.constant 0 : index
      %79 = vector.load %arg16[%c0_60, %c0_61, %c0_62] : memref<1x1x128xf32, #tpu.memory_space<vmem>>, vector<1x1x128xf32>
      tpu.vector_store %arg16[%c0_60, %c0_61, %c0_62], %78 {strides = array<i32>} : memref<1x1x128xf32, #tpu.memory_space<vmem>>, vector<1x1x128xf32>,
    } else {
    }
    %c0_39 = arith.constant 0 : index
    %c0_40 = arith.constant 0 : index
    %c0_41 = arith.constant 0 : index
    %56 = vector.load %arg15[%c0_39, %c0_40, %c0_41] : memref<1x1x128xf32, #tpu.memory_space<vmem>>, vector<1x1x128xf32>
    %57 = vector.shape_cast %56 : vector<1x1x128xf32> to vector<1x128xf32>
    %cst_42 = arith.constant dense<0.000000e+00> : vector<128xf32>
    %58 = vector.multi_reduction <add>, %48, %cst_42 [0] : vector<256x128xf32> to vector<128xf32>
    %59 = vector.shape_cast %58 : vector<128xf32> to vector<1x128xf32>
    %60 = arith.addf %57, %59 : vector<1x128xf32>
    %c0_43 = arith.constant 0 : index
    %c0_44 = arith.constant 0 : index
    %c0_45 = arith.constant 0 : index
    %61 = vector.load %arg15[%c0_43, %c0_44, %c0_45] : memref<1x1x128xf32, #tpu.memory_space<vmem>>, vector<1x1x128xf32>
    %62 = vector.shape_cast %61 : vector<1x1x128xf32> to vector<1x128xf32>
    %63 = vector.shape_cast %60 : vector<1x128xf32> to vector<1x1x128xf32>
    tpu.vector_store %arg15[%c0_43, %c0_44, %c0_45], %63 {strides = array<i32>} : memref<1x1x128xf32, #tpu.memory_space<vmem>>, vector<1x1x128xf32>,
    %c0_46 = arith.constant 0 : index
    %c0_47 = arith.constant 0 : index
    %c0_48 = arith.constant 0 : index
    %64 = vector.load %arg16[%c0_46, %c0_47, %c0_48] : memref<1x1x128xf32, #tpu.memory_space<vmem>>, vector<1x1x128xf32>
    %65 = vector.shape_cast %64 : vector<1x1x128xf32> to vector<1x128xf32>
    %66 = arith.mulf %48, %48 : vector<256x128xf32>
    %cst_49 = arith.constant dense<0.000000e+00> : vector<128xf32>
    %67 = vector.multi_reduction <add>, %66, %cst_49 [0] : vector<256x128xf32> to vector<128xf32>
    %68 = vector.shape_cast %67 : vector<128xf32> to vector<1x128xf32>
    %69 = arith.addf %65, %68 : vector<1x128xf32>
    %c0_50 = arith.constant 0 : index
    %c0_51 = arith.constant 0 : index
    %c0_52 = arith.constant 0 : index
    %70 = vector.load %arg16[%c0_50, %c0_51, %c0_52] : memref<1x1x128xf32, #tpu.memory_space<vmem>>, vector<1x1x128xf32>
    %71 = vector.shape_cast %70 : vector<1x1x128xf32> to vector<1x128xf32>
    %72 = vector.shape_cast %69 : vector<1x128xf32> to vector<1x1x128xf32>
    tpu.vector_store %arg16[%c0_50, %c0_51, %c0_52], %72 {strides = array<i32>} : memref<1x1x128xf32, #tpu.memory_space<vmem>>, vector<1x1x128xf32>,
    %c0_i32_53 = arith.constant 0 : i32
    %73 = arith.cmpi eq, %arg1, %c0_i32_53 : i32
    %74 = arith.extui %73 : i1 to i32
    %c0_i32_54 = arith.constant 0 : i32
    %75 = arith.cmpi ne, %74, %c0_i32_54 : i32
    scf.if %75 {
      %c0_55 = arith.constant 0 : index
      %c0_56 = arith.constant 0 : index
      %c0_57 = arith.constant 0 : index
      %76 = vector.load %arg15[%c0_55, %c0_56, %c0_57] : memref<1x1x128xf32, #tpu.memory_space<vmem>>, vector<1x1x128xf32>
      %cst_58 = arith.constant 3.906250e-03 : f32
      %77 = vector.broadcast %cst_58 : f32 to vector<1x1x128xf32>
      %78 = arith.mulf %76, %77 : vector<1x1x128xf32>
      %c0_59 = arith.constant 0 : index
      %c0_60 = arith.constant 0 : index
      %c0_61 = arith.constant 0 : index
      %79 = vector.load %arg16[%c0_59, %c0_60, %c0_61] : memref<1x1x128xf32, #tpu.memory_space<vmem>>, vector<1x1x128xf32>
      %cst_62 = arith.constant 3.906250e-03 : f32
      %80 = vector.broadcast %cst_62 : f32 to vector<1x1x128xf32>
      %81 = arith.mulf %79, %80 : vector<1x1x128xf32>
      %82 = arith.mulf %78, %78 : vector<1x1x128xf32>
      %83 = arith.subf %81, %82 : vector<1x1x128xf32>
      %c0_63 = arith.constant 0 : index
      %c0_64 = arith.constant 0 : index
      %c0_65 = arith.constant 0 : index
      %84 = vector.load %arg15[%c0_63, %c0_64, %c0_65] : memref<1x1x128xf32, #tpu.memory_space<vmem>>, vector<1x1x128xf32>
      tpu.vector_store %arg15[%c0_63, %c0_64, %c0_65], %78 {strides = array<i32>} : memref<1x1x128xf32, #tpu.memory_space<vmem>>, vector<1x1x128xf32>,
      %cst_66 = arith.constant 0.000000e+00 : f32
      %85 = vector.broadcast %cst_66 : f32 to vector<1x1x128xf32>
      %86 = arith.maximumf %83, %85 : vector<1x1x128xf32>
      %cst_67 = arith.constant 9.99999974E-6 : f32
      %87 = vector.broadcast %cst_67 : f32 to vector<1x1x128xf32>
      %88 = arith.addf %86, %87 : vector<1x1x128xf32>
      %89 = math.rsqrt %88 : vector<1x1x128xf32>
      %c0_68 = arith.constant 0 : index
      %c0_69 = arith.constant 0 : index
      %c0_70 = arith.constant 0 : index
      %90 = vector.load %arg16[%c0_68, %c0_69, %c0_70] : memref<1x1x128xf32, #tpu.memory_space<vmem>>, vector<1x1x128xf32>
      tpu.vector_store %arg16[%c0_68, %c0_69, %c0_70], %89 {strides = array<i32>} : memref<1x1x128xf32, #tpu.memory_space<vmem>>, vector<1x1x128xf32>,
    } else {
    }
    return
  }
  func.func @transform_0(%arg0: i32, %arg1: i32) -> (i32, i32, i32) {
    %c0_i32 = arith.constant 0 : i32
    %c0_i32_0 = arith.constant 0 : i32
    return %arg0, %arg1, %c0_i32 : i32, i32, i32
  }
  func.func @transform_1(%arg0: i32, %arg1: i32) -> (i32, i32, i32) {
    %c0_i32 = arith.constant 0 : i32
    %c0_i32_0 = arith.constant 0 : i32
    %c0_i32_1 = arith.constant 0 : i32
    return %arg0, %c0_i32, %c0_i32_0 : i32, i32, i32
  }
  func.func @transform_2(%arg0: i32, %arg1: i32) -> (i32, i32, i32) {
    %c0_i32 = arith.constant 0 : i32
    %c0_i32_0 = arith.constant 0 : i32
    %c0_i32_1 = arith.constant 0 : i32
    return %arg0, %c0_i32, %c0_i32_0 : i32, i32, i32
  }
  func.func @transform_3(%arg0: i32, %arg1: i32) -> (i32, i32, i32) {
    %c0_i32 = arith.constant 0 : i32
    %c0_i32_0 = arith.constant 0 : i32
    return %arg0, %arg1, %c0_i32 : i32, i32, i32
  }
  func.func @transform_4(%arg0: i32, %arg1: i32) -> (i32, i32, i32) {
    %c0_i32 = arith.constant 0 : i32
    %c0_i32_0 = arith.constant 0 : i32
    return %arg0, %arg1, %c0_i32 : i32, i32, i32
  }
  func.func @transform_5(%arg0: i32, %arg1: i32) -> (i32, i32) {
    %c0_i32 = arith.constant 0 : i32
    %c0_i32_0 = arith.constant 0 : i32
    %c0_i32_1 = arith.constant 0 : i32
    return %c0_i32, %c0_i32_0 : i32, i32
  }
  func.func @transform_6(%arg0: i32, %arg1: i32) -> (i32, i32) {
    %c0_i32 = arith.constant 0 : i32
    %c0_i32_0 = arith.constant 0 : i32
    %c0_i32_1 = arith.constant 0 : i32
    return %c0_i32, %c0_i32_0 : i32, i32
  }
  func.func @transform_7(%arg0: i32, %arg1: i32) -> (i32, i32) {
    %c0_i32 = arith.constant 0 : i32
    %c0_i32_0 = arith.constant 0 : i32
    %c0_i32_1 = arith.constant 0 : i32
    return %c0_i32, %c0_i32_0 : i32, i32
  }
  func.func @transform_8(%arg0: i32, %arg1: i32) -> (i32, i32) {
    %c0_i32 = arith.constant 0 : i32
    %c0_i32_0 = arith.constant 0 : i32
    %c0_i32_1 = arith.constant 0 : i32
    return %c0_i32, %c0_i32_0 : i32, i32
  }
  func.func @transform_9(%arg0: i32, %arg1: i32) -> (i32, i32) {
    %c0_i32 = arith.constant 0 : i32
    %c0_i32_0 = arith.constant 0 : i32
    %c0_i32_1 = arith.constant 0 : i32
    return %c0_i32, %c0_i32_0 : i32, i32
  }
  func.func @transform_10(%arg0: i32, %arg1: i32) -> (i32, i32) {
    %c0_i32 = arith.constant 0 : i32
    %c0_i32_0 = arith.constant 0 : i32
    %c0_i32_1 = arith.constant 0 : i32
    return %c0_i32, %c0_i32_0 : i32, i32
  }
  func.func @transform_11(%arg0: i32, %arg1: i32) -> (i32, i32) {
    %c0_i32 = arith.constant 0 : i32
    %c0_i32_0 = arith.constant 0 : i32
    %c0_i32_1 = arith.constant 0 : i32
    return %c0_i32, %c0_i32_0 : i32, i32
  }
  func.func @transform_12(%arg0: i32, %arg1: i32) -> (i32, i32, i32) {
    %c0_i32 = arith.constant 0 : i32
    %c0_i32_0 = arith.constant 0 : i32
    return %arg0, %arg1, %c0_i32 : i32, i32, i32
  }
  func.func @transform_13(%arg0: i32, %arg1: i32) -> (i32, i32, i32) {
    %c0_i32 = arith.constant 0 : i32
    %c0_i32_0 = arith.constant 0 : i32
    %c0_i32_1 = arith.constant 0 : i32
    return %arg0, %c0_i32, %c0_i32_0 : i32, i32, i32
  }
  func.func @transform_14(%arg0: i32, %arg1: i32) -> (i32, i32, i32) {
    %c0_i32 = arith.constant 0 : i32
    %c0_i32_0 = arith.constant 0 : i32
    %c0_i32_1 = arith.constant 0 : i32
    return %arg0, %c0_i32, %c0_i32_0 : i32, i32, i32
  }
}

</mosaic_0001>

<llo_original>
// kernel: _lambda_.10
$region0: #{_lambda_.10}
  #allocation0 [shape = 'u32[]', space=smem, size = 0x4, offset = 0x4, fixed_abs, tag = 'smem constant byte address 0x4 - core index']
  #allocation1 [shape = 'u32[72,128]{1,0:T(1,128)}', space=vmem, size = 0x9000, scoped, tag = 'internal scratch']
  %s0 = inlined_call_operand.vmem [shape: f32[2,256,5], index: 0, kind: input, shape index: {}]
  %s1 = inlined_call_operand.vmem [shape: bf16[5,128], index: 1, kind: input, shape index: {}]
  %s2 = inlined_call_operand.vmem [shape: f32[256,128], index: 2, kind: input, shape index: {}]
  %s3 = inlined_call_operand.vmem [shape: f32[2,1,128], index: 3, kind: input, shape index: {}]
  %s4 = inlined_call_operand.vmem [shape: bf16[2,256,128], index: 4, kind: output, shape index: {0}]
  %s5 = inlined_call_operand.vmem [shape: f32[2,1,128], index: 5, kind: output, shape index: {1}]
  %s6 = inlined_call_operand.vmem [shape: f32[2,1,128], index: 6, kind: output, shape index: {2}]
  %7 = xla_tuple %s4, %s5, %s6
  %s8 = sld [smem:[#allocation0]]
  $region73: #{_lambda_.10} parent=0
    _
  %s10 = ssub.s32 1, %s8
  %s11 = scalar_select 0, %s10, %s8
  loop: start=0, step=1, limit=4
  $region2: #{_lambda_.10} parent=0 // loop_pre_header
    _
  $region3: #{_lambda_.10} parent=0 // loop_header
    %s13 = sphi 0, %s17
    %p14 = scmp.ge.s32.totalorder %s13, 4
    %s20 = sphi 0, %s32
    %s21 = sphi 0, %s28
    %s22 = sphi 0, %s20
    %s23 = sphi 0, %s21
    %s24 = sphi 0, %s22
    %s25 = sphi 0, %s23
    %s37 = sphi 0, %s39
    %s40 = sphi 0, %s37
    %s41 = sphi 0, %s40
    %s57 = sphi 0, %s41
    %s61 = sphi 0, %s61
    %s63 = sphi 0, %s61
    %s64 = sphi 0, %s63
    %s78 = sphi 0, %s64
    %s84 = sphi 0, %s86
    %s87 = sphi 0, %s84
    %s88 = sphi 0, %s87
    %s104 = sphi 0, %s88
    %s110 = sphi 0, %s112
    %s113 = sphi 0, %s110
    %s114 = sphi 0, %s113
    %s130 = sphi 0, %s114
    %s138 = sphi 0, %s140
    %s141 = sphi 0, %s138
    %s142 = sphi 0, %s141
    %s158 = sphi 0, %s142
    %s164 = sphi 0, %s166
    %s167 = sphi 0, %s164
    %s168 = sphi 0, %s167
    %s184 = sphi 0, %s168
    %s190 = sphi 0, %s192
    %s193 = sphi 0, %s190
    %s194 = sphi 0, %s193
    %s210 = sphi 0, %s194
  $region4: #{_lambda_.10} parent=0 // loop_header_branch
    %16 = sbr.rel (%p14) target = $region8
  $region5: #{_lambda_.10} parent=0 // loop_body
    %s18 = ssub.s32 %s13, 1
    %s19 = ssub.s32 %s13, 2
    %s26 = sadd.s32 1, %s21
    %p27 = scmp.ge.s32.totalorder %s26, 1
    %s28 = scalar_select %p27, 0, %s26
    %s29 = sadd.s32 1, %s20
    %s30 = scalar_select %p27, %s29, %s20
    %p31 = scmp.ge.s32.totalorder %s30, 2
    %s32 = scalar_select %p31, 0, %s30
    %s33 = ssub.s32 %s20, %s32
    %s34 = ssub.s32 %s21, %s28
    %s35 = sor.u32 %s33, %s34
    %p36 = scmp.eq.s32.totalorder %s35, 0
    %s38 = sadd.s32 %s37, 1
    %s39 = scalar_select %p36, %s37, %s38
    %p42 = pneg %p36
    %p43 = scmp.eq.s32.totalorder %s13, 1
    %p44 = por %p42, %p43
    %p45 = scmp.ne.s32.totalorder %s37, %s40
    %p46 = scmp.eq.s32.totalorder %s13, 0
    %p47 = por %p45, %p46
    %p48 = scmp.ne.s32.totalorder %s37, %s40
    %p49 = scmp.eq.s32.totalorder %s18, 1
    %p50 = por %p48, %p49
    %p51 = scmp.ne.s32.totalorder %s40, %s41
    %p52 = scmp.eq.s32.totalorder %s18, 0
    %p53 = por %p51, %p52
    %p54 = scmp.ne.s32.totalorder %s40, %s41
    %p55 = scmp.eq.s32.totalorder %s19, 1
    %p56 = por %p54, %p55
    %p58 = scmp.ne.s32.totalorder %s41, %s57
    %p59 = scmp.eq.s32.totalorder %s19, 0
    %p60 = por %p58, %p59
    %s62 = sadd.s32 %s61, 1
    %p65 = scmp.eq.s32.totalorder %s13, 1
    %p66 = scmp.ne.s32.totalorder %s61, %s63
    %p67 = scmp.eq.s32.totalorder %s13, 0
    %p68 = por %p66, %p67
    %p69 = scmp.ne.s32.totalorder %s61, %s63
    %p70 = scmp.eq.s32.totalorder %s18, 1
    %p71 = por %p69, %p70
    %p72 = scmp.ne.s32.totalorder %s63, %s64
    %p73 = scmp.eq.s32.totalorder %s18, 0
    %p74 = por %p72, %p73
    %p75 = scmp.ne.s32.totalorder %s63, %s64
    %p76 = scmp.eq.s32.totalorder %s19, 1
    %p77 = por %p75, %p76
    %p79 = scmp.ne.s32.totalorder %s64, %s78
    %p80 = scmp.eq.s32.totalorder %s19, 0
    %p81 = por %p79, %p80
    %s82 = ssub.s32 %s21, %s28
    %p83 = scmp.eq.s32.totalorder %s82, 0
    %s85 = sadd.s32 %s84, 1
    %s86 = scalar_select %p83, %s84, %s85
    %p89 = pneg %p83
    %p90 = scmp.eq.s32.totalorder %s13, 1
    %p91 = por %p89, %p90
    %p92 = scmp.ne.s32.totalorder %s84, %s87
    %p93 = scmp.eq.s32.totalorder %s13, 0
    %p94 = por %p92, %p93
    %p95 = scmp.ne.s32.totalorder %s84, %s87
    %p96 = scmp.eq.s32.totalorder %s18, 1
    %p97 = por %p95, %p96
    %p98 = scmp.ne.s32.totalorder %s87, %s88
    %p99 = scmp.eq.s32.totalorder %s18, 0
    %p100 = por %p98, %p99
    %p101 = scmp.ne.s32.totalorder %s87, %s88
    %p102 = scmp.eq.s32.totalorder %s19, 1
    %p103 = por %p101, %p102
    %p105 = scmp.ne.s32.totalorder %s88, %s104
    %p106 = scmp.eq.s32.totalorder %s19, 0
    %p107 = por %p105, %p106
    %s108 = ssub.s32 %s20, %s32
    %p109 = scmp.eq.s32.totalorder %s108, 0
    %s111 = sadd.s32 %s110, 1
    %s112 = scalar_select %p109, %s110, %s111
    %p115 = pneg %p109
    %p116 = scmp.eq.s32.totalorder %s13, 1
    %p117 = por %p115, %p116
    %p118 = scmp.ne.s32.totalorder %s110, %s113
    %p119 = scmp.eq.s32.totalorder %s13, 0
    %p120 = por %p118, %p119
    %p121 = scmp.ne.s32.totalorder %s110, %s113
    %p122 = scmp.eq.s32.totalorder %s18, 1
    %p123 = por %p121, %p122
    %p124 = scmp.ne.s32.totalorder %s113, %s114
    %p125 = scmp.eq.s32.totalorder %s18, 0
    %p126 = por %p124, %p125
    %p127 = scmp.ne.s32.totalorder %s113, %s114
    %p128 = scmp.eq.s32.totalorder %s19, 1
    %p129 = por %p127, %p128
    %p131 = scmp.ne.s32.totalorder %s114, %s130
    %p132 = scmp.eq.s32.totalorder %s19, 0
    %p133 = por %p131, %p132
    %s134 = ssub.s32 %s20, %s32
    %s135 = ssub.s32 %s21, %s28
    %s136 = sor.u32 %s134, %s135
    %p137 = scmp.eq.s32.totalorder %s136, 0
    %s139 = sadd.s32 %s138, 1
    %s140 = scalar_select %p137, %s138, %s139
    %p143 = pneg %p137
    %p144 = scmp.eq.s32.totalorder %s13, 1
    %p145 = por %p143, %p144
    %p146 = scmp.ne.s32.totalorder %s138, %s141
    %p147 = scmp.eq.s32.totalorder %s13, 0
    %p148 = por %p146, %p147
    %p149 = scmp.ne.s32.totalorder %s138, %s141
    %p150 = scmp.eq.s32.totalorder %s18, 1
    %p151 = por %p149, %p150
    %p152 = scmp.ne.s32.totalorder %s141, %s142
    %p153 = scmp.eq.s32.totalorder %s18, 0
    %p154 = por %p152, %p153
    %p155 = scmp.ne.s32.totalorder %s141, %s142
    %p156 = scmp.eq.s32.totalorder %s19, 1
    %p157 = por %p155, %p156
    %p159 = scmp.ne.s32.totalorder %s142, %s158
    %p160 = scmp.eq.s32.totalorder %s19, 0
    %p161 = por %p159, %p160
    %s162 = ssub.s32 %s20, %s32
    %p163 = scmp.eq.s32.totalorder %s162, 0
    %s165 = sadd.s32 %s164, 1
    %s166 = scalar_select %p163, %s164, %s165
    %p169 = pneg %p163
    %p170 = scmp.eq.s32.totalorder %s13, 1
    %p171 = por %p169, %p170
    %p172 = scmp.ne.s32.totalorder %s164, %s167
    %p173 = scmp.eq.s32.totalorder %s13, 0
    %p174 = por %p172, %p173
    %p175 = scmp.ne.s32.totalorder %s164, %s167
    %p176 = scmp.eq.s32.totalorder %s18, 1
    %p177 = por %p175, %p176
    %p178 = scmp.ne.s32.totalorder %s167, %s168
    %p179 = scmp.eq.s32.totalorder %s18, 0
    %p180 = por %p178, %p179
    %p181 = scmp.ne.s32.totalorder %s167, %s168
    %p182 = scmp.eq.s32.totalorder %s19, 1
    %p183 = por %p181, %p182
    %p185 = scmp.ne.s32.totalorder %s168, %s184
    %p186 = scmp.eq.s32.totalorder %s19, 0
    %p187 = por %p185, %p186
    %s188 = ssub.s32 %s20, %s32
    %p189 = scmp.eq.s32.totalorder %s188, 0
    %s191 = sadd.s32 %s190, 1
    %s192 = scalar_select %p189, %s190, %s191
    %p195 = pneg %p189
    %p196 = scmp.eq.s32.totalorder %s13, 1
    %p197 = por %p195, %p196
    %p198 = scmp.ne.s32.totalorder %s190, %s193
    %p199 = scmp.eq.s32.totalorder %s13, 0
    %p200 = por %p198, %p199
    %p201 = scmp.ne.s32.totalorder %s190, %s193
    %p202 = scmp.eq.s32.totalorder %s18, 1
    %p203 = por %p201, %p202
    %p204 = scmp.ne.s32.totalorder %s193, %s194
    %p205 = scmp.eq.s32.totalorder %s18, 0
    %p206 = por %p204, %p205
    %p207 = scmp.ne.s32.totalorder %s193, %s194
    %p208 = scmp.eq.s32.totalorder %s19, 1
    %p209 = por %p207, %p208
    %p211 = scmp.ne.s32.totalorder %s194, %s210
    %p212 = scmp.eq.s32.totalorder %s19, 0
    %p213 = por %p211, %p212
    %p214 = scmp.le.s32.totalorder 1, %s13
    %p215 = scmp.lt.s32.totalorder %s13, 3
    %p216 = pnand %p214, %p215
    %p217 = pneg %p216
    // Predicated region
    $region9: #{_lambda_.10} parent=5 // pred_check
      _
    $region10: #{_lambda_.10} parent=5 // pred_check_branch
      %219 = sbr.rel (%p216) target = $region12
    $region11: #{_lambda_.10} parent=5 // pred_region
      %s220 = ssub.s32 %s13, 1
      // Predicated region
      $region13: #{_lambda_.10} parent=11 // pred_check
        %p221 = pneg %p74
      $region14: #{_lambda_.10} parent=11 // pred_check_branch
        %223 = sbr.rel (%p221) target = $region16
      $region15: #{_lambda_.10} parent=11 // pred_region
        _
      $region16: #{_lambda_.10} parent=11 // pred_fallthru
        _
      // Predicated region
      $region17: #{_lambda_.10} parent=11 // pred_check
        %p224 = pneg %p100
      $region18: #{_lambda_.10} parent=11 // pred_check_branch
        %226 = sbr.rel (%p224) target = $region20
      $region19: #{_lambda_.10} parent=11 // pred_region
        %s227 = smul.u32 32, %s23
        %p228 = scmp.lt.s32.totalorder %s227, 31
        %s229 = scalar_select %p228, %s227, 31
        %s230 = smul.addr %s229, 8
        %s231 = scalar_lea.vmem %s2, %s230
        %s232 = smul.u32 32, %s23
      $region20: #{_lambda_.10} parent=11 // pred_fallthru
        _
    $region12: #{_lambda_.10} parent=5 // pred_fallthru
      _
    %p233 = scmp.lt.s32.totalorder %s13, 2
    // Predicated region
    $region21: #{_lambda_.10} parent=5 // pred_check
      %p234 = pneg %p233
    $region22: #{_lambda_.10} parent=5 // pred_check_branch
      %236 = sbr.rel (%p234) target = $region24
    $region23: #{_lambda_.10} parent=5 // pred_region
      // Predicated region
      $region25: #{_lambda_.10} parent=23 // pred_check
        %p237 = pneg %p47
      $region26: #{_lambda_.10} parent=23 // pred_check_branch
        %239 = sbr.rel (%p237) target = $region28
      $region27: #{_lambda_.10} parent=23 // pred_region
        %s240 = smul.u32 32, %s21
        %p241 = scmp.lt.s32.totalorder %s20, 1
        %s242 = scalar_select %p241, %s20, 1
        %p243 = scmp.lt.s32.totalorder %s240, 31
        %s244 = scalar_select %p243, %s240, 31
        %s245 = smul.addr %s242, 32
        %s246 = sadd.s32 %s244, %s245
        %s247 = smul.addr %s246, 8
        %s248 = scalar_lea.vmem %s0, %s247
        %s249 = smul.u32 32, %s21
      $region28: #{_lambda_.10} parent=23 // pred_fallthru
        _
      // Predicated region
      $region29: #{_lambda_.10} parent=23 // pred_check
        %p250 = pneg %p120
      $region30: #{_lambda_.10} parent=23 // pred_check_branch
        %252 = sbr.rel (%p250) target = $region32
      $region31: #{_lambda_.10} parent=23 // pred_region
        %p253 = scmp.lt.s32.totalorder %s20, 1
        %s254 = scalar_select %p253, %s20, 1
        %s255 = scalar_lea.vmem %s3, %s254
      $region32: #{_lambda_.10} parent=23 // pred_fallthru
        _
    $region24: #{_lambda_.10} parent=5 // pred_fallthru
      _
    %p256 = scmp.le.s32.totalorder 1, %s13
    %p257 = scmp.lt.s32.totalorder %s13, 3
    %p258 = pnand %p256, %p257
    %p259 = pneg %p258
    // Predicated region
    $region33: #{_lambda_.10} parent=5 // pred_check
      _
    $region34: #{_lambda_.10} parent=5 // pred_check_branch
      %261 = sbr.rel (%p258) target = $region36
    $region35: #{_lambda_.10} parent=5 // pred_region
      %s262 = ssub.s32 %s13, 1
      %s263 = smul.u32 32, %s23
      %p264 = scmp.lt.s32.totalorder %s22, 1
      %s265 = scalar_select %p264, %s22, 1
      %p266 = scmp.lt.s32.totalorder %s263, 31
      %s267 = scalar_select %p266, %s263, 31
      %s268 = smul.addr %s265, 32
      %s269 = sadd.s32 %s267, %s268
      %s270 = smul.addr %s269, 8
      %s271 = scalar_lea.vmem %s0, %s270
      %p272 = pneg %p53
      %p273 = pneg %p50
      %p274 = pneg %p74
      %p275 = pneg %p71
      %s276 = smul.u32 32, %s23
      %p277 = scmp.lt.s32.totalorder %s276, 31
      %s278 = scalar_select %p277, %s276, 31
      %s279 = smul.addr %s278, 8
      %s280 = scalar_lea.vmem %s2, %s279
      %p281 = pneg %p100
      %p282 = pneg %p97
      %p283 = scmp.lt.s32.totalorder %s22, 1
      %s284 = scalar_select %p283, %s22, 1
      %s285 = scalar_lea.vmem %s3, %s284
      %p286 = pneg %p126
      %p287 = pneg %p123
      %p288 = pneg %p154
      %p289 = pneg %p151
      %s290 = smul.u32 32, %s23
      %p291 = scmp.lt.s32.totalorder %s22, 1
      %s292 = scalar_select %p291, %s22, 1
      %p293 = scmp.lt.s32.totalorder %s290, 31
      %s294 = scalar_select %p293, %s290, 31
      %s295 = smul.addr %s292, 32
      %s296 = sadd.s32 %s294, %s295
      %s297 = smul.addr %s296, 4
      %s298 = scalar_lea.vmem %s4, %s297
      %p299 = pneg %p180
      %p300 = pneg %p177
      %p301 = scmp.lt.s32.totalorder %s22, 1
      %s302 = scalar_select %p301, %s22, 1
      %s303 = scalar_lea.vmem %s5, %s302
      %p304 = pneg %p206
      %p305 = pneg %p203
      %p306 = scmp.lt.s32.totalorder %s22, 1
      %s307 = scalar_select %p306, %s22, 1
      %s308 = scalar_lea.vmem %s6, %s307
      %s309 = smul.u32 32, %s23
      %p310 = scmp.lt.s32.totalorder %s22, 1
      %s311 = scalar_select %p310, %s22, 1
      %p312 = scmp.lt.s32.totalorder %s309, 31
      %s313 = scalar_select %p312, %s309, 31
      %s314 = smul.addr %s311, 32
      %s315 = sadd.s32 %s313, %s314
      %s316 = smul.addr %s315, 8
      %s317 = scalar_lea.vmem %s0, %s316
      %s318 = smul.u32 32, %s23
      %s319 = smul.u32 32, %s23
      %p320 = scmp.lt.s32.totalorder %s319, 31
      %s321 = scalar_select %p320, %s319, 31
      %s322 = smul.addr %s321, 8
      %s323 = scalar_lea.vmem %s2, %s322
      %s324 = smul.u32 32, %s23
      %p325 = scmp.lt.s32.totalorder %s22, 1
      %s326 = scalar_select %p325, %s22, 1
      %s327 = scalar_lea.vmem %s3, %s326
      %s328 = smul.u32 32, %s23
      %p329 = scmp.lt.s32.totalorder %s22, 1
      %s330 = scalar_select %p329, %s22, 1
      %p331 = scmp.lt.s32.totalorder %s328, 31
      %s332 = scalar_select %p331, %s328, 31
      %s333 = smul.addr %s330, 32
      %s334 = sadd.s32 %s332, %s333
      %s335 = smul.addr %s334, 4
      %s336 = scalar_lea.vmem %s4, %s335
      %s337 = smul.u32 32, %s23
      %p338 = scmp.lt.s32.totalorder %s22, 1
      %s339 = scalar_select %p338, %s22, 1
      %s340 = scalar_lea.vmem %s5, %s339
      %p341 = scmp.lt.s32.totalorder %s22, 1
      %s342 = scalar_select %p341, %s22, 1
      %s343 = scalar_lea.vmem %s6, %s342
      %v345 = vld [vmem:[%s317] sm:$0xff]
      %v346 = vld [vmem:[%s317 + $0x8] sm:$0xff]
      %v347 = vld [vmem:[%s317 + $0x10] sm:$0xff]
      %v348 = vld [vmem:[%s317 + $0x18] sm:$0xff]
      %v349 = vld [vmem:[%s317 + $0x20] sm:$0xff]
      %v350 = vld [vmem:[%s317 + $0x28] sm:$0xff]
      %v351 = vld [vmem:[%s317 + $0x30] sm:$0xff]
      %v352 = vld [vmem:[%s317 + $0x38] sm:$0xff]
      %v353 = vld [vmem:[%s317 + $0x40] sm:$0xff]
      %v354 = vld [vmem:[%s317 + $0x48] sm:$0xff]
      %v355 = vld [vmem:[%s317 + $0x50] sm:$0xff]
      %v356 = vld [vmem:[%s317 + $0x58] sm:$0xff]
      %v357 = vld [vmem:[%s317 + $0x60] sm:$0xff]
      %v358 = vld [vmem:[%s317 + $0x68] sm:$0xff]
      %v359 = vld [vmem:[%s317 + $0x70] sm:$0xff]
      %v360 = vld [vmem:[%s317 + $0x78] sm:$0xff]
      %v361 = vld [vmem:[%s317 + $0x80] sm:$0xff]
      %v362 = vld [vmem:[%s317 + $0x88] sm:$0xff]
      %v363 = vld [vmem:[%s317 + $0x90] sm:$0xff]
      %v364 = vld [vmem:[%s317 + $0x98] sm:$0xff]
      %v365 = vld [vmem:[%s317 + $0xa0] sm:$0xff]
      %v366 = vld [vmem:[%s317 + $0xa8] sm:$0xff]
      %v367 = vld [vmem:[%s317 + $0xb0] sm:$0xff]
      %v368 = vld [vmem:[%s317 + $0xb8] sm:$0xff]
      %v369 = vld [vmem:[%s317 + $0xc0] sm:$0xff]
      %v370 = vld [vmem:[%s317 + $0xc8] sm:$0xff]
      %v371 = vld [vmem:[%s317 + $0xd0] sm:$0xff]
      %v372 = vld [vmem:[%s317 + $0xd8] sm:$0xff]
      %v373 = vld [vmem:[%s317 + $0xe0] sm:$0xff]
      %v374 = vld [vmem:[%s317 + $0xe8] sm:$0xff]
      %v375 = vld [vmem:[%s317 + $0xf0] sm:$0xff]
      %v376 = vld [vmem:[%s317 + $0xf8] sm:$0xff]
      %v377 = vld [vmem:[%s1] sm:$0x7]
      %v378 = vpack.c.bf16 %v346, %v345
      %v379 = vpack.c.bf16 %v348, %v347
      %v380 = vpack.c.bf16 %v350, %v349
      %v381 = vpack.c.bf16 %v352, %v351
      %v382 = vpack.c.bf16 %v354, %v353
      %v383 = vpack.c.bf16 %v356, %v355
      %v384 = vpack.c.bf16 %v358, %v357
      %v385 = vpack.c.bf16 %v360, %v359
      %v386 = vpack.c.bf16 %v362, %v361
      %v387 = vpack.c.bf16 %v364, %v363
      %v388 = vpack.c.bf16 %v366, %v365
      %v389 = vpack.c.bf16 %v368, %v367
      %v390 = vpack.c.bf16 %v370, %v369
      %v391 = vpack.c.bf16 %v372, %v371
      %v392 = vpack.c.bf16 %v374, %v373
      %v393 = vpack.c.bf16 %v376, %v375
      %v394 = vld [vmem:[%s323] sm:$0xff]
      %v395 = vld [vmem:[%s323 + $0x8] sm:$0xff]
      %v396 = vld [vmem:[%s323 + $0x10] sm:$0xff]
      %v397 = vld [vmem:[%s323 + $0x18] sm:$0xff]
      %v398 = vld [vmem:[%s323 + $0x20] sm:$0xff]
      %v399 = vld [vmem:[%s323 + $0x28] sm:$0xff]
      %v400 = vld [vmem:[%s323 + $0x30] sm:$0xff]
      %v401 = vld [vmem:[%s323 + $0x38] sm:$0xff]
      %v402 = vld [vmem:[%s323 + $0x40] sm:$0xff]
      %v403 = vld [vmem:[%s323 + $0x48] sm:$0xff]
      %v404 = vld [vmem:[%s323 + $0x50] sm:$0xff]
      %v405 = vld [vmem:[%s323 + $0x58] sm:$0xff]
      %v406 = vld [vmem:[%s323 + $0x60] sm:$0xff]
      %v407 = vld [vmem:[%s323 + $0x68] sm:$0xff]
      %v408 = vld [vmem:[%s323 + $0x70] sm:$0xff]
      %v409 = vld [vmem:[%s323 + $0x78] sm:$0xff]
      %v410 = vld [vmem:[%s323 + $0x80] sm:$0xff]
      %v411 = vld [vmem:[%s323 + $0x88] sm:$0xff]
      %v412 = vld [vmem:[%s323 + $0x90] sm:$0xff]
      %v413 = vld [vmem:[%s323 + $0x98] sm:$0xff]
      %v414 = vld [vmem:[%s323 + $0xa0] sm:$0xff]
      %v415 = vld [vmem:[%s323 + $0xa8] sm:$0xff]
      %v416 = vld [vmem:[%s323 + $0xb0] sm:$0xff]
      %v417 = vld [vmem:[%s323 + $0xb8] sm:$0xff]
      %v418 = vld [vmem:[%s323 + $0xc0] sm:$0xff]
      %v419 = vld [vmem:[%s323 + $0xc8] sm:$0xff]
      %v420 = vld [vmem:[%s323 + $0xd0] sm:$0xff]
      %v421 = vld [vmem:[%s323 + $0xd8] sm:$0xff]
      %v422 = vld [vmem:[%s323 + $0xe0] sm:$0xff]
      %v423 = vld [vmem:[%s323 + $0xe8] sm:$0xff]
      %v424 = vld [vmem:[%s323 + $0xf0] sm:$0xff]
      %v425 = vld [vmem:[%s323 + $0xf8] sm:$0xff]
      %vm426 = vcmask 39936
      %v428 = vsel %vm426, %v378, 0
      %v431 = vsel %vm426, %v379, 0
      %v434 = vsel %vm426, %v380, 0
      %v437 = vsel %vm426, %v381, 0
      %v440 = vsel %vm426, %v382, 0
      %v443 = vsel %vm426, %v383, 0
      %v446 = vsel %vm426, %v384, 0
      %v449 = vsel %vm426, %v385, 0
      %v452 = vsel %vm426, %v386, 0
      %v455 = vsel %vm426, %v387, 0
      %v458 = vsel %vm426, %v388, 0
      %v461 = vsel %vm426, %v389, 0
      %v464 = vsel %vm426, %v390, 0
      %v467 = vsel %vm426, %v391, 0
      %v470 = vsel %vm426, %v392, 0
      %v473 = vsel %vm426, %v393, 0
      %vm475 = vcmask 1041408
      %vm476 = vcmask 1042432
      %v477 = vsel %vm475, 4294967295, 65535
      %v478 = vsel %vm476, %v477, 0
      %v480 = vand.u32 %v377, %v478
      %482 = vmatpush.bf16.msra.mxu0 0
      %483 = vmatpush.bf16.msra.mxu0 0
      %484 = vmatpush.bf16.msra.mxu0 0
      %485 = vmatpush.bf16.msra.mxu0 0
      %486 = vmatpush.bf16.msra.mxu0 0
      %487 = vmatpush.bf16.msra.mxu0 0
      %488 = vmatpush.bf16.msra.mxu0 0
      %489 = vmatpush.bf16.msra.mxu0 %v480
      %490 = vmatmul.bf16.gmra.mxu0 %v428
      %v491 = vpop.f32.mrf.mxu0
      %v492 = vadd.f32 %v394, %v491
      %v493 = vpop.f32.mrf.mxu0
      %v494 = vadd.f32 %v395, %v493
      %495 = vmatmul.bf16.gmra.mxu0 %v431
      %v496 = vpop.f32.mrf.mxu0
      %v497 = vadd.f32 %v396, %v496
      %v498 = vpop.f32.mrf.mxu0
      %v499 = vadd.f32 %v397, %v498
      %500 = vmatmul.bf16.gmra.mxu0 %v434
      %v501 = vpop.f32.mrf.mxu0
      %v502 = vadd.f32 %v398, %v501
      %v503 = vpop.f32.mrf.mxu0
      %v504 = vadd.f32 %v399, %v503
      %505 = vmatmul.bf16.gmra.mxu0 %v437
      %v506 = vpop.f32.mrf.mxu0
      %v507 = vadd.f32 %v400, %v506
      %v508 = vpop.f32.mrf.mxu0
      %v509 = vadd.f32 %v401, %v508
      %510 = vmatmul.bf16.gmra.mxu0 %v440
      %v511 = vpop.f32.mrf.mxu0
      %v512 = vadd.f32 %v402, %v511
      %v513 = vpop.f32.mrf.mxu0
      %v514 = vadd.f32 %v403, %v513
      %515 = vmatmul.bf16.gmra.mxu0 %v443
      %v516 = vpop.f32.mrf.mxu0
      %v517 = vadd.f32 %v404, %v516
      %v518 = vpop.f32.mrf.mxu0
      %v519 = vadd.f32 %v405, %v518
      %520 = vmatmul.bf16.gmra.mxu0 %v446
      %v521 = vpop.f32.mrf.mxu0
      %v522 = vadd.f32 %v406, %v521
      %v523 = vpop.f32.mrf.mxu0
      %v524 = vadd.f32 %v407, %v523
      %525 = vmatmul.bf16.gmra.mxu0 %v449
      %v526 = vpop.f32.mrf.mxu0
      %v527 = vadd.f32 %v408, %v526
      %v528 = vpop.f32.mrf.mxu0
      %v529 = vadd.f32 %v409, %v528
      %530 = vmatmul.bf16.gmra.mxu0 %v452
      %v531 = vpop.f32.mrf.mxu0
      %v532 = vadd.f32 %v410, %v531
      %v533 = vpop.f32.mrf.mxu0
      %v534 = vadd.f32 %v411, %v533
      %535 = vmatmul.bf16.gmra.mxu0 %v455
      %v536 = vpop.f32.mrf.mxu0
      %v537 = vadd.f32 %v412, %v536
      %v538 = vpop.f32.mrf.mxu0
      %v539 = vadd.f32 %v413, %v538
      %540 = vmatmul.bf16.gmra.mxu0 %v458
      %v541 = vpop.f32.mrf.mxu0
      %v542 = vadd.f32 %v414, %v541
      %v543 = vpop.f32.mrf.mxu0
      %v544 = vadd.f32 %v415, %v543
      %545 = vmatmul.bf16.gmra.mxu0 %v461
      %v546 = vpop.f32.mrf.mxu0
      %v547 = vadd.f32 %v416, %v546
      %v548 = vpop.f32.mrf.mxu0
      %v549 = vadd.f32 %v417, %v548
      %550 = vmatmul.bf16.gmra.mxu0 %v464
      %v551 = vpop.f32.mrf.mxu0
      %v552 = vadd.f32 %v418, %v551
      %v553 = vpop.f32.mrf.mxu0
      %v554 = vadd.f32 %v419, %v553
      %555 = vmatmul.bf16.gmra.mxu0 %v467
      %v556 = vpop.f32.mrf.mxu0
      %v557 = vadd.f32 %v420, %v556
      %v558 = vpop.f32.mrf.mxu0
      %v559 = vadd.f32 %v421, %v558
      %560 = vmatmul.bf16.gmra.mxu0 %v470
      %v561 = vpop.f32.mrf.mxu0
      %v562 = vadd.f32 %v422, %v561
      %v563 = vpop.f32.mrf.mxu0
      %v564 = vadd.f32 %v423, %v563
      %565 = vmatmul.bf16.gmra.mxu0 %v473
      %v566 = vpop.f32.mrf.mxu0
      %v567 = vadd.f32 %v424, %v566
      %v568 = vpop.f32.mrf.mxu0
      %v569 = vadd.f32 %v425, %v568
      %570 = vdwg.mxu0
      %v571 = vld [vmem:[%s327] sm:$0x1]
      %v573 = vperm.slane %v571, 0
      %v575 = vadd.f32 %v492, %v573
      %v576 = vadd.f32 %v494, %v573
      %v577 = vadd.f32 %v497, %v573
      %v578 = vadd.f32 %v499, %v573
      %v579 = vadd.f32 %v502, %v573
      %v580 = vadd.f32 %v504, %v573
      %v581 = vadd.f32 %v507, %v573
      %v582 = vadd.f32 %v509, %v573
      %v583 = vadd.f32 %v512, %v573
      %v584 = vadd.f32 %v514, %v573
      %v585 = vadd.f32 %v517, %v573
      %v586 = vadd.f32 %v519, %v573
      %v587 = vadd.f32 %v522, %v573
      %v588 = vadd.f32 %v524, %v573
      %v589 = vadd.f32 %v527, %v573
      %v590 = vadd.f32 %v529, %v573
      %v591 = vadd.f32 %v532, %v573
      %v592 = vadd.f32 %v534, %v573
      %v593 = vadd.f32 %v537, %v573
      %v594 = vadd.f32 %v539, %v573
      %v595 = vadd.f32 %v542, %v573
      %v596 = vadd.f32 %v544, %v573
      %v597 = vadd.f32 %v547, %v573
      %v598 = vadd.f32 %v549, %v573
      %v599 = vadd.f32 %v552, %v573
      %v600 = vadd.f32 %v554, %v573
      %v601 = vadd.f32 %v557, %v573
      %v602 = vadd.f32 %v559, %v573
      %v603 = vadd.f32 %v562, %v573
      %v604 = vadd.f32 %v564, %v573
      %v605 = vadd.f32 %v567, %v573
      %v606 = vadd.f32 %v569, %v573
      %v607 = vpack.c.bf16 %v575, %v575
      %v608 = vpack.c.bf16 %v576, %v576
      %v609 = vpack.c.bf16 %v577, %v577
      %v610 = vpack.c.bf16 %v578, %v578
      %v611 = vpack.c.bf16 %v579, %v579
      %v612 = vpack.c.bf16 %v580, %v580
      %v613 = vpack.c.bf16 %v581, %v581
      %v614 = vpack.c.bf16 %v582, %v582
      %v615 = vpack.c.bf16 %v583, %v583
      %v616 = vpack.c.bf16 %v584, %v584
      %v617 = vpack.c.bf16 %v585, %v585
      %v618 = vpack.c.bf16 %v586, %v586
      %v619 = vpack.c.bf16 %v587, %v587
      %v620 = vpack.c.bf16 %v588, %v588
      %v621 = vpack.c.bf16 %v589, %v589
      %v622 = vpack.c.bf16 %v590, %v590
      %v623 = vpack.c.bf16 %v591, %v591
      %v624 = vpack.c.bf16 %v592, %v592
      %v625 = vpack.c.bf16 %v593, %v593
      %v626 = vpack.c.bf16 %v594, %v594
      %v627 = vpack.c.bf16 %v595, %v595
      %v628 = vpack.c.bf16 %v596, %v596
      %v629 = vpack.c.bf16 %v597, %v597
      %v630 = vpack.c.bf16 %v598, %v598
      %v631 = vpack.c.bf16 %v599, %v599
      %v632 = vpack.c.bf16 %v600, %v600
      %v633 = vpack.c.bf16 %v601, %v601
      %v634 = vpack.c.bf16 %v602, %v602
      %v635 = vpack.c.bf16 %v603, %v603
      %v636 = vpack.c.bf16 %v604, %v604
      %v637 = vpack.c.bf16 %v605, %v605
      %v638 = vpack.c.bf16 %v606, %v606
      %639 = vst [vmem:[%s336] sm:$0xf] %v607
      %640 = vst [vmem:[%s336 + $0x4] sm:$0xf] %v608
      %641 = vst [vmem:[%s336 + $0x8] sm:$0xf] %v609
      %642 = vst [vmem:[%s336 + $0xc] sm:$0xf] %v610
      %643 = vst [vmem:[%s336 + $0x10] sm:$0xf] %v611
      %644 = vst [vmem:[%s336 + $0x14] sm:$0xf] %v612
      %645 = vst [vmem:[%s336 + $0x18] sm:$0xf] %v613
      %646 = vst [vmem:[%s336 + $0x1c] sm:$0xf] %v614
      %647 = vst [vmem:[%s336 + $0x20] sm:$0xf] %v615
      %648 = vst [vmem:[%s336 + $0x24] sm:$0xf] %v616
      %649 = vst [vmem:[%s336 + $0x28] sm:$0xf] %v617
      %650 = vst [vmem:[%s336 + $0x2c] sm:$0xf] %v618
      %651 = vst [vmem:[%s336 + $0x30] sm:$0xf] %v619
      %652 = vst [vmem:[%s336 + $0x34] sm:$0xf] %v620
      %653 = vst [vmem:[%s336 + $0x38] sm:$0xf] %v621
      %654 = vst [vmem:[%s336 + $0x3c] sm:$0xf] %v622
      %655 = vst [vmem:[%s336 + $0x40] sm:$0xf] %v623
      %656 = vst [vmem:[%s336 + $0x44] sm:$0xf] %v624
      %657 = vst [vmem:[%s336 + $0x48] sm:$0xf] %v625
      %658 = vst [vmem:[%s336 + $0x4c] sm:$0xf] %v626
      %659 = vst [vmem:[%s336 + $0x50] sm:$0xf] %v627
      %660 = vst [vmem:[%s336 + $0x54] sm:$0xf] %v628
      %661 = vst [vmem:[%s336 + $0x58] sm:$0xf] %v629
      %662 = vst [vmem:[%s336 + $0x5c] sm:$0xf] %v630
      %663 = vst [vmem:[%s336 + $0x60] sm:$0xf] %v631
      %664 = vst [vmem:[%s336 + $0x64] sm:$0xf] %v632
      %665 = vst [vmem:[%s336 + $0x68] sm:$0xf] %v633
      %666 = vst [vmem:[%s336 + $0x6c] sm:$0xf] %v634
      %667 = vst [vmem:[%s336 + $0x70] sm:$0xf] %v635
      %668 = vst [vmem:[%s336 + $0x74] sm:$0xf] %v636
      %669 = vst [vmem:[%s336 + $0x78] sm:$0xf] %v637
      %670 = vst [vmem:[%s336 + $0x7c] sm:$0xf] %v638
      %p671 = scmp.eq.s32.totalorder %s23, 0
      // Predicated region
      $region37: #{_lambda_.10} parent=35 // pred_check
        %p672 = pneg %p671
      $region38: #{_lambda_.10} parent=35 // pred_check_branch
        %674 = sbr.rel (%p672) target = $region40
      $region39: #{_lambda_.10} parent=35 // pred_region
        %675 = vst [vmem:[%s340] sm:$0x1] 0.0
        %676 = vst [vmem:[%s343] sm:$0x1] 0.0
      $region40: #{_lambda_.10} parent=35 // pred_fallthru
        _
      %v677 = vld [vmem:[%s340] sm:$0x1]
      %v678 = vadd.f32 %v575, %v576
      %v679 = vadd.f32 %v678, %v577
      %v680 = vadd.f32 %v679, %v578
      %v681 = vadd.f32 %v680, %v579
      %v682 = vadd.f32 %v681, %v580
      %v683 = vadd.f32 %v682, %v581
      %v684 = vadd.f32 %v683, %v582
      %v685 = vadd.f32 %v684, %v583
      %v686 = vadd.f32 %v685, %v584
      %v687 = vadd.f32 %v686, %v585
      %v688 = vadd.f32 %v687, %v586
      %v689 = vadd.f32 %v688, %v587
      %v690 = vadd.f32 %v689, %v588
      %v691 = vadd.f32 %v690, %v589
      %v692 = vadd.f32 %v691, %v590
      %v693 = vadd.f32 %v692, %v591
      %v694 = vadd.f32 %v693, %v592
      %v695 = vadd.f32 %v694, %v593
      %v696 = vadd.f32 %v695, %v594
      %v697 = vadd.f32 %v696, %v595
      %v698 = vadd.f32 %v697, %v596
      %v699 = vadd.f32 %v698, %v597
      %v700 = vadd.f32 %v699, %v598
      %v701 = vadd.f32 %v700, %v599
      %v702 = vadd.f32 %v701, %v600
      %v703 = vadd.f32 %v702, %v601
      %v704 = vadd.f32 %v703, %v602
      %v705 = vadd.f32 %v704, %v603
      %v706 = vadd.f32 %v705, %v604
      %v707 = vadd.f32 %v706, %v605
      %v708 = vadd.f32 %v707, %v606
      %v709 = vrot.slane %v708, 4
      %v710 = vadd.f32 %v708, %v709
      %v711 = vrot.slane %v710, 2
      %v712 = vadd.f32 %v710, %v711
      %v713 = vrot.slane %v712, 1
      %v714 = vadd.f32 %v712, %v713
      %v715 = vadd.f32 %v677, %v714
      %716 = vst [vmem:[%s340] sm:$0x1] %v715
      %v717 = vld [vmem:[%s343] sm:$0x1]
      %v718 = vmul.f32 %v575, %v575
      %v719 = vmul.f32 %v576, %v576
      %v720 = vmul.f32 %v577, %v577
      %v721 = vmul.f32 %v578, %v578
      %v722 = vmul.f32 %v579, %v579
      %v723 = vmul.f32 %v580, %v580
      %v724 = vmul.f32 %v581, %v581
      %v725 = vmul.f32 %v582, %v582
      %v726 = vmul.f32 %v583, %v583
      %v727 = vmul.f32 %v584, %v584
      %v728 = vmul.f32 %v585, %v585
      %v729 = vmul.f32 %v586, %v586
      %v730 = vmul.f32 %v587, %v587
      %v731 = vmul.f32 %v588, %v588
      %v732 = vmul.f32 %v589, %v589
      %v733 = vmul.f32 %v590, %v590
      %v734 = vmul.f32 %v591, %v591
      %v735 = vmul.f32 %v592, %v592
      %v736 = vmul.f32 %v593, %v593
      %v737 = vmul.f32 %v594, %v594
      %v738 = vmul.f32 %v595, %v595
      %v739 = vmul.f32 %v596, %v596
      %v740 = vmul.f32 %v597, %v597
      %v741 = vmul.f32 %v598, %v598
      %v742 = vmul.f32 %v599, %v599
      %v743 = vmul.f32 %v600, %v600
      %v744 = vmul.f32 %v601, %v601
      %v745 = vmul.f32 %v602, %v602
      %v746 = vmul.f32 %v603, %v603
      %v747 = vmul.f32 %v604, %v604
      %v748 = vmul.f32 %v605, %v605
      %v749 = vmul.f32 %v606, %v606
      %v750 = vadd.f32 %v718, %v719
      %v751 = vadd.f32 %v750, %v720
      %v752 = vadd.f32 %v751, %v721
      %v753 = vadd.f32 %v752, %v722
      %v754 = vadd.f32 %v753, %v723
      %v755 = vadd.f32 %v754, %v724
      %v756 = vadd.f32 %v755, %v725
      %v757 = vadd.f32 %v756, %v726
      %v758 = vadd.f32 %v757, %v727
      %v759 = vadd.f32 %v758, %v728
      %v760 = vadd.f32 %v759, %v729
      %v761 = vadd.f32 %v760, %v730
      %v762 = vadd.f32 %v761, %v731
      %v763 = vadd.f32 %v762, %v732
      %v764 = vadd.f32 %v763, %v733
      %v765 = vadd.f32 %v764, %v734
      %v766 = vadd.f32 %v765, %v735
      %v767 = vadd.f32 %v766, %v736
      %v768 = vadd.f32 %v767, %v737
      %v769 = vadd.f32 %v768, %v738
      %v770 = vadd.f32 %v769, %v739
      %v771 = vadd.f32 %v770, %v740
      %v772 = vadd.f32 %v771, %v741
      %v773 = vadd.f32 %v772, %v742
      %v774 = vadd.f32 %v773, %v743
      %v775 = vadd.f32 %v774, %v744
      %v776 = vadd.f32 %v775, %v745
      %v777 = vadd.f32 %v776, %v746
      %v778 = vadd.f32 %v777, %v747
      %v779 = vadd.f32 %v778, %v748
      %v780 = vadd.f32 %v779, %v749
      %v781 = vrot.slane %v780, 4
      %v782 = vadd.f32 %v780, %v781
      %v783 = vrot.slane %v782, 2
      %v784 = vadd.f32 %v782, %v783
      %v785 = vrot.slane %v784, 1
      %v786 = vadd.f32 %v784, %v785
      %v787 = vadd.f32 %v717, %v786
      %788 = vst [vmem:[%s343] sm:$0x1] %v787
      // Predicated region
      $region41: #{_lambda_.10} parent=35 // pred_check
        %p789 = pneg %p671
      $region42: #{_lambda_.10} parent=35 // pred_check_branch
        %791 = sbr.rel (%p789) target = $region44
      $region43: #{_lambda_.10} parent=35 // pred_region
        %v792 = vld [vmem:[%s340] sm:$0x1]
        %v793 = vmul.f32 %v792, 0.00390625
        %v794 = vld [vmem:[%s343] sm:$0x1]
        %v795 = vmul.f32 %v794, 0.00390625
        %v796 = vmul.f32 %v793, %v793
        %v797 = vsub.f32 %v795, %v796
        %798 = vst [vmem:[%s340] sm:$0x1] %v793
        %v799 = vmax.f32 %v797, 0.0
        %v800 = vadd.f32 %v799, 1e-05
        %v801 = vrsqrt.pop %v800
        %v802 = vmul.f32 %v801, %v800
        %v803 = vmul.f32 %v802, %v801
        %v804 = vmul.f32 0.5, %v803
        %v805 = vsub.f32 1.5, %v804
        %v806 = vmul.f32 %v801, %v805
        %vm807 = vweird.f32 %v800
        %vm808 = vweird.f32 %v801
        %vm809 = vmor %vm807, %vm808
        %v810 = vsel %vm809, %v801, %v806
        %811 = vst [vmem:[%s343] sm:$0x1] %v810
      $region44: #{_lambda_.10} parent=35 // pred_fallthru
        _
      %s812 = smul.u32 32, %s23
      %p813 = scmp.lt.s32.totalorder %s22, 1
      %s814 = scalar_select %p813, %s22, 1
      %p815 = scmp.lt.s32.totalorder %s812, 31
      %s816 = scalar_select %p815, %s812, 31
      %s817 = smul.addr %s814, 32
      %s818 = sadd.s32 %s816, %s817
      %s819 = smul.addr %s818, 4
      %s820 = scalar_lea.vmem %s4, %s819
      %p821 = scmp.lt.s32.totalorder %s22, 1
      %s822 = scalar_select %p821, %s22, 1
      %s823 = scalar_lea.vmem %s5, %s822
      %p824 = scmp.lt.s32.totalorder %s22, 1
      %s825 = scalar_select %p824, %s22, 1
      %s826 = scalar_lea.vmem %s6, %s825
      // Predicated region
      $region45: #{_lambda_.10} parent=35 // pred_check
        %p827 = pneg %p151
      $region46: #{_lambda_.10} parent=35 // pred_check_branch
        %829 = sbr.rel (%p827) target = $region48
      $region47: #{_lambda_.10} parent=35 // pred_region
        %s830 = smul.u32 32, %s23
      $region48: #{_lambda_.10} parent=35 // pred_fallthru
        _
      // Predicated region
      $region49: #{_lambda_.10} parent=35 // pred_check
        %p831 = pneg %p177
      $region50: #{_lambda_.10} parent=35 // pred_check_branch
        %833 = sbr.rel (%p831) target = $region52
      $region51: #{_lambda_.10} parent=35 // pred_region
        _
      $region52: #{_lambda_.10} parent=35 // pred_fallthru
        _
      // Predicated region
      $region53: #{_lambda_.10} parent=35 // pred_check
        %p834 = pneg %p203
      $region54: #{_lambda_.10} parent=35 // pred_check_branch
        %836 = sbr.rel (%p834) target = $region56
      $region55: #{_lambda_.10} parent=35 // pred_region
        _
      $region56: #{_lambda_.10} parent=35 // pred_fallthru
        _
    $region36: #{_lambda_.10} parent=5 // pred_fallthru
      _
    %p837 = scmp.le.s32.totalorder 2, %s13
    // Predicated region
    $region57: #{_lambda_.10} parent=5 // pred_check
      %p838 = pneg %p837
    $region58: #{_lambda_.10} parent=5 // pred_check_branch
      %840 = sbr.rel (%p838) target = $region60
    $region59: #{_lambda_.10} parent=5 // pred_region
      %s841 = ssub.s32 %s13, 2
      // Predicated region
      $region61: #{_lambda_.10} parent=59 // pred_check
        %p842 = pneg %p157
      $region62: #{_lambda_.10} parent=59 // pred_check_branch
        %844 = sbr.rel (%p842) target = $region64
      $region63: #{_lambda_.10} parent=59 // pred_region
        %s845 = smul.u32 32, %s25
        %p846 = scmp.lt.s32.totalorder %s24, 1
        %s847 = scalar_select %p846, %s24, 1
        %p848 = scmp.lt.s32.totalorder %s845, 31
        %s849 = scalar_select %p848, %s845, 31
        %s850 = smul.addr %s847, 32
        %s851 = sadd.s32 %s849, %s850
        %s852 = smul.addr %s851, 4
        %s853 = scalar_lea.vmem %s4, %s852
      $region64: #{_lambda_.10} parent=59 // pred_fallthru
        _
      // Predicated region
      $region65: #{_lambda_.10} parent=59 // pred_check
        %p854 = pneg %p183
      $region66: #{_lambda_.10} parent=59 // pred_check_branch
        %856 = sbr.rel (%p854) target = $region68
      $region67: #{_lambda_.10} parent=59 // pred_region
        %p857 = scmp.lt.s32.totalorder %s24, 1
        %s858 = scalar_select %p857, %s24, 1
        %s859 = scalar_lea.vmem %s5, %s858
      $region68: #{_lambda_.10} parent=59 // pred_fallthru
        _
      // Predicated region
      $region69: #{_lambda_.10} parent=59 // pred_check
        %p860 = pneg %p209
      $region70: #{_lambda_.10} parent=59 // pred_check_branch
        %862 = sbr.rel (%p860) target = $region72
      $region71: #{_lambda_.10} parent=59 // pred_region
        %p863 = scmp.lt.s32.totalorder %s24, 1
        %s864 = scalar_select %p863, %s24, 1
        %s865 = scalar_lea.vmem %s6, %s864
      $region72: #{_lambda_.10} parent=59 // pred_fallthru
        _
    $region60: #{_lambda_.10} parent=5 // pred_fallthru
      _
  $region6: #{_lambda_.10} parent=0 // loop_footer
    %s17 = sadd.s32 1, %s13
  $region7: #{_lambda_.10} parent=0 // loop_footer_branch
    %12 = sbr.rel target = $region3
  $region8: #{_lambda_.10} parent=0 // loop_exit
    _

// kernel: reverse.8
$region0: #{reverse.8}
  #allocation0 [shape = 's32[1]{0}', space=sflag, size = 0x4, scoped, tag = 'scoped memory for reverse.8']
  %s0 = inlined_call_operand.vmem [shape: f32[2,32,16,7], index: 0, kind: input, shape index: {}]
  %s1 = inlined_call_operand.vmem [shape: f32[2,32,16,7], index: 1, kind: output, shape index: {}]
  %s2 = scalar_lea.vmem %s0, 96
  %v3 = vld [vmem:[%s2] sm:$0xff]
  %4 = vst [vmem:[%s1] sm:$0xff] %v3
  %s5 = scalar_lea.vmem %s0, 208
  %v6 = vld [vmem:[%s5] sm:$0xff]
  %s7 = scalar_lea.vmem %s1, 112
  %8 = vst [vmem:[%s7] sm:$0xff] %v6
  %s9 = scalar_lea.vmem %s0, 80
  %v10 = vld [vmem:[%s9] sm:$0xff]
  %s11 = scalar_lea.vmem %s1, 16
  %12 = vst [vmem:[%s11] sm:$0xff] %v10
  %s13 = scalar_lea.vmem %s0, 192
  %v14 = vld [vmem:[%s13] sm:$0xff]
  %s15 = scalar_lea.vmem %s1, 128
  %16 = vst [vmem:[%s15] sm:$0xff] %v14
  %s17 = scalar_lea.vmem %s0, 64
  %v18 = vld [vmem:[%s17] sm:$0xff]
  %s19 = scalar_lea.vmem %s1, 32
  %20 = vst [vmem:[%s19] sm:$0xff] %v18
  %s21 = scalar_lea.vmem %s0, 176
  %v22 = vld [vmem:[%s21] sm:$0xff]
  %s23 = scalar_lea.vmem %s1, 144
  %24 = vst [vmem:[%s23] sm:$0xff] %v22
  %s25 = scalar_lea.vmem %s0, 48
  %v26 = vld [vmem:[%s25] sm:$0xff]
  %s27 = scalar_lea.vmem %s1, 48
  %28 = vst [vmem:[%s27] sm:$0xff] %v26
  %s29 = scalar_lea.vmem %s0, 160
  %v30 = vld [vmem:[%s29] sm:$0xff]
  %s31 = scalar_lea.vmem %s1, 160
  %32 = vst [vmem:[%s31] sm:$0xff] %v30
  %s33 = scalar_lea.vmem %s0, 32
  %v34 = vld [vmem:[%s33] sm:$0xff]
  %s35 = scalar_lea.vmem %s1, 64
  %36 = vst [vmem:[%s35] sm:$0xff] %v34
  %s37 = scalar_lea.vmem %s0, 144
  %v38 = vld [vmem:[%s37] sm:$0xff]
  %s39 = scalar_lea.vmem %s1, 176
  %40 = vst [vmem:[%s39] sm:$0xff] %v38
  %s41 = scalar_lea.vmem %s0, 16
  %v42 = vld [vmem:[%s41] sm:$0xff]
  %s43 = scalar_lea.vmem %s1, 80
  %44 = vst [vmem:[%s43] sm:$0xff] %v42
  %s45 = scalar_lea.vmem %s0, 128
  %v46 = vld [vmem:[%s45] sm:$0xff]
  %s47 = scalar_lea.vmem %s1, 192
  %48 = vst [vmem:[%s47] sm:$0xff] %v46
  %v49 = vld [vmem:[%s0] sm:$0xff]
  %s50 = scalar_lea.vmem %s1, 96
  %51 = vst [vmem:[%s50] sm:$0xff] %v49
  %s52 = scalar_lea.vmem %s0, 112
  %v53 = vld [vmem:[%s52] sm:$0xff]
  %s54 = scalar_lea.vmem %s1, 208
  %55 = vst [vmem:[%s54] sm:$0xff] %v53
  %s56 = scalar_lea.vmem %s0, 104
  %v57 = vld [vmem:[%s56] sm:$0xff]
  %s58 = scalar_lea.vmem %s1, 8
  %59 = vst [vmem:[%s58] sm:$0xff] %v57
  %s60 = scalar_lea.vmem %s0, 216
  %v61 = vld [vmem:[%s60] sm:$0xff]
  %s62 = scalar_lea.vmem %s1, 120
  %63 = vst [vmem:[%s62] sm:$0xff] %v61
  %s64 = scalar_lea.vmem %s0, 88
  %v65 = vld [vmem:[%s64] sm:$0xff]
  %s66 = scalar_lea.vmem %s1, 24
  %67 = vst [vmem:[%s66] sm:$0xff] %v65
  %s68 = scalar_lea.vmem %s0, 200
  %v69 = vld [vmem:[%s68] sm:$0xff]
  %s70 = scalar_lea.vmem %s1, 136
  %71 = vst [vmem:[%s70] sm:$0xff] %v69
  %s72 = scalar_lea.vmem %s0, 72
  %v73 = vld [vmem:[%s72] sm:$0xff]
  %s74 = scalar_lea.vmem %s1, 40
  %75 = vst [vmem:[%s74] sm:$0xff] %v73
  %s76 = scalar_lea.vmem %s0, 184
  %v77 = vld [vmem:[%s76] sm:$0xff]
  %s78 = scalar_lea.vmem %s1, 152
  %79 = vst [vmem:[%s78] sm:$0xff] %v77
  %s80 = scalar_lea.vmem %s0, 56
  %v81 = vld [vmem:[%s80] sm:$0xff]
  %s82 = scalar_lea.vmem %s1, 56
  %83 = vst [vmem:[%s82] sm:$0xff] %v81
  %s84 = scalar_lea.vmem %s0, 168
  %v85 = vld [vmem:[%s84] sm:$0xff]
  %s86 = scalar_lea.vmem %s1, 168
  %87 = vst [vmem:[%s86] sm:$0xff] %v85
  %s88 = scalar_lea.vmem %s0, 40
  %v89 = vld [vmem:[%s88] sm:$0xff]
  %s90 = scalar_lea.vmem %s1, 72
  %91 = vst [vmem:[%s90] sm:$0xff] %v89
  %s92 = scalar_lea.vmem %s0, 152
  %v93 = vld [vmem:[%s92] sm:$0xff]
  %s94 = scalar_lea.vmem %s1, 184
  %95 = vst [vmem:[%s94] sm:$0xff] %v93
  %s96 = scalar_lea.vmem %s0, 24
  %v97 = vld [vmem:[%s96] sm:$0xff]
  %s98 = scalar_lea.vmem %s1, 88
  %99 = vst [vmem:[%s98] sm:$0xff] %v97
  %s100 = scalar_lea.vmem %s0, 136
  %v101 = vld [vmem:[%s100] sm:$0xff]
  %s102 = scalar_lea.vmem %s1, 200
  %103 = vst [vmem:[%s102] sm:$0xff] %v101
  %s104 = scalar_lea.vmem %s0, 8
  %v105 = vld [vmem:[%s104] sm:$0xff]
  %s106 = scalar_lea.vmem %s1, 104
  %107 = vst [vmem:[%s106] sm:$0xff] %v105
  %s108 = scalar_lea.vmem %s0, 120
  %v109 = vld [vmem:[%s108] sm:$0xff]
  %s110 = scalar_lea.vmem %s1, 216
  %111 = vst [vmem:[%s110] sm:$0xff] %v109

// kernel: _lambda_.11
$region0: #{_lambda_.11}
  #allocation0 [shape = 'u32[]', space=smem, size = 0x4, offset = 0x4, fixed_abs, tag = 'smem constant byte address 0x4 - core index']
  #allocation1 [shape = 'u32[72,128]{1,0:T(1,128)}', space=vmem, size = 0x9000, scoped, tag = 'internal scratch']
  %s0 = inlined_call_operand.vmem [shape: f32[32,2,128], index: 0, kind: input, shape index: {}]
  %s1 = inlined_call_operand.vmem [shape: bf16[32,128,128], index: 1, kind: input, shape index: {}]
  %s2 = inlined_call_operand.vmem [shape: f32[32,2,128], index: 2, kind: output, shape index: {}]
  %s3 = sld [smem:[#allocation0]]
  $region18: #{_lambda_.11} parent=0
    _
  %s5 = ssub.s32 1, %s3
  %s6 = scalar_select 0, %s5, %s3
  // Predicated region
  $region2: #{_lambda_.11} parent=0 // pred_check
    _
  $region3: #{_lambda_.11} parent=0 // pred_check_branch
    %8 = sbr.rel (0) target = $region5
  $region4: #{_lambda_.11} parent=0 // pred_region
    _
  $region5: #{_lambda_.11} parent=0 // pred_fallthru
    _
  // Predicated region
  $region6: #{_lambda_.11} parent=0 // pred_check
    _
  $region7: #{_lambda_.11} parent=0 // pred_check_branch
    %10 = sbr.rel (0) target = $region9
  $region8: #{_lambda_.11} parent=0 // pred_region
    _
  $region9: #{_lambda_.11} parent=0 // pred_fallthru
    _
  %v11 = vld [vmem:[%s0] sm:$0x3]
  %v12 = vld [vmem:[%s0 + $0x2] sm:$0x3]
  %v13 = vld [vmem:[%s0 + $0x4] sm:$0x3]
  %v14 = vld [vmem:[%s0 + $0x6] sm:$0x3]
  %v15 = vld [vmem:[%s0 + $0x8] sm:$0x3]
  %v16 = vld [vmem:[%s0 + $0xa] sm:$0x3]
  %v17 = vld [vmem:[%s0 + $0xc] sm:$0x3]
  %v18 = vld [vmem:[%s0 + $0xe] sm:$0x3]
  %v19 = vld [vmem:[%s0 + $0x10] sm:$0x3]
  %v20 = vld [vmem:[%s0 + $0x12] sm:$0x3]
  %v21 = vld [vmem:[%s0 + $0x14] sm:$0x3]
  %v22 = vld [vmem:[%s0 + $0x16] sm:$0x3]
  %v23 = vld [vmem:[%s0 + $0x18] sm:$0x3]
  %v24 = vld [vmem:[%s0 + $0x1a] sm:$0x3]
  %v25 = vld [vmem:[%s0 + $0x1c] sm:$0x3]
  %v26 = vld [vmem:[%s0 + $0x1e] sm:$0x3]
  %v27 = vld [vmem:[%s0 + $0x20] sm:$0x3]
  %v28 = vld [vmem:[%s0 + $0x22] sm:$0x3]
  %v29 = vld [vmem:[%s0 + $0x24] sm:$0x3]
  %v30 = vld [vmem:[%s0 + $0x26] sm:$0x3]
  %v31 = vld [vmem:[%s0 + $0x28] sm:$0x3]
  %v32 = vld [vmem:[%s0 + $0x2a] sm:$0x3]
  %v33 = vld [vmem:[%s0 + $0x2c] sm:$0x3]
  %v34 = vld [vmem:[%s0 + $0x2e] sm:$0x3]
  %v35 = vld [vmem:[%s0 + $0x30] sm:$0x3]
  %v36 = vld [vmem:[%s0 + $0x32] sm:$0x3]
  %v37 = vld [vmem:[%s0 + $0x34] sm:$0x3]
  %v38 = vld [vmem:[%s0 + $0x36] sm:$0x3]
  %v39 = vld [vmem:[%s0 + $0x38] sm:$0x3]
  %v40 = vld [vmem:[%s0 + $0x3a] sm:$0x3]
  %v41 = vld [vmem:[%s0 + $0x3c] sm:$0x3]
  %v42 = vld [vmem:[%s0 + $0x3e] sm:$0x3]
  %v43 = vpack.c.bf16 %v11, %v11
  %v44 = vpack.c.bf16 %v12, %v12
  %v45 = vpack.c.bf16 %v13, %v13
  %v46 = vpack.c.bf16 %v14, %v14
  %v47 = vpack.c.bf16 %v15, %v15
  %v48 = vpack.c.bf16 %v16, %v16
  %v49 = vpack.c.bf16 %v17, %v17
  %v50 = vpack.c.bf16 %v18, %v18
  %v51 = vpack.c.bf16 %v19, %v19
  %v52 = vpack.c.bf16 %v20, %v20
  %v53 = vpack.c.bf16 %v21, %v21
  %v54 = vpack.c.bf16 %v22, %v22
  %v55 = vpack.c.bf16 %v23, %v23
  %v56 = vpack.c.bf16 %v24, %v24
  %v57 = vpack.c.bf16 %v25, %v25
  %v58 = vpack.c.bf16 %v26, %v26
  %v59 = vpack.c.bf16 %v27, %v27
  %v60 = vpack.c.bf16 %v28, %v28
  %v61 = vpack.c.bf16 %v29, %v29
  %v62 = vpack.c.bf16 %v30, %v30
  %v63 = vpack.c.bf16 %v31, %v31
  %v64 = vpack.c.bf16 %v32, %v32
  %v65 = vpack.c.bf16 %v33, %v33
  %v66 = vpack.c.bf16 %v34, %v34
  %v67 = vpack.c.bf16 %v35, %v35
  %v68 = vpack.c.bf16 %v36, %v36
  %v69 = vpack.c.bf16 %v37, %v37
  %v70 = vpack.c.bf16 %v38, %v38
  %v71 = vpack.c.bf16 %v39, %v39
  %v72 = vpack.c.bf16 %v40, %v40
  %v73 = vpack.c.bf16 %v41, %v41
  %v74 = vpack.c.bf16 %v42, %v42
  %v75 = vld [vmem:[%s1] sm:$0xf]
  %v76 = vld [vmem:[%s1 + $0x4] sm:$0xf]
  %v77 = vld [vmem:[%s1 + $0x8] sm:$0xf]
  %v78 = vld [vmem:[%s1 + $0xc] sm:$0xf]
  %v79 = vld [vmem:[%s1 + $0x10] sm:$0xf]
  %v80 = vld [vmem:[%s1 + $0x14] sm:$0xf]
  %v81 = vld [vmem:[%s1 + $0x18] sm:$0xf]
  %v82 = vld [vmem:[%s1 + $0x1c] sm:$0xf]
  %v83 = vld [vmem:[%s1 + $0x20] sm:$0xf]
  %v84 = vld [vmem:[%s1 + $0x24] sm:$0xf]
  %v85 = vld [vmem:[%s1 + $0x28] sm:$0xf]
  %v86 = vld [vmem:[%s1 + $0x2c] sm:$0xf]
  %v87 = vld [vmem:[%s1 + $0x30] sm:$0xf]
  %v88 = vld [vmem:[%s1 + $0x34] sm:$0xf]
  %v89 = vld [vmem:[%s1 + $0x38] sm:$0xf]
  %v90 = vld [vmem:[%s1 + $0x3c] sm:$0xf]
  %v91 = vld [vmem:[%s1 + $0x40] sm:$0xf]
  %v92 = vld [vmem:[%s1 + $0x44] sm:$0xf]
  %v93 = vld [vmem:[%s1 + $0x48] sm:$0xf]
  %v94 = vld [vmem:[%s1 + $0x4c] sm:$0xf]
  %v95 = vld [vmem:[%s1 + $0x50] sm:$0xf]
  %v96 = vld [vmem:[%s1 + $0x54] sm:$0xf]
  %v97 = vld [vmem:[%s1 + $0x58] sm:$0xf]
  %v98 = vld [vmem:[%s1 + $0x5c] sm:$0xf]
  %v99 = vld [vmem:[%s1 + $0x60] sm:$0xf]
  %v100 = vld [vmem:[%s1 + $0x64] sm:$0xf]
  %v101 = vld [vmem:[%s1 + $0x68] sm:$0xf]
  %v102 = vld [vmem:[%s1 + $0x6c] sm:$0xf]
  %v103 = vld [vmem:[%s1 + $0x70] sm:$0xf]
  %v104 = vld [vmem:[%s1 + $0x74] sm:$0xf]
  %v105 = vld [vmem:[%s1 + $0x78] sm:$0xf]
  %v106 = vld [vmem:[%s1 + $0x7c] sm:$0xf]
  %v107 = vld [vmem:[%s1 + $0x80] sm:$0xf]
  %v108 = vld [vmem:[%s1 + $0x84] sm:$0xf]
  %v109 = vld [vmem:[%s1 + $0x88] sm:$0xf]
  %v110 = vld [vmem:[%s1 + $0x8c] sm:$0xf]
  %v111 = vld [vmem:[%s1 + $0x90] sm:$0xf]
  %v112 = vld [vmem:[%s1 + $0x94] sm:$0xf]
  %v113 = vld [vmem:[%s1 + $0x98] sm:$0xf]
  %v114 = vld [vmem:[%s1 + $0x9c] sm:$0xf]
  %v115 = vld [vmem:[%s1 + $0xa0] sm:$0xf]
  %v116 = vld [vmem:[%s1 + $0xa4] sm:$0xf]
  %v117 = vld [vmem:[%s1 + $0xa8] sm:$0xf]
  %v118 = vld [vmem:[%s1 + $0xac] sm:$0xf]
  %v119 = vld [vmem:[%s1 + $0xb0] sm:$0xf]
  %v120 = vld [vmem:[%s1 + $0xb4] sm:$0xf]
  %v121 = vld [vmem:[%s1 + $0xb8] sm:$0xf]
  %v122 = vld [vmem:[%s1 + $0xbc] sm:$0xf]
  %v123 = vld [vmem:[%s1 + $0xc0] sm:$0xf]
  %v124 = vld [vmem:[%s1 + $0xc4] sm:$0xf]
  %v125 = vld [vmem:[%s1 + $0xc8] sm:$0xf]
  %v126 = vld [vmem:[%s1 + $0xcc] sm:$0xf]
  %v127 = vld [vmem:[%s1 + $0xd0] sm:$0xf]
  %v128 = vld [vmem:[%s1 + $0xd4] sm:$0xf]
  %v129 = vld [vmem:[%s1 + $0xd8] sm:$0xf]
  %v130 = vld [vmem:[%s1 + $0xdc] sm:$0xf]
  %v131 = vld [vmem:[%s1 + $0xe0] sm:$0xf]
  %v132 = vld [vmem:[%s1 + $0xe4] sm:$0xf]
  %v133 = vld [vmem:[%s1 + $0xe8] sm:$0xf]
  %v134 = vld [vmem:[%s1 + $0xec] sm:$0xf]
  %v135 = vld [vmem:[%s1 + $0xf0] sm:$0xf]
  %v136 = vld [vmem:[%s1 + $0xf4] sm:$0xf]
  %v137 = vld [vmem:[%s1 + $0xf8] sm:$0xf]
  %v138 = vld [vmem:[%s1 + $0xfc] sm:$0xf]
  %v139 = vld [vmem:[%s1 + $0x100] sm:$0xf]
  %v140 = vld [vmem:[%s1 + $0x104] sm:$0xf]
  %v141 = vld [vmem:[%s1 + $0x108] sm:$0xf]
  %v142 = vld [vmem:[%s1 + $0x10c] sm:$0xf]
  %v143 = vld [vmem:[%s1 + $0x110] sm:$0xf]
  %v144 = vld [vmem:[%s1 + $0x114] sm:$0xf]
  %v145 = vld [vmem:[%s1 + $0x118] sm:$0xf]
  %v146 = vld [vmem:[%s1 + $0x11c] sm:$0xf]
  %v147 = vld [vmem:[%s1 + $0x120] sm:$0xf]
  %v148 = vld [vmem:[%s1 + $0x124] sm:$0xf]
  %v149 = vld [vmem:[%s1 + $0x128] sm:$0xf]
  %v150 = vld [vmem:[%s1 + $0x12c] sm:$0xf]
  %v151 = vld [vmem:[%s1 + $0x130] sm:$0xf]
  %v152 = vld [vmem:[%s1 + $0x134] sm:$0xf]
  %v153 = vld [vmem:[%s1 + $0x138] sm:$0xf]
  %v154 = vld [vmem:[%s1 + $0x13c] sm:$0xf]
  %v155 = vld [vmem:[%s1 + $0x140] sm:$0xf]
  %v156 = vld [vmem:[%s1 + $0x144] sm:$0xf]
  %v157 = vld [vmem:[%s1 + $0x148] sm:$0xf]
  %v158 = vld [vmem:[%s1 + $0x14c] sm:$0xf]
  %v159 = vld [vmem:[%s1 + $0x150] sm:$0xf]
  %v160 = vld [vmem:[%s1 + $0x154] sm:$0xf]
  %v161 = vld [vmem:[%s1 + $0x158] sm:$0xf]
  %v162 = vld [vmem:[%s1 + $0x15c] sm:$0xf]
  %v163 = vld [vmem:[%s1 + $0x160] sm:$0xf]
  %v164 = vld [vmem:[%s1 + $0x164] sm:$0xf]
  %v165 = vld [vmem:[%s1 + $0x168] sm:$0xf]
  %v166 = vld [vmem:[%s1 + $0x16c] sm:$0xf]
  %v167 = vld [vmem:[%s1 + $0x170] sm:$0xf]
  %v168 = vld [vmem:[%s1 + $0x174] sm:$0xf]
  %v169 = vld [vmem:[%s1 + $0x178] sm:$0xf]
  %v170 = vld [vmem:[%s1 + $0x17c] sm:$0xf]
  %v171 = vld [vmem:[%s1 + $0x180] sm:$0xf]
  %v172 = vld [vmem:[%s1 + $0x184] sm:$0xf]
  %v173 = vld [vmem:[%s1 + $0x188] sm:$0xf]
  %v174 = vld [vmem:[%s1 + $0x18c] sm:$0xf]
  %v175 = vld [vmem:[%s1 + $0x190] sm:$0xf]
  %v176 = vld [vmem:[%s1 + $0x194] sm:$0xf]
  %v177 = vld [vmem:[%s1 + $0x198] sm:$0xf]
  %v178 = vld [vmem:[%s1 + $0x19c] sm:$0xf]
  %v179 = vld [vmem:[%s1 + $0x1a0] sm:$0xf]
  %v180 = vld [vmem:[%s1 + $0x1a4] sm:$0xf]
  %v181 = vld [vmem:[%s1 + $0x1a8] sm:$0xf]
  %v182 = vld [vmem:[%s1 + $0x1ac] sm:$0xf]
  %v183 = vld [vmem:[%s1 + $0x1b0] sm:$0xf]
  %v184 = vld [vmem:[%s1 + $0x1b4] sm:$0xf]
  %v185 = vld [vmem:[%s1 + $0x1b8] sm:$0xf]
  %v186 = vld [vmem:[%s1 + $0x1bc] sm:$0xf]
  %v187 = vld [vmem:[%s1 + $0x1c0] sm:$0xf]
  %v188 = vld [vmem:[%s1 + $0x1c4] sm:$0xf]
  %v189 = vld [vmem:[%s1 + $0x1c8] sm:$0xf]
  %v190 = vld [vmem:[%s1 + $0x1cc] sm:$0xf]
  %v191 = vld [vmem:[%s1 + $0x1d0] sm:$0xf]
  %v192 = vld [vmem:[%s1 + $0x1d4] sm:$0xf]
  %v193 = vld [vmem:[%s1 + $0x1d8] sm:$0xf]
  %v194 = vld [vmem:[%s1 + $0x1dc] sm:$0xf]
  %v195 = vld [vmem:[%s1 + $0x1e0] sm:$0xf]
  %v196 = vld [vmem:[%s1 + $0x1e4] sm:$0xf]
  %v197 = vld [vmem:[%s1 + $0x1e8] sm:$0xf]
  %v198 = vld [vmem:[%s1 + $0x1ec] sm:$0xf]
  %v199 = vld [vmem:[%s1 + $0x1f0] sm:$0xf]
  %v200 = vld [vmem:[%s1 + $0x1f4] sm:$0xf]
  %v201 = vld [vmem:[%s1 + $0x1f8] sm:$0xf]
  %v202 = vld [vmem:[%s1 + $0x1fc] sm:$0xf]
  %v203 = vld [vmem:[%s1 + $0x200] sm:$0xf]
  %v204 = vld [vmem:[%s1 + $0x204] sm:$0xf]
  %v205 = vld [vmem:[%s1 + $0x208] sm:$0xf]
  %v206 = vld [vmem:[%s1 + $0x20c] sm:$0xf]
  %v207 = vld [vmem:[%s1 + $0x210] sm:$0xf]
  %v208 = vld [vmem:[%s1 + $0x214] sm:$0xf]
  %v209 = vld [vmem:[%s1 + $0x218] sm:$0xf]
  %v210 = vld [vmem:[%s1 + $0x21c] sm:$0xf]
  %v211 = vld [vmem:[%s1 + $0x220] sm:$0xf]
  %v212 = vld [vmem:[%s1 + $0x224] sm:$0xf]
  %v213 = vld [vmem:[%s1 + $0x228] sm:$0xf]
  %v214 = vld [vmem:[%s1 + $0x22c] sm:$0xf]
  %v215 = vld [vmem:[%s1 + $0x230] sm:$0xf]
  %v216 = vld [vmem:[%s1 + $0x234] sm:$0xf]
  %v217 = vld [vmem:[%s1 + $0x238] sm:$0xf]
  %v218 = vld [vmem:[%s1 + $0x23c] sm:$0xf]
  %v219 = vld [vmem:[%s1 + $0x240] sm:$0xf]
  %v220 = vld [vmem:[%s1 + $0x244] sm:$0xf]
  %v221 = vld [vmem:[%s1 + $0x248] sm:$0xf]
  %v222 = vld [vmem:[%s1 + $0x24c] sm:$0xf]
  %v223 = vld [vmem:[%s1 + $0x250] sm:$0xf]
  %v224 = vld [vmem:[%s1 + $0x254] sm:$0xf]
  %v225 = vld [vmem:[%s1 + $0x258] sm:$0xf]
  %v226 = vld [vmem:[%s1 + $0x25c] sm:$0xf]
  %v227 = vld [vmem:[%s1 + $0x260] sm:$0xf]
  %v228 = vld [vmem:[%s1 + $0x264] sm:$0xf]
  %v229 = vld [vmem:[%s1 + $0x268] sm:$0xf]
  %v230 = vld [vmem:[%s1 + $0x26c] sm:$0xf]
  %v231 = vld [vmem:[%s1 + $0x270] sm:$0xf]
  %v232 = vld [vmem:[%s1 + $0x274] sm:$0xf]
  %v233 = vld [vmem:[%s1 + $0x278] sm:$0xf]
  %v234 = vld [vmem:[%s1 + $0x27c] sm:$0xf]
  %v235 = vld [vmem:[%s1 + $0x280] sm:$0xf]
  %v236 = vld [vmem:[%s1 + $0x284] sm:$0xf]
  %v237 = vld [vmem:[%s1 + $0x288] sm:$0xf]
  %v238 = vld [vmem:[%s1 + $0x28c] sm:$0xf]
  %v239 = vld [vmem:[%s1 + $0x290] sm:$0xf]
  %v240 = vld [vmem:[%s1 + $0x294] sm:$0xf]
  %v241 = vld [vmem:[%s1 + $0x298] sm:$0xf]
  %v242 = vld [vmem:[%s1 + $0x29c] sm:$0xf]
  %v243 = vld [vmem:[%s1 + $0x2a0] sm:$0xf]
  %v244 = vld [vmem:[%s1 + $0x2a4] sm:$0xf]
  %v245 = vld [vmem:[%s1 + $0x2a8] sm:$0xf]
  %v246 = vld [vmem:[%s1 + $0x2ac] sm:$0xf]
  %v247 = vld [vmem:[%s1 + $0x2b0] sm:$0xf]
  %v248 = vld [vmem:[%s1 + $0x2b4] sm:$0xf]
  %v249 = vld [vmem:[%s1 + $0x2b8] sm:$0xf]
  %v250 = vld [vmem:[%s1 + $0x2bc] sm:$0xf]
  %v251 = vld [vmem:[%s1 + $0x2c0] sm:$0xf]
  %v252 = vld [vmem:[%s1 + $0x2c4] sm:$0xf]
  %v253 = vld [vmem:[%s1 + $0x2c8] sm:$0xf]
  %v254 = vld [vmem:[%s1 + $0x2cc] sm:$0xf]
  %v255 = vld [vmem:[%s1 + $0x2d0] sm:$0xf]
  %v256 = vld [vmem:[%s1 + $0x2d4] sm:$0xf]
  %v257 = vld [vmem:[%s1 + $0x2d8] sm:$0xf]
  %v258 = vld [vmem:[%s1 + $0x2dc] sm:$0xf]
  %v259 = vld [vmem:[%s1 + $0x2e0] sm:$0xf]
  %v260 = vld [vmem:[%s1 + $0x2e4] sm:$0xf]
  %v261 = vld [vmem:[%s1 + $0x2e8] sm:$0xf]
  %v262 = vld [vmem:[%s1 + $0x2ec] sm:$0xf]
  %v263 = vld [vmem:[%s1 + $0x2f0] sm:$0xf]
  %v264 = vld [vmem:[%s1 + $0x2f4] sm:$0xf]
  %v265 = vld [vmem:[%s1 + $0x2f8] sm:$0xf]
  %v266 = vld [vmem:[%s1 + $0x2fc] sm:$0xf]
  %v267 = vld [vmem:[%s1 + $0x300] sm:$0xf]
  %v268 = vld [vmem:[%s1 + $0x304] sm:$0xf]
  %v269 = vld [vmem:[%s1 + $0x308] sm:$0xf]
  %v270 = vld [vmem:[%s1 + $0x30c] sm:$0xf]
  %v271 = vld [vmem:[%s1 + $0x310] sm:$0xf]
  %v272 = vld [vmem:[%s1 + $0x314] sm:$0xf]
  %v273 = vld [vmem:[%s1 + $0x318] sm:$0xf]
  %v274 = vld [vmem:[%s1 + $0x31c] sm:$0xf]
  %v275 = vld [vmem:[%s1 + $0x320] sm:$0xf]
  %v276 = vld [vmem:[%s1 + $0x324] sm:$0xf]
  %v277 = vld [vmem:[%s1 + $0x328] sm:$0xf]
  %v278 = vld [vmem:[%s1 + $0x32c] sm:$0xf]
  %v279 = vld [vmem:[%s1 + $0x330] sm:$0xf]
  %v280 = vld [vmem:[%s1 + $0x334] sm:$0xf]
  %v281 = vld [vmem:[%s1 + $0x338] sm:$0xf]
  %v282 = vld [vmem:[%s1 + $0x33c] sm:$0xf]
  %v283 = vld [vmem:[%s1 + $0x340] sm:$0xf]
  %v284 = vld [vmem:[%s1 + $0x344] sm:$0xf]
  %v285 = vld [vmem:[%s1 + $0x348] sm:$0xf]
  %v286 = vld [vmem:[%s1 + $0x34c] sm:$0xf]
  %v287 = vld [vmem:[%s1 + $0x350] sm:$0xf]
  %v288 = vld [vmem:[%s1 + $0x354] sm:$0xf]
  %v289 = vld [vmem:[%s1 + $0x358] sm:$0xf]
  %v290 = vld [vmem:[%s1 + $0x35c] sm:$0xf]
  %v291 = vld [vmem:[%s1 + $0x360] sm:$0xf]
  %v292 = vld [vmem:[%s1 + $0x364] sm:$0xf]
  %v293 = vld [vmem:[%s1 + $0x368] sm:$0xf]
  %v294 = vld [vmem:[%s1 + $0x36c] sm:$0xf]
  %v295 = vld [vmem:[%s1 + $0x370] sm:$0xf]
  %v296 = vld [vmem:[%s1 + $0x374] sm:$0xf]
  %v297 = vld [vmem:[%s1 + $0x378] sm:$0xf]
  %v298 = vld [vmem:[%s1 + $0x37c] sm:$0xf]
  %v299 = vld [vmem:[%s1 + $0x380] sm:$0xf]
  %v300 = vld [vmem:[%s1 + $0x384] sm:$0xf]
  %v301 = vld [vmem:[%s1 + $0x388] sm:$0xf]
  %v302 = vld [vmem:[%s1 + $0x38c] sm:$0xf]
  %v303 = vld [vmem:[%s1 + $0x390] sm:$0xf]
  %v304 = vld [vmem:[%s1 + $0x394] sm:$0xf]
  %v305 = vld [vmem:[%s1 + $0x398] sm:$0xf]
  %v306 = vld [vmem:[%s1 + $0x39c] sm:$0xf]
  %v307 = vld [vmem:[%s1 + $0x3a0] sm:$0xf]
  %v308 = vld [vmem:[%s1 + $0x3a4] sm:$0xf]
  %v309 = vld [vmem:[%s1 + $0x3a8] sm:$0xf]
  %v310 = vld [vmem:[%s1 + $0x3ac] sm:$0xf]
  %v311 = vld [vmem:[%s1 + $0x3b0] sm:$0xf]
  %v312 = vld [vmem:[%s1 + $0x3b4] sm:$0xf]
  %v313 = vld [vmem:[%s1 + $0x3b8] sm:$0xf]
  %v314 = vld [vmem:[%s1 + $0x3bc] sm:$0xf]
  %v315 = vld [vmem:[%s1 + $0x3c0] sm:$0xf]
  %v316 = vld [vmem:[%s1 + $0x3c4] sm:$0xf]
  %v317 = vld [vmem:[%s1 + $0x3c8] sm:$0xf]
  %v318 = vld [vmem:[%s1 + $0x3cc] sm:$0xf]
  %v319 = vld [vmem:[%s1 + $0x3d0] sm:$0xf]
  %v320 = vld [vmem:[%s1 + $0x3d4] sm:$0xf]
  %v321 = vld [vmem:[%s1 + $0x3d8] sm:$0xf]
  %v322 = vld [vmem:[%s1 + $0x3dc] sm:$0xf]
  %v323 = vld [vmem:[%s1 + $0x3e0] sm:$0xf]
  %v324 = vld [vmem:[%s1 + $0x3e4] sm:$0xf]
  %v325 = vld [vmem:[%s1 + $0x3e8] sm:$0xf]
  %v326 = vld [vmem:[%s1 + $0x3ec] sm:$0xf]
  %v327 = vld [vmem:[%s1 + $0x3f0] sm:$0xf]
  %v328 = vld [vmem:[%s1 + $0x3f4] sm:$0xf]
  %v329 = vld [vmem:[%s1 + $0x3f8] sm:$0xf]
  %v330 = vld [vmem:[%s1 + $0x3fc] sm:$0xf]
  %v331 = vld [vmem:[%s1 + $0x400] sm:$0xf]
  %v332 = vld [vmem:[%s1 + $0x404] sm:$0xf]
  %v333 = vld [vmem:[%s1 + $0x408] sm:$0xf]
  %v334 = vld [vmem:[%s1 + $0x40c] sm:$0xf]
  %v335 = vld [vmem:[%s1 + $0x410] sm:$0xf]
  %v336 = vld [vmem:[%s1 + $0x414] sm:$0xf]
  %v337 = vld [vmem:[%s1 + $0x418] sm:$0xf]
  %v338 = vld [vmem:[%s1 + $0x41c] sm:$0xf]
  %v339 = vld [vmem:[%s1 + $0x420] sm:$0xf]
  %v340 = vld [vmem:[%s1 + $0x424] sm:$0xf]
  %v341 = vld [vmem:[%s1 + $0x428] sm:$0xf]
  %v342 = vld [vmem:[%s1 + $0x42c] sm:$0xf]
  %v343 = vld [vmem:[%s1 + $0x430] sm:$0xf]
  %v344 = vld [vmem:[%s1 + $0x434] sm:$0xf]
  %v345 = vld [vmem:[%s1 + $0x438] sm:$0xf]
  %v346 = vld [vmem:[%s1 + $0x43c] sm:$0xf]
  %v347 = vld [vmem:[%s1 + $0x440] sm:$0xf]
  %v348 = vld [vmem:[%s1 + $0x444] sm:$0xf]
  %v349 = vld [vmem:[%s1 + $0x448] sm:$0xf]
  %v350 = vld [vmem:[%s1 + $0x44c] sm:$0xf]
  %v351 = vld [vmem:[%s1 + $0x450] sm:$0xf]
  %v352 = vld [vmem:[%s1 + $0x454] sm:$0xf]
  %v353 = vld [vmem:[%s1 + $0x458] sm:$0xf]
  %v354 = vld [vmem:[%s1 + $0x45c] sm:$0xf]
  %v355 = vld [vmem:[%s1 + $0x460] sm:$0xf]
  %v356 = vld [vmem:[%s1 + $0x464] sm:$0xf]
  %v357 = vld [vmem:[%s1 + $0x468] sm:$0xf]
  %v358 = vld [vmem:[%s1 + $0x46c] sm:$0xf]
  %v359 = vld [vmem:[%s1 + $0x470] sm:$0xf]
  %v360 = vld [vmem:[%s1 + $0x474] sm:$0xf]
  %v361 = vld [vmem:[%s1 + $0x478] sm:$0xf]
  %v362 = vld [vmem:[%s1 + $0x47c] sm:$0xf]
  %v363 = vld [vmem:[%s1 + $0x480] sm:$0xf]
  %v364 = vld [vmem:[%s1 + $0x484] sm:$0xf]
  %v365 = vld [vmem:[%s1 + $0x488] sm:$0xf]
  %v366 = vld [vmem:[%s1 + $0x48c] sm:$0xf]
  %v367 = vld [vmem:[%s1 + $0x490] sm:$0xf]
  %v368 = vld [vmem:[%s1 + $0x494] sm:$0xf]
  %v369 = vld [vmem:[%s1 + $0x498] sm:$0xf]
  %v370 = vld [vmem:[%s1 + $0x49c] sm:$0xf]
  %v371 = vld [vmem:[%s1 + $0x4a0] sm:$0xf]
  %v372 = vld [vmem:[%s1 + $0x4a4] sm:$0xf]
  %v373 = vld [vmem:[%s1 + $0x4a8] sm:$0xf]
  %v374 = vld [vmem:[%s1 + $0x4ac] sm:$0xf]
  %v375 = vld [vmem:[%s1 + $0x4b0] sm:$0xf]
  %v376 = vld [vmem:[%s1 + $0x4b4] sm:$0xf]
  %v377 = vld [vmem:[%s1 + $0x4b8] sm:$0xf]
  %v378 = vld [vmem:[%s1 + $0x4bc] sm:$0xf]
  %v379 = vld [vmem:[%s1 + $0x4c0] sm:$0xf]
  %v380 = vld [vmem:[%s1 + $0x4c4] sm:$0xf]
  %v381 = vld [vmem:[%s1 + $0x4c8] sm:$0xf]
  %v382 = vld [vmem:[%s1 + $0x4cc] sm:$0xf]
  %v383 = vld [vmem:[%s1 + $0x4d0] sm:$0xf]
  %v384 = vld [vmem:[%s1 + $0x4d4] sm:$0xf]
  %v385 = vld [vmem:[%s1 + $0x4d8] sm:$0xf]
  %v386 = vld [vmem:[%s1 + $0x4dc] sm:$0xf]
  %v387 = vld [vmem:[%s1 + $0x4e0] sm:$0xf]
  %v388 = vld [vmem:[%s1 + $0x4e4] sm:$0xf]
  %v389 = vld [vmem:[%s1 + $0x4e8] sm:$0xf]
  %v390 = vld [vmem:[%s1 + $0x4ec] sm:$0xf]
  %v391 = vld [vmem:[%s1 + $0x4f0] sm:$0xf]
  %v392 = vld [vmem:[%s1 + $0x4f4] sm:$0xf]
  %v393 = vld [vmem:[%s1 + $0x4f8] sm:$0xf]
  %v394 = vld [vmem:[%s1 + $0x4fc] sm:$0xf]
  %v395 = vld [vmem:[%s1 + $0x500] sm:$0xf]
  %v396 = vld [vmem:[%s1 + $0x504] sm:$0xf]
  %v397 = vld [vmem:[%s1 + $0x508] sm:$0xf]
  %v398 = vld [vmem:[%s1 + $0x50c] sm:$0xf]
  %v399 = vld [vmem:[%s1 + $0x510] sm:$0xf]
  %v400 = vld [vmem:[%s1 + $0x514] sm:$0xf]
  %v401 = vld [vmem:[%s1 + $0x518] sm:$0xf]
  %v402 = vld [vmem:[%s1 + $0x51c] sm:$0xf]
  %v403 = vld [vmem:[%s1 + $0x520] sm:$0xf]
  %v404 = vld [vmem:[%s1 + $0x524] sm:$0xf]
  %v405 = vld [vmem:[%s1 + $0x528] sm:$0xf]
  %v406 = vld [vmem:[%s1 + $0x52c] sm:$0xf]
  %v407 = vld [vmem:[%s1 + $0x530] sm:$0xf]
  %v408 = vld [vmem:[%s1 + $0x534] sm:$0xf]
  %v409 = vld [vmem:[%s1 + $0x538] sm:$0xf]
  %v410 = vld [vmem:[%s1 + $0x53c] sm:$0xf]
  %v411 = vld [vmem:[%s1 + $0x540] sm:$0xf]
  %v412 = vld [vmem:[%s1 + $0x544] sm:$0xf]
  %v413 = vld [vmem:[%s1 + $0x548] sm:$0xf]
  %v414 = vld [vmem:[%s1 + $0x54c] sm:$0xf]
  %v415 = vld [vmem:[%s1 + $0x550] sm:$0xf]
  %v416 = vld [vmem:[%s1 + $0x554] sm:$0xf]
  %v417 = vld [vmem:[%s1 + $0x558] sm:$0xf]
  %v418 = vld [vmem:[%s1 + $0x55c] sm:$0xf]
  %v419 = vld [vmem:[%s1 + $0x560] sm:$0xf]
  %v420 = vld [vmem:[%s1 + $0x564] sm:$0xf]
  %v421 = vld [vmem:[%s1 + $0x568] sm:$0xf]
  %v422 = vld [vmem:[%s1 + $0x56c] sm:$0xf]
  %v423 = vld [vmem:[%s1 + $0x570] sm:$0xf]
  %v424 = vld [vmem:[%s1 + $0x574] sm:$0xf]
  %v425 = vld [vmem:[%s1 + $0x578] sm:$0xf]
  %v426 = vld [vmem:[%s1 + $0x57c] sm:$0xf]
  %v427 = vld [vmem:[%s1 + $0x580] sm:$0xf]
  %v428 = vld [vmem:[%s1 + $0x584] sm:$0xf]
  %v429 = vld [vmem:[%s1 + $0x588] sm:$0xf]
  %v430 = vld [vmem:[%s1 + $0x58c] sm:$0xf]
  %v431 = vld [vmem:[%s1 + $0x590] sm:$0xf]
  %v432 = vld [vmem:[%s1 + $0x594] sm:$0xf]
  %v433 = vld [vmem:[%s1 + $0x598] sm:$0xf]
  %v434 = vld [vmem:[%s1 + $0x59c] sm:$0xf]
  %v435 = vld [vmem:[%s1 + $0x5a0] sm:$0xf]
  %v436 = vld [vmem:[%s1 + $0x5a4] sm:$0xf]
  %v437 = vld [vmem:[%s1 + $0x5a8] sm:$0xf]
  %v438 = vld [vmem:[%s1 + $0x5ac] sm:$0xf]
  %v439 = vld [vmem:[%s1 + $0x5b0] sm:$0xf]
  %v440 = vld [vmem:[%s1 + $0x5b4] sm:$0xf]
  %v441 = vld [vmem:[%s1 + $0x5b8] sm:$0xf]
  %v442 = vld [vmem:[%s1 + $0x5bc] sm:$0xf]
  %v443 = vld [vmem:[%s1 + $0x5c0] sm:$0xf]
  %v444 = vld [vmem:[%s1 + $0x5c4] sm:$0xf]
  %v445 = vld [vmem:[%s1 + $0x5c8] sm:$0xf]
  %v446 = vld [vmem:[%s1 + $0x5cc] sm:$0xf]
  %v447 = vld [vmem:[%s1 + $0x5d0] sm:$0xf]
  %v448 = vld [vmem:[%s1 + $0x5d4] sm:$0xf]
  %v449 = vld [vmem:[%s1 + $0x5d8] sm:$0xf]
  %v450 = vld [vmem:[%s1 + $0x5dc] sm:$0xf]
  %v451 = vld [vmem:[%s1 + $0x5e0] sm:$0xf]
  %v452 = vld [vmem:[%s1 + $0x5e4] sm:$0xf]
  %v453 = vld [vmem:[%s1 + $0x5e8] sm:$0xf]
  %v454 = vld [vmem:[%s1 + $0x5ec] sm:$0xf]
  %v455 = vld [vmem:[%s1 + $0x5f0] sm:$0xf]
  %v456 = vld [vmem:[%s1 + $0x5f4] sm:$0xf]
  %v457 = vld [vmem:[%s1 + $0x5f8] sm:$0xf]
  %v458 = vld [vmem:[%s1 + $0x5fc] sm:$0xf]
  %v459 = vld [vmem:[%s1 + $0x600] sm:$0xf]
  %v460 = vld [vmem:[%s1 + $0x604] sm:$0xf]
  %v461 = vld [vmem:[%s1 + $0x608] sm:$0xf]
  %v462 = vld [vmem:[%s1 + $0x60c] sm:$0xf]
  %v463 = vld [vmem:[%s1 + $0x610] sm:$0xf]
  %v464 = vld [vmem:[%s1 + $0x614] sm:$0xf]
  %v465 = vld [vmem:[%s1 + $0x618] sm:$0xf]
  %v466 = vld [vmem:[%s1 + $0x61c] sm:$0xf]
  %v467 = vld [vmem:[%s1 + $0x620] sm:$0xf]
  %v468 = vld [vmem:[%s1 + $0x624] sm:$0xf]
  %v469 = vld [vmem:[%s1 + $0x628] sm:$0xf]
  %v470 = vld [vmem:[%s1 + $0x62c] sm:$0xf]
  %v471 = vld [vmem:[%s1 + $0x630] sm:$0xf]
  %v472 = vld [vmem:[%s1 + $0x634] sm:$0xf]
  %v473 = vld [vmem:[%s1 + $0x638] sm:$0xf]
  %v474 = vld [vmem:[%s1 + $0x63c] sm:$0xf]
  %v475 = vld [vmem:[%s1 + $0x640] sm:$0xf]
  %v476 = vld [vmem:[%s1 + $0x644] sm:$0xf]
  %v477 = vld [vmem:[%s1 + $0x648] sm:$0xf]
  %v478 = vld [vmem:[%s1 + $0x64c] sm:$0xf]
  %v479 = vld [vmem:[%s1 + $0x650] sm:$0xf]
  %v480 = vld [vmem:[%s1 + $0x654] sm:$0xf]
  %v481 = vld [vmem:[%s1 + $0x658] sm:$0xf]
  %v482 = vld [vmem:[%s1 + $0x65c] sm:$0xf]
  %v483 = vld [vmem:[%s1 + $0x660] sm:$0xf]
  %v484 = vld [vmem:[%s1 + $0x664] sm:$0xf]
  %v485 = vld [vmem:[%s1 + $0x668] sm:$0xf]
  %v486 = vld [vmem:[%s1 + $0x66c] sm:$0xf]
  %v487 = vld [vmem:[%s1 + $0x670] sm:$0xf]
  %v488 = vld [vmem:[%s1 + $0x674] sm:$0xf]
  %v489 = vld [vmem:[%s1 + $0x678] sm:$0xf]
  %v490 = vld [vmem:[%s1 + $0x67c] sm:$0xf]
  %v491 = vld [vmem:[%s1 + $0x680] sm:$0xf]
  %v492 = vld [vmem:[%s1 + $0x684] sm:$0xf]
  %v493 = vld [vmem:[%s1 + $0x688] sm:$0xf]
  %v494 = vld [vmem:[%s1 + $0x68c] sm:$0xf]
  %v495 = vld [vmem:[%s1 + $0x690] sm:$0xf]
  %v496 = vld [vmem:[%s1 + $0x694] sm:$0xf]
  %v497 = vld [vmem:[%s1 + $0x698] sm:$0xf]
  %v498 = vld [vmem:[%s1 + $0x69c] sm:$0xf]
  %v499 = vld [vmem:[%s1 + $0x6a0] sm:$0xf]
  %v500 = vld [vmem:[%s1 + $0x6a4] sm:$0xf]
  %v501 = vld [vmem:[%s1 + $0x6a8] sm:$0xf]
  %v502 = vld [vmem:[%s1 + $0x6ac] sm:$0xf]
  %v503 = vld [vmem:[%s1 + $0x6b0] sm:$0xf]
  %v504 = vld [vmem:[%s1 + $0x6b4] sm:$0xf]
  %v505 = vld [vmem:[%s1 + $0x6b8] sm:$0xf]
  %v506 = vld [vmem:[%s1 + $0x6bc] sm:$0xf]
  %v507 = vld [vmem:[%s1 + $0x6c0] sm:$0xf]
  %v508 = vld [vmem:[%s1 + $0x6c4] sm:$0xf]
  %v509 = vld [vmem:[%s1 + $0x6c8] sm:$0xf]
  %v510 = vld [vmem:[%s1 + $0x6cc] sm:$0xf]
  %v511 = vld [vmem:[%s1 + $0x6d0] sm:$0xf]
  %v512 = vld [vmem:[%s1 + $0x6d4] sm:$0xf]
  %v513 = vld [vmem:[%s1 + $0x6d8] sm:$0xf]
  %v514 = vld [vmem:[%s1 + $0x6dc] sm:$0xf]
  %v515 = vld [vmem:[%s1 + $0x6e0] sm:$0xf]
  %v516 = vld [vmem:[%s1 + $0x6e4] sm:$0xf]
  %v517 = vld [vmem:[%s1 + $0x6e8] sm:$0xf]
  %v518 = vld [vmem:[%s1 + $0x6ec] sm:$0xf]
  %v519 = vld [vmem:[%s1 + $0x6f0] sm:$0xf]
  %v520 = vld [vmem:[%s1 + $0x6f4] sm:$0xf]
  %v521 = vld [vmem:[%s1 + $0x6f8] sm:$0xf]
  %v522 = vld [vmem:[%s1 + $0x6fc] sm:$0xf]
  %v523 = vld [vmem:[%s1 + $0x700] sm:$0xf]
  %v524 = vld [vmem:[%s1 + $0x704] sm:$0xf]
  %v525 = vld [vmem:[%s1 + $0x708] sm:$0xf]
  %v526 = vld [vmem:[%s1 + $0x70c] sm:$0xf]
  %v527 = vld [vmem:[%s1 + $0x710] sm:$0xf]
  %v528 = vld [vmem:[%s1 + $0x714] sm:$0xf]
  %v529 = vld [vmem:[%s1 + $0x718] sm:$0xf]
  %v530 = vld [vmem:[%s1 + $0x71c] sm:$0xf]
  %v531 = vld [vmem:[%s1 + $0x720] sm:$0xf]
  %v532 = vld [vmem:[%s1 + $0x724] sm:$0xf]
  %v533 = vld [vmem:[%s1 + $0x728] sm:$0xf]
  %v534 = vld [vmem:[%s1 + $0x72c] sm:$0xf]
  %v535 = vld [vmem:[%s1 + $0x730] sm:$0xf]
  %v536 = vld [vmem:[%s1 + $0x734] sm:$0xf]
  %v537 = vld [vmem:[%s1 + $0x738] sm:$0xf]
  %v538 = vld [vmem:[%s1 + $0x73c] sm:$0xf]
  %v539 = vld [vmem:[%s1 + $0x740] sm:$0xf]
  %v540 = vld [vmem:[%s1 + $0x744] sm:$0xf]
  %v541 = vld [vmem:[%s1 + $0x748] sm:$0xf]
  %v542 = vld [vmem:[%s1 + $0x74c] sm:$0xf]
  %v543 = vld [vmem:[%s1 + $0x750] sm:$0xf]
  %v544 = vld [vmem:[%s1 + $0x754] sm:$0xf]
  %v545 = vld [vmem:[%s1 + $0x758] sm:$0xf]
  %v546 = vld [vmem:[%s1 + $0x75c] sm:$0xf]
  %v547 = vld [vmem:[%s1 + $0x760] sm:$0xf]
  %v548 = vld [vmem:[%s1 + $0x764] sm:$0xf]
  %v549 = vld [vmem:[%s1 + $0x768] sm:$0xf]
  %v550 = vld [vmem:[%s1 + $0x76c] sm:$0xf]
  %v551 = vld [vmem:[%s1 + $0x770] sm:$0xf]
  %v552 = vld [vmem:[%s1 + $0x774] sm:$0xf]
  %v553 = vld [vmem:[%s1 + $0x778] sm:$0xf]
  %v554 = vld [vmem:[%s1 + $0x77c] sm:$0xf]
  %v555 = vld [vmem:[%s1 + $0x780] sm:$0xf]
  %v556 = vld [vmem:[%s1 + $0x784] sm:$0xf]
  %v557 = vld [vmem:[%s1 + $0x788] sm:$0xf]
  %v558 = vld [vmem:[%s1 + $0x78c] sm:$0xf]
  %v559 = vld [vmem:[%s1 + $0x790] sm:$0xf]
  %v560 = vld [vmem:[%s1 + $0x794] sm:$0xf]
  %v561 = vld [vmem:[%s1 + $0x798] sm:$0xf]
  %v562 = vld [vmem:[%s1 + $0x79c] sm:$0xf]
  %v563 = vld [vmem:[%s1 + $0x7a0] sm:$0xf]
  %v564 = vld [vmem:[%s1 + $0x7a4] sm:$0xf]
  %v565 = vld [vmem:[%s1 + $0x7a8] sm:$0xf]
  %v566 = vld [vmem:[%s1 + $0x7ac] sm:$0xf]
  %v567 = vld [vmem:[%s1 + $0x7b0] sm:$0xf]
  %v568 = vld [vmem:[%s1 + $0x7b4] sm:$0xf]
  %v569 = vld [vmem:[%s1 + $0x7b8] sm:$0xf]
  %v570 = vld [vmem:[%s1 + $0x7bc] sm:$0xf]
  %v571 = vld [vmem:[%s1 + $0x7c0] sm:$0xf]
  %v572 = vld [vmem:[%s1 + $0x7c4] sm:$0xf]
  %v573 = vld [vmem:[%s1 + $0x7c8] sm:$0xf]
  %v574 = vld [vmem:[%s1 + $0x7cc] sm:$0xf]
  %v575 = vld [vmem:[%s1 + $0x7d0] sm:$0xf]
  %v576 = vld [vmem:[%s1 + $0x7d4] sm:$0xf]
  %v577 = vld [vmem:[%s1 + $0x7d8] sm:$0xf]
  %v578 = vld [vmem:[%s1 + $0x7dc] sm:$0xf]
  %v579 = vld [vmem:[%s1 + $0x7e0] sm:$0xf]
  %v580 = vld [vmem:[%s1 + $0x7e4] sm:$0xf]
  %v581 = vld [vmem:[%s1 + $0x7e8] sm:$0xf]
  %v582 = vld [vmem:[%s1 + $0x7ec] sm:$0xf]
  %v583 = vld [vmem:[%s1 + $0x7f0] sm:$0xf]
  %v584 = vld [vmem:[%s1 + $0x7f4] sm:$0xf]
  %v585 = vld [vmem:[%s1 + $0x7f8] sm:$0xf]
  %v586 = vld [vmem:[%s1 + $0x7fc] sm:$0xf]
  %v603 = vunpack.c.l.b16 %v75
  %v604 = vunpack.c.l.b16 %v76
  %v605 = vunpack.c.l.b16 %v77
  %v606 = vunpack.c.l.b16 %v78
  %v607 = vunpack.c.l.b16 %v79
  %v608 = vunpack.c.l.b16 %v80
  %v609 = vunpack.c.l.b16 %v81
  %v610 = vunpack.c.l.b16 %v82
  %v611 = vunpack.c.l.b16 %v83
  %v612 = vunpack.c.l.b16 %v84
  %v613 = vunpack.c.l.b16 %v85
  %v614 = vunpack.c.l.b16 %v86
  %v615 = vunpack.c.l.b16 %v87
  %v616 = vunpack.c.l.b16 %v88
  %v617 = vunpack.c.l.b16 %v89
  %v618 = vunpack.c.l.b16 %v90
  %v619 = vpack.c.b16 %v604, %v603
  %v620 = vpack.c.b16 %v606, %v605
  %v621 = vpack.c.b16 %v608, %v607
  %v622 = vpack.c.b16 %v610, %v609
  %v623 = vpack.c.b16 %v612, %v611
  %v624 = vpack.c.b16 %v614, %v613
  %v625 = vpack.c.b16 %v616, %v615
  %v626 = vpack.c.b16 %v618, %v617
  %635 = vmatpush.bf16.msra.mxu0 %v626
  %636 = vmatpush.bf16.msra.mxu0 %v625
  %637 = vmatpush.bf16.msra.mxu0 %v624
  %638 = vmatpush.bf16.msra.mxu0 %v623
  %639 = vmatpush.bf16.msra.mxu0 %v622
  %640 = vmatpush.bf16.msra.mxu0 %v621
  %641 = vmatpush.bf16.msra.mxu0 %v620
  %642 = vmatpush.bf16.msra.mxu0 %v619
  %643 = vmatmul.bf16.gmra.mxu0 %v43
  %v644 = vpop.f32.mrf.mxu0
  %v645 = vadd.f32 0.0, %v644
  %v646 = vpop.f32.mrf.mxu0
  %647 = vdwg.mxu0
  %v664 = vunpack.c.l.b16 %v91
  %v665 = vunpack.c.l.b16 %v92
  %v666 = vunpack.c.l.b16 %v93
  %v667 = vunpack.c.l.b16 %v94
  %v668 = vunpack.c.l.b16 %v95
  %v669 = vunpack.c.l.b16 %v96
  %v670 = vunpack.c.l.b16 %v97
  %v671 = vunpack.c.l.b16 %v98
  %v672 = vunpack.c.l.b16 %v99
  %v673 = vunpack.c.l.b16 %v100
  %v674 = vunpack.c.l.b16 %v101
  %v675 = vunpack.c.l.b16 %v102
  %v676 = vunpack.c.l.b16 %v103
  %v677 = vunpack.c.l.b16 %v104
  %v678 = vunpack.c.l.b16 %v105
  %v679 = vunpack.c.l.b16 %v106
  %v680 = vpack.c.b16 %v665, %v664
  %v681 = vpack.c.b16 %v667, %v666
  %v682 = vpack.c.b16 %v669, %v668
  %v683 = vpack.c.b16 %v671, %v670
  %v684 = vpack.c.b16 %v673, %v672
  %v685 = vpack.c.b16 %v675, %v674
  %v686 = vpack.c.b16 %v677, %v676
  %v687 = vpack.c.b16 %v679, %v678
  %696 = vmatpush.bf16.msra.mxu0 %v687
  %697 = vmatpush.bf16.msra.mxu0 %v686
  %698 = vmatpush.bf16.msra.mxu0 %v685
  %699 = vmatpush.bf16.msra.mxu0 %v684
  %700 = vmatpush.bf16.msra.mxu0 %v683
  %701 = vmatpush.bf16.msra.mxu0 %v682
  %702 = vmatpush.bf16.msra.mxu0 %v681
  %703 = vmatpush.bf16.msra.mxu0 %v680
  %704 = vmatmul.bf16.gmra.mxu0 %v44
  %v705 = vpop.f32.mrf.mxu0
  %v706 = vadd.f32 0.0, %v705
  %v707 = vpop.f32.mrf.mxu0
  %708 = vdwg.mxu0
  %v725 = vunpack.c.l.b16 %v107
  %v726 = vunpack.c.l.b16 %v108
  %v727 = vunpack.c.l.b16 %v109
  %v728 = vunpack.c.l.b16 %v110
  %v729 = vunpack.c.l.b16 %v111
  %v730 = vunpack.c.l.b16 %v112
  %v731 = vunpack.c.l.b16 %v113
  %v732 = vunpack.c.l.b16 %v114
  %v733 = vunpack.c.l.b16 %v115
  %v734 = vunpack.c.l.b16 %v116
  %v735 = vunpack.c.l.b16 %v117
  %v736 = vunpack.c.l.b16 %v118
  %v737 = vunpack.c.l.b16 %v119
  %v738 = vunpack.c.l.b16 %v120
  %v739 = vunpack.c.l.b16 %v121
  %v740 = vunpack.c.l.b16 %v122
  %v741 = vpack.c.b16 %v726, %v725
  %v742 = vpack.c.b16 %v728, %v727
  %v743 = vpack.c.b16 %v730, %v729
  %v744 = vpack.c.b16 %v732, %v731
  %v745 = vpack.c.b16 %v734, %v733
  %v746 = vpack.c.b16 %v736, %v735
  %v747 = vpack.c.b16 %v738, %v737
  %v748 = vpack.c.b16 %v740, %v739
  %757 = vmatpush.bf16.msra.mxu0 %v748
  %758 = vmatpush.bf16.msra.mxu0 %v747
  %759 = vmatpush.bf16.msra.mxu0 %v746
  %760 = vmatpush.bf16.msra.mxu0 %v745
  %761 = vmatpush.bf16.msra.mxu0 %v744
  %762 = vmatpush.bf16.msra.mxu0 %v743
  %763 = vmatpush.bf16.msra.mxu0 %v742
  %764 = vmatpush.bf16.msra.mxu0 %v741
  %765 = vmatmul.bf16.gmra.mxu0 %v45
  %v766 = vpop.f32.mrf.mxu0
  %v767 = vadd.f32 0.0, %v766
  %v768 = vpop.f32.mrf.mxu0
  %769 = vdwg.mxu0
  %v786 = vunpack.c.l.b16 %v123
  %v787 = vunpack.c.l.b16 %v124
  %v788 = vunpack.c.l.b16 %v125
  %v789 = vunpack.c.l.b16 %v126
  %v790 = vunpack.c.l.b16 %v127
  %v791 = vunpack.c.l.b16 %v128
  %v792 = vunpack.c.l.b16 %v129
  %v793 = vunpack.c.l.b16 %v130
  %v794 = vunpack.c.l.b16 %v131
  %v795 = vunpack.c.l.b16 %v132
  %v796 = vunpack.c.l.b16 %v133
  %v797 = vunpack.c.l.b16 %v134
  %v798 = vunpack.c.l.b16 %v135
  %v799 = vunpack.c.l.b16 %v136
  %v800 = vunpack.c.l.b16 %v137
  %v801 = vunpack.c.l.b16 %v138
  %v802 = vpack.c.b16 %v787, %v786
  %v803 = vpack.c.b16 %v789, %v788
  %v804 = vpack.c.b16 %v791, %v790
  %v805 = vpack.c.b16 %v793, %v792
  %v806 = vpack.c.b16 %v795, %v794
  %v807 = vpack.c.b16 %v797, %v796
  %v808 = vpack.c.b16 %v799, %v798
  %v809 = vpack.c.b16 %v801, %v800
  %818 = vmatpush.bf16.msra.mxu0 %v809
  %819 = vmatpush.bf16.msra.mxu0 %v808
  %820 = vmatpush.bf16.msra.mxu0 %v807
  %821 = vmatpush.bf16.msra.mxu0 %v806
  %822 = vmatpush.bf16.msra.mxu0 %v805
  %823 = vmatpush.bf16.msra.mxu0 %v804
  %824 = vmatpush.bf16.msra.mxu0 %v803
  %825 = vmatpush.bf16.msra.mxu0 %v802
  %826 = vmatmul.bf16.gmra.mxu0 %v46
  %v827 = vpop.f32.mrf.mxu0
  %v828 = vadd.f32 0.0, %v827
  %v829 = vpop.f32.mrf.mxu0
  %830 = vdwg.mxu0
  %v847 = vunpack.c.l.b16 %v139
  %v848 = vunpack.c.l.b16 %v140
  %v849 = vunpack.c.l.b16 %v141
  %v850 = vunpack.c.l.b16 %v142
  %v851 = vunpack.c.l.b16 %v143
  %v852 = vunpack.c.l.b16 %v144
  %v853 = vunpack.c.l.b16 %v145
  %v854 = vunpack.c.l.b16 %v146
  %v855 = vunpack.c.l.b16 %v147
  %v856 = vunpack.c.l.b16 %v148
  %v857 = vunpack.c.l.b16 %v149
  %v858 = vunpack.c.l.b16 %v150
  %v859 = vunpack.c.l.b16 %v151
  %v860 = vunpack.c.l.b16 %v152
  %v861 = vunpack.c.l.b16 %v153
  %v862 = vunpack.c.l.b16 %v154
  %v863 = vpack.c.b16 %v848, %v847
  %v864 = vpack.c.b16 %v850, %v849
  %v865 = vpack.c.b16 %v852, %v851
  %v866 = vpack.c.b16 %v854, %v853
  %v867 = vpack.c.b16 %v856, %v855
  %v868 = vpack.c.b16 %v858, %v857
  %v869 = vpack.c.b16 %v860, %v859
  %v870 = vpack.c.b16 %v862, %v861
  %879 = vmatpush.bf16.msra.mxu0 %v870
  %880 = vmatpush.bf16.msra.mxu0 %v869
  %881 = vmatpush.bf16.msra.mxu0 %v868
  %882 = vmatpush.bf16.msra.mxu0 %v867
  %883 = vmatpush.bf16.msra.mxu0 %v866
  %884 = vmatpush.bf16.msra.mxu0 %v865
  %885 = vmatpush.bf16.msra.mxu0 %v864
  %886 = vmatpush.bf16.msra.mxu0 %v863
  %887 = vmatmul.bf16.gmra.mxu0 %v47
  %v888 = vpop.f32.mrf.mxu0
  %v889 = vadd.f32 0.0, %v888
  %v890 = vpop.f32.mrf.mxu0
  %891 = vdwg.mxu0
  %v908 = vunpack.c.l.b16 %v155
  %v909 = vunpack.c.l.b16 %v156
  %v910 = vunpack.c.l.b16 %v157
  %v911 = vunpack.c.l.b16 %v158
  %v912 = vunpack.c.l.b16 %v159
  %v913 = vunpack.c.l.b16 %v160
  %v914 = vunpack.c.l.b16 %v161
  %v915 = vunpack.c.l.b16 %v162
  %v916 = vunpack.c.l.b16 %v163
  %v917 = vunpack.c.l.b16 %v164
  %v918 = vunpack.c.l.b16 %v165
  %v919 = vunpack.c.l.b16 %v166
  %v920 = vunpack.c.l.b16 %v167
  %v921 = vunpack.c.l.b16 %v168
  %v922 = vunpack.c.l.b16 %v169
  %v923 = vunpack.c.l.b16 %v170
  %v924 = vpack.c.b16 %v909, %v908
  %v925 = vpack.c.b16 %v911, %v910
  %v926 = vpack.c.b16 %v913, %v912
  %v927 = vpack.c.b16 %v915, %v914
  %v928 = vpack.c.b16 %v917, %v916
  %v929 = vpack.c.b16 %v919, %v918
  %v930 = vpack.c.b16 %v921, %v920
  %v931 = vpack.c.b16 %v923, %v922
  %940 = vmatpush.bf16.msra.mxu0 %v931
  %941 = vmatpush.bf16.msra.mxu0 %v930
  %942 = vmatpush.bf16.msra.mxu0 %v929
  %943 = vmatpush.bf16.msra.mxu0 %v928
  %944 = vmatpush.bf16.msra.mxu0 %v927
  %945 = vmatpush.bf16.msra.mxu0 %v926
  %946 = vmatpush.bf16.msra.mxu0 %v925
  %947 = vmatpush.bf16.msra.mxu0 %v924
  %948 = vmatmul.bf16.gmra.mxu0 %v48
  %v949 = vpop.f32.mrf.mxu0
  %v950 = vadd.f32 0.0, %v949
  %v951 = vpop.f32.mrf.mxu0
  %952 = vdwg.mxu0
  %v969 = vunpack.c.l.b16 %v171
  %v970 = vunpack.c.l.b16 %v172
  %v971 = vunpack.c.l.b16 %v173
  %v972 = vunpack.c.l.b16 %v174
  %v973 = vunpack.c.l.b16 %v175
  %v974 = vunpack.c.l.b16 %v176
  %v975 = vunpack.c.l.b16 %v177
  %v976 = vunpack.c.l.b16 %v178
  %v977 = vunpack.c.l.b16 %v179
  %v978 = vunpack.c.l.b16 %v180
  %v979 = vunpack.c.l.b16 %v181
  %v980 = vunpack.c.l.b16 %v182
  %v981 = vunpack.c.l.b16 %v183
  %v982 = vunpack.c.l.b16 %v184
  %v983 = vunpack.c.l.b16 %v185
  %v984 = vunpack.c.l.b16 %v186
  %v985 = vpack.c.b16 %v970, %v969
  %v986 = vpack.c.b16 %v972, %v971
  %v987 = vpack.c.b16 %v974, %v973
  %v988 = vpack.c.b16 %v976, %v975
  %v989 = vpack.c.b16 %v978, %v977
  %v990 = vpack.c.b16 %v980, %v979
  %v991 = vpack.c.b16 %v982, %v981
  %v992 = vpack.c.b16 %v984, %v983
  %1001 = vmatpush.bf16.msra.mxu0 %v992
  %1002 = vmatpush.bf16.msra.mxu0 %v991
  %1003 = vmatpush.bf16.msra.mxu0 %v990
  %1004 = vmatpush.bf16.msra.mxu0 %v989
  %1005 = vmatpush.bf16.msra.mxu0 %v988
  %1006 = vmatpush.bf16.msra.mxu0 %v987
  %1007 = vmatpush.bf16.msra.mxu0 %v986
  %1008 = vmatpush.bf16.msra.mxu0 %v985
  %1009 = vmatmul.bf16.gmra.mxu0 %v49
  %v1010 = vpop.f32.mrf.mxu0
  %v1011 = vadd.f32 0.0, %v1010
  %v1012 = vpop.f32.mrf.mxu0
  %1013 = vdwg.mxu0
  %v1030 = vunpack.c.l.b16 %v187
  %v1031 = vunpack.c.l.b16 %v188
  %v1032 = vunpack.c.l.b16 %v189
  %v1033 = vunpack.c.l.b16 %v190
  %v1034 = vunpack.c.l.b16 %v191
  %v1035 = vunpack.c.l.b16 %v192
  %v1036 = vunpack.c.l.b16 %v193
  %v1037 = vunpack.c.l.b16 %v194
  %v1038 = vunpack.c.l.b16 %v195
  %v1039 = vunpack.c.l.b16 %v196
  %v1040 = vunpack.c.l.b16 %v197
  %v1041 = vunpack.c.l.b16 %v198
  %v1042 = vunpack.c.l.b16 %v199
  %v1043 = vunpack.c.l.b16 %v200
  %v1044 = vunpack.c.l.b16 %v201
  %v1045 = vunpack.c.l.b16 %v202
  %v1046 = vpack.c.b16 %v1031, %v1030
  %v1047 = vpack.c.b16 %v1033, %v1032
  %v1048 = vpack.c.b16 %v1035, %v1034
  %v1049 = vpack.c.b16 %v1037, %v1036
  %v1050 = vpack.c.b16 %v1039, %v1038
  %v1051 = vpack.c.b16 %v1041, %v1040
  %v1052 = vpack.c.b16 %v1043, %v1042
  %v1053 = vpack.c.b16 %v1045, %v1044
  %1062 = vmatpush.bf16.msra.mxu0 %v1053
  %1063 = vmatpush.bf16.msra.mxu0 %v1052
  %1064 = vmatpush.bf16.msra.mxu0 %v1051
  %1065 = vmatpush.bf16.msra.mxu0 %v1050
  %1066 = vmatpush.bf16.msra.mxu0 %v1049
  %1067 = vmatpush.bf16.msra.mxu0 %v1048
  %1068 = vmatpush.bf16.msra.mxu0 %v1047
  %1069 = vmatpush.bf16.msra.mxu0 %v1046
  %1070 = vmatmul.bf16.gmra.mxu0 %v50
  %v1071 = vpop.f32.mrf.mxu0
  %v1072 = vadd.f32 0.0, %v1071
  %v1073 = vpop.f32.mrf.mxu0
  %1074 = vdwg.mxu0
  %v1091 = vunpack.c.l.b16 %v203
  %v1092 = vunpack.c.l.b16 %v204
  %v1093 = vunpack.c.l.b16 %v205
  %v1094 = vunpack.c.l.b16 %v206
  %v1095 = vunpack.c.l.b16 %v207
  %v1096 = vunpack.c.l.b16 %v208
  %v1097 = vunpack.c.l.b16 %v209
  %v1098 = vunpack.c.l.b16 %v210
  %v1099 = vunpack.c.l.b16 %v211
  %v1100 = vunpack.c.l.b16 %v212
  %v1101 = vunpack.c.l.b16 %v213
  %v1102 = vunpack.c.l.b16 %v214
  %v1103 = vunpack.c.l.b16 %v215
  %v1104 = vunpack.c.l.b16 %v216
  %v1105 = vunpack.c.l.b16 %v217
  %v1106 = vunpack.c.l.b16 %v218
  %v1107 = vpack.c.b16 %v1092, %v1091
  %v1108 = vpack.c.b16 %v1094, %v1093
  %v1109 = vpack.c.b16 %v1096, %v1095
  %v1110 = vpack.c.b16 %v1098, %v1097
  %v1111 = vpack.c.b16 %v1100, %v1099
  %v1112 = vpack.c.b16 %v1102, %v1101
  %v1113 = vpack.c.b16 %v1104, %v1103
  %v1114 = vpack.c.b16 %v1106, %v1105
  %1123 = vmatpush.bf16.msra.mxu0 %v1114
  %1124 = vmatpush.bf16.msra.mxu0 %v1113
  %1125 = vmatpush.bf16.msra.mxu0 %v1112
  %1126 = vmatpush.bf16.msra.mxu0 %v1111
  %1127 = vmatpush.bf16.msra.mxu0 %v1110
  %1128 = vmatpush.bf16.msra.mxu0 %v1109
  %1129 = vmatpush.bf16.msra.mxu0 %v1108
  %1130 = vmatpush.bf16.msra.mxu0 %v1107
  %1131 = vmatmul.bf16.gmra.mxu0 %v51
  %v1132 = vpop.f32.mrf.mxu0
  %v1133 = vadd.f32 0.0, %v1132
  %v1134 = vpop.f32.mrf.mxu0
  %1135 = vdwg.mxu0
  %v1152 = vunpack.c.l.b16 %v219
  %v1153 = vunpack.c.l.b16 %v220
  %v1154 = vunpack.c.l.b16 %v221
  %v1155 = vunpack.c.l.b16 %v222
  %v1156 = vunpack.c.l.b16 %v223
  %v1157 = vunpack.c.l.b16 %v224
  %v1158 = vunpack.c.l.b16 %v225
  %v1159 = vunpack.c.l.b16 %v226
  %v1160 = vunpack.c.l.b16 %v227
  %v1161 = vunpack.c.l.b16 %v228
  %v1162 = vunpack.c.l.b16 %v229
  %v1163 = vunpack.c.l.b16 %v230
  %v1164 = vunpack.c.l.b16 %v231
  %v1165 = vunpack.c.l.b16 %v232
  %v1166 = vunpack.c.l.b16 %v233
  %v1167 = vunpack.c.l.b16 %v234
  %v1168 = vpack.c.b16 %v1153, %v1152
  %v1169 = vpack.c.b16 %v1155, %v1154
  %v1170 = vpack.c.b16 %v1157, %v1156
  %v1171 = vpack.c.b16 %v1159, %v1158
  %v1172 = vpack.c.b16 %v1161, %v1160
  %v1173 = vpack.c.b16 %v1163, %v1162
  %v1174 = vpack.c.b16 %v1165, %v1164
  %v1175 = vpack.c.b16 %v1167, %v1166
  %1184 = vmatpush.bf16.msra.mxu0 %v1175
  %1185 = vmatpush.bf16.msra.mxu0 %v1174
  %1186 = vmatpush.bf16.msra.mxu0 %v1173
  %1187 = vmatpush.bf16.msra.mxu0 %v1172
  %1188 = vmatpush.bf16.msra.mxu0 %v1171
  %1189 = vmatpush.bf16.msra.mxu0 %v1170
  %1190 = vmatpush.bf16.msra.mxu0 %v1169
  %1191 = vmatpush.bf16.msra.mxu0 %v1168
  %1192 = vmatmul.bf16.gmra.mxu0 %v52
  %v1193 = vpop.f32.mrf.mxu0
  %v1194 = vadd.f32 0.0, %v1193
  %v1195 = vpop.f32.mrf.mxu0
  %1196 = vdwg.mxu0
  %v1213 = vunpack.c.l.b16 %v235
  %v1214 = vunpack.c.l.b16 %v236
  %v1215 = vunpack.c.l.b16 %v237
  %v1216 = vunpack.c.l.b16 %v238
  %v1217 = vunpack.c.l.b16 %v239
  %v1218 = vunpack.c.l.b16 %v240
  %v1219 = vunpack.c.l.b16 %v241
  %v1220 = vunpack.c.l.b16 %v242
  %v1221 = vunpack.c.l.b16 %v243
  %v1222 = vunpack.c.l.b16 %v244
  %v1223 = vunpack.c.l.b16 %v245
  %v1224 = vunpack.c.l.b16 %v246
  %v1225 = vunpack.c.l.b16 %v247
  %v1226 = vunpack.c.l.b16 %v248
  %v1227 = vunpack.c.l.b16 %v249
  %v1228 = vunpack.c.l.b16 %v250
  %v1229 = vpack.c.b16 %v1214, %v1213
  %v1230 = vpack.c.b16 %v1216, %v1215
  %v1231 = vpack.c.b16 %v1218, %v1217
  %v1232 = vpack.c.b16 %v1220, %v1219
  %v1233 = vpack.c.b16 %v1222, %v1221
  %v1234 = vpack.c.b16 %v1224, %v1223
  %v1235 = vpack.c.b16 %v1226, %v1225
  %v1236 = vpack.c.b16 %v1228, %v1227
  %1245 = vmatpush.bf16.msra.mxu0 %v1236
  %1246 = vmatpush.bf16.msra.mxu0 %v1235
  %1247 = vmatpush.bf16.msra.mxu0 %v1234
  %1248 = vmatpush.bf16.msra.mxu0 %v1233
  %1249 = vmatpush.bf16.msra.mxu0 %v1232
  %1250 = vmatpush.bf16.msra.mxu0 %v1231
  %1251 = vmatpush.bf16.msra.mxu0 %v1230
  %1252 = vmatpush.bf16.msra.mxu0 %v1229
  %1253 = vmatmul.bf16.gmra.mxu0 %v53
  %v1254 = vpop.f32.mrf.mxu0
  %v1255 = vadd.f32 0.0, %v1254
  %v1256 = vpop.f32.mrf.mxu0
  %1257 = vdwg.mxu0
  %v1274 = vunpack.c.l.b16 %v251
  %v1275 = vunpack.c.l.b16 %v252
  %v1276 = vunpack.c.l.b16 %v253
  %v1277 = vunpack.c.l.b16 %v254
  %v1278 = vunpack.c.l.b16 %v255
  %v1279 = vunpack.c.l.b16 %v256
  %v1280 = vunpack.c.l.b16 %v257
  %v1281 = vunpack.c.l.b16 %v258
  %v1282 = vunpack.c.l.b16 %v259
  %v1283 = vunpack.c.l.b16 %v260
  %v1284 = vunpack.c.l.b16 %v261
  %v1285 = vunpack.c.l.b16 %v262
  %v1286 = vunpack.c.l.b16 %v263
  %v1287 = vunpack.c.l.b16 %v264
  %v1288 = vunpack.c.l.b16 %v265
  %v1289 = vunpack.c.l.b16 %v266
  %v1290 = vpack.c.b16 %v1275, %v1274
  %v1291 = vpack.c.b16 %v1277, %v1276
  %v1292 = vpack.c.b16 %v1279, %v1278
  %v1293 = vpack.c.b16 %v1281, %v1280
  %v1294 = vpack.c.b16 %v1283, %v1282
  %v1295 = vpack.c.b16 %v1285, %v1284
  %v1296 = vpack.c.b16 %v1287, %v1286
  %v1297 = vpack.c.b16 %v1289, %v1288
  %1306 = vmatpush.bf16.msra.mxu0 %v1297
  %1307 = vmatpush.bf16.msra.mxu0 %v1296
  %1308 = vmatpush.bf16.msra.mxu0 %v1295
  %1309 = vmatpush.bf16.msra.mxu0 %v1294
  %1310 = vmatpush.bf16.msra.mxu0 %v1293
  %1311 = vmatpush.bf16.msra.mxu0 %v1292
  %1312 = vmatpush.bf16.msra.mxu0 %v1291
  %1313 = vmatpush.bf16.msra.mxu0 %v1290
  %1314 = vmatmul.bf16.gmra.mxu0 %v54
  %v1315 = vpop.f32.mrf.mxu0
  %v1316 = vadd.f32 0.0, %v1315
  %v1317 = vpop.f32.mrf.mxu0
  %1318 = vdwg.mxu0
  %v1335 = vunpack.c.l.b16 %v267
  %v1336 = vunpack.c.l.b16 %v268
  %v1337 = vunpack.c.l.b16 %v269
  %v1338 = vunpack.c.l.b16 %v270
  %v1339 = vunpack.c.l.b16 %v271
  %v1340 = vunpack.c.l.b16 %v272
  %v1341 = vunpack.c.l.b16 %v273
  %v1342 = vunpack.c.l.b16 %v274
  %v1343 = vunpack.c.l.b16 %v275
  %v1344 = vunpack.c.l.b16 %v276
  %v1345 = vunpack.c.l.b16 %v277
  %v1346 = vunpack.c.l.b16 %v278
  %v1347 = vunpack.c.l.b16 %v279
  %v1348 = vunpack.c.l.b16 %v280
  %v1349 = vunpack.c.l.b16 %v281
  %v1350 = vunpack.c.l.b16 %v282
  %v1351 = vpack.c.b16 %v1336, %v1335
  %v1352 = vpack.c.b16 %v1338, %v1337
  %v1353 = vpack.c.b16 %v1340, %v1339
  %v1354 = vpack.c.b16 %v1342, %v1341
  %v1355 = vpack.c.b16 %v1344, %v1343
  %v1356 = vpack.c.b16 %v1346, %v1345
  %v1357 = vpack.c.b16 %v1348, %v1347
  %v1358 = vpack.c.b16 %v1350, %v1349
  %1367 = vmatpush.bf16.msra.mxu0 %v1358
  %1368 = vmatpush.bf16.msra.mxu0 %v1357
  %1369 = vmatpush.bf16.msra.mxu0 %v1356
  %1370 = vmatpush.bf16.msra.mxu0 %v1355
  %1371 = vmatpush.bf16.msra.mxu0 %v1354
  %1372 = vmatpush.bf16.msra.mxu0 %v1353
  %1373 = vmatpush.bf16.msra.mxu0 %v1352
  %1374 = vmatpush.bf16.msra.mxu0 %v1351
  %1375 = vmatmul.bf16.gmra.mxu0 %v55
  %v1376 = vpop.f32.mrf.mxu0
  %v1377 = vadd.f32 0.0, %v1376
  %v1378 = vpop.f32.mrf.mxu0
  %1379 = vdwg.mxu0
  %v1396 = vunpack.c.l.b16 %v283
  %v1397 = vunpack.c.l.b16 %v284
  %v1398 = vunpack.c.l.b16 %v285
  %v1399 = vunpack.c.l.b16 %v286
  %v1400 = vunpack.c.l.b16 %v287
  %v1401 = vunpack.c.l.b16 %v288
  %v1402 = vunpack.c.l.b16 %v289
  %v1403 = vunpack.c.l.b16 %v290
  %v1404 = vunpack.c.l.b16 %v291
  %v1405 = vunpack.c.l.b16 %v292
  %v1406 = vunpack.c.l.b16 %v293
  %v1407 = vunpack.c.l.b16 %v294
  %v1408 = vunpack.c.l.b16 %v295
  %v1409 = vunpack.c.l.b16 %v296
  %v1410 = vunpack.c.l.b16 %v297
  %v1411 = vunpack.c.l.b16 %v298
  %v1412 = vpack.c.b16 %v1397, %v1396
  %v1413 = vpack.c.b16 %v1399, %v1398
  %v1414 = vpack.c.b16 %v1401, %v1400
  %v1415 = vpack.c.b16 %v1403, %v1402
  %v1416 = vpack.c.b16 %v1405, %v1404
  %v1417 = vpack.c.b16 %v1407, %v1406
  %v1418 = vpack.c.b16 %v1409, %v1408
  %v1419 = vpack.c.b16 %v1411, %v1410
  %1428 = vmatpush.bf16.msra.mxu0 %v1419
  %1429 = vmatpush.bf16.msra.mxu0 %v1418
  %1430 = vmatpush.bf16.msra.mxu0 %v1417
  %1431 = vmatpush.bf16.msra.mxu0 %v1416
  %1432 = vmatpush.bf16.msra.mxu0 %v1415
  %1433 = vmatpush.bf16.msra.mxu0 %v1414
  %1434 = vmatpush.bf16.msra.mxu0 %v1413
  %1435 = vmatpush.bf16.msra.mxu0 %v1412
  %1436 = vmatmul.bf16.gmra.mxu0 %v56
  %v1437 = vpop.f32.mrf.mxu0
  %v1438 = vadd.f32 0.0, %v1437
  %v1439 = vpop.f32.mrf.mxu0
  %1440 = vdwg.mxu0
  %v1457 = vunpack.c.l.b16 %v299
  %v1458 = vunpack.c.l.b16 %v300
  %v1459 = vunpack.c.l.b16 %v301
  %v1460 = vunpack.c.l.b16 %v302
  %v1461 = vunpack.c.l.b16 %v303
  %v1462 = vunpack.c.l.b16 %v304
  %v1463 = vunpack.c.l.b16 %v305
  %v1464 = vunpack.c.l.b16 %v306
  %v1465 = vunpack.c.l.b16 %v307
  %v1466 = vunpack.c.l.b16 %v308
  %v1467 = vunpack.c.l.b16 %v309
  %v1468 = vunpack.c.l.b16 %v310
  %v1469 = vunpack.c.l.b16 %v311
  %v1470 = vunpack.c.l.b16 %v312
  %v1471 = vunpack.c.l.b16 %v313
  %v1472 = vunpack.c.l.b16 %v314
  %v1473 = vpack.c.b16 %v1458, %v1457
  %v1474 = vpack.c.b16 %v1460, %v1459
  %v1475 = vpack.c.b16 %v1462, %v1461
  %v1476 = vpack.c.b16 %v1464, %v1463
  %v1477 = vpack.c.b16 %v1466, %v1465
  %v1478 = vpack.c.b16 %v1468, %v1467
  %v1479 = vpack.c.b16 %v1470, %v1469
  %v1480 = vpack.c.b16 %v1472, %v1471
  %1489 = vmatpush.bf16.msra.mxu0 %v1480
  %1490 = vmatpush.bf16.msra.mxu0 %v1479
  %1491 = vmatpush.bf16.msra.mxu0 %v1478
  %1492 = vmatpush.bf16.msra.mxu0 %v1477
  %1493 = vmatpush.bf16.msra.mxu0 %v1476
  %1494 = vmatpush.bf16.msra.mxu0 %v1475
  %1495 = vmatpush.bf16.msra.mxu0 %v1474
  %1496 = vmatpush.bf16.msra.mxu0 %v1473
  %1497 = vmatmul.bf16.gmra.mxu0 %v57
  %v1498 = vpop.f32.mrf.mxu0
  %v1499 = vadd.f32 0.0, %v1498
  %v1500 = vpop.f32.mrf.mxu0
  %1501 = vdwg.mxu0
  %v1518 = vunpack.c.l.b16 %v315
  %v1519 = vunpack.c.l.b16 %v316
  %v1520 = vunpack.c.l.b16 %v317
  %v1521 = vunpack.c.l.b16 %v318
  %v1522 = vunpack.c.l.b16 %v319
  %v1523 = vunpack.c.l.b16 %v320
  %v1524 = vunpack.c.l.b16 %v321
  %v1525 = vunpack.c.l.b16 %v322
  %v1526 = vunpack.c.l.b16 %v323
  %v1527 = vunpack.c.l.b16 %v324
  %v1528 = vunpack.c.l.b16 %v325
  %v1529 = vunpack.c.l.b16 %v326
  %v1530 = vunpack.c.l.b16 %v327
  %v1531 = vunpack.c.l.b16 %v328
  %v1532 = vunpack.c.l.b16 %v329
  %v1533 = vunpack.c.l.b16 %v330
  %v1534 = vpack.c.b16 %v1519, %v1518
  %v1535 = vpack.c.b16 %v1521, %v1520
  %v1536 = vpack.c.b16 %v1523, %v1522
  %v1537 = vpack.c.b16 %v1525, %v1524
  %v1538 = vpack.c.b16 %v1527, %v1526
  %v1539 = vpack.c.b16 %v1529, %v1528
  %v1540 = vpack.c.b16 %v1531, %v1530
  %v1541 = vpack.c.b16 %v1533, %v1532
  %1550 = vmatpush.bf16.msra.mxu0 %v1541
  %1551 = vmatpush.bf16.msra.mxu0 %v1540
  %1552 = vmatpush.bf16.msra.mxu0 %v1539
  %1553 = vmatpush.bf16.msra.mxu0 %v1538
  %1554 = vmatpush.bf16.msra.mxu0 %v1537
  %1555 = vmatpush.bf16.msra.mxu0 %v1536
  %1556 = vmatpush.bf16.msra.mxu0 %v1535
  %1557 = vmatpush.bf16.msra.mxu0 %v1534
  %1558 = vmatmul.bf16.gmra.mxu0 %v58
  %v1559 = vpop.f32.mrf.mxu0
  %v1560 = vadd.f32 0.0, %v1559
  %v1561 = vpop.f32.mrf.mxu0
  %1562 = vdwg.mxu0
  %v1579 = vunpack.c.l.b16 %v331
  %v1580 = vunpack.c.l.b16 %v332
  %v1581 = vunpack.c.l.b16 %v333
  %v1582 = vunpack.c.l.b16 %v334
  %v1583 = vunpack.c.l.b16 %v335
  %v1584 = vunpack.c.l.b16 %v336
  %v1585 = vunpack.c.l.b16 %v337
  %v1586 = vunpack.c.l.b16 %v338
  %v1587 = vunpack.c.l.b16 %v339
  %v1588 = vunpack.c.l.b16 %v340
  %v1589 = vunpack.c.l.b16 %v341
  %v1590 = vunpack.c.l.b16 %v342
  %v1591 = vunpack.c.l.b16 %v343
  %v1592 = vunpack.c.l.b16 %v344
  %v1593 = vunpack.c.l.b16 %v345
  %v1594 = vunpack.c.l.b16 %v346
  %v1595 = vpack.c.b16 %v1580, %v1579
  %v1596 = vpack.c.b16 %v1582, %v1581
  %v1597 = vpack.c.b16 %v1584, %v1583
  %v1598 = vpack.c.b16 %v1586, %v1585
  %v1599 = vpack.c.b16 %v1588, %v1587
  %v1600 = vpack.c.b16 %v1590, %v1589
  %v1601 = vpack.c.b16 %v1592, %v1591
  %v1602 = vpack.c.b16 %v1594, %v1593
  %1611 = vmatpush.bf16.msra.mxu0 %v1602
  %1612 = vmatpush.bf16.msra.mxu0 %v1601
  %1613 = vmatpush.bf16.msra.mxu0 %v1600
  %1614 = vmatpush.bf16.msra.mxu0 %v1599
  %1615 = vmatpush.bf16.msra.mxu0 %v1598
  %1616 = vmatpush.bf16.msra.mxu0 %v1597
  %1617 = vmatpush.bf16.msra.mxu0 %v1596
  %1618 = vmatpush.bf16.msra.mxu0 %v1595
  %1619 = vmatmul.bf16.gmra.mxu0 %v59
  %v1620 = vpop.f32.mrf.mxu0
  %v1621 = vadd.f32 0.0, %v1620
  %v1622 = vpop.f32.mrf.mxu0
  %1623 = vdwg.mxu0
  %v1640 = vunpack.c.l.b16 %v347
  %v1641 = vunpack.c.l.b16 %v348
  %v1642 = vunpack.c.l.b16 %v349
  %v1643 = vunpack.c.l.b16 %v350
  %v1644 = vunpack.c.l.b16 %v351
  %v1645 = vunpack.c.l.b16 %v352
  %v1646 = vunpack.c.l.b16 %v353
  %v1647 = vunpack.c.l.b16 %v354
  %v1648 = vunpack.c.l.b16 %v355
  %v1649 = vunpack.c.l.b16 %v356
  %v1650 = vunpack.c.l.b16 %v357
  %v1651 = vunpack.c.l.b16 %v358
  %v1652 = vunpack.c.l.b16 %v359
  %v1653 = vunpack.c.l.b16 %v360
  %v1654 = vunpack.c.l.b16 %v361
  %v1655 = vunpack.c.l.b16 %v362
  %v1656 = vpack.c.b16 %v1641, %v1640
  %v1657 = vpack.c.b16 %v1643, %v1642
  %v1658 = vpack.c.b16 %v1645, %v1644
  %v1659 = vpack.c.b16 %v1647, %v1646
  %v1660 = vpack.c.b16 %v1649, %v1648
  %v1661 = vpack.c.b16 %v1651, %v1650
  %v1662 = vpack.c.b16 %v1653, %v1652
  %v1663 = vpack.c.b16 %v1655, %v1654
  %1672 = vmatpush.bf16.msra.mxu0 %v1663
  %1673 = vmatpush.bf16.msra.mxu0 %v1662
  %1674 = vmatpush.bf16.msra.mxu0 %v1661
  %1675 = vmatpush.bf16.msra.mxu0 %v1660
  %1676 = vmatpush.bf16.msra.mxu0 %v1659
  %1677 = vmatpush.bf16.msra.mxu0 %v1658
  %1678 = vmatpush.bf16.msra.mxu0 %v1657
  %1679 = vmatpush.bf16.msra.mxu0 %v1656
  %1680 = vmatmul.bf16.gmra.mxu0 %v60
  %v1681 = vpop.f32.mrf.mxu0
  %v1682 = vadd.f32 0.0, %v1681
  %v1683 = vpop.f32.mrf.mxu0
  %1684 = vdwg.mxu0
  %v1701 = vunpack.c.l.b16 %v363
  %v1702 = vunpack.c.l.b16 %v364
  %v1703 = vunpack.c.l.b16 %v365
  %v1704 = vunpack.c.l.b16 %v366
  %v1705 = vunpack.c.l.b16 %v367
  %v1706 = vunpack.c.l.b16 %v368
  %v1707 = vunpack.c.l.b16 %v369
  %v1708 = vunpack.c.l.b16 %v370
  %v1709 = vunpack.c.l.b16 %v371
  %v1710 = vunpack.c.l.b16 %v372
  %v1711 = vunpack.c.l.b16 %v373
  %v1712 = vunpack.c.l.b16 %v374
  %v1713 = vunpack.c.l.b16 %v375
  %v1714 = vunpack.c.l.b16 %v376
  %v1715 = vunpack.c.l.b16 %v377
  %v1716 = vunpack.c.l.b16 %v378
  %v1717 = vpack.c.b16 %v1702, %v1701
  %v1718 = vpack.c.b16 %v1704, %v1703
  %v1719 = vpack.c.b16 %v1706, %v1705
  %v1720 = vpack.c.b16 %v1708, %v1707
  %v1721 = vpack.c.b16 %v1710, %v1709
  %v1722 = vpack.c.b16 %v1712, %v1711
  %v1723 = vpack.c.b16 %v1714, %v1713
  %v1724 = vpack.c.b16 %v1716, %v1715
  %1733 = vmatpush.bf16.msra.mxu0 %v1724
  %1734 = vmatpush.bf16.msra.mxu0 %v1723
  %1735 = vmatpush.bf16.msra.mxu0 %v1722
  %1736 = vmatpush.bf16.msra.mxu0 %v1721
  %1737 = vmatpush.bf16.msra.mxu0 %v1720
  %1738 = vmatpush.bf16.msra.mxu0 %v1719
  %1739 = vmatpush.bf16.msra.mxu0 %v1718
  %1740 = vmatpush.bf16.msra.mxu0 %v1717
  %1741 = vmatmul.bf16.gmra.mxu0 %v61
  %v1742 = vpop.f32.mrf.mxu0
  %v1743 = vadd.f32 0.0, %v1742
  %v1744 = vpop.f32.mrf.mxu0
  %1745 = vdwg.mxu0
  %v1762 = vunpack.c.l.b16 %v379
  %v1763 = vunpack.c.l.b16 %v380
  %v1764 = vunpack.c.l.b16 %v381
  %v1765 = vunpack.c.l.b16 %v382
  %v1766 = vunpack.c.l.b16 %v383
  %v1767 = vunpack.c.l.b16 %v384
  %v1768 = vunpack.c.l.b16 %v385
  %v1769 = vunpack.c.l.b16 %v386
  %v1770 = vunpack.c.l.b16 %v387
  %v1771 = vunpack.c.l.b16 %v388
  %v1772 = vunpack.c.l.b16 %v389
  %v1773 = vunpack.c.l.b16 %v390
  %v1774 = vunpack.c.l.b16 %v391
  %v1775 = vunpack.c.l.b16 %v392
  %v1776 = vunpack.c.l.b16 %v393
  %v1777 = vunpack.c.l.b16 %v394
  %v1778 = vpack.c.b16 %v1763, %v1762
  %v1779 = vpack.c.b16 %v1765, %v1764
  %v1780 = vpack.c.b16 %v1767, %v1766
  %v1781 = vpack.c.b16 %v1769, %v1768
  %v1782 = vpack.c.b16 %v1771, %v1770
  %v1783 = vpack.c.b16 %v1773, %v1772
  %v1784 = vpack.c.b16 %v1775, %v1774
  %v1785 = vpack.c.b16 %v1777, %v1776
  %1794 = vmatpush.bf16.msra.mxu0 %v1785
  %1795 = vmatpush.bf16.msra.mxu0 %v1784
  %1796 = vmatpush.bf16.msra.mxu0 %v1783
  %1797 = vmatpush.bf16.msra.mxu0 %v1782
  %1798 = vmatpush.bf16.msra.mxu0 %v1781
  %1799 = vmatpush.bf16.msra.mxu0 %v1780
  %1800 = vmatpush.bf16.msra.mxu0 %v1779
  %1801 = vmatpush.bf16.msra.mxu0 %v1778
  %1802 = vmatmul.bf16.gmra.mxu0 %v62
  %v1803 = vpop.f32.mrf.mxu0
  %v1804 = vadd.f32 0.0, %v1803
  %v1805 = vpop.f32.mrf.mxu0
  %1806 = vdwg.mxu0
  %v1823 = vunpack.c.l.b16 %v395
  %v1824 = vunpack.c.l.b16 %v396
  %v1825 = vunpack.c.l.b16 %v397
  %v1826 = vunpack.c.l.b16 %v398
  %v1827 = vunpack.c.l.b16 %v399
  %v1828 = vunpack.c.l.b16 %v400
  %v1829 = vunpack.c.l.b16 %v401
  %v1830 = vunpack.c.l.b16 %v402
  %v1831 = vunpack.c.l.b16 %v403
  %v1832 = vunpack.c.l.b16 %v404
  %v1833 = vunpack.c.l.b16 %v405
  %v1834 = vunpack.c.l.b16 %v406
  %v1835 = vunpack.c.l.b16 %v407
  %v1836 = vunpack.c.l.b16 %v408
  %v1837 = vunpack.c.l.b16 %v409
  %v1838 = vunpack.c.l.b16 %v410
  %v1839 = vpack.c.b16 %v1824, %v1823
  %v1840 = vpack.c.b16 %v1826, %v1825
  %v1841 = vpack.c.b16 %v1828, %v1827
  %v1842 = vpack.c.b16 %v1830, %v1829
  %v1843 = vpack.c.b16 %v1832, %v1831
  %v1844 = vpack.c.b16 %v1834, %v1833
  %v1845 = vpack.c.b16 %v1836, %v1835
  %v1846 = vpack.c.b16 %v1838, %v1837
  %1855 = vmatpush.bf16.msra.mxu0 %v1846
  %1856 = vmatpush.bf16.msra.mxu0 %v1845
  %1857 = vmatpush.bf16.msra.mxu0 %v1844
  %1858 = vmatpush.bf16.msra.mxu0 %v1843
  %1859 = vmatpush.bf16.msra.mxu0 %v1842
  %1860 = vmatpush.bf16.msra.mxu0 %v1841
  %1861 = vmatpush.bf16.msra.mxu0 %v1840
  %1862 = vmatpush.bf16.msra.mxu0 %v1839
  %1863 = vmatmul.bf16.gmra.mxu0 %v63
  %v1864 = vpop.f32.mrf.mxu0
  %v1865 = vadd.f32 0.0, %v1864
  %v1866 = vpop.f32.mrf.mxu0
  %1867 = vdwg.mxu0
  %v1884 = vunpack.c.l.b16 %v411
  %v1885 = vunpack.c.l.b16 %v412
  %v1886 = vunpack.c.l.b16 %v413
  %v1887 = vunpack.c.l.b16 %v414
  %v1888 = vunpack.c.l.b16 %v415
  %v1889 = vunpack.c.l.b16 %v416
  %v1890 = vunpack.c.l.b16 %v417
  %v1891 = vunpack.c.l.b16 %v418
  %v1892 = vunpack.c.l.b16 %v419
  %v1893 = vunpack.c.l.b16 %v420
  %v1894 = vunpack.c.l.b16 %v421
  %v1895 = vunpack.c.l.b16 %v422
  %v1896 = vunpack.c.l.b16 %v423
  %v1897 = vunpack.c.l.b16 %v424
  %v1898 = vunpack.c.l.b16 %v425
  %v1899 = vunpack.c.l.b16 %v426
  %v1900 = vpack.c.b16 %v1885, %v1884
  %v1901 = vpack.c.b16 %v1887, %v1886
  %v1902 = vpack.c.b16 %v1889, %v1888
  %v1903 = vpack.c.b16 %v1891, %v1890
  %v1904 = vpack.c.b16 %v1893, %v1892
  %v1905 = vpack.c.b16 %v1895, %v1894
  %v1906 = vpack.c.b16 %v1897, %v1896
  %v1907 = vpack.c.b16 %v1899, %v1898
  %1916 = vmatpush.bf16.msra.mxu0 %v1907
  %1917 = vmatpush.bf16.msra.mxu0 %v1906
  %1918 = vmatpush.bf16.msra.mxu0 %v1905
  %1919 = vmatpush.bf16.msra.mxu0 %v1904
  %1920 = vmatpush.bf16.msra.mxu0 %v1903
  %1921 = vmatpush.bf16.msra.mxu0 %v1902
  %1922 = vmatpush.bf16.msra.mxu0 %v1901
  %1923 = vmatpush.bf16.msra.mxu0 %v1900
  %1924 = vmatmul.bf16.gmra.mxu0 %v64
  %v1925 = vpop.f32.mrf.mxu0
  %v1926 = vadd.f32 0.0, %v1925
  %v1927 = vpop.f32.mrf.mxu0
  %1928 = vdwg.mxu0
  %v1945 = vunpack.c.l.b16 %v427
  %v1946 = vunpack.c.l.b16 %v428
  %v1947 = vunpack.c.l.b16 %v429
  %v1948 = vunpack.c.l.b16 %v430
  %v1949 = vunpack.c.l.b16 %v431
  %v1950 = vunpack.c.l.b16 %v432
  %v1951 = vunpack.c.l.b16 %v433
  %v1952 = vunpack.c.l.b16 %v434
  %v1953 = vunpack.c.l.b16 %v435
  %v1954 = vunpack.c.l.b16 %v436
  %v1955 = vunpack.c.l.b16 %v437
  %v1956 = vunpack.c.l.b16 %v438
  %v1957 = vunpack.c.l.b16 %v439
  %v1958 = vunpack.c.l.b16 %v440
  %v1959 = vunpack.c.l.b16 %v441
  %v1960 = vunpack.c.l.b16 %v442
  %v1961 = vpack.c.b16 %v1946, %v1945
  %v1962 = vpack.c.b16 %v1948, %v1947
  %v1963 = vpack.c.b16 %v1950, %v1949
  %v1964 = vpack.c.b16 %v1952, %v1951
  %v1965 = vpack.c.b16 %v1954, %v1953
  %v1966 = vpack.c.b16 %v1956, %v1955
  %v1967 = vpack.c.b16 %v1958, %v1957
  %v1968 = vpack.c.b16 %v1960, %v1959
  %1977 = vmatpush.bf16.msra.mxu0 %v1968
  %1978 = vmatpush.bf16.msra.mxu0 %v1967
  %1979 = vmatpush.bf16.msra.mxu0 %v1966
  %1980 = vmatpush.bf16.msra.mxu0 %v1965
  %1981 = vmatpush.bf16.msra.mxu0 %v1964
  %1982 = vmatpush.bf16.msra.mxu0 %v1963
  %1983 = vmatpush.bf16.msra.mxu0 %v1962
  %1984 = vmatpush.bf16.msra.mxu0 %v1961
  %1985 = vmatmul.bf16.gmra.mxu0 %v65
  %v1986 = vpop.f32.mrf.mxu0
  %v1987 = vadd.f32 0.0, %v1986
  %v1988 = vpop.f32.mrf.mxu0
  %1989 = vdwg.mxu0
  %v2006 = vunpack.c.l.b16 %v443
  %v2007 = vunpack.c.l.b16 %v444
  %v2008 = vunpack.c.l.b16 %v445
  %v2009 = vunpack.c.l.b16 %v446
  %v2010 = vunpack.c.l.b16 %v447
  %v2011 = vunpack.c.l.b16 %v448
  %v2012 = vunpack.c.l.b16 %v449
  %v2013 = vunpack.c.l.b16 %v450
  %v2014 = vunpack.c.l.b16 %v451
  %v2015 = vunpack.c.l.b16 %v452
  %v2016 = vunpack.c.l.b16 %v453
  %v2017 = vunpack.c.l.b16 %v454
  %v2018 = vunpack.c.l.b16 %v455
  %v2019 = vunpack.c.l.b16 %v456
  %v2020 = vunpack.c.l.b16 %v457
  %v2021 = vunpack.c.l.b16 %v458
  %v2022 = vpack.c.b16 %v2007, %v2006
  %v2023 = vpack.c.b16 %v2009, %v2008
  %v2024 = vpack.c.b16 %v2011, %v2010
  %v2025 = vpack.c.b16 %v2013, %v2012
  %v2026 = vpack.c.b16 %v2015, %v2014
  %v2027 = vpack.c.b16 %v2017, %v2016
  %v2028 = vpack.c.b16 %v2019, %v2018
  %v2029 = vpack.c.b16 %v2021, %v2020
  %2038 = vmatpush.bf16.msra.mxu0 %v2029
  %2039 = vmatpush.bf16.msra.mxu0 %v2028
  %2040 = vmatpush.bf16.msra.mxu0 %v2027
  %2041 = vmatpush.bf16.msra.mxu0 %v2026
  %2042 = vmatpush.bf16.msra.mxu0 %v2025
  %2043 = vmatpush.bf16.msra.mxu0 %v2024
  %2044 = vmatpush.bf16.msra.mxu0 %v2023
  %2045 = vmatpush.bf16.msra.mxu0 %v2022
  %2046 = vmatmul.bf16.gmra.mxu0 %v66
  %v2047 = vpop.f32.mrf.mxu0
  %v2048 = vadd.f32 0.0, %v2047
  %v2049 = vpop.f32.mrf.mxu0
  %2050 = vdwg.mxu0
  %v2067 = vunpack.c.l.b16 %v459
  %v2068 = vunpack.c.l.b16 %v460
  %v2069 = vunpack.c.l.b16 %v461
  %v2070 = vunpack.c.l.b16 %v462
  %v2071 = vunpack.c.l.b16 %v463
  %v2072 = vunpack.c.l.b16 %v464
  %v2073 = vunpack.c.l.b16 %v465
  %v2074 = vunpack.c.l.b16 %v466
  %v2075 = vunpack.c.l.b16 %v467
  %v2076 = vunpack.c.l.b16 %v468
  %v2077 = vunpack.c.l.b16 %v469
  %v2078 = vunpack.c.l.b16 %v470
  %v2079 = vunpack.c.l.b16 %v471
  %v2080 = vunpack.c.l.b16 %v472
  %v2081 = vunpack.c.l.b16 %v473
  %v2082 = vunpack.c.l.b16 %v474
  %v2083 = vpack.c.b16 %v2068, %v2067
  %v2084 = vpack.c.b16 %v2070, %v2069
  %v2085 = vpack.c.b16 %v2072, %v2071
  %v2086 = vpack.c.b16 %v2074, %v2073
  %v2087 = vpack.c.b16 %v2076, %v2075
  %v2088 = vpack.c.b16 %v2078, %v2077
  %v2089 = vpack.c.b16 %v2080, %v2079
  %v2090 = vpack.c.b16 %v2082, %v2081
  %2099 = vmatpush.bf16.msra.mxu0 %v2090
  %2100 = vmatpush.bf16.msra.mxu0 %v2089
  %2101 = vmatpush.bf16.msra.mxu0 %v2088
  %2102 = vmatpush.bf16.msra.mxu0 %v2087
  %2103 = vmatpush.bf16.msra.mxu0 %v2086
  %2104 = vmatpush.bf16.msra.mxu0 %v2085
  %2105 = vmatpush.bf16.msra.mxu0 %v2084
  %2106 = vmatpush.bf16.msra.mxu0 %v2083
  %2107 = vmatmul.bf16.gmra.mxu0 %v67
  %v2108 = vpop.f32.mrf.mxu0
  %v2109 = vadd.f32 0.0, %v2108
  %v2110 = vpop.f32.mrf.mxu0
  %2111 = vdwg.mxu0
  %v2128 = vunpack.c.l.b16 %v475
  %v2129 = vunpack.c.l.b16 %v476
  %v2130 = vunpack.c.l.b16 %v477
  %v2131 = vunpack.c.l.b16 %v478
  %v2132 = vunpack.c.l.b16 %v479
  %v2133 = vunpack.c.l.b16 %v480
  %v2134 = vunpack.c.l.b16 %v481
  %v2135 = vunpack.c.l.b16 %v482
  %v2136 = vunpack.c.l.b16 %v483
  %v2137 = vunpack.c.l.b16 %v484
  %v2138 = vunpack.c.l.b16 %v485
  %v2139 = vunpack.c.l.b16 %v486
  %v2140 = vunpack.c.l.b16 %v487
  %v2141 = vunpack.c.l.b16 %v488
  %v2142 = vunpack.c.l.b16 %v489
  %v2143 = vunpack.c.l.b16 %v490
  %v2144 = vpack.c.b16 %v2129, %v2128
  %v2145 = vpack.c.b16 %v2131, %v2130
  %v2146 = vpack.c.b16 %v2133, %v2132
  %v2147 = vpack.c.b16 %v2135, %v2134
  %v2148 = vpack.c.b16 %v2137, %v2136
  %v2149 = vpack.c.b16 %v2139, %v2138
  %v2150 = vpack.c.b16 %v2141, %v2140
  %v2151 = vpack.c.b16 %v2143, %v2142
  %2160 = vmatpush.bf16.msra.mxu0 %v2151
  %2161 = vmatpush.bf16.msra.mxu0 %v2150
  %2162 = vmatpush.bf16.msra.mxu0 %v2149
  %2163 = vmatpush.bf16.msra.mxu0 %v2148
  %2164 = vmatpush.bf16.msra.mxu0 %v2147
  %2165 = vmatpush.bf16.msra.mxu0 %v2146
  %2166 = vmatpush.bf16.msra.mxu0 %v2145
  %2167 = vmatpush.bf16.msra.mxu0 %v2144
  %2168 = vmatmul.bf16.gmra.mxu0 %v68
  %v2169 = vpop.f32.mrf.mxu0
  %v2170 = vadd.f32 0.0, %v2169
  %v2171 = vpop.f32.mrf.mxu0
  %2172 = vdwg.mxu0
  %v2189 = vunpack.c.l.b16 %v491
  %v2190 = vunpack.c.l.b16 %v492
  %v2191 = vunpack.c.l.b16 %v493
  %v2192 = vunpack.c.l.b16 %v494
  %v2193 = vunpack.c.l.b16 %v495
  %v2194 = vunpack.c.l.b16 %v496
  %v2195 = vunpack.c.l.b16 %v497
  %v2196 = vunpack.c.l.b16 %v498
  %v2197 = vunpack.c.l.b16 %v499
  %v2198 = vunpack.c.l.b16 %v500
  %v2199 = vunpack.c.l.b16 %v501
  %v2200 = vunpack.c.l.b16 %v502
  %v2201 = vunpack.c.l.b16 %v503
  %v2202 = vunpack.c.l.b16 %v504
  %v2203 = vunpack.c.l.b16 %v505
  %v2204 = vunpack.c.l.b16 %v506
  %v2205 = vpack.c.b16 %v2190, %v2189
  %v2206 = vpack.c.b16 %v2192, %v2191
  %v2207 = vpack.c.b16 %v2194, %v2193
  %v2208 = vpack.c.b16 %v2196, %v2195
  %v2209 = vpack.c.b16 %v2198, %v2197
  %v2210 = vpack.c.b16 %v2200, %v2199
  %v2211 = vpack.c.b16 %v2202, %v2201
  %v2212 = vpack.c.b16 %v2204, %v2203
  %2221 = vmatpush.bf16.msra.mxu0 %v2212
  %2222 = vmatpush.bf16.msra.mxu0 %v2211
  %2223 = vmatpush.bf16.msra.mxu0 %v2210
  %2224 = vmatpush.bf16.msra.mxu0 %v2209
  %2225 = vmatpush.bf16.msra.mxu0 %v2208
  %2226 = vmatpush.bf16.msra.mxu0 %v2207
  %2227 = vmatpush.bf16.msra.mxu0 %v2206
  %2228 = vmatpush.bf16.msra.mxu0 %v2205
  %2229 = vmatmul.bf16.gmra.mxu0 %v69
  %v2230 = vpop.f32.mrf.mxu0
  %v2231 = vadd.f32 0.0, %v2230
  %v2232 = vpop.f32.mrf.mxu0
  %2233 = vdwg.mxu0
  %v2250 = vunpack.c.l.b16 %v507
  %v2251 = vunpack.c.l.b16 %v508
  %v2252 = vunpack.c.l.b16 %v509
  %v2253 = vunpack.c.l.b16 %v510
  %v2254 = vunpack.c.l.b16 %v511
  %v2255 = vunpack.c.l.b16 %v512
  %v2256 = vunpack.c.l.b16 %v513
  %v2257 = vunpack.c.l.b16 %v514
  %v2258 = vunpack.c.l.b16 %v515
  %v2259 = vunpack.c.l.b16 %v516
  %v2260 = vunpack.c.l.b16 %v517
  %v2261 = vunpack.c.l.b16 %v518
  %v2262 = vunpack.c.l.b16 %v519
  %v2263 = vunpack.c.l.b16 %v520
  %v2264 = vunpack.c.l.b16 %v521
  %v2265 = vunpack.c.l.b16 %v522
  %v2266 = vpack.c.b16 %v2251, %v2250
  %v2267 = vpack.c.b16 %v2253, %v2252
  %v2268 = vpack.c.b16 %v2255, %v2254
  %v2269 = vpack.c.b16 %v2257, %v2256
  %v2270 = vpack.c.b16 %v2259, %v2258
  %v2271 = vpack.c.b16 %v2261, %v2260
  %v2272 = vpack.c.b16 %v2263, %v2262
  %v2273 = vpack.c.b16 %v2265, %v2264
  %2282 = vmatpush.bf16.msra.mxu0 %v2273
  %2283 = vmatpush.bf16.msra.mxu0 %v2272
  %2284 = vmatpush.bf16.msra.mxu0 %v2271
  %2285 = vmatpush.bf16.msra.mxu0 %v2270
  %2286 = vmatpush.bf16.msra.mxu0 %v2269
  %2287 = vmatpush.bf16.msra.mxu0 %v2268
  %2288 = vmatpush.bf16.msra.mxu0 %v2267
  %2289 = vmatpush.bf16.msra.mxu0 %v2266
  %2290 = vmatmul.bf16.gmra.mxu0 %v70
  %v2291 = vpop.f32.mrf.mxu0
  %v2292 = vadd.f32 0.0, %v2291
  %v2293 = vpop.f32.mrf.mxu0
  %2294 = vdwg.mxu0
  %v2311 = vunpack.c.l.b16 %v523
  %v2312 = vunpack.c.l.b16 %v524
  %v2313 = vunpack.c.l.b16 %v525
  %v2314 = vunpack.c.l.b16 %v526
  %v2315 = vunpack.c.l.b16 %v527
  %v2316 = vunpack.c.l.b16 %v528
  %v2317 = vunpack.c.l.b16 %v529
  %v2318 = vunpack.c.l.b16 %v530
  %v2319 = vunpack.c.l.b16 %v531
  %v2320 = vunpack.c.l.b16 %v532
  %v2321 = vunpack.c.l.b16 %v533
  %v2322 = vunpack.c.l.b16 %v534
  %v2323 = vunpack.c.l.b16 %v535
  %v2324 = vunpack.c.l.b16 %v536
  %v2325 = vunpack.c.l.b16 %v537
  %v2326 = vunpack.c.l.b16 %v538
  %v2327 = vpack.c.b16 %v2312, %v2311
  %v2328 = vpack.c.b16 %v2314, %v2313
  %v2329 = vpack.c.b16 %v2316, %v2315
  %v2330 = vpack.c.b16 %v2318, %v2317
  %v2331 = vpack.c.b16 %v2320, %v2319
  %v2332 = vpack.c.b16 %v2322, %v2321
  %v2333 = vpack.c.b16 %v2324, %v2323
  %v2334 = vpack.c.b16 %v2326, %v2325
  %2343 = vmatpush.bf16.msra.mxu0 %v2334
  %2344 = vmatpush.bf16.msra.mxu0 %v2333
  %2345 = vmatpush.bf16.msra.mxu0 %v2332
  %2346 = vmatpush.bf16.msra.mxu0 %v2331
  %2347 = vmatpush.bf16.msra.mxu0 %v2330
  %2348 = vmatpush.bf16.msra.mxu0 %v2329
  %2349 = vmatpush.bf16.msra.mxu0 %v2328
  %2350 = vmatpush.bf16.msra.mxu0 %v2327
  %2351 = vmatmul.bf16.gmra.mxu0 %v71
  %v2352 = vpop.f32.mrf.mxu0
  %v2353 = vadd.f32 0.0, %v2352
  %v2354 = vpop.f32.mrf.mxu0
  %2355 = vdwg.mxu0
  %v2372 = vunpack.c.l.b16 %v539
  %v2373 = vunpack.c.l.b16 %v540
  %v2374 = vunpack.c.l.b16 %v541
  %v2375 = vunpack.c.l.b16 %v542
  %v2376 = vunpack.c.l.b16 %v543
  %v2377 = vunpack.c.l.b16 %v544
  %v2378 = vunpack.c.l.b16 %v545
  %v2379 = vunpack.c.l.b16 %v546
  %v2380 = vunpack.c.l.b16 %v547
  %v2381 = vunpack.c.l.b16 %v548
  %v2382 = vunpack.c.l.b16 %v549
  %v2383 = vunpack.c.l.b16 %v550
  %v2384 = vunpack.c.l.b16 %v551
  %v2385 = vunpack.c.l.b16 %v552
  %v2386 = vunpack.c.l.b16 %v553
  %v2387 = vunpack.c.l.b16 %v554
  %v2388 = vpack.c.b16 %v2373, %v2372
  %v2389 = vpack.c.b16 %v2375, %v2374
  %v2390 = vpack.c.b16 %v2377, %v2376
  %v2391 = vpack.c.b16 %v2379, %v2378
  %v2392 = vpack.c.b16 %v2381, %v2380
  %v2393 = vpack.c.b16 %v2383, %v2382
  %v2394 = vpack.c.b16 %v2385, %v2384
  %v2395 = vpack.c.b16 %v2387, %v2386
  %2404 = vmatpush.bf16.msra.mxu0 %v2395
  %2405 = vmatpush.bf16.msra.mxu0 %v2394
  %2406 = vmatpush.bf16.msra.mxu0 %v2393
  %2407 = vmatpush.bf16.msra.mxu0 %v2392
  %2408 = vmatpush.bf16.msra.mxu0 %v2391
  %2409 = vmatpush.bf16.msra.mxu0 %v2390
  %2410 = vmatpush.bf16.msra.mxu0 %v2389
  %2411 = vmatpush.bf16.msra.mxu0 %v2388
  %2412 = vmatmul.bf16.gmra.mxu0 %v72
  %v2413 = vpop.f32.mrf.mxu0
  %v2414 = vadd.f32 0.0, %v2413
  %v2415 = vpop.f32.mrf.mxu0
  %2416 = vdwg.mxu0
  %v2433 = vunpack.c.l.b16 %v555
  %v2434 = vunpack.c.l.b16 %v556
  %v2435 = vunpack.c.l.b16 %v557
  %v2436 = vunpack.c.l.b16 %v558
  %v2437 = vunpack.c.l.b16 %v559
  %v2438 = vunpack.c.l.b16 %v560
  %v2439 = vunpack.c.l.b16 %v561
  %v2440 = vunpack.c.l.b16 %v562
  %v2441 = vunpack.c.l.b16 %v563
  %v2442 = vunpack.c.l.b16 %v564
  %v2443 = vunpack.c.l.b16 %v565
  %v2444 = vunpack.c.l.b16 %v566
  %v2445 = vunpack.c.l.b16 %v567
  %v2446 = vunpack.c.l.b16 %v568
  %v2447 = vunpack.c.l.b16 %v569
  %v2448 = vunpack.c.l.b16 %v570
  %v2449 = vpack.c.b16 %v2434, %v2433
  %v2450 = vpack.c.b16 %v2436, %v2435
  %v2451 = vpack.c.b16 %v2438, %v2437
  %v2452 = vpack.c.b16 %v2440, %v2439
  %v2453 = vpack.c.b16 %v2442, %v2441
  %v2454 = vpack.c.b16 %v2444, %v2443
  %v2455 = vpack.c.b16 %v2446, %v2445
  %v2456 = vpack.c.b16 %v2448, %v2447
  %2465 = vmatpush.bf16.msra.mxu0 %v2456
  %2466 = vmatpush.bf16.msra.mxu0 %v2455
  %2467 = vmatpush.bf16.msra.mxu0 %v2454
  %2468 = vmatpush.bf16.msra.mxu0 %v2453
  %2469 = vmatpush.bf16.msra.mxu0 %v2452
  %2470 = vmatpush.bf16.msra.mxu0 %v2451
  %2471 = vmatpush.bf16.msra.mxu0 %v2450
  %2472 = vmatpush.bf16.msra.mxu0 %v2449
  %2473 = vmatmul.bf16.gmra.mxu0 %v73
  %v2474 = vpop.f32.mrf.mxu0
  %v2475 = vadd.f32 0.0, %v2474
  %v2476 = vpop.f32.mrf.mxu0
  %2477 = vdwg.mxu0
  %v2494 = vunpack.c.l.b16 %v571
  %v2495 = vunpack.c.l.b16 %v572
  %v2496 = vunpack.c.l.b16 %v573
  %v2497 = vunpack.c.l.b16 %v574
  %v2498 = vunpack.c.l.b16 %v575
  %v2499 = vunpack.c.l.b16 %v576
  %v2500 = vunpack.c.l.b16 %v577
  %v2501 = vunpack.c.l.b16 %v578
  %v2502 = vunpack.c.l.b16 %v579
  %v2503 = vunpack.c.l.b16 %v580
  %v2504 = vunpack.c.l.b16 %v581
  %v2505 = vunpack.c.l.b16 %v582
  %v2506 = vunpack.c.l.b16 %v583
  %v2507 = vunpack.c.l.b16 %v584
  %v2508 = vunpack.c.l.b16 %v585
  %v2509 = vunpack.c.l.b16 %v586
  %v2510 = vpack.c.b16 %v2495, %v2494
  %v2511 = vpack.c.b16 %v2497, %v2496
  %v2512 = vpack.c.b16 %v2499, %v2498
  %v2513 = vpack.c.b16 %v2501, %v2500
  %v2514 = vpack.c.b16 %v2503, %v2502
  %v2515 = vpack.c.b16 %v2505, %v2504
  %v2516 = vpack.c.b16 %v2507, %v2506
  %v2517 = vpack.c.b16 %v2509, %v2508
  %2526 = vmatpush.bf16.msra.mxu0 %v2517
  %2527 = vmatpush.bf16.msra.mxu0 %v2516
  %2528 = vmatpush.bf16.msra.mxu0 %v2515
  %2529 = vmatpush.bf16.msra.mxu0 %v2514
  %2530 = vmatpush.bf16.msra.mxu0 %v2513
  %2531 = vmatpush.bf16.msra.mxu0 %v2512
  %2532 = vmatpush.bf16.msra.mxu0 %v2511
  %2533 = vmatpush.bf16.msra.mxu0 %v2510
  %2534 = vmatmul.bf16.gmra.mxu0 %v74
  %v2535 = vpop.f32.mrf.mxu0
  %v2536 = vadd.f32 0.0, %v2535
  %v2537 = vpop.f32.mrf.mxu0
  %2538 = vdwg.mxu0
  %2539 = vst [vmem:[%s2] sm:$0x3] %v645
  %2540 = vst [vmem:[%s2 + $0x2] sm:$0x3] %v706
  %2541 = vst [vmem:[%s2 + $0x4] sm:$0x3] %v767
  %2542 = vst [vmem:[%s2 + $0x6] sm:$0x3] %v828
  %2543 = vst [vmem:[%s2 + $0x8] sm:$0x3] %v889
  %2544 = vst [vmem:[%s2 + $0xa] sm:$0x3] %v950
  %2545 = vst [vmem:[%s2 + $0xc] sm:$0x3] %v1011
  %2546 = vst [vmem:[%s2 + $0xe] sm:$0x3] %v1072
  %2547 = vst [vmem:[%s2 + $0x10] sm:$0x3] %v1133
  %2548 = vst [vmem:[%s2 + $0x12] sm:$0x3] %v1194
  %2549 = vst [vmem:[%s2 + $0x14] sm:$0x3] %v1255
  %2550 = vst [vmem:[%s2 + $0x16] sm:$0x3] %v1316
  %2551 = vst [vmem:[%s2 + $0x18] sm:$0x3] %v1377
  %2552 = vst [vmem:[%s2 + $0x1a] sm:$0x3] %v1438
  %2553 = vst [vmem:[%s2 + $0x1c] sm:$0x3] %v1499
  %2554 = vst [vmem:[%s2 + $0x1e] sm:$0x3] %v1560
  %2555 = vst [vmem:[%s2 + $0x20] sm:$0x3] %v1621
  %2556 = vst [vmem:[%s2 + $0x22] sm:$0x3] %v1682
  %2557 = vst [vmem:[%s2 + $0x24] sm:$0x3] %v1743
  %2558 = vst [vmem:[%s2 + $0x26] sm:$0x3] %v1804
  %2559 = vst [vmem:[%s2 + $0x28] sm:$0x3] %v1865
  %2560 = vst [vmem:[%s2 + $0x2a] sm:$0x3] %v1926
  %2561 = vst [vmem:[%s2 + $0x2c] sm:$0x3] %v1987
  %2562 = vst [vmem:[%s2 + $0x2e] sm:$0x3] %v2048
  %2563 = vst [vmem:[%s2 + $0x30] sm:$0x3] %v2109
  %2564 = vst [vmem:[%s2 + $0x32] sm:$0x3] %v2170
  %2565 = vst [vmem:[%s2 + $0x34] sm:$0x3] %v2231
  %2566 = vst [vmem:[%s2 + $0x36] sm:$0x3] %v2292
  %2567 = vst [vmem:[%s2 + $0x38] sm:$0x3] %v2353
  %2568 = vst [vmem:[%s2 + $0x3a] sm:$0x3] %v2414
  %2569 = vst [vmem:[%s2 + $0x3c] sm:$0x3] %v2475
  %2570 = vst [vmem:[%s2 + $0x3e] sm:$0x3] %v2536
  // Predicated region
  $region10: #{_lambda_.11} parent=0 // pred_check
    _
  $region11: #{_lambda_.11} parent=0 // pred_check_branch
    %2572 = sbr.rel (0) target = $region13
  $region12: #{_lambda_.11} parent=0 // pred_region
    _
  $region13: #{_lambda_.11} parent=0 // pred_fallthru
    _
  // Predicated region
  $region14: #{_lambda_.11} parent=0 // pred_check
    _
  $region15: #{_lambda_.11} parent=0 // pred_check_branch
    %2574 = sbr.rel (0) target = $region17
  $region16: #{_lambda_.11} parent=0 // pred_region
    _
  $region17: #{_lambda_.11} parent=0 // pred_fallthru
    _

// kernel: _lambda_.19
$region0: #{_lambda_.19}
  #allocation0 [shape = 'u32[]', space=smem, size = 0x4, offset = 0x4, fixed_abs, tag = 'smem constant byte address 0x4 - core index']
  #allocation1 [shape = 'u32[72,128]{1,0:T(1,128)}', space=vmem, size = 0x9000, scoped, tag = 'internal scratch']
  %s0 = inlined_call_operand.vmem [shape: bf16[2,256,128], index: 0, kind: input, shape index: {}]
  %s1 = inlined_call_operand.vmem [shape: bf16[128,128], index: 1, kind: input, shape index: {}]
  %s2 = inlined_call_operand.vmem [shape: f32[1,128], index: 2, kind: input, shape index: {}]
  %s3 = inlined_call_operand.vmem [shape: bf16[128,128], index: 3, kind: input, shape index: {}]
  %s4 = inlined_call_operand.vmem [shape: f32[1,128], index: 4, kind: input, shape index: {}]
  %s5 = inlined_call_operand.vmem [shape: f32[2,256,128], index: 5, kind: output, shape index: {}]
  %s6 = sld [smem:[#allocation0]]
  $region53: #{_lambda_.19} parent=0
    _
  %s8 = ssub.s32 1, %s6
  %s9 = scalar_select 0, %s8, %s6
  loop: start=0, step=1, limit=4
  $region2: #{_lambda_.19} parent=0 // loop_pre_header
    _
  $region3: #{_lambda_.19} parent=0 // loop_header
    %s11 = sphi 0, %s15
    %p12 = scmp.ge.s32.totalorder %s11, 4
    %s18 = sphi 0, %s30
    %s19 = sphi 0, %s26
    %s20 = sphi 0, %s18
    %s21 = sphi 0, %s19
    %s22 = sphi 0, %s20
    %s23 = sphi 0, %s21
    %s35 = sphi 0, %s37
    %s38 = sphi 0, %s35
    %s39 = sphi 0, %s38
    %s55 = sphi 0, %s39
    %s59 = sphi 0, %s59
    %s61 = sphi 0, %s59
    %s62 = sphi 0, %s61
    %s76 = sphi 0, %s62
    %s80 = sphi 0, %s80
    %s82 = sphi 0, %s80
    %s83 = sphi 0, %s82
    %s97 = sphi 0, %s83
    %s101 = sphi 0, %s101
    %s103 = sphi 0, %s101
    %s104 = sphi 0, %s103
    %s118 = sphi 0, %s104
    %s122 = sphi 0, %s122
    %s124 = sphi 0, %s122
    %s125 = sphi 0, %s124
    %s139 = sphi 0, %s125
    %s147 = sphi 0, %s149
    %s150 = sphi 0, %s147
    %s151 = sphi 0, %s150
    %s167 = sphi 0, %s151
  $region4: #{_lambda_.19} parent=0 // loop_header_branch
    %14 = sbr.rel (%p12) target = $region8
  $region5: #{_lambda_.19} parent=0 // loop_body
    %s16 = ssub.s32 %s11, 1
    %s17 = ssub.s32 %s11, 2
    %s24 = sadd.s32 1, %s19
    %p25 = scmp.ge.s32.totalorder %s24, 1
    %s26 = scalar_select %p25, 0, %s24
    %s27 = sadd.s32 1, %s18
    %s28 = scalar_select %p25, %s27, %s18
    %p29 = scmp.ge.s32.totalorder %s28, 2
    %s30 = scalar_select %p29, 0, %s28
    %s31 = ssub.s32 %s18, %s30
    %s32 = ssub.s32 %s19, %s26
    %s33 = sor.u32 %s31, %s32
    %p34 = scmp.eq.s32.totalorder %s33, 0
    %s36 = sadd.s32 %s35, 1
    %s37 = scalar_select %p34, %s35, %s36
    %p40 = pneg %p34
    %p41 = scmp.eq.s32.totalorder %s11, 1
    %p42 = por %p40, %p41
    %p43 = scmp.ne.s32.totalorder %s35, %s38
    %p44 = scmp.eq.s32.totalorder %s11, 0
    %p45 = por %p43, %p44
    %p46 = scmp.ne.s32.totalorder %s35, %s38
    %p47 = scmp.eq.s32.totalorder %s16, 1
    %p48 = por %p46, %p47
    %p49 = scmp.ne.s32.totalorder %s38, %s39
    %p50 = scmp.eq.s32.totalorder %s16, 0
    %p51 = por %p49, %p50
    %p52 = scmp.ne.s32.totalorder %s38, %s39
    %p53 = scmp.eq.s32.totalorder %s17, 1
    %p54 = por %p52, %p53
    %p56 = scmp.ne.s32.totalorder %s39, %s55
    %p57 = scmp.eq.s32.totalorder %s17, 0
    %p58 = por %p56, %p57
    %s60 = sadd.s32 %s59, 1
    %p63 = scmp.eq.s32.totalorder %s11, 1
    %p64 = scmp.ne.s32.totalorder %s59, %s61
    %p65 = scmp.eq.s32.totalorder %s11, 0
    %p66 = por %p64, %p65
    %p67 = scmp.ne.s32.totalorder %s59, %s61
    %p68 = scmp.eq.s32.totalorder %s16, 1
    %p69 = por %p67, %p68
    %p70 = scmp.ne.s32.totalorder %s61, %s62
    %p71 = scmp.eq.s32.totalorder %s16, 0
    %p72 = por %p70, %p71
    %p73 = scmp.ne.s32.totalorder %s61, %s62
    %p74 = scmp.eq.s32.totalorder %s17, 1
    %p75 = por %p73, %p74
    %p77 = scmp.ne.s32.totalorder %s62, %s76
    %p78 = scmp.eq.s32.totalorder %s17, 0
    %p79 = por %p77, %p78
    %s81 = sadd.s32 %s80, 1
    %p84 = scmp.eq.s32.totalorder %s11, 1
    %p85 = scmp.ne.s32.totalorder %s80, %s82
    %p86 = scmp.eq.s32.totalorder %s11, 0
    %p87 = por %p85, %p86
    %p88 = scmp.ne.s32.totalorder %s80, %s82
    %p89 = scmp.eq.s32.totalorder %s16, 1
    %p90 = por %p88, %p89
    %p91 = scmp.ne.s32.totalorder %s82, %s83
    %p92 = scmp.eq.s32.totalorder %s16, 0
    %p93 = por %p91, %p92
    %p94 = scmp.ne.s32.totalorder %s82, %s83
    %p95 = scmp.eq.s32.totalorder %s17, 1
    %p96 = por %p94, %p95
    %p98 = scmp.ne.s32.totalorder %s83, %s97
    %p99 = scmp.eq.s32.totalorder %s17, 0
    %p100 = por %p98, %p99
    %s102 = sadd.s32 %s101, 1
    %p105 = scmp.eq.s32.totalorder %s11, 1
    %p106 = scmp.ne.s32.totalorder %s101, %s103
    %p107 = scmp.eq.s32.totalorder %s11, 0
    %p108 = por %p106, %p107
    %p109 = scmp.ne.s32.totalorder %s101, %s103
    %p110 = scmp.eq.s32.totalorder %s16, 1
    %p111 = por %p109, %p110
    %p112 = scmp.ne.s32.totalorder %s103, %s104
    %p113 = scmp.eq.s32.totalorder %s16, 0
    %p114 = por %p112, %p113
    %p115 = scmp.ne.s32.totalorder %s103, %s104
    %p116 = scmp.eq.s32.totalorder %s17, 1
    %p117 = por %p115, %p116
    %p119 = scmp.ne.s32.totalorder %s104, %s118
    %p120 = scmp.eq.s32.totalorder %s17, 0
    %p121 = por %p119, %p120
    %s123 = sadd.s32 %s122, 1
    %p126 = scmp.eq.s32.totalorder %s11, 1
    %p127 = scmp.ne.s32.totalorder %s122, %s124
    %p128 = scmp.eq.s32.totalorder %s11, 0
    %p129 = por %p127, %p128
    %p130 = scmp.ne.s32.totalorder %s122, %s124
    %p131 = scmp.eq.s32.totalorder %s16, 1
    %p132 = por %p130, %p131
    %p133 = scmp.ne.s32.totalorder %s124, %s125
    %p134 = scmp.eq.s32.totalorder %s16, 0
    %p135 = por %p133, %p134
    %p136 = scmp.ne.s32.totalorder %s124, %s125
    %p137 = scmp.eq.s32.totalorder %s17, 1
    %p138 = por %p136, %p137
    %p140 = scmp.ne.s32.totalorder %s125, %s139
    %p141 = scmp.eq.s32.totalorder %s17, 0
    %p142 = por %p140, %p141
    %s143 = ssub.s32 %s18, %s30
    %s144 = ssub.s32 %s19, %s26
    %s145 = sor.u32 %s143, %s144
    %p146 = scmp.eq.s32.totalorder %s145, 0
    %s148 = sadd.s32 %s147, 1
    %s149 = scalar_select %p146, %s147, %s148
    %p152 = pneg %p146
    %p153 = scmp.eq.s32.totalorder %s11, 1
    %p154 = por %p152, %p153
    %p155 = scmp.ne.s32.totalorder %s147, %s150
    %p156 = scmp.eq.s32.totalorder %s11, 0
    %p157 = por %p155, %p156
    %p158 = scmp.ne.s32.totalorder %s147, %s150
    %p159 = scmp.eq.s32.totalorder %s16, 1
    %p160 = por %p158, %p159
    %p161 = scmp.ne.s32.totalorder %s150, %s151
    %p162 = scmp.eq.s32.totalorder %s16, 0
    %p163 = por %p161, %p162
    %p164 = scmp.ne.s32.totalorder %s150, %s151
    %p165 = scmp.eq.s32.totalorder %s17, 1
    %p166 = por %p164, %p165
    %p168 = scmp.ne.s32.totalorder %s151, %s167
    %p169 = scmp.eq.s32.totalorder %s17, 0
    %p170 = por %p168, %p169
    %p171 = scmp.le.s32.totalorder 1, %s11
    %p172 = scmp.lt.s32.totalorder %s11, 3
    %p173 = pnand %p171, %p172
    %p174 = pneg %p173
    // Predicated region
    $region9: #{_lambda_.19} parent=5 // pred_check
      _
    $region10: #{_lambda_.19} parent=5 // pred_check_branch
      %176 = sbr.rel (%p173) target = $region12
    $region11: #{_lambda_.19} parent=5 // pred_region
      %s177 = ssub.s32 %s11, 1
      // Predicated region
      $region13: #{_lambda_.19} parent=11 // pred_check
        %p178 = pneg %p72
      $region14: #{_lambda_.19} parent=11 // pred_check_branch
        %180 = sbr.rel (%p178) target = $region16
      $region15: #{_lambda_.19} parent=11 // pred_region
        _
      $region16: #{_lambda_.19} parent=11 // pred_fallthru
        _
      // Predicated region
      $region17: #{_lambda_.19} parent=11 // pred_check
        %p181 = pneg %p93
      $region18: #{_lambda_.19} parent=11 // pred_check_branch
        %183 = sbr.rel (%p181) target = $region20
      $region19: #{_lambda_.19} parent=11 // pred_region
        _
      $region20: #{_lambda_.19} parent=11 // pred_fallthru
        _
      // Predicated region
      $region21: #{_lambda_.19} parent=11 // pred_check
        %p184 = pneg %p114
      $region22: #{_lambda_.19} parent=11 // pred_check_branch
        %186 = sbr.rel (%p184) target = $region24
      $region23: #{_lambda_.19} parent=11 // pred_region
        _
      $region24: #{_lambda_.19} parent=11 // pred_fallthru
        _
      // Predicated region
      $region25: #{_lambda_.19} parent=11 // pred_check
        %p187 = pneg %p135
      $region26: #{_lambda_.19} parent=11 // pred_check_branch
        %189 = sbr.rel (%p187) target = $region28
      $region27: #{_lambda_.19} parent=11 // pred_region
        _
      $region28: #{_lambda_.19} parent=11 // pred_fallthru
        _
    $region12: #{_lambda_.19} parent=5 // pred_fallthru
      _
    %p190 = scmp.lt.s32.totalorder %s11, 2
    // Predicated region
    $region29: #{_lambda_.19} parent=5 // pred_check
      %p191 = pneg %p190
    $region30: #{_lambda_.19} parent=5 // pred_check_branch
      %193 = sbr.rel (%p191) target = $region32
    $region31: #{_lambda_.19} parent=5 // pred_region
      // Predicated region
      $region33: #{_lambda_.19} parent=31 // pred_check
        %p194 = pneg %p45
      $region34: #{_lambda_.19} parent=31 // pred_check_branch
        %196 = sbr.rel (%p194) target = $region36
      $region35: #{_lambda_.19} parent=31 // pred_region
        %s197 = smul.u32 32, %s19
        %p198 = scmp.lt.s32.totalorder %s18, 1
        %s199 = scalar_select %p198, %s18, 1
        %p200 = scmp.lt.s32.totalorder %s197, 31
        %s201 = scalar_select %p200, %s197, 31
        %s202 = smul.addr %s199, 32
        %s203 = sadd.s32 %s201, %s202
        %s204 = smul.addr %s203, 4
        %s205 = scalar_lea.vmem %s0, %s204
        %s206 = smul.u32 32, %s19
      $region36: #{_lambda_.19} parent=31 // pred_fallthru
        _
    $region32: #{_lambda_.19} parent=5 // pred_fallthru
      _
    %p207 = scmp.le.s32.totalorder 1, %s11
    %p208 = scmp.lt.s32.totalorder %s11, 3
    %p209 = pnand %p207, %p208
    %p210 = pneg %p209
    // Predicated region
    $region37: #{_lambda_.19} parent=5 // pred_check
      _
    $region38: #{_lambda_.19} parent=5 // pred_check_branch
      %212 = sbr.rel (%p209) target = $region40
    $region39: #{_lambda_.19} parent=5 // pred_region
      %s213 = ssub.s32 %s11, 1
      %s214 = smul.u32 32, %s21
      %p215 = scmp.lt.s32.totalorder %s20, 1
      %s216 = scalar_select %p215, %s20, 1
      %p217 = scmp.lt.s32.totalorder %s214, 31
      %s218 = scalar_select %p217, %s214, 31
      %s219 = smul.addr %s216, 32
      %s220 = sadd.s32 %s218, %s219
      %s221 = smul.addr %s220, 4
      %s222 = scalar_lea.vmem %s0, %s221
      %p223 = pneg %p51
      %p224 = pneg %p48
      %p225 = pneg %p72
      %p226 = pneg %p69
      %p227 = pneg %p93
      %p228 = pneg %p90
      %p229 = pneg %p114
      %p230 = pneg %p111
      %p231 = pneg %p135
      %p232 = pneg %p132
      %p233 = pneg %p163
      %p234 = pneg %p160
      %s235 = smul.u32 32, %s21
      %p236 = scmp.lt.s32.totalorder %s20, 1
      %s237 = scalar_select %p236, %s20, 1
      %p238 = scmp.lt.s32.totalorder %s235, 31
      %s239 = scalar_select %p238, %s235, 31
      %s240 = smul.addr %s237, 32
      %s241 = sadd.s32 %s239, %s240
      %s242 = smul.addr %s241, 8
      %s243 = scalar_lea.vmem %s5, %s242
      %s244 = smul.u32 32, %s21
      %p245 = scmp.lt.s32.totalorder %s20, 1
      %s246 = scalar_select %p245, %s20, 1
      %p247 = scmp.lt.s32.totalorder %s244, 31
      %s248 = scalar_select %p247, %s244, 31
      %s249 = smul.addr %s246, 32
      %s250 = sadd.s32 %s248, %s249
      %s251 = smul.addr %s250, 4
      %s252 = scalar_lea.vmem %s0, %s251
      %s253 = smul.u32 32, %s21
      %s254 = smul.u32 32, %s21
      %p255 = scmp.lt.s32.totalorder %s20, 1
      %s256 = scalar_select %p255, %s20, 1
      %p257 = scmp.lt.s32.totalorder %s254, 31
      %s258 = scalar_select %p257, %s254, 31
      %s259 = smul.addr %s256, 32
      %s260 = sadd.s32 %s258, %s259
      %s261 = smul.addr %s260, 8
      %s262 = scalar_lea.vmem %s5, %s261
      %s263 = smul.u32 32, %s21
      %v264 = vld [vmem:[%s252] sm:$0xf]
      %v265 = vld [vmem:[%s252 + $0x4] sm:$0xf]
      %v266 = vld [vmem:[%s252 + $0x8] sm:$0xf]
      %v267 = vld [vmem:[%s252 + $0xc] sm:$0xf]
      %v268 = vld [vmem:[%s252 + $0x10] sm:$0xf]
      %v269 = vld [vmem:[%s252 + $0x14] sm:$0xf]
      %v270 = vld [vmem:[%s252 + $0x18] sm:$0xf]
      %v271 = vld [vmem:[%s252 + $0x1c] sm:$0xf]
      %v272 = vld [vmem:[%s252 + $0x20] sm:$0xf]
      %v273 = vld [vmem:[%s252 + $0x24] sm:$0xf]
      %v274 = vld [vmem:[%s252 + $0x28] sm:$0xf]
      %v275 = vld [vmem:[%s252 + $0x2c] sm:$0xf]
      %v276 = vld [vmem:[%s252 + $0x30] sm:$0xf]
      %v277 = vld [vmem:[%s252 + $0x34] sm:$0xf]
      %v278 = vld [vmem:[%s252 + $0x38] sm:$0xf]
      %v279 = vld [vmem:[%s252 + $0x3c] sm:$0xf]
      %v280 = vld [vmem:[%s252 + $0x40] sm:$0xf]
      %v281 = vld [vmem:[%s252 + $0x44] sm:$0xf]
      %v282 = vld [vmem:[%s252 + $0x48] sm:$0xf]
      %v283 = vld [vmem:[%s252 + $0x4c] sm:$0xf]
      %v284 = vld [vmem:[%s252 + $0x50] sm:$0xf]
      %v285 = vld [vmem:[%s252 + $0x54] sm:$0xf]
      %v286 = vld [vmem:[%s252 + $0x58] sm:$0xf]
      %v287 = vld [vmem:[%s252 + $0x5c] sm:$0xf]
      %v288 = vld [vmem:[%s252 + $0x60] sm:$0xf]
      %v289 = vld [vmem:[%s252 + $0x64] sm:$0xf]
      %v290 = vld [vmem:[%s252 + $0x68] sm:$0xf]
      %v291 = vld [vmem:[%s252 + $0x6c] sm:$0xf]
      %v292 = vld [vmem:[%s252 + $0x70] sm:$0xf]
      %v293 = vld [vmem:[%s252 + $0x74] sm:$0xf]
      %v294 = vld [vmem:[%s252 + $0x78] sm:$0xf]
      %v295 = vld [vmem:[%s252 + $0x7c] sm:$0xf]
      %v296 = vld [vmem:[%s1] sm:$0xf]
      %v297 = vld [vmem:[%s1 + $0x4] sm:$0xf]
      %v298 = vld [vmem:[%s1 + $0x8] sm:$0xf]
      %v299 = vld [vmem:[%s1 + $0xc] sm:$0xf]
      %v300 = vld [vmem:[%s1 + $0x10] sm:$0xf]
      %v301 = vld [vmem:[%s1 + $0x14] sm:$0xf]
      %v302 = vld [vmem:[%s1 + $0x18] sm:$0xf]
      %v303 = vld [vmem:[%s1 + $0x1c] sm:$0xf]
      %v304 = vld [vmem:[%s1 + $0x20] sm:$0xf]
      %v305 = vld [vmem:[%s1 + $0x24] sm:$0xf]
      %v306 = vld [vmem:[%s1 + $0x28] sm:$0xf]
      %v307 = vld [vmem:[%s1 + $0x2c] sm:$0xf]
      %v308 = vld [vmem:[%s1 + $0x30] sm:$0xf]
      %v309 = vld [vmem:[%s1 + $0x34] sm:$0xf]
      %v310 = vld [vmem:[%s1 + $0x38] sm:$0xf]
      %v311 = vld [vmem:[%s1 + $0x3c] sm:$0xf]
      %v312 = vld [vmem:[%s2] sm:$0x1]
      %v314 = vperm.slane %v312, 0
      %v348 = vunpack.c.l.b16 %v264
      %v349 = vunpack.c.l.b16 %v265
      %v350 = vunpack.c.l.b16 %v266
      %v351 = vunpack.c.l.b16 %v267
      %v352 = vunpack.c.l.b16 %v268
      %v353 = vunpack.c.l.b16 %v269
      %v354 = vunpack.c.l.b16 %v270
      %v355 = vunpack.c.l.b16 %v271
      %v356 = vunpack.c.l.b16 %v272
      %v357 = vunpack.c.l.b16 %v273
      %v358 = vunpack.c.l.b16 %v274
      %v359 = vunpack.c.l.b16 %v275
      %v360 = vunpack.c.l.b16 %v276
      %v361 = vunpack.c.l.b16 %v277
      %v362 = vunpack.c.l.b16 %v278
      %v363 = vunpack.c.l.b16 %v279
      %v364 = vunpack.c.l.b16 %v280
      %v365 = vunpack.c.l.b16 %v281
      %v366 = vunpack.c.l.b16 %v282
      %v367 = vunpack.c.l.b16 %v283
      %v368 = vunpack.c.l.b16 %v284
      %v369 = vunpack.c.l.b16 %v285
      %v370 = vunpack.c.l.b16 %v286
      %v371 = vunpack.c.l.b16 %v287
      %v372 = vunpack.c.l.b16 %v288
      %v373 = vunpack.c.l.b16 %v289
      %v374 = vunpack.c.l.b16 %v290
      %v375 = vunpack.c.l.b16 %v291
      %v376 = vunpack.c.l.b16 %v292
      %v377 = vunpack.c.l.b16 %v293
      %v378 = vunpack.c.l.b16 %v294
      %v379 = vunpack.c.l.b16 %v295
      %v380 = vpack.c.b16 %v349, %v348
      %v381 = vpack.c.b16 %v351, %v350
      %v382 = vpack.c.b16 %v353, %v352
      %v383 = vpack.c.b16 %v355, %v354
      %v384 = vpack.c.b16 %v357, %v356
      %v385 = vpack.c.b16 %v359, %v358
      %v386 = vpack.c.b16 %v361, %v360
      %v387 = vpack.c.b16 %v363, %v362
      %v388 = vpack.c.b16 %v365, %v364
      %v389 = vpack.c.b16 %v367, %v366
      %v390 = vpack.c.b16 %v369, %v368
      %v391 = vpack.c.b16 %v371, %v370
      %v392 = vpack.c.b16 %v373, %v372
      %v393 = vpack.c.b16 %v375, %v374
      %v394 = vpack.c.b16 %v377, %v376
      %v395 = vpack.c.b16 %v379, %v378
      %v428 = vunpack.c.l.b16 %v296
      %v429 = vunpack.c.l.b16 %v297
      %v430 = vunpack.c.l.b16 %v298
      %v431 = vunpack.c.l.b16 %v299
      %v432 = vunpack.c.l.b16 %v300
      %v433 = vunpack.c.l.b16 %v301
      %v434 = vunpack.c.l.b16 %v302
      %v435 = vunpack.c.l.b16 %v303
      %v436 = vunpack.c.l.b16 %v304
      %v437 = vunpack.c.l.b16 %v305
      %v438 = vunpack.c.l.b16 %v306
      %v439 = vunpack.c.l.b16 %v307
      %v440 = vunpack.c.l.b16 %v308
      %v441 = vunpack.c.l.b16 %v309
      %v442 = vunpack.c.l.b16 %v310
      %v443 = vunpack.c.l.b16 %v311
      %v444 = vpack.c.b16 %v429, %v428
      %v445 = vpack.c.b16 %v431, %v430
      %v446 = vpack.c.b16 %v433, %v432
      %v447 = vpack.c.b16 %v435, %v434
      %v448 = vpack.c.b16 %v437, %v436
      %v449 = vpack.c.b16 %v439, %v438
      %v450 = vpack.c.b16 %v441, %v440
      %v451 = vpack.c.b16 %v443, %v442
      %460 = vmatpush.bf16.msra.mxu0 %v451
      %461 = vmatpush.bf16.msra.mxu0 %v450
      %462 = vmatpush.bf16.msra.mxu0 %v449
      %463 = vmatpush.bf16.msra.mxu0 %v448
      %464 = vmatpush.bf16.msra.mxu0 %v447
      %465 = vmatpush.bf16.msra.mxu0 %v446
      %466 = vmatpush.bf16.msra.mxu0 %v445
      %467 = vmatpush.bf16.msra.mxu0 %v444
      %468 = vmatmul.bf16.gmra.mxu0 %v380
      %v469 = vpop.f32.mrf.mxu0
      %v470 = vadd.f32 %v314, %v469
      %v471 = vpop.f32.mrf.mxu0
      %v472 = vadd.f32 %v314, %v471
      %473 = vmatmul.bf16.gmra.mxu0 %v381
      %v474 = vpop.f32.mrf.mxu0
      %v475 = vadd.f32 %v314, %v474
      %v476 = vpop.f32.mrf.mxu0
      %v477 = vadd.f32 %v314, %v476
      %478 = vmatmul.bf16.gmra.mxu0 %v382
      %v479 = vpop.f32.mrf.mxu0
      %v480 = vadd.f32 %v314, %v479
      %v481 = vpop.f32.mrf.mxu0
      %v482 = vadd.f32 %v314, %v481
      %483 = vmatmul.bf16.gmra.mxu0 %v383
      %v484 = vpop.f32.mrf.mxu0
      %v485 = vadd.f32 %v314, %v484
      %v486 = vpop.f32.mrf.mxu0
      %v487 = vadd.f32 %v314, %v486
      %488 = vmatmul.bf16.gmra.mxu0 %v384
      %v489 = vpop.f32.mrf.mxu0
      %v490 = vadd.f32 %v314, %v489
      %v491 = vpop.f32.mrf.mxu0
      %v492 = vadd.f32 %v314, %v491
      %493 = vmatmul.bf16.gmra.mxu0 %v385
      %v494 = vpop.f32.mrf.mxu0
      %v495 = vadd.f32 %v314, %v494
      %v496 = vpop.f32.mrf.mxu0
      %v497 = vadd.f32 %v314, %v496
      %498 = vmatmul.bf16.gmra.mxu0 %v386
      %v499 = vpop.f32.mrf.mxu0
      %v500 = vadd.f32 %v314, %v499
      %v501 = vpop.f32.mrf.mxu0
      %v502 = vadd.f32 %v314, %v501
      %503 = vmatmul.bf16.gmra.mxu0 %v387
      %v504 = vpop.f32.mrf.mxu0
      %v505 = vadd.f32 %v314, %v504
      %v506 = vpop.f32.mrf.mxu0
      %v507 = vadd.f32 %v314, %v506
      %508 = vmatmul.bf16.gmra.mxu0 %v388
      %v509 = vpop.f32.mrf.mxu0
      %v510 = vadd.f32 %v314, %v509
      %v511 = vpop.f32.mrf.mxu0
      %v512 = vadd.f32 %v314, %v511
      %513 = vmatmul.bf16.gmra.mxu0 %v389
      %v514 = vpop.f32.mrf.mxu0
      %v515 = vadd.f32 %v314, %v514
      %v516 = vpop.f32.mrf.mxu0
      %v517 = vadd.f32 %v314, %v516
      %518 = vmatmul.bf16.gmra.mxu0 %v390
      %v519 = vpop.f32.mrf.mxu0
      %v520 = vadd.f32 %v314, %v519
      %v521 = vpop.f32.mrf.mxu0
      %v522 = vadd.f32 %v314, %v521
      %523 = vmatmul.bf16.gmra.mxu0 %v391
      %v524 = vpop.f32.mrf.mxu0
      %v525 = vadd.f32 %v314, %v524
      %v526 = vpop.f32.mrf.mxu0
      %v527 = vadd.f32 %v314, %v526
      %528 = vmatmul.bf16.gmra.mxu0 %v392
      %v529 = vpop.f32.mrf.mxu0
      %v530 = vadd.f32 %v314, %v529
      %v531 = vpop.f32.mrf.mxu0
      %v532 = vadd.f32 %v314, %v531
      %533 = vmatmul.bf16.gmra.mxu0 %v393
      %v534 = vpop.f32.mrf.mxu0
      %v535 = vadd.f32 %v314, %v534
      %v536 = vpop.f32.mrf.mxu0
      %v537 = vadd.f32 %v314, %v536
      %538 = vmatmul.bf16.gmra.mxu0 %v394
      %v539 = vpop.f32.mrf.mxu0
      %v540 = vadd.f32 %v314, %v539
      %v541 = vpop.f32.mrf.mxu0
      %v542 = vadd.f32 %v314, %v541
      %543 = vmatmul.bf16.gmra.mxu0 %v395
      %v544 = vpop.f32.mrf.mxu0
      %v545 = vadd.f32 %v314, %v544
      %v546 = vpop.f32.mrf.mxu0
      %v547 = vadd.f32 %v314, %v546
      %548 = vdwg.mxu0
      %v549 = vmul.f32 %v470, 0.5
      %v550 = vmul.f32 %v472, 0.5
      %v551 = vmul.f32 %v475, 0.5
      %v552 = vmul.f32 %v477, 0.5
      %v553 = vmul.f32 %v480, 0.5
      %v554 = vmul.f32 %v482, 0.5
      %v555 = vmul.f32 %v485, 0.5
      %v556 = vmul.f32 %v487, 0.5
      %v557 = vmul.f32 %v490, 0.5
      %v558 = vmul.f32 %v492, 0.5
      %v559 = vmul.f32 %v495, 0.5
      %v560 = vmul.f32 %v497, 0.5
      %v561 = vmul.f32 %v500, 0.5
      %v562 = vmul.f32 %v502, 0.5
      %v563 = vmul.f32 %v505, 0.5
      %v564 = vmul.f32 %v507, 0.5
      %v565 = vmul.f32 %v510, 0.5
      %v566 = vmul.f32 %v512, 0.5
      %v567 = vmul.f32 %v515, 0.5
      %v568 = vmul.f32 %v517, 0.5
      %v569 = vmul.f32 %v520, 0.5
      %v570 = vmul.f32 %v522, 0.5
      %v571 = vmul.f32 %v525, 0.5
      %v572 = vmul.f32 %v527, 0.5
      %v573 = vmul.f32 %v530, 0.5
      %v574 = vmul.f32 %v532, 0.5
      %v575 = vmul.f32 %v535, 0.5
      %v576 = vmul.f32 %v537, 0.5
      %v577 = vmul.f32 %v540, 0.5
      %v578 = vmul.f32 %v542, 0.5
      %v579 = vmul.f32 %v545, 0.5
      %v580 = vmul.f32 %v547, 0.5
      %v581 = vmul.f32 %v470, 0.044715
      %v582 = vmul.f32 %v472, 0.044715
      %v583 = vmul.f32 %v475, 0.044715
      %v584 = vmul.f32 %v477, 0.044715
      %v585 = vmul.f32 %v480, 0.044715
      %v586 = vmul.f32 %v482, 0.044715
      %v587 = vmul.f32 %v485, 0.044715
      %v588 = vmul.f32 %v487, 0.044715
      %v589 = vmul.f32 %v490, 0.044715
      %v590 = vmul.f32 %v492, 0.044715
      %v591 = vmul.f32 %v495, 0.044715
      %v592 = vmul.f32 %v497, 0.044715
      %v593 = vmul.f32 %v500, 0.044715
      %v594 = vmul.f32 %v502, 0.044715
      %v595 = vmul.f32 %v505, 0.044715
      %v596 = vmul.f32 %v507, 0.044715
      %v597 = vmul.f32 %v510, 0.044715
      %v598 = vmul.f32 %v512, 0.044715
      %v599 = vmul.f32 %v515, 0.044715
      %v600 = vmul.f32 %v517, 0.044715
      %v601 = vmul.f32 %v520, 0.044715
      %v602 = vmul.f32 %v522, 0.044715
      %v603 = vmul.f32 %v525, 0.044715
      %v604 = vmul.f32 %v527, 0.044715
      %v605 = vmul.f32 %v530, 0.044715
      %v606 = vmul.f32 %v532, 0.044715
      %v607 = vmul.f32 %v535, 0.044715
      %v608 = vmul.f32 %v537, 0.044715
      %v609 = vmul.f32 %v540, 0.044715
      %v610 = vmul.f32 %v542, 0.044715
      %v611 = vmul.f32 %v545, 0.044715
      %v612 = vmul.f32 %v547, 0.044715
      %v613 = vmul.f32 %v581, %v470
      %v614 = vmul.f32 %v582, %v472
      %v615 = vmul.f32 %v583, %v475
      %v616 = vmul.f32 %v584, %v477
      %v617 = vmul.f32 %v585, %v480
      %v618 = vmul.f32 %v586, %v482
      %v619 = vmul.f32 %v587, %v485
      %v620 = vmul.f32 %v588, %v487
      %v621 = vmul.f32 %v589, %v490
      %v622 = vmul.f32 %v590, %v492
      %v623 = vmul.f32 %v591, %v495
      %v624 = vmul.f32 %v592, %v497
      %v625 = vmul.f32 %v593, %v500
      %v626 = vmul.f32 %v594, %v502
      %v627 = vmul.f32 %v595, %v505
      %v628 = vmul.f32 %v596, %v507
      %v629 = vmul.f32 %v597, %v510
      %v630 = vmul.f32 %v598, %v512
      %v631 = vmul.f32 %v599, %v515
      %v632 = vmul.f32 %v600, %v517
      %v633 = vmul.f32 %v601, %v520
      %v634 = vmul.f32 %v602, %v522
      %v635 = vmul.f32 %v603, %v525
      %v636 = vmul.f32 %v604, %v527
      %v637 = vmul.f32 %v605, %v530
      %v638 = vmul.f32 %v606, %v532
      %v639 = vmul.f32 %v607, %v535
      %v640 = vmul.f32 %v608, %v537
      %v641 = vmul.f32 %v609, %v540
      %v642 = vmul.f32 %v610, %v542
      %v643 = vmul.f32 %v611, %v545
      %v644 = vmul.f32 %v612, %v547
      %v645 = vmul.f32 %v613, %v470
      %v646 = vmul.f32 %v614, %v472
      %v647 = vmul.f32 %v615, %v475
      %v648 = vmul.f32 %v616, %v477
      %v649 = vmul.f32 %v617, %v480
      %v650 = vmul.f32 %v618, %v482
      %v651 = vmul.f32 %v619, %v485
      %v652 = vmul.f32 %v620, %v487
      %v653 = vmul.f32 %v621, %v490
      %v654 = vmul.f32 %v622, %v492
      %v655 = vmul.f32 %v623, %v495
      %v656 = vmul.f32 %v624, %v497
      %v657 = vmul.f32 %v625, %v500
      %v658 = vmul.f32 %v626, %v502
      %v659 = vmul.f32 %v627, %v505
      %v660 = vmul.f32 %v628, %v507
      %v661 = vmul.f32 %v629, %v510
      %v662 = vmul.f32 %v630, %v512
      %v663 = vmul.f32 %v631, %v515
      %v664 = vmul.f32 %v632, %v517
      %v665 = vmul.f32 %v633, %v520
      %v666 = vmul.f32 %v634, %v522
      %v667 = vmul.f32 %v635, %v525
      %v668 = vmul.f32 %v636, %v527
      %v669 = vmul.f32 %v637, %v530
      %v670 = vmul.f32 %v638, %v532
      %v671 = vmul.f32 %v639, %v535
      %v672 = vmul.f32 %v640, %v537
      %v673 = vmul.f32 %v641, %v540
      %v674 = vmul.f32 %v642, %v542
      %v675 = vmul.f32 %v643, %v545
      %v676 = vmul.f32 %v644, %v547
      %v677 = vadd.f32 %v470, %v645
      %v678 = vadd.f32 %v472, %v646
      %v679 = vadd.f32 %v475, %v647
      %v680 = vadd.f32 %v477, %v648
      %v681 = vadd.f32 %v480, %v649
      %v682 = vadd.f32 %v482, %v650
      %v683 = vadd.f32 %v485, %v651
      %v684 = vadd.f32 %v487, %v652
      %v685 = vadd.f32 %v490, %v653
      %v686 = vadd.f32 %v492, %v654
      %v687 = vadd.f32 %v495, %v655
      %v688 = vadd.f32 %v497, %v656
      %v689 = vadd.f32 %v500, %v657
      %v690 = vadd.f32 %v502, %v658
      %v691 = vadd.f32 %v505, %v659
      %v692 = vadd.f32 %v507, %v660
      %v693 = vadd.f32 %v510, %v661
      %v694 = vadd.f32 %v512, %v662
      %v695 = vadd.f32 %v515, %v663
      %v696 = vadd.f32 %v517, %v664
      %v697 = vadd.f32 %v520, %v665
      %v698 = vadd.f32 %v522, %v666
      %v699 = vadd.f32 %v525, %v667
      %v700 = vadd.f32 %v527, %v668
      %v701 = vadd.f32 %v530, %v669
      %v702 = vadd.f32 %v532, %v670
      %v703 = vadd.f32 %v535, %v671
      %v704 = vadd.f32 %v537, %v672
      %v705 = vadd.f32 %v540, %v673
      %v706 = vadd.f32 %v542, %v674
      %v707 = vadd.f32 %v545, %v675
      %v708 = vadd.f32 %v547, %v676
      %v709 = vmul.f32 %v677, 0.7978846
      %v710 = vmul.f32 %v678, 0.7978846
      %v711 = vmul.f32 %v679, 0.7978846
      %v712 = vmul.f32 %v680, 0.7978846
      %v713 = vmul.f32 %v681, 0.7978846
      %v714 = vmul.f32 %v682, 0.7978846
      %v715 = vmul.f32 %v683, 0.7978846
      %v716 = vmul.f32 %v684, 0.7978846
      %v717 = vmul.f32 %v685, 0.7978846
      %v718 = vmul.f32 %v686, 0.7978846
      %v719 = vmul.f32 %v687, 0.7978846
      %v720 = vmul.f32 %v688, 0.7978846
      %v721 = vmul.f32 %v689, 0.7978846
      %v722 = vmul.f32 %v690, 0.7978846
      %v723 = vmul.f32 %v691, 0.7978846
      %v724 = vmul.f32 %v692, 0.7978846
      %v725 = vmul.f32 %v693, 0.7978846
      %v726 = vmul.f32 %v694, 0.7978846
      %v727 = vmul.f32 %v695, 0.7978846
      %v728 = vmul.f32 %v696, 0.7978846
      %v729 = vmul.f32 %v697, 0.7978846
      %v730 = vmul.f32 %v698, 0.7978846
      %v731 = vmul.f32 %v699, 0.7978846
      %v732 = vmul.f32 %v700, 0.7978846
      %v733 = vmul.f32 %v701, 0.7978846
      %v734 = vmul.f32 %v702, 0.7978846
      %v735 = vmul.f32 %v703, 0.7978846
      %v736 = vmul.f32 %v704, 0.7978846
      %v737 = vmul.f32 %v705, 0.7978846
      %v738 = vmul.f32 %v706, 0.7978846
      %v739 = vmul.f32 %v707, 0.7978846
      %v740 = vmul.f32 %v708, 0.7978846
      %v741 = vtanh.pop %v709
      %v742 = vtanh.pop %v710
      %v743 = vtanh.pop %v711
      %v744 = vtanh.pop %v712
      %v745 = vtanh.pop %v713
      %v746 = vtanh.pop %v714
      %v747 = vtanh.pop %v715
      %v748 = vtanh.pop %v716
      %v749 = vtanh.pop %v717
      %v750 = vtanh.pop %v718
      %v751 = vtanh.pop %v719
      %v752 = vtanh.pop %v720
      %v753 = vtanh.pop %v721
      %v754 = vtanh.pop %v722
      %v755 = vtanh.pop %v723
      %v756 = vtanh.pop %v724
      %v757 = vtanh.pop %v725
      %v758 = vtanh.pop %v726
      %v759 = vtanh.pop %v727
      %v760 = vtanh.pop %v728
      %v761 = vtanh.pop %v729
      %v762 = vtanh.pop %v730
      %v763 = vtanh.pop %v731
      %v764 = vtanh.pop %v732
      %v765 = vtanh.pop %v733
      %v766 = vtanh.pop %v734
      %v767 = vtanh.pop %v735
      %v768 = vtanh.pop %v736
      %v769 = vtanh.pop %v737
      %v770 = vtanh.pop %v738
      %v771 = vtanh.pop %v739
      %v772 = vtanh.pop %v740
      %v773 = vadd.f32 %v741, 1.0
      %v774 = vadd.f32 %v742, 1.0
      %v775 = vadd.f32 %v743, 1.0
      %v776 = vadd.f32 %v744, 1.0
      %v777 = vadd.f32 %v745, 1.0
      %v778 = vadd.f32 %v746, 1.0
      %v779 = vadd.f32 %v747, 1.0
      %v780 = vadd.f32 %v748, 1.0
      %v781 = vadd.f32 %v749, 1.0
      %v782 = vadd.f32 %v750, 1.0
      %v783 = vadd.f32 %v751, 1.0
      %v784 = vadd.f32 %v752, 1.0
      %v785 = vadd.f32 %v753, 1.0
      %v786 = vadd.f32 %v754, 1.0
      %v787 = vadd.f32 %v755, 1.0
      %v788 = vadd.f32 %v756, 1.0
      %v789 = vadd.f32 %v757, 1.0
      %v790 = vadd.f32 %v758, 1.0
      %v791 = vadd.f32 %v759, 1.0
      %v792 = vadd.f32 %v760, 1.0
      %v793 = vadd.f32 %v761, 1.0
      %v794 = vadd.f32 %v762, 1.0
      %v795 = vadd.f32 %v763, 1.0
      %v796 = vadd.f32 %v764, 1.0
      %v797 = vadd.f32 %v765, 1.0
      %v798 = vadd.f32 %v766, 1.0
      %v799 = vadd.f32 %v767, 1.0
      %v800 = vadd.f32 %v768, 1.0
      %v801 = vadd.f32 %v769, 1.0
      %v802 = vadd.f32 %v770, 1.0
      %v803 = vadd.f32 %v771, 1.0
      %v804 = vadd.f32 %v772, 1.0
      %v805 = vmul.f32 %v549, %v773
      %v806 = vmul.f32 %v550, %v774
      %v807 = vmul.f32 %v551, %v775
      %v808 = vmul.f32 %v552, %v776
      %v809 = vmul.f32 %v553, %v777
      %v810 = vmul.f32 %v554, %v778
      %v811 = vmul.f32 %v555, %v779
      %v812 = vmul.f32 %v556, %v780
      %v813 = vmul.f32 %v557, %v781
      %v814 = vmul.f32 %v558, %v782
      %v815 = vmul.f32 %v559, %v783
      %v816 = vmul.f32 %v560, %v784
      %v817 = vmul.f32 %v561, %v785
      %v818 = vmul.f32 %v562, %v786
      %v819 = vmul.f32 %v563, %v787
      %v820 = vmul.f32 %v564, %v788
      %v821 = vmul.f32 %v565, %v789
      %v822 = vmul.f32 %v566, %v790
      %v823 = vmul.f32 %v567, %v791
      %v824 = vmul.f32 %v568, %v792
      %v825 = vmul.f32 %v569, %v793
      %v826 = vmul.f32 %v570, %v794
      %v827 = vmul.f32 %v571, %v795
      %v828 = vmul.f32 %v572, %v796
      %v829 = vmul.f32 %v573, %v797
      %v830 = vmul.f32 %v574, %v798
      %v831 = vmul.f32 %v575, %v799
      %v832 = vmul.f32 %v576, %v800
      %v833 = vmul.f32 %v577, %v801
      %v834 = vmul.f32 %v578, %v802
      %v835 = vmul.f32 %v579, %v803
      %v836 = vmul.f32 %v580, %v804
      %v837 = vld [vmem:[%s3] sm:$0xf]
      %v838 = vld [vmem:[%s3 + $0x4] sm:$0xf]
      %v839 = vld [vmem:[%s3 + $0x8] sm:$0xf]
      %v840 = vld [vmem:[%s3 + $0xc] sm:$0xf]
      %v841 = vld [vmem:[%s3 + $0x10] sm:$0xf]
      %v842 = vld [vmem:[%s3 + $0x14] sm:$0xf]
      %v843 = vld [vmem:[%s3 + $0x18] sm:$0xf]
      %v844 = vld [vmem:[%s3 + $0x1c] sm:$0xf]
      %v845 = vld [vmem:[%s3 + $0x20] sm:$0xf]
      %v846 = vld [vmem:[%s3 + $0x24] sm:$0xf]
      %v847 = vld [vmem:[%s3 + $0x28] sm:$0xf]
      %v848 = vld [vmem:[%s3 + $0x2c] sm:$0xf]
      %v849 = vld [vmem:[%s3 + $0x30] sm:$0xf]
      %v850 = vld [vmem:[%s3 + $0x34] sm:$0xf]
      %v851 = vld [vmem:[%s3 + $0x38] sm:$0xf]
      %v852 = vld [vmem:[%s3 + $0x3c] sm:$0xf]
      %v853 = vpack.c.bf16 %v806, %v805
      %v854 = vpack.c.bf16 %v808, %v807
      %v855 = vpack.c.bf16 %v810, %v809
      %v856 = vpack.c.bf16 %v812, %v811
      %v857 = vpack.c.bf16 %v814, %v813
      %v858 = vpack.c.bf16 %v816, %v815
      %v859 = vpack.c.bf16 %v818, %v817
      %v860 = vpack.c.bf16 %v820, %v819
      %v861 = vpack.c.bf16 %v822, %v821
      %v862 = vpack.c.bf16 %v824, %v823
      %v863 = vpack.c.bf16 %v826, %v825
      %v864 = vpack.c.bf16 %v828, %v827
      %v865 = vpack.c.bf16 %v830, %v829
      %v866 = vpack.c.bf16 %v832, %v831
      %v867 = vpack.c.bf16 %v834, %v833
      %v868 = vpack.c.bf16 %v836, %v835
      %v869 = vld [vmem:[%s4] sm:$0x1]
      %v871 = vperm.slane %v869, 0
      %v889 = vunpack.c.l.b16 %v837
      %v890 = vunpack.c.l.b16 %v838
      %v891 = vunpack.c.l.b16 %v839
      %v892 = vunpack.c.l.b16 %v840
      %v893 = vunpack.c.l.b16 %v841
      %v894 = vunpack.c.l.b16 %v842
      %v895 = vunpack.c.l.b16 %v843
      %v896 = vunpack.c.l.b16 %v844
      %v897 = vunpack.c.l.b16 %v845
      %v898 = vunpack.c.l.b16 %v846
      %v899 = vunpack.c.l.b16 %v847
      %v900 = vunpack.c.l.b16 %v848
      %v901 = vunpack.c.l.b16 %v849
      %v902 = vunpack.c.l.b16 %v850
      %v903 = vunpack.c.l.b16 %v851
      %v904 = vunpack.c.l.b16 %v852
      %v905 = vpack.c.b16 %v890, %v889
      %v906 = vpack.c.b16 %v892, %v891
      %v907 = vpack.c.b16 %v894, %v893
      %v908 = vpack.c.b16 %v896, %v895
      %v909 = vpack.c.b16 %v898, %v897
      %v910 = vpack.c.b16 %v900, %v899
      %v911 = vpack.c.b16 %v902, %v901
      %v912 = vpack.c.b16 %v904, %v903
      %921 = vmatpush.bf16.msra.mxu0 %v912
      %922 = vmatpush.bf16.msra.mxu0 %v911
      %923 = vmatpush.bf16.msra.mxu0 %v910
      %924 = vmatpush.bf16.msra.mxu0 %v909
      %925 = vmatpush.bf16.msra.mxu0 %v908
      %926 = vmatpush.bf16.msra.mxu0 %v907
      %927 = vmatpush.bf16.msra.mxu0 %v906
      %928 = vmatpush.bf16.msra.mxu0 %v905
      %929 = vmatmul.bf16.gmra.mxu0 %v853
      %v930 = vpop.f32.mrf.mxu0
      %v931 = vadd.f32 %v871, %v930
      %v932 = vpop.f32.mrf.mxu0
      %v933 = vadd.f32 %v871, %v932
      %934 = vmatmul.bf16.gmra.mxu0 %v854
      %v935 = vpop.f32.mrf.mxu0
      %v936 = vadd.f32 %v871, %v935
      %v937 = vpop.f32.mrf.mxu0
      %v938 = vadd.f32 %v871, %v937
      %939 = vmatmul.bf16.gmra.mxu0 %v855
      %v940 = vpop.f32.mrf.mxu0
      %v941 = vadd.f32 %v871, %v940
      %v942 = vpop.f32.mrf.mxu0
      %v943 = vadd.f32 %v871, %v942
      %944 = vmatmul.bf16.gmra.mxu0 %v856
      %v945 = vpop.f32.mrf.mxu0
      %v946 = vadd.f32 %v871, %v945
      %v947 = vpop.f32.mrf.mxu0
      %v948 = vadd.f32 %v871, %v947
      %949 = vmatmul.bf16.gmra.mxu0 %v857
      %v950 = vpop.f32.mrf.mxu0
      %v951 = vadd.f32 %v871, %v950
      %v952 = vpop.f32.mrf.mxu0
      %v953 = vadd.f32 %v871, %v952
      %954 = vmatmul.bf16.gmra.mxu0 %v858
      %v955 = vpop.f32.mrf.mxu0
      %v956 = vadd.f32 %v871, %v955
      %v957 = vpop.f32.mrf.mxu0
      %v958 = vadd.f32 %v871, %v957
      %959 = vmatmul.bf16.gmra.mxu0 %v859
      %v960 = vpop.f32.mrf.mxu0
      %v961 = vadd.f32 %v871, %v960
      %v962 = vpop.f32.mrf.mxu0
      %v963 = vadd.f32 %v871, %v962
      %964 = vmatmul.bf16.gmra.mxu0 %v860
      %v965 = vpop.f32.mrf.mxu0
      %v966 = vadd.f32 %v871, %v965
      %v967 = vpop.f32.mrf.mxu0
      %v968 = vadd.f32 %v871, %v967
      %969 = vmatmul.bf16.gmra.mxu0 %v861
      %v970 = vpop.f32.mrf.mxu0
      %v971 = vadd.f32 %v871, %v970
      %v972 = vpop.f32.mrf.mxu0
      %v973 = vadd.f32 %v871, %v972
      %974 = vmatmul.bf16.gmra.mxu0 %v862
      %v975 = vpop.f32.mrf.mxu0
      %v976 = vadd.f32 %v871, %v975
      %v977 = vpop.f32.mrf.mxu0
      %v978 = vadd.f32 %v871, %v977
      %979 = vmatmul.bf16.gmra.mxu0 %v863
      %v980 = vpop.f32.mrf.mxu0
      %v981 = vadd.f32 %v871, %v980
      %v982 = vpop.f32.mrf.mxu0
      %v983 = vadd.f32 %v871, %v982
      %984 = vmatmul.bf16.gmra.mxu0 %v864
      %v985 = vpop.f32.mrf.mxu0
      %v986 = vadd.f32 %v871, %v985
      %v987 = vpop.f32.mrf.mxu0
      %v988 = vadd.f32 %v871, %v987
      %989 = vmatmul.bf16.gmra.mxu0 %v865
      %v990 = vpop.f32.mrf.mxu0
      %v991 = vadd.f32 %v871, %v990
      %v992 = vpop.f32.mrf.mxu0
      %v993 = vadd.f32 %v871, %v992
      %994 = vmatmul.bf16.gmra.mxu0 %v866
      %v995 = vpop.f32.mrf.mxu0
      %v996 = vadd.f32 %v871, %v995
      %v997 = vpop.f32.mrf.mxu0
      %v998 = vadd.f32 %v871, %v997
      %999 = vmatmul.bf16.gmra.mxu0 %v867
      %v1000 = vpop.f32.mrf.mxu0
      %v1001 = vadd.f32 %v871, %v1000
      %v1002 = vpop.f32.mrf.mxu0
      %v1003 = vadd.f32 %v871, %v1002
      %1004 = vmatmul.bf16.gmra.mxu0 %v868
      %v1005 = vpop.f32.mrf.mxu0
      %v1006 = vadd.f32 %v871, %v1005
      %v1007 = vpop.f32.mrf.mxu0
      %v1008 = vadd.f32 %v871, %v1007
      %1009 = vdwg.mxu0
      %1010 = vst [vmem:[%s262] sm:$0xff] %v931
      %1011 = vst [vmem:[%s262 + $0x8] sm:$0xff] %v933
      %1012 = vst [vmem:[%s262 + $0x10] sm:$0xff] %v936
      %1013 = vst [vmem:[%s262 + $0x18] sm:$0xff] %v938
      %1014 = vst [vmem:[%s262 + $0x20] sm:$0xff] %v941
      %1015 = vst [vmem:[%s262 + $0x28] sm:$0xff] %v943
      %1016 = vst [vmem:[%s262 + $0x30] sm:$0xff] %v946
      %1017 = vst [vmem:[%s262 + $0x38] sm:$0xff] %v948
      %1018 = vst [vmem:[%s262 + $0x40] sm:$0xff] %v951
      %1019 = vst [vmem:[%s262 + $0x48] sm:$0xff] %v953
      %1020 = vst [vmem:[%s262 + $0x50] sm:$0xff] %v956
      %1021 = vst [vmem:[%s262 + $0x58] sm:$0xff] %v958
      %1022 = vst [vmem:[%s262 + $0x60] sm:$0xff] %v961
      %1023 = vst [vmem:[%s262 + $0x68] sm:$0xff] %v963
      %1024 = vst [vmem:[%s262 + $0x70] sm:$0xff] %v966
      %1025 = vst [vmem:[%s262 + $0x78] sm:$0xff] %v968
      %1026 = vst [vmem:[%s262 + $0x80] sm:$0xff] %v971
      %1027 = vst [vmem:[%s262 + $0x88] sm:$0xff] %v973
      %1028 = vst [vmem:[%s262 + $0x90] sm:$0xff] %v976
      %1029 = vst [vmem:[%s262 + $0x98] sm:$0xff] %v978
      %1030 = vst [vmem:[%s262 + $0xa0] sm:$0xff] %v981
      %1031 = vst [vmem:[%s262 + $0xa8] sm:$0xff] %v983
      %1032 = vst [vmem:[%s262 + $0xb0] sm:$0xff] %v986
      %1033 = vst [vmem:[%s262 + $0xb8] sm:$0xff] %v988
      %1034 = vst [vmem:[%s262 + $0xc0] sm:$0xff] %v991
      %1035 = vst [vmem:[%s262 + $0xc8] sm:$0xff] %v993
      %1036 = vst [vmem:[%s262 + $0xd0] sm:$0xff] %v996
      %1037 = vst [vmem:[%s262 + $0xd8] sm:$0xff] %v998
      %1038 = vst [vmem:[%s262 + $0xe0] sm:$0xff] %v1001
      %1039 = vst [vmem:[%s262 + $0xe8] sm:$0xff] %v1003
      %1040 = vst [vmem:[%s262 + $0xf0] sm:$0xff] %v1006
      %1041 = vst [vmem:[%s262 + $0xf8] sm:$0xff] %v1008
      %s1042 = smul.u32 32, %s21
      %p1043 = scmp.lt.s32.totalorder %s20, 1
      %s1044 = scalar_select %p1043, %s20, 1
      %p1045 = scmp.lt.s32.totalorder %s1042, 31
      %s1046 = scalar_select %p1045, %s1042, 31
      %s1047 = smul.addr %s1044, 32
      %s1048 = sadd.s32 %s1046, %s1047
      %s1049 = smul.addr %s1048, 8
      %s1050 = scalar_lea.vmem %s5, %s1049
      // Predicated region
      $region41: #{_lambda_.19} parent=39 // pred_check
        %p1051 = pneg %p160
      $region42: #{_lambda_.19} parent=39 // pred_check_branch
        %1053 = sbr.rel (%p1051) target = $region44
      $region43: #{_lambda_.19} parent=39 // pred_region
        %s1054 = smul.u32 32, %s21
      $region44: #{_lambda_.19} parent=39 // pred_fallthru
        _
    $region40: #{_lambda_.19} parent=5 // pred_fallthru
      _
    %p1055 = scmp.le.s32.totalorder 2, %s11
    // Predicated region
    $region45: #{_lambda_.19} parent=5 // pred_check
      %p1056 = pneg %p1055
    $region46: #{_lambda_.19} parent=5 // pred_check_branch
      %1058 = sbr.rel (%p1056) target = $region48
    $region47: #{_lambda_.19} parent=5 // pred_region
      %s1059 = ssub.s32 %s11, 2
      // Predicated region
      $region49: #{_lambda_.19} parent=47 // pred_check
        %p1060 = pneg %p166
      $region50: #{_lambda_.19} parent=47 // pred_check_branch
        %1062 = sbr.rel (%p1060) target = $region52
      $region51: #{_lambda_.19} parent=47 // pred_region
        %s1063 = smul.u32 32, %s23
        %p1064 = scmp.lt.s32.totalorder %s22, 1
        %s1065 = scalar_select %p1064, %s22, 1
        %p1066 = scmp.lt.s32.totalorder %s1063, 31
        %s1067 = scalar_select %p1066, %s1063, 31
        %s1068 = smul.addr %s1065, 32
        %s1069 = sadd.s32 %s1067, %s1068
        %s1070 = smul.addr %s1069, 8
        %s1071 = scalar_lea.vmem %s5, %s1070
      $region52: #{_lambda_.19} parent=47 // pred_fallthru
        _
    $region48: #{_lambda_.19} parent=5 // pred_fallthru
      _
  $region6: #{_lambda_.19} parent=0 // loop_footer
    %s15 = sadd.s32 1, %s11
  $region7: #{_lambda_.19} parent=0 // loop_footer_branch
    %10 = sbr.rel target = $region3
  $region8: #{_lambda_.19} parent=0 // loop_exit
    _

// kernel: _lambda_.12
$region0: #{_lambda_.12}
  #allocation0 [shape = 'u32[]', space=smem, size = 0x4, offset = 0x4, fixed_abs, tag = 'smem constant byte address 0x4 - core index']
  #allocation1 [shape = 'u32[72,128]{1,0:T(1,128)}', space=vmem, size = 0x9000, scoped, tag = 'internal scratch']
  %s0 = inlined_call_operand.vmem [shape: f32[2,256,32], index: 0, kind: input, shape index: {}]
  %s1 = inlined_call_operand.vmem [shape: f32[2,1,32], index: 1, kind: input, shape index: {}]
  %s2 = inlined_call_operand.vmem [shape: f32[2,1,32], index: 2, kind: input, shape index: {}]
  %s3 = inlined_call_operand.vmem [shape: bf16[2,256,128], index: 3, kind: input, shape index: {}]
  %s4 = inlined_call_operand.vmem [shape: f32[2,256,4], index: 4, kind: input, shape index: {}]
  %s5 = inlined_call_operand.vmem [shape: bf16[32,128], index: 5, kind: input, shape index: {}]
  %s6 = inlined_call_operand.vmem [shape: f32[1,128], index: 6, kind: input, shape index: {}]
  %s7 = inlined_call_operand.vmem [shape: bf16[128,128], index: 7, kind: input, shape index: {}]
  %s8 = inlined_call_operand.vmem [shape: f32[1,128], index: 8, kind: input, shape index: {}]
  %s9 = inlined_call_operand.vmem [shape: bf16[128,128], index: 9, kind: input, shape index: {}]
  %s10 = inlined_call_operand.vmem [shape: bf16[4,128], index: 10, kind: input, shape index: {}]
  %s11 = inlined_call_operand.vmem [shape: f32[1,128], index: 11, kind: input, shape index: {}]
  %s12 = inlined_call_operand.vmem [shape: bf16[2,256,128], index: 12, kind: output, shape index: {0}]
  %s13 = inlined_call_operand.vmem [shape: f32[2,1,128], index: 13, kind: output, shape index: {1}]
  %s14 = inlined_call_operand.vmem [shape: f32[2,1,128], index: 14, kind: output, shape index: {2}]
  %15 = xla_tuple %s12, %s13, %s14
  %s16 = sld [smem:[#allocation0]]
  $region105: #{_lambda_.12} parent=0
    _
  %s18 = ssub.s32 1, %s16
  %s19 = scalar_select 0, %s18, %s16
  loop: start=0, step=1, limit=4
  $region2: #{_lambda_.12} parent=0 // loop_pre_header
    _
  $region3: #{_lambda_.12} parent=0 // loop_header
    %s21 = sphi 0, %s25
    %p22 = scmp.ge.s32.totalorder %s21, 4
    %s28 = sphi 0, %s40
    %s29 = sphi 0, %s36
    %s30 = sphi 0, %s28
    %s31 = sphi 0, %s29
    %s32 = sphi 0, %s30
    %s33 = sphi 0, %s31
    %s45 = sphi 0, %s47
    %s48 = sphi 0, %s45
    %s49 = sphi 0, %s48
    %s65 = sphi 0, %s49
    %s71 = sphi 0, %s73
    %s74 = sphi 0, %s71
    %s75 = sphi 0, %s74
    %s91 = sphi 0, %s75
    %s97 = sphi 0, %s99
    %s100 = sphi 0, %s97
    %s101 = sphi 0, %s100
    %s117 = sphi 0, %s101
    %s125 = sphi 0, %s127
    %s128 = sphi 0, %s125
    %s129 = sphi 0, %s128
    %s145 = sphi 0, %s129
    %s153 = sphi 0, %s155
    %s156 = sphi 0, %s153
    %s157 = sphi 0, %s156
    %s173 = sphi 0, %s157
    %s177 = sphi 0, %s177
    %s179 = sphi 0, %s177
    %s180 = sphi 0, %s179
    %s194 = sphi 0, %s180
    %s198 = sphi 0, %s198
    %s200 = sphi 0, %s198
    %s201 = sphi 0, %s200
    %s215 = sphi 0, %s201
    %s219 = sphi 0, %s219
    %s221 = sphi 0, %s219
    %s222 = sphi 0, %s221
    %s236 = sphi 0, %s222
    %s240 = sphi 0, %s240
    %s242 = sphi 0, %s240
    %s243 = sphi 0, %s242
    %s257 = sphi 0, %s243
    %s261 = sphi 0, %s261
    %s263 = sphi 0, %s261
    %s264 = sphi 0, %s263
    %s278 = sphi 0, %s264
    %s282 = sphi 0, %s282
    %s284 = sphi 0, %s282
    %s285 = sphi 0, %s284
    %s299 = sphi 0, %s285
    %s303 = sphi 0, %s303
    %s305 = sphi 0, %s303
    %s306 = sphi 0, %s305
    %s320 = sphi 0, %s306
    %s328 = sphi 0, %s330
    %s331 = sphi 0, %s328
    %s332 = sphi 0, %s331
    %s348 = sphi 0, %s332
    %s354 = sphi 0, %s356
    %s357 = sphi 0, %s354
    %s358 = sphi 0, %s357
    %s374 = sphi 0, %s358
    %s380 = sphi 0, %s382
    %s383 = sphi 0, %s380
    %s384 = sphi 0, %s383
    %s400 = sphi 0, %s384
  $region4: #{_lambda_.12} parent=0 // loop_header_branch
    %24 = sbr.rel (%p22) target = $region8
  $region5: #{_lambda_.12} parent=0 // loop_body
    %s26 = ssub.s32 %s21, 1
    %s27 = ssub.s32 %s21, 2
    %s34 = sadd.s32 1, %s29
    %p35 = scmp.ge.s32.totalorder %s34, 1
    %s36 = scalar_select %p35, 0, %s34
    %s37 = sadd.s32 1, %s28
    %s38 = scalar_select %p35, %s37, %s28
    %p39 = scmp.ge.s32.totalorder %s38, 2
    %s40 = scalar_select %p39, 0, %s38
    %s41 = ssub.s32 %s28, %s40
    %s42 = ssub.s32 %s29, %s36
    %s43 = sor.u32 %s41, %s42
    %p44 = scmp.eq.s32.totalorder %s43, 0
    %s46 = sadd.s32 %s45, 1
    %s47 = scalar_select %p44, %s45, %s46
    %p50 = pneg %p44
    %p51 = scmp.eq.s32.totalorder %s21, 1
    %p52 = por %p50, %p51
    %p53 = scmp.ne.s32.totalorder %s45, %s48
    %p54 = scmp.eq.s32.totalorder %s21, 0
    %p55 = por %p53, %p54
    %p56 = scmp.ne.s32.totalorder %s45, %s48
    %p57 = scmp.eq.s32.totalorder %s26, 1
    %p58 = por %p56, %p57
    %p59 = scmp.ne.s32.totalorder %s48, %s49
    %p60 = scmp.eq.s32.totalorder %s26, 0
    %p61 = por %p59, %p60
    %p62 = scmp.ne.s32.totalorder %s48, %s49
    %p63 = scmp.eq.s32.totalorder %s27, 1
    %p64 = por %p62, %p63
    %p66 = scmp.ne.s32.totalorder %s49, %s65
    %p67 = scmp.eq.s32.totalorder %s27, 0
    %p68 = por %p66, %p67
    %s69 = ssub.s32 %s28, %s40
    %p70 = scmp.eq.s32.totalorder %s69, 0
    %s72 = sadd.s32 %s71, 1
    %s73 = scalar_select %p70, %s71, %s72
    %p76 = pneg %p70
    %p77 = scmp.eq.s32.totalorder %s21, 1
    %p78 = por %p76, %p77
    %p79 = scmp.ne.s32.totalorder %s71, %s74
    %p80 = scmp.eq.s32.totalorder %s21, 0
    %p81 = por %p79, %p80
    %p82 = scmp.ne.s32.totalorder %s71, %s74
    %p83 = scmp.eq.s32.totalorder %s26, 1
    %p84 = por %p82, %p83
    %p85 = scmp.ne.s32.totalorder %s74, %s75
    %p86 = scmp.eq.s32.totalorder %s26, 0
    %p87 = por %p85, %p86
    %p88 = scmp.ne.s32.totalorder %s74, %s75
    %p89 = scmp.eq.s32.totalorder %s27, 1
    %p90 = por %p88, %p89
    %p92 = scmp.ne.s32.totalorder %s75, %s91
    %p93 = scmp.eq.s32.totalorder %s27, 0
    %p94 = por %p92, %p93
    %s95 = ssub.s32 %s28, %s40
    %p96 = scmp.eq.s32.totalorder %s95, 0
    %s98 = sadd.s32 %s97, 1
    %s99 = scalar_select %p96, %s97, %s98
    %p102 = pneg %p96
    %p103 = scmp.eq.s32.totalorder %s21, 1
    %p104 = por %p102, %p103
    %p105 = scmp.ne.s32.totalorder %s97, %s100
    %p106 = scmp.eq.s32.totalorder %s21, 0
    %p107 = por %p105, %p106
    %p108 = scmp.ne.s32.totalorder %s97, %s100
    %p109 = scmp.eq.s32.totalorder %s26, 1
    %p110 = por %p108, %p109
    %p111 = scmp.ne.s32.totalorder %s100, %s101
    %p112 = scmp.eq.s32.totalorder %s26, 0
    %p113 = por %p111, %p112
    %p114 = scmp.ne.s32.totalorder %s100, %s101
    %p115 = scmp.eq.s32.totalorder %s27, 1
    %p116 = por %p114, %p115
    %p118 = scmp.ne.s32.totalorder %s101, %s117
    %p119 = scmp.eq.s32.totalorder %s27, 0
    %p120 = por %p118, %p119
    %s121 = ssub.s32 %s28, %s40
    %s122 = ssub.s32 %s29, %s36
    %s123 = sor.u32 %s121, %s122
    %p124 = scmp.eq.s32.totalorder %s123, 0
    %s126 = sadd.s32 %s125, 1
    %s127 = scalar_select %p124, %s125, %s126
    %p130 = pneg %p124
    %p131 = scmp.eq.s32.totalorder %s21, 1
    %p132 = por %p130, %p131
    %p133 = scmp.ne.s32.totalorder %s125, %s128
    %p134 = scmp.eq.s32.totalorder %s21, 0
    %p135 = por %p133, %p134
    %p136 = scmp.ne.s32.totalorder %s125, %s128
    %p137 = scmp.eq.s32.totalorder %s26, 1
    %p138 = por %p136, %p137
    %p139 = scmp.ne.s32.totalorder %s128, %s129
    %p140 = scmp.eq.s32.totalorder %s26, 0
    %p141 = por %p139, %p140
    %p142 = scmp.ne.s32.totalorder %s128, %s129
    %p143 = scmp.eq.s32.totalorder %s27, 1
    %p144 = por %p142, %p143
    %p146 = scmp.ne.s32.totalorder %s129, %s145
    %p147 = scmp.eq.s32.totalorder %s27, 0
    %p148 = por %p146, %p147
    %s149 = ssub.s32 %s28, %s40
    %s150 = ssub.s32 %s29, %s36
    %s151 = sor.u32 %s149, %s150
    %p152 = scmp.eq.s32.totalorder %s151, 0
    %s154 = sadd.s32 %s153, 1
    %s155 = scalar_select %p152, %s153, %s154
    %p158 = pneg %p152
    %p159 = scmp.eq.s32.totalorder %s21, 1
    %p160 = por %p158, %p159
    %p161 = scmp.ne.s32.totalorder %s153, %s156
    %p162 = scmp.eq.s32.totalorder %s21, 0
    %p163 = por %p161, %p162
    %p164 = scmp.ne.s32.totalorder %s153, %s156
    %p165 = scmp.eq.s32.totalorder %s26, 1
    %p166 = por %p164, %p165
    %p167 = scmp.ne.s32.totalorder %s156, %s157
    %p168 = scmp.eq.s32.totalorder %s26, 0
    %p169 = por %p167, %p168
    %p170 = scmp.ne.s32.totalorder %s156, %s157
    %p171 = scmp.eq.s32.totalorder %s27, 1
    %p172 = por %p170, %p171
    %p174 = scmp.ne.s32.totalorder %s157, %s173
    %p175 = scmp.eq.s32.totalorder %s27, 0
    %p176 = por %p174, %p175
    %s178 = sadd.s32 %s177, 1
    %p181 = scmp.eq.s32.totalorder %s21, 1
    %p182 = scmp.ne.s32.totalorder %s177, %s179
    %p183 = scmp.eq.s32.totalorder %s21, 0
    %p184 = por %p182, %p183
    %p185 = scmp.ne.s32.totalorder %s177, %s179
    %p186 = scmp.eq.s32.totalorder %s26, 1
    %p187 = por %p185, %p186
    %p188 = scmp.ne.s32.totalorder %s179, %s180
    %p189 = scmp.eq.s32.totalorder %s26, 0
    %p190 = por %p188, %p189
    %p191 = scmp.ne.s32.totalorder %s179, %s180
    %p192 = scmp.eq.s32.totalorder %s27, 1
    %p193 = por %p191, %p192
    %p195 = scmp.ne.s32.totalorder %s180, %s194
    %p196 = scmp.eq.s32.totalorder %s27, 0
    %p197 = por %p195, %p196
    %s199 = sadd.s32 %s198, 1
    %p202 = scmp.eq.s32.totalorder %s21, 1
    %p203 = scmp.ne.s32.totalorder %s198, %s200
    %p204 = scmp.eq.s32.totalorder %s21, 0
    %p205 = por %p203, %p204
    %p206 = scmp.ne.s32.totalorder %s198, %s200
    %p207 = scmp.eq.s32.totalorder %s26, 1
    %p208 = por %p206, %p207
    %p209 = scmp.ne.s32.totalorder %s200, %s201
    %p210 = scmp.eq.s32.totalorder %s26, 0
    %p211 = por %p209, %p210
    %p212 = scmp.ne.s32.totalorder %s200, %s201
    %p213 = scmp.eq.s32.totalorder %s27, 1
    %p214 = por %p212, %p213
    %p216 = scmp.ne.s32.totalorder %s201, %s215
    %p217 = scmp.eq.s32.totalorder %s27, 0
    %p218 = por %p216, %p217
    %s220 = sadd.s32 %s219, 1
    %p223 = scmp.eq.s32.totalorder %s21, 1
    %p224 = scmp.ne.s32.totalorder %s219, %s221
    %p225 = scmp.eq.s32.totalorder %s21, 0
    %p226 = por %p224, %p225
    %p227 = scmp.ne.s32.totalorder %s219, %s221
    %p228 = scmp.eq.s32.totalorder %s26, 1
    %p229 = por %p227, %p228
    %p230 = scmp.ne.s32.totalorder %s221, %s222
    %p231 = scmp.eq.s32.totalorder %s26, 0
    %p232 = por %p230, %p231
    %p233 = scmp.ne.s32.totalorder %s221, %s222
    %p234 = scmp.eq.s32.totalorder %s27, 1
    %p235 = por %p233, %p234
    %p237 = scmp.ne.s32.totalorder %s222, %s236
    %p238 = scmp.eq.s32.totalorder %s27, 0
    %p239 = por %p237, %p238
    %s241 = sadd.s32 %s240, 1
    %p244 = scmp.eq.s32.totalorder %s21, 1
    %p245 = scmp.ne.s32.totalorder %s240, %s242
    %p246 = scmp.eq.s32.totalorder %s21, 0
    %p247 = por %p245, %p246
    %p248 = scmp.ne.s32.totalorder %s240, %s242
    %p249 = scmp.eq.s32.totalorder %s26, 1
    %p250 = por %p248, %p249
    %p251 = scmp.ne.s32.totalorder %s242, %s243
    %p252 = scmp.eq.s32.totalorder %s26, 0
    %p253 = por %p251, %p252
    %p254 = scmp.ne.s32.totalorder %s242, %s243
    %p255 = scmp.eq.s32.totalorder %s27, 1
    %p256 = por %p254, %p255
    %p258 = scmp.ne.s32.totalorder %s243, %s257
    %p259 = scmp.eq.s32.totalorder %s27, 0
    %p260 = por %p258, %p259
    %s262 = sadd.s32 %s261, 1
    %p265 = scmp.eq.s32.totalorder %s21, 1
    %p266 = scmp.ne.s32.totalorder %s261, %s263
    %p267 = scmp.eq.s32.totalorder %s21, 0
    %p268 = por %p266, %p267
    %p269 = scmp.ne.s32.totalorder %s261, %s263
    %p270 = scmp.eq.s32.totalorder %s26, 1
    %p271 = por %p269, %p270
    %p272 = scmp.ne.s32.totalorder %s263, %s264
    %p273 = scmp.eq.s32.totalorder %s26, 0
    %p274 = por %p272, %p273
    %p275 = scmp.ne.s32.totalorder %s263, %s264
    %p276 = scmp.eq.s32.totalorder %s27, 1
    %p277 = por %p275, %p276
    %p279 = scmp.ne.s32.totalorder %s264, %s278
    %p280 = scmp.eq.s32.totalorder %s27, 0
    %p281 = por %p279, %p280
    %s283 = sadd.s32 %s282, 1
    %p286 = scmp.eq.s32.totalorder %s21, 1
    %p287 = scmp.ne.s32.totalorder %s282, %s284
    %p288 = scmp.eq.s32.totalorder %s21, 0
    %p289 = por %p287, %p288
    %p290 = scmp.ne.s32.totalorder %s282, %s284
    %p291 = scmp.eq.s32.totalorder %s26, 1
    %p292 = por %p290, %p291
    %p293 = scmp.ne.s32.totalorder %s284, %s285
    %p294 = scmp.eq.s32.totalorder %s26, 0
    %p295 = por %p293, %p294
    %p296 = scmp.ne.s32.totalorder %s284, %s285
    %p297 = scmp.eq.s32.totalorder %s27, 1
    %p298 = por %p296, %p297
    %p300 = scmp.ne.s32.totalorder %s285, %s299
    %p301 = scmp.eq.s32.totalorder %s27, 0
    %p302 = por %p300, %p301
    %s304 = sadd.s32 %s303, 1
    %p307 = scmp.eq.s32.totalorder %s21, 1
    %p308 = scmp.ne.s32.totalorder %s303, %s305
    %p309 = scmp.eq.s32.totalorder %s21, 0
    %p310 = por %p308, %p309
    %p311 = scmp.ne.s32.totalorder %s303, %s305
    %p312 = scmp.eq.s32.totalorder %s26, 1
    %p313 = por %p311, %p312
    %p314 = scmp.ne.s32.totalorder %s305, %s306
    %p315 = scmp.eq.s32.totalorder %s26, 0
    %p316 = por %p314, %p315
    %p317 = scmp.ne.s32.totalorder %s305, %s306
    %p318 = scmp.eq.s32.totalorder %s27, 1
    %p319 = por %p317, %p318
    %p321 = scmp.ne.s32.totalorder %s306, %s320
    %p322 = scmp.eq.s32.totalorder %s27, 0
    %p323 = por %p321, %p322
    %s324 = ssub.s32 %s28, %s40
    %s325 = ssub.s32 %s29, %s36
    %s326 = sor.u32 %s324, %s325
    %p327 = scmp.eq.s32.totalorder %s326, 0
    %s329 = sadd.s32 %s328, 1
    %s330 = scalar_select %p327, %s328, %s329
    %p333 = pneg %p327
    %p334 = scmp.eq.s32.totalorder %s21, 1
    %p335 = por %p333, %p334
    %p336 = scmp.ne.s32.totalorder %s328, %s331
    %p337 = scmp.eq.s32.totalorder %s21, 0
    %p338 = por %p336, %p337
    %p339 = scmp.ne.s32.totalorder %s328, %s331
    %p340 = scmp.eq.s32.totalorder %s26, 1
    %p341 = por %p339, %p340
    %p342 = scmp.ne.s32.totalorder %s331, %s332
    %p343 = scmp.eq.s32.totalorder %s26, 0
    %p344 = por %p342, %p343
    %p345 = scmp.ne.s32.totalorder %s331, %s332
    %p346 = scmp.eq.s32.totalorder %s27, 1
    %p347 = por %p345, %p346
    %p349 = scmp.ne.s32.totalorder %s332, %s348
    %p350 = scmp.eq.s32.totalorder %s27, 0
    %p351 = por %p349, %p350
    %s352 = ssub.s32 %s28, %s40
    %p353 = scmp.eq.s32.totalorder %s352, 0
    %s355 = sadd.s32 %s354, 1
    %s356 = scalar_select %p353, %s354, %s355
    %p359 = pneg %p353
    %p360 = scmp.eq.s32.totalorder %s21, 1
    %p361 = por %p359, %p360
    %p362 = scmp.ne.s32.totalorder %s354, %s357
    %p363 = scmp.eq.s32.totalorder %s21, 0
    %p364 = por %p362, %p363
    %p365 = scmp.ne.s32.totalorder %s354, %s357
    %p366 = scmp.eq.s32.totalorder %s26, 1
    %p367 = por %p365, %p366
    %p368 = scmp.ne.s32.totalorder %s357, %s358
    %p369 = scmp.eq.s32.totalorder %s26, 0
    %p370 = por %p368, %p369
    %p371 = scmp.ne.s32.totalorder %s357, %s358
    %p372 = scmp.eq.s32.totalorder %s27, 1
    %p373 = por %p371, %p372
    %p375 = scmp.ne.s32.totalorder %s358, %s374
    %p376 = scmp.eq.s32.totalorder %s27, 0
    %p377 = por %p375, %p376
    %s378 = ssub.s32 %s28, %s40
    %p379 = scmp.eq.s32.totalorder %s378, 0
    %s381 = sadd.s32 %s380, 1
    %s382 = scalar_select %p379, %s380, %s381
    %p385 = pneg %p379
    %p386 = scmp.eq.s32.totalorder %s21, 1
    %p387 = por %p385, %p386
    %p388 = scmp.ne.s32.totalorder %s380, %s383
    %p389 = scmp.eq.s32.totalorder %s21, 0
    %p390 = por %p388, %p389
    %p391 = scmp.ne.s32.totalorder %s380, %s383
    %p392 = scmp.eq.s32.totalorder %s26, 1
    %p393 = por %p391, %p392
    %p394 = scmp.ne.s32.totalorder %s383, %s384
    %p395 = scmp.eq.s32.totalorder %s26, 0
    %p396 = por %p394, %p395
    %p397 = scmp.ne.s32.totalorder %s383, %s384
    %p398 = scmp.eq.s32.totalorder %s27, 1
    %p399 = por %p397, %p398
    %p401 = scmp.ne.s32.totalorder %s384, %s400
    %p402 = scmp.eq.s32.totalorder %s27, 0
    %p403 = por %p401, %p402
    %p404 = scmp.le.s32.totalorder 1, %s21
    %p405 = scmp.lt.s32.totalorder %s21, 3
    %p406 = pnand %p404, %p405
    %p407 = pneg %p406
    // Predicated region
    $region9: #{_lambda_.12} parent=5 // pred_check
      _
    $region10: #{_lambda_.12} parent=5 // pred_check_branch
      %409 = sbr.rel (%p406) target = $region12
    $region11: #{_lambda_.12} parent=5 // pred_region
      %s410 = ssub.s32 %s21, 1
      // Predicated region
      $region13: #{_lambda_.12} parent=11 // pred_check
        %p411 = pneg %p190
      $region14: #{_lambda_.12} parent=11 // pred_check_branch
        %413 = sbr.rel (%p411) target = $region16
      $region15: #{_lambda_.12} parent=11 // pred_region
        _
      $region16: #{_lambda_.12} parent=11 // pred_fallthru
        _
      // Predicated region
      $region17: #{_lambda_.12} parent=11 // pred_check
        %p414 = pneg %p211
      $region18: #{_lambda_.12} parent=11 // pred_check_branch
        %416 = sbr.rel (%p414) target = $region20
      $region19: #{_lambda_.12} parent=11 // pred_region
        _
      $region20: #{_lambda_.12} parent=11 // pred_fallthru
        _
      // Predicated region
      $region21: #{_lambda_.12} parent=11 // pred_check
        %p417 = pneg %p232
      $region22: #{_lambda_.12} parent=11 // pred_check_branch
        %419 = sbr.rel (%p417) target = $region24
      $region23: #{_lambda_.12} parent=11 // pred_region
        _
      $region24: #{_lambda_.12} parent=11 // pred_fallthru
        _
      // Predicated region
      $region25: #{_lambda_.12} parent=11 // pred_check
        %p420 = pneg %p253
      $region26: #{_lambda_.12} parent=11 // pred_check_branch
        %422 = sbr.rel (%p420) target = $region28
      $region27: #{_lambda_.12} parent=11 // pred_region
        _
      $region28: #{_lambda_.12} parent=11 // pred_fallthru
        _
      // Predicated region
      $region29: #{_lambda_.12} parent=11 // pred_check
        %p423 = pneg %p274
      $region30: #{_lambda_.12} parent=11 // pred_check_branch
        %425 = sbr.rel (%p423) target = $region32
      $region31: #{_lambda_.12} parent=11 // pred_region
        _
      $region32: #{_lambda_.12} parent=11 // pred_fallthru
        _
      // Predicated region
      $region33: #{_lambda_.12} parent=11 // pred_check
        %p426 = pneg %p295
      $region34: #{_lambda_.12} parent=11 // pred_check_branch
        %428 = sbr.rel (%p426) target = $region36
      $region35: #{_lambda_.12} parent=11 // pred_region
        _
      $region36: #{_lambda_.12} parent=11 // pred_fallthru
        _
      // Predicated region
      $region37: #{_lambda_.12} parent=11 // pred_check
        %p429 = pneg %p316
      $region38: #{_lambda_.12} parent=11 // pred_check_branch
        %431 = sbr.rel (%p429) target = $region40
      $region39: #{_lambda_.12} parent=11 // pred_region
        _
      $region40: #{_lambda_.12} parent=11 // pred_fallthru
        _
    $region12: #{_lambda_.12} parent=5 // pred_fallthru
      _
    %p432 = scmp.lt.s32.totalorder %s21, 2
    // Predicated region
    $region41: #{_lambda_.12} parent=5 // pred_check
      %p433 = pneg %p432
    $region42: #{_lambda_.12} parent=5 // pred_check_branch
      %435 = sbr.rel (%p433) target = $region44
    $region43: #{_lambda_.12} parent=5 // pred_region
      // Predicated region
      $region45: #{_lambda_.12} parent=43 // pred_check
        %p436 = pneg %p55
      $region46: #{_lambda_.12} parent=43 // pred_check_branch
        %438 = sbr.rel (%p436) target = $region48
      $region47: #{_lambda_.12} parent=43 // pred_region
        %s439 = smul.u32 32, %s29
        %p440 = scmp.lt.s32.totalorder %s28, 1
        %s441 = scalar_select %p440, %s28, 1
        %p442 = scmp.lt.s32.totalorder %s439, 31
        %s443 = scalar_select %p442, %s439, 31
        %s444 = smul.addr %s441, 32
        %s445 = sadd.s32 %s443, %s444
        %s446 = smul.addr %s445, 8
        %s447 = scalar_lea.vmem %s0, %s446
        %s448 = smul.u32 32, %s29
      $region48: #{_lambda_.12} parent=43 // pred_fallthru
        _
      // Predicated region
      $region49: #{_lambda_.12} parent=43 // pred_check
        %p449 = pneg %p81
      $region50: #{_lambda_.12} parent=43 // pred_check_branch
        %451 = sbr.rel (%p449) target = $region52
      $region51: #{_lambda_.12} parent=43 // pred_region
        %p452 = scmp.lt.s32.totalorder %s28, 1
        %s453 = scalar_select %p452, %s28, 1
        %s454 = scalar_lea.vmem %s1, %s453
      $region52: #{_lambda_.12} parent=43 // pred_fallthru
        _
      // Predicated region
      $region53: #{_lambda_.12} parent=43 // pred_check
        %p455 = pneg %p107
      $region54: #{_lambda_.12} parent=43 // pred_check_branch
        %457 = sbr.rel (%p455) target = $region56
      $region55: #{_lambda_.12} parent=43 // pred_region
        %p458 = scmp.lt.s32.totalorder %s28, 1
        %s459 = scalar_select %p458, %s28, 1
        %s460 = scalar_lea.vmem %s2, %s459
      $region56: #{_lambda_.12} parent=43 // pred_fallthru
        _
      // Predicated region
      $region57: #{_lambda_.12} parent=43 // pred_check
        %p461 = pneg %p135
      $region58: #{_lambda_.12} parent=43 // pred_check_branch
        %463 = sbr.rel (%p461) target = $region60
      $region59: #{_lambda_.12} parent=43 // pred_region
        %s464 = smul.u32 32, %s29
        %p465 = scmp.lt.s32.totalorder %s28, 1
        %s466 = scalar_select %p465, %s28, 1
        %p467 = scmp.lt.s32.totalorder %s464, 31
        %s468 = scalar_select %p467, %s464, 31
        %s469 = smul.addr %s466, 32
        %s470 = sadd.s32 %s468, %s469
        %s471 = smul.addr %s470, 4
        %s472 = scalar_lea.vmem %s3, %s471
        %s473 = smul.u32 32, %s29
      $region60: #{_lambda_.12} parent=43 // pred_fallthru
        _
      // Predicated region
      $region61: #{_lambda_.12} parent=43 // pred_check
        %p474 = pneg %p163
      $region62: #{_lambda_.12} parent=43 // pred_check_branch
        %476 = sbr.rel (%p474) target = $region64
      $region63: #{_lambda_.12} parent=43 // pred_region
        %s477 = smul.u32 32, %s29
        %p478 = scmp.lt.s32.totalorder %s28, 1
        %s479 = scalar_select %p478, %s28, 1
        %p480 = scmp.lt.s32.totalorder %s477, 31
        %s481 = scalar_select %p480, %s477, 31
        %s482 = smul.addr %s479, 32
        %s483 = sadd.s32 %s481, %s482
        %s484 = smul.addr %s483, 8
        %s485 = scalar_lea.vmem %s4, %s484
        %s486 = smul.u32 32, %s29
      $region64: #{_lambda_.12} parent=43 // pred_fallthru
        _
    $region44: #{_lambda_.12} parent=5 // pred_fallthru
      _
    %p487 = scmp.le.s32.totalorder 1, %s21
    %p488 = scmp.lt.s32.totalorder %s21, 3
    %p489 = pnand %p487, %p488
    %p490 = pneg %p489
    // Predicated region
    $region65: #{_lambda_.12} parent=5 // pred_check
      _
    $region66: #{_lambda_.12} parent=5 // pred_check_branch
      %492 = sbr.rel (%p489) target = $region68
    $region67: #{_lambda_.12} parent=5 // pred_region
      %s493 = ssub.s32 %s21, 1
      %s494 = smul.u32 32, %s31
      %p495 = scmp.lt.s32.totalorder %s30, 1
      %s496 = scalar_select %p495, %s30, 1
      %p497 = scmp.lt.s32.totalorder %s494, 31
      %s498 = scalar_select %p497, %s494, 31
      %s499 = smul.addr %s496, 32
      %s500 = sadd.s32 %s498, %s499
      %s501 = smul.addr %s500, 8
      %s502 = scalar_lea.vmem %s0, %s501
      %p503 = pneg %p61
      %p504 = pneg %p58
      %p505 = scmp.lt.s32.totalorder %s30, 1
      %s506 = scalar_select %p505, %s30, 1
      %s507 = scalar_lea.vmem %s1, %s506
      %p508 = pneg %p87
      %p509 = pneg %p84
      %p510 = scmp.lt.s32.totalorder %s30, 1
      %s511 = scalar_select %p510, %s30, 1
      %s512 = scalar_lea.vmem %s2, %s511
      %p513 = pneg %p113
      %p514 = pneg %p110
      %s515 = smul.u32 32, %s31
      %p516 = scmp.lt.s32.totalorder %s30, 1
      %s517 = scalar_select %p516, %s30, 1
      %p518 = scmp.lt.s32.totalorder %s515, 31
      %s519 = scalar_select %p518, %s515, 31
      %s520 = smul.addr %s517, 32
      %s521 = sadd.s32 %s519, %s520
      %s522 = smul.addr %s521, 4
      %s523 = scalar_lea.vmem %s3, %s522
      %p524 = pneg %p141
      %p525 = pneg %p138
      %s526 = smul.u32 32, %s31
      %p527 = scmp.lt.s32.totalorder %s30, 1
      %s528 = scalar_select %p527, %s30, 1
      %p529 = scmp.lt.s32.totalorder %s526, 31
      %s530 = scalar_select %p529, %s526, 31
      %s531 = smul.addr %s528, 32
      %s532 = sadd.s32 %s530, %s531
      %s533 = smul.addr %s532, 8
      %s534 = scalar_lea.vmem %s4, %s533
      %p535 = pneg %p169
      %p536 = pneg %p166
      %p537 = pneg %p190
      %p538 = pneg %p187
      %p539 = pneg %p211
      %p540 = pneg %p208
      %p541 = pneg %p232
      %p542 = pneg %p229
      %p543 = pneg %p253
      %p544 = pneg %p250
      %p545 = pneg %p274
      %p546 = pneg %p271
      %p547 = pneg %p295
      %p548 = pneg %p292
      %p549 = pneg %p316
      %p550 = pneg %p313
      %p551 = pneg %p344
      %p552 = pneg %p341
      %s553 = smul.u32 32, %s31
      %p554 = scmp.lt.s32.totalorder %s30, 1
      %s555 = scalar_select %p554, %s30, 1
      %p556 = scmp.lt.s32.totalorder %s553, 31
      %s557 = scalar_select %p556, %s553, 31
      %s558 = smul.addr %s555, 32
      %s559 = sadd.s32 %s557, %s558
      %s560 = smul.addr %s559, 4
      %s561 = scalar_lea.vmem %s12, %s560
      %p562 = pneg %p370
      %p563 = pneg %p367
      %p564 = scmp.lt.s32.totalorder %s30, 1
      %s565 = scalar_select %p564, %s30, 1
      %s566 = scalar_lea.vmem %s13, %s565
      %p567 = pneg %p396
      %p568 = pneg %p393
      %p569 = scmp.lt.s32.totalorder %s30, 1
      %s570 = scalar_select %p569, %s30, 1
      %s571 = scalar_lea.vmem %s14, %s570
      %s572 = smul.u32 32, %s31
      %p573 = scmp.lt.s32.totalorder %s30, 1
      %s574 = scalar_select %p573, %s30, 1
      %p575 = scmp.lt.s32.totalorder %s572, 31
      %s576 = scalar_select %p575, %s572, 31
      %s577 = smul.addr %s574, 32
      %s578 = sadd.s32 %s576, %s577
      %s579 = smul.addr %s578, 8
      %s580 = scalar_lea.vmem %s0, %s579
      %s581 = smul.u32 32, %s31
      %p582 = scmp.lt.s32.totalorder %s30, 1
      %s583 = scalar_select %p582, %s30, 1
      %s584 = scalar_lea.vmem %s1, %s583
      %p585 = scmp.lt.s32.totalorder %s30, 1
      %s586 = scalar_select %p585, %s30, 1
      %s587 = scalar_lea.vmem %s2, %s586
      %s588 = smul.u32 32, %s31
      %p589 = scmp.lt.s32.totalorder %s30, 1
      %s590 = scalar_select %p589, %s30, 1
      %p591 = scmp.lt.s32.totalorder %s588, 31
      %s592 = scalar_select %p591, %s588, 31
      %s593 = smul.addr %s590, 32
      %s594 = sadd.s32 %s592, %s593
      %s595 = smul.addr %s594, 4
      %s596 = scalar_lea.vmem %s3, %s595
      %s597 = smul.u32 32, %s31
      %s598 = smul.u32 32, %s31
      %p599 = scmp.lt.s32.totalorder %s30, 1
      %s600 = scalar_select %p599, %s30, 1
      %p601 = scmp.lt.s32.totalorder %s598, 31
      %s602 = scalar_select %p601, %s598, 31
      %s603 = smul.addr %s600, 32
      %s604 = sadd.s32 %s602, %s603
      %s605 = smul.addr %s604, 8
      %s606 = scalar_lea.vmem %s4, %s605
      %s607 = smul.u32 32, %s31
      %s608 = smul.u32 32, %s31
      %p609 = scmp.lt.s32.totalorder %s30, 1
      %s610 = scalar_select %p609, %s30, 1
      %p611 = scmp.lt.s32.totalorder %s608, 31
      %s612 = scalar_select %p611, %s608, 31
      %s613 = smul.addr %s610, 32
      %s614 = sadd.s32 %s612, %s613
      %s615 = smul.addr %s614, 4
      %s616 = scalar_lea.vmem %s12, %s615
      %s617 = smul.u32 32, %s31
      %p618 = scmp.lt.s32.totalorder %s30, 1
      %s619 = scalar_select %p618, %s30, 1
      %s620 = scalar_lea.vmem %s13, %s619
      %p621 = scmp.lt.s32.totalorder %s30, 1
      %s622 = scalar_select %p621, %s30, 1
      %s623 = scalar_lea.vmem %s14, %s622
      %v625 = vld [vmem:[%s580] sm:$0xff]
      %v626 = vld [vmem:[%s580 + $0x8] sm:$0xff]
      %v627 = vld [vmem:[%s580 + $0x10] sm:$0xff]
      %v628 = vld [vmem:[%s580 + $0x18] sm:$0xff]
      %v629 = vld [vmem:[%s580 + $0x20] sm:$0xff]
      %v630 = vld [vmem:[%s580 + $0x28] sm:$0xff]
      %v631 = vld [vmem:[%s580 + $0x30] sm:$0xff]
      %v632 = vld [vmem:[%s580 + $0x38] sm:$0xff]
      %v633 = vld [vmem:[%s580 + $0x40] sm:$0xff]
      %v634 = vld [vmem:[%s580 + $0x48] sm:$0xff]
      %v635 = vld [vmem:[%s580 + $0x50] sm:$0xff]
      %v636 = vld [vmem:[%s580 + $0x58] sm:$0xff]
      %v637 = vld [vmem:[%s580 + $0x60] sm:$0xff]
      %v638 = vld [vmem:[%s580 + $0x68] sm:$0xff]
      %v639 = vld [vmem:[%s580 + $0x70] sm:$0xff]
      %v640 = vld [vmem:[%s580 + $0x78] sm:$0xff]
      %v641 = vld [vmem:[%s580 + $0x80] sm:$0xff]
      %v642 = vld [vmem:[%s580 + $0x88] sm:$0xff]
      %v643 = vld [vmem:[%s580 + $0x90] sm:$0xff]
      %v644 = vld [vmem:[%s580 + $0x98] sm:$0xff]
      %v645 = vld [vmem:[%s580 + $0xa0] sm:$0xff]
      %v646 = vld [vmem:[%s580 + $0xa8] sm:$0xff]
      %v647 = vld [vmem:[%s580 + $0xb0] sm:$0xff]
      %v648 = vld [vmem:[%s580 + $0xb8] sm:$0xff]
      %v649 = vld [vmem:[%s580 + $0xc0] sm:$0xff]
      %v650 = vld [vmem:[%s580 + $0xc8] sm:$0xff]
      %v651 = vld [vmem:[%s580 + $0xd0] sm:$0xff]
      %v652 = vld [vmem:[%s580 + $0xd8] sm:$0xff]
      %v653 = vld [vmem:[%s580 + $0xe0] sm:$0xff]
      %v654 = vld [vmem:[%s580 + $0xe8] sm:$0xff]
      %v655 = vld [vmem:[%s580 + $0xf0] sm:$0xff]
      %v656 = vld [vmem:[%s580 + $0xf8] sm:$0xff]
      %v657 = vld [vmem:[%s584] sm:$0x1]
      %v659 = vperm.slane %v657, 0
      %v661 = vsub.f32 %v625, %v659
      %v662 = vsub.f32 %v626, %v659
      %v663 = vsub.f32 %v627, %v659
      %v664 = vsub.f32 %v628, %v659
      %v665 = vsub.f32 %v629, %v659
      %v666 = vsub.f32 %v630, %v659
      %v667 = vsub.f32 %v631, %v659
      %v668 = vsub.f32 %v632, %v659
      %v669 = vsub.f32 %v633, %v659
      %v670 = vsub.f32 %v634, %v659
      %v671 = vsub.f32 %v635, %v659
      %v672 = vsub.f32 %v636, %v659
      %v673 = vsub.f32 %v637, %v659
      %v674 = vsub.f32 %v638, %v659
      %v675 = vsub.f32 %v639, %v659
      %v676 = vsub.f32 %v640, %v659
      %v677 = vsub.f32 %v641, %v659
      %v678 = vsub.f32 %v642, %v659
      %v679 = vsub.f32 %v643, %v659
      %v680 = vsub.f32 %v644, %v659
      %v681 = vsub.f32 %v645, %v659
      %v682 = vsub.f32 %v646, %v659
      %v683 = vsub.f32 %v647, %v659
      %v684 = vsub.f32 %v648, %v659
      %v685 = vsub.f32 %v649, %v659
      %v686 = vsub.f32 %v650, %v659
      %v687 = vsub.f32 %v651, %v659
      %v688 = vsub.f32 %v652, %v659
      %v689 = vsub.f32 %v653, %v659
      %v690 = vsub.f32 %v654, %v659
      %v691 = vsub.f32 %v655, %v659
      %v692 = vsub.f32 %v656, %v659
      %v693 = vld [vmem:[%s587] sm:$0x1]
      %v695 = vperm.slane %v693, 0
      %v697 = vmul.f32 %v661, %v695
      %v698 = vmul.f32 %v662, %v695
      %v699 = vmul.f32 %v663, %v695
      %v700 = vmul.f32 %v664, %v695
      %v701 = vmul.f32 %v665, %v695
      %v702 = vmul.f32 %v666, %v695
      %v703 = vmul.f32 %v667, %v695
      %v704 = vmul.f32 %v668, %v695
      %v705 = vmul.f32 %v669, %v695
      %v706 = vmul.f32 %v670, %v695
      %v707 = vmul.f32 %v671, %v695
      %v708 = vmul.f32 %v672, %v695
      %v709 = vmul.f32 %v673, %v695
      %v710 = vmul.f32 %v674, %v695
      %v711 = vmul.f32 %v675, %v695
      %v712 = vmul.f32 %v676, %v695
      %v713 = vmul.f32 %v677, %v695
      %v714 = vmul.f32 %v678, %v695
      %v715 = vmul.f32 %v679, %v695
      %v716 = vmul.f32 %v680, %v695
      %v717 = vmul.f32 %v681, %v695
      %v718 = vmul.f32 %v682, %v695
      %v719 = vmul.f32 %v683, %v695
      %v720 = vmul.f32 %v684, %v695
      %v721 = vmul.f32 %v685, %v695
      %v722 = vmul.f32 %v686, %v695
      %v723 = vmul.f32 %v687, %v695
      %v724 = vmul.f32 %v688, %v695
      %v725 = vmul.f32 %v689, %v695
      %v726 = vmul.f32 %v690, %v695
      %v727 = vmul.f32 %v691, %v695
      %v728 = vmul.f32 %v692, %v695
      %v729 = vld [vmem:[%s5] sm:$0xf]
      %v730 = vld [vmem:[%s5 + $0x4] sm:$0xf]
      %v731 = vld [vmem:[%s5 + $0x8] sm:$0xf]
      %v732 = vld [vmem:[%s5 + $0xc] sm:$0xf]
      %v733 = vpack.c.bf16 %v698, %v697
      %v734 = vpack.c.bf16 %v700, %v699
      %v735 = vpack.c.bf16 %v702, %v701
      %v736 = vpack.c.bf16 %v704, %v703
      %v737 = vpack.c.bf16 %v706, %v705
      %v738 = vpack.c.bf16 %v708, %v707
      %v739 = vpack.c.bf16 %v710, %v709
      %v740 = vpack.c.bf16 %v712, %v711
      %v741 = vpack.c.bf16 %v714, %v713
      %v742 = vpack.c.bf16 %v716, %v715
      %v743 = vpack.c.bf16 %v718, %v717
      %v744 = vpack.c.bf16 %v720, %v719
      %v745 = vpack.c.bf16 %v722, %v721
      %v746 = vpack.c.bf16 %v724, %v723
      %v747 = vpack.c.bf16 %v726, %v725
      %v748 = vpack.c.bf16 %v728, %v727
      %v749 = vld [vmem:[%s6] sm:$0x1]
      %v751 = vperm.slane %v749, 0
      %v757 = vunpack.c.l.b16 %v729
      %v758 = vunpack.c.l.b16 %v730
      %v759 = vunpack.c.l.b16 %v731
      %v760 = vunpack.c.l.b16 %v732
      %v761 = vpack.c.b16 %v758, %v757
      %v762 = vpack.c.b16 %v760, %v759
      %vm765 = vcmask 261120
      %v767 = vsel %vm765, %v733, 0
      %v770 = vsel %vm765, %v734, 0
      %v773 = vsel %vm765, %v735, 0
      %v776 = vsel %vm765, %v736, 0
      %v779 = vsel %vm765, %v737, 0
      %v782 = vsel %vm765, %v738, 0
      %v785 = vsel %vm765, %v739, 0
      %v788 = vsel %vm765, %v740, 0
      %v791 = vsel %vm765, %v741, 0
      %v794 = vsel %vm765, %v742, 0
      %v797 = vsel %vm765, %v743, 0
      %v800 = vsel %vm765, %v744, 0
      %v803 = vsel %vm765, %v745, 0
      %v806 = vsel %vm765, %v746, 0
      %v809 = vsel %vm765, %v747, 0
      %v812 = vsel %vm765, %v748, 0
      %814 = vmatpush.bf16.msra.mxu0 0
      %815 = vmatpush.bf16.msra.mxu0 0
      %816 = vmatpush.bf16.msra.mxu0 0
      %817 = vmatpush.bf16.msra.mxu0 0
      %818 = vmatpush.bf16.msra.mxu0 0
      %819 = vmatpush.bf16.msra.mxu0 0
      %820 = vmatpush.bf16.msra.mxu0 %v762
      %821 = vmatpush.bf16.msra.mxu0 %v761
      %822 = vmatmul.bf16.gmra.mxu0 %v767
      %v823 = vpop.f32.mrf.mxu0
      %v824 = vadd.f32 %v751, %v823
      %v825 = vpop.f32.mrf.mxu0
      %v826 = vadd.f32 %v751, %v825
      %827 = vmatmul.bf16.gmra.mxu0 %v770
      %v828 = vpop.f32.mrf.mxu0
      %v829 = vadd.f32 %v751, %v828
      %v830 = vpop.f32.mrf.mxu0
      %v831 = vadd.f32 %v751, %v830
      %832 = vmatmul.bf16.gmra.mxu0 %v773
      %v833 = vpop.f32.mrf.mxu0
      %v834 = vadd.f32 %v751, %v833
      %v835 = vpop.f32.mrf.mxu0
      %v836 = vadd.f32 %v751, %v835
      %837 = vmatmul.bf16.gmra.mxu0 %v776
      %v838 = vpop.f32.mrf.mxu0
      %v839 = vadd.f32 %v751, %v838
      %v840 = vpop.f32.mrf.mxu0
      %v841 = vadd.f32 %v751, %v840
      %842 = vmatmul.bf16.gmra.mxu0 %v779
      %v843 = vpop.f32.mrf.mxu0
      %v844 = vadd.f32 %v751, %v843
      %v845 = vpop.f32.mrf.mxu0
      %v846 = vadd.f32 %v751, %v845
      %847 = vmatmul.bf16.gmra.mxu0 %v782
      %v848 = vpop.f32.mrf.mxu0
      %v849 = vadd.f32 %v751, %v848
      %v850 = vpop.f32.mrf.mxu0
      %v851 = vadd.f32 %v751, %v850
      %852 = vmatmul.bf16.gmra.mxu0 %v785
      %v853 = vpop.f32.mrf.mxu0
      %v854 = vadd.f32 %v751, %v853
      %v855 = vpop.f32.mrf.mxu0
      %v856 = vadd.f32 %v751, %v855
      %857 = vmatmul.bf16.gmra.mxu0 %v788
      %v858 = vpop.f32.mrf.mxu0
      %v859 = vadd.f32 %v751, %v858
      %v860 = vpop.f32.mrf.mxu0
      %v861 = vadd.f32 %v751, %v860
      %862 = vmatmul.bf16.gmra.mxu0 %v791
      %v863 = vpop.f32.mrf.mxu0
      %v864 = vadd.f32 %v751, %v863
      %v865 = vpop.f32.mrf.mxu0
      %v866 = vadd.f32 %v751, %v865
      %867 = vmatmul.bf16.gmra.mxu0 %v794
      %v868 = vpop.f32.mrf.mxu0
      %v869 = vadd.f32 %v751, %v868
      %v870 = vpop.f32.mrf.mxu0
      %v871 = vadd.f32 %v751, %v870
      %872 = vmatmul.bf16.gmra.mxu0 %v797
      %v873 = vpop.f32.mrf.mxu0
      %v874 = vadd.f32 %v751, %v873
      %v875 = vpop.f32.mrf.mxu0
      %v876 = vadd.f32 %v751, %v875
      %877 = vmatmul.bf16.gmra.mxu0 %v800
      %v878 = vpop.f32.mrf.mxu0
      %v879 = vadd.f32 %v751, %v878
      %v880 = vpop.f32.mrf.mxu0
      %v881 = vadd.f32 %v751, %v880
      %882 = vmatmul.bf16.gmra.mxu0 %v803
      %v883 = vpop.f32.mrf.mxu0
      %v884 = vadd.f32 %v751, %v883
      %v885 = vpop.f32.mrf.mxu0
      %v886 = vadd.f32 %v751, %v885
      %887 = vmatmul.bf16.gmra.mxu0 %v806
      %v888 = vpop.f32.mrf.mxu0
      %v889 = vadd.f32 %v751, %v888
      %v890 = vpop.f32.mrf.mxu0
      %v891 = vadd.f32 %v751, %v890
      %892 = vmatmul.bf16.gmra.mxu0 %v809
      %v893 = vpop.f32.mrf.mxu0
      %v894 = vadd.f32 %v751, %v893
      %v895 = vpop.f32.mrf.mxu0
      %v896 = vadd.f32 %v751, %v895
      %897 = vmatmul.bf16.gmra.mxu0 %v812
      %v898 = vpop.f32.mrf.mxu0
      %v899 = vadd.f32 %v751, %v898
      %v900 = vpop.f32.mrf.mxu0
      %v901 = vadd.f32 %v751, %v900
      %902 = vdwg.mxu0
      %v903 = vmul.f32 %v824, 0.5
      %v904 = vmul.f32 %v826, 0.5
      %v905 = vmul.f32 %v829, 0.5
      %v906 = vmul.f32 %v831, 0.5
      %v907 = vmul.f32 %v834, 0.5
      %v908 = vmul.f32 %v836, 0.5
      %v909 = vmul.f32 %v839, 0.5
      %v910 = vmul.f32 %v841, 0.5
      %v911 = vmul.f32 %v844, 0.5
      %v912 = vmul.f32 %v846, 0.5
      %v913 = vmul.f32 %v849, 0.5
      %v914 = vmul.f32 %v851, 0.5
      %v915 = vmul.f32 %v854, 0.5
      %v916 = vmul.f32 %v856, 0.5
      %v917 = vmul.f32 %v859, 0.5
      %v918 = vmul.f32 %v861, 0.5
      %v919 = vmul.f32 %v864, 0.5
      %v920 = vmul.f32 %v866, 0.5
      %v921 = vmul.f32 %v869, 0.5
      %v922 = vmul.f32 %v871, 0.5
      %v923 = vmul.f32 %v874, 0.5
      %v924 = vmul.f32 %v876, 0.5
      %v925 = vmul.f32 %v879, 0.5
      %v926 = vmul.f32 %v881, 0.5
      %v927 = vmul.f32 %v884, 0.5
      %v928 = vmul.f32 %v886, 0.5
      %v929 = vmul.f32 %v889, 0.5
      %v930 = vmul.f32 %v891, 0.5
      %v931 = vmul.f32 %v894, 0.5
      %v932 = vmul.f32 %v896, 0.5
      %v933 = vmul.f32 %v899, 0.5
      %v934 = vmul.f32 %v901, 0.5
      %v935 = vmul.f32 %v824, 0.044715
      %v936 = vmul.f32 %v826, 0.044715
      %v937 = vmul.f32 %v829, 0.044715
      %v938 = vmul.f32 %v831, 0.044715
      %v939 = vmul.f32 %v834, 0.044715
      %v940 = vmul.f32 %v836, 0.044715
      %v941 = vmul.f32 %v839, 0.044715
      %v942 = vmul.f32 %v841, 0.044715
      %v943 = vmul.f32 %v844, 0.044715
      %v944 = vmul.f32 %v846, 0.044715
      %v945 = vmul.f32 %v849, 0.044715
      %v946 = vmul.f32 %v851, 0.044715
      %v947 = vmul.f32 %v854, 0.044715
      %v948 = vmul.f32 %v856, 0.044715
      %v949 = vmul.f32 %v859, 0.044715
      %v950 = vmul.f32 %v861, 0.044715
      %v951 = vmul.f32 %v864, 0.044715
      %v952 = vmul.f32 %v866, 0.044715
      %v953 = vmul.f32 %v869, 0.044715
      %v954 = vmul.f32 %v871, 0.044715
      %v955 = vmul.f32 %v874, 0.044715
      %v956 = vmul.f32 %v876, 0.044715
      %v957 = vmul.f32 %v879, 0.044715
      %v958 = vmul.f32 %v881, 0.044715
      %v959 = vmul.f32 %v884, 0.044715
      %v960 = vmul.f32 %v886, 0.044715
      %v961 = vmul.f32 %v889, 0.044715
      %v962 = vmul.f32 %v891, 0.044715
      %v963 = vmul.f32 %v894, 0.044715
      %v964 = vmul.f32 %v896, 0.044715
      %v965 = vmul.f32 %v899, 0.044715
      %v966 = vmul.f32 %v901, 0.044715
      %v967 = vmul.f32 %v935, %v824
      %v968 = vmul.f32 %v936, %v826
      %v969 = vmul.f32 %v937, %v829
      %v970 = vmul.f32 %v938, %v831
      %v971 = vmul.f32 %v939, %v834
      %v972 = vmul.f32 %v940, %v836
      %v973 = vmul.f32 %v941, %v839
      %v974 = vmul.f32 %v942, %v841
      %v975 = vmul.f32 %v943, %v844
      %v976 = vmul.f32 %v944, %v846
      %v977 = vmul.f32 %v945, %v849
      %v978 = vmul.f32 %v946, %v851
      %v979 = vmul.f32 %v947, %v854
      %v980 = vmul.f32 %v948, %v856
      %v981 = vmul.f32 %v949, %v859
      %v982 = vmul.f32 %v950, %v861
      %v983 = vmul.f32 %v951, %v864
      %v984 = vmul.f32 %v952, %v866
      %v985 = vmul.f32 %v953, %v869
      %v986 = vmul.f32 %v954, %v871
      %v987 = vmul.f32 %v955, %v874
      %v988 = vmul.f32 %v956, %v876
      %v989 = vmul.f32 %v957, %v879
      %v990 = vmul.f32 %v958, %v881
      %v991 = vmul.f32 %v959, %v884
      %v992 = vmul.f32 %v960, %v886
      %v993 = vmul.f32 %v961, %v889
      %v994 = vmul.f32 %v962, %v891
      %v995 = vmul.f32 %v963, %v894
      %v996 = vmul.f32 %v964, %v896
      %v997 = vmul.f32 %v965, %v899
      %v998 = vmul.f32 %v966, %v901
      %v999 = vmul.f32 %v967, %v824
      %v1000 = vmul.f32 %v968, %v826
      %v1001 = vmul.f32 %v969, %v829
      %v1002 = vmul.f32 %v970, %v831
      %v1003 = vmul.f32 %v971, %v834
      %v1004 = vmul.f32 %v972, %v836
      %v1005 = vmul.f32 %v973, %v839
      %v1006 = vmul.f32 %v974, %v841
      %v1007 = vmul.f32 %v975, %v844
      %v1008 = vmul.f32 %v976, %v846
      %v1009 = vmul.f32 %v977, %v849
      %v1010 = vmul.f32 %v978, %v851
      %v1011 = vmul.f32 %v979, %v854
      %v1012 = vmul.f32 %v980, %v856
      %v1013 = vmul.f32 %v981, %v859
      %v1014 = vmul.f32 %v982, %v861
      %v1015 = vmul.f32 %v983, %v864
      %v1016 = vmul.f32 %v984, %v866
      %v1017 = vmul.f32 %v985, %v869
      %v1018 = vmul.f32 %v986, %v871
      %v1019 = vmul.f32 %v987, %v874
      %v1020 = vmul.f32 %v988, %v876
      %v1021 = vmul.f32 %v989, %v879
      %v1022 = vmul.f32 %v990, %v881
      %v1023 = vmul.f32 %v991, %v884
      %v1024 = vmul.f32 %v992, %v886
      %v1025 = vmul.f32 %v993, %v889
      %v1026 = vmul.f32 %v994, %v891
      %v1027 = vmul.f32 %v995, %v894
      %v1028 = vmul.f32 %v996, %v896
      %v1029 = vmul.f32 %v997, %v899
      %v1030 = vmul.f32 %v998, %v901
      %v1031 = vadd.f32 %v824, %v999
      %v1032 = vadd.f32 %v826, %v1000
      %v1033 = vadd.f32 %v829, %v1001
      %v1034 = vadd.f32 %v831, %v1002
      %v1035 = vadd.f32 %v834, %v1003
      %v1036 = vadd.f32 %v836, %v1004
      %v1037 = vadd.f32 %v839, %v1005
      %v1038 = vadd.f32 %v841, %v1006
      %v1039 = vadd.f32 %v844, %v1007
      %v1040 = vadd.f32 %v846, %v1008
      %v1041 = vadd.f32 %v849, %v1009
      %v1042 = vadd.f32 %v851, %v1010
      %v1043 = vadd.f32 %v854, %v1011
      %v1044 = vadd.f32 %v856, %v1012
      %v1045 = vadd.f32 %v859, %v1013
      %v1046 = vadd.f32 %v861, %v1014
      %v1047 = vadd.f32 %v864, %v1015
      %v1048 = vadd.f32 %v866, %v1016
      %v1049 = vadd.f32 %v869, %v1017
      %v1050 = vadd.f32 %v871, %v1018
      %v1051 = vadd.f32 %v874, %v1019
      %v1052 = vadd.f32 %v876, %v1020
      %v1053 = vadd.f32 %v879, %v1021
      %v1054 = vadd.f32 %v881, %v1022
      %v1055 = vadd.f32 %v884, %v1023
      %v1056 = vadd.f32 %v886, %v1024
      %v1057 = vadd.f32 %v889, %v1025
      %v1058 = vadd.f32 %v891, %v1026
      %v1059 = vadd.f32 %v894, %v1027
      %v1060 = vadd.f32 %v896, %v1028
      %v1061 = vadd.f32 %v899, %v1029
      %v1062 = vadd.f32 %v901, %v1030
      %v1063 = vmul.f32 %v1031, 0.7978846
      %v1064 = vmul.f32 %v1032, 0.7978846
      %v1065 = vmul.f32 %v1033, 0.7978846
      %v1066 = vmul.f32 %v1034, 0.7978846
      %v1067 = vmul.f32 %v1035, 0.7978846
      %v1068 = vmul.f32 %v1036, 0.7978846
      %v1069 = vmul.f32 %v1037, 0.7978846
      %v1070 = vmul.f32 %v1038, 0.7978846
      %v1071 = vmul.f32 %v1039, 0.7978846
      %v1072 = vmul.f32 %v1040, 0.7978846
      %v1073 = vmul.f32 %v1041, 0.7978846
      %v1074 = vmul.f32 %v1042, 0.7978846
      %v1075 = vmul.f32 %v1043, 0.7978846
      %v1076 = vmul.f32 %v1044, 0.7978846
      %v1077 = vmul.f32 %v1045, 0.7978846
      %v1078 = vmul.f32 %v1046, 0.7978846
      %v1079 = vmul.f32 %v1047, 0.7978846
      %v1080 = vmul.f32 %v1048, 0.7978846
      %v1081 = vmul.f32 %v1049, 0.7978846
      %v1082 = vmul.f32 %v1050, 0.7978846
      %v1083 = vmul.f32 %v1051, 0.7978846
      %v1084 = vmul.f32 %v1052, 0.7978846
      %v1085 = vmul.f32 %v1053, 0.7978846
      %v1086 = vmul.f32 %v1054, 0.7978846
      %v1087 = vmul.f32 %v1055, 0.7978846
      %v1088 = vmul.f32 %v1056, 0.7978846
      %v1089 = vmul.f32 %v1057, 0.7978846
      %v1090 = vmul.f32 %v1058, 0.7978846
      %v1091 = vmul.f32 %v1059, 0.7978846
      %v1092 = vmul.f32 %v1060, 0.7978846
      %v1093 = vmul.f32 %v1061, 0.7978846
      %v1094 = vmul.f32 %v1062, 0.7978846
      %v1095 = vtanh.pop %v1063
      %v1096 = vtanh.pop %v1064
      %v1097 = vtanh.pop %v1065
      %v1098 = vtanh.pop %v1066
      %v1099 = vtanh.pop %v1067
      %v1100 = vtanh.pop %v1068
      %v1101 = vtanh.pop %v1069
      %v1102 = vtanh.pop %v1070
      %v1103 = vtanh.pop %v1071
      %v1104 = vtanh.pop %v1072
      %v1105 = vtanh.pop %v1073
      %v1106 = vtanh.pop %v1074
      %v1107 = vtanh.pop %v1075
      %v1108 = vtanh.pop %v1076
      %v1109 = vtanh.pop %v1077
      %v1110 = vtanh.pop %v1078
      %v1111 = vtanh.pop %v1079
      %v1112 = vtanh.pop %v1080
      %v1113 = vtanh.pop %v1081
      %v1114 = vtanh.pop %v1082
      %v1115 = vtanh.pop %v1083
      %v1116 = vtanh.pop %v1084
      %v1117 = vtanh.pop %v1085
      %v1118 = vtanh.pop %v1086
      %v1119 = vtanh.pop %v1087
      %v1120 = vtanh.pop %v1088
      %v1121 = vtanh.pop %v1089
      %v1122 = vtanh.pop %v1090
      %v1123 = vtanh.pop %v1091
      %v1124 = vtanh.pop %v1092
      %v1125 = vtanh.pop %v1093
      %v1126 = vtanh.pop %v1094
      %v1127 = vadd.f32 %v1095, 1.0
      %v1128 = vadd.f32 %v1096, 1.0
      %v1129 = vadd.f32 %v1097, 1.0
      %v1130 = vadd.f32 %v1098, 1.0
      %v1131 = vadd.f32 %v1099, 1.0
      %v1132 = vadd.f32 %v1100, 1.0
      %v1133 = vadd.f32 %v1101, 1.0
      %v1134 = vadd.f32 %v1102, 1.0
      %v1135 = vadd.f32 %v1103, 1.0
      %v1136 = vadd.f32 %v1104, 1.0
      %v1137 = vadd.f32 %v1105, 1.0
      %v1138 = vadd.f32 %v1106, 1.0
      %v1139 = vadd.f32 %v1107, 1.0
      %v1140 = vadd.f32 %v1108, 1.0
      %v1141 = vadd.f32 %v1109, 1.0
      %v1142 = vadd.f32 %v1110, 1.0
      %v1143 = vadd.f32 %v1111, 1.0
      %v1144 = vadd.f32 %v1112, 1.0
      %v1145 = vadd.f32 %v1113, 1.0
      %v1146 = vadd.f32 %v1114, 1.0
      %v1147 = vadd.f32 %v1115, 1.0
      %v1148 = vadd.f32 %v1116, 1.0
      %v1149 = vadd.f32 %v1117, 1.0
      %v1150 = vadd.f32 %v1118, 1.0
      %v1151 = vadd.f32 %v1119, 1.0
      %v1152 = vadd.f32 %v1120, 1.0
      %v1153 = vadd.f32 %v1121, 1.0
      %v1154 = vadd.f32 %v1122, 1.0
      %v1155 = vadd.f32 %v1123, 1.0
      %v1156 = vadd.f32 %v1124, 1.0
      %v1157 = vadd.f32 %v1125, 1.0
      %v1158 = vadd.f32 %v1126, 1.0
      %v1159 = vmul.f32 %v903, %v1127
      %v1160 = vmul.f32 %v904, %v1128
      %v1161 = vmul.f32 %v905, %v1129
      %v1162 = vmul.f32 %v906, %v1130
      %v1163 = vmul.f32 %v907, %v1131
      %v1164 = vmul.f32 %v908, %v1132
      %v1165 = vmul.f32 %v909, %v1133
      %v1166 = vmul.f32 %v910, %v1134
      %v1167 = vmul.f32 %v911, %v1135
      %v1168 = vmul.f32 %v912, %v1136
      %v1169 = vmul.f32 %v913, %v1137
      %v1170 = vmul.f32 %v914, %v1138
      %v1171 = vmul.f32 %v915, %v1139
      %v1172 = vmul.f32 %v916, %v1140
      %v1173 = vmul.f32 %v917, %v1141
      %v1174 = vmul.f32 %v918, %v1142
      %v1175 = vmul.f32 %v919, %v1143
      %v1176 = vmul.f32 %v920, %v1144
      %v1177 = vmul.f32 %v921, %v1145
      %v1178 = vmul.f32 %v922, %v1146
      %v1179 = vmul.f32 %v923, %v1147
      %v1180 = vmul.f32 %v924, %v1148
      %v1181 = vmul.f32 %v925, %v1149
      %v1182 = vmul.f32 %v926, %v1150
      %v1183 = vmul.f32 %v927, %v1151
      %v1184 = vmul.f32 %v928, %v1152
      %v1185 = vmul.f32 %v929, %v1153
      %v1186 = vmul.f32 %v930, %v1154
      %v1187 = vmul.f32 %v931, %v1155
      %v1188 = vmul.f32 %v932, %v1156
      %v1189 = vmul.f32 %v933, %v1157
      %v1190 = vmul.f32 %v934, %v1158
      %v1191 = vld [vmem:[%s7] sm:$0xf]
      %v1192 = vld [vmem:[%s7 + $0x4] sm:$0xf]
      %v1193 = vld [vmem:[%s7 + $0x8] sm:$0xf]
      %v1194 = vld [vmem:[%s7 + $0xc] sm:$0xf]
      %v1195 = vld [vmem:[%s7 + $0x10] sm:$0xf]
      %v1196 = vld [vmem:[%s7 + $0x14] sm:$0xf]
      %v1197 = vld [vmem:[%s7 + $0x18] sm:$0xf]
      %v1198 = vld [vmem:[%s7 + $0x1c] sm:$0xf]
      %v1199 = vld [vmem:[%s7 + $0x20] sm:$0xf]
      %v1200 = vld [vmem:[%s7 + $0x24] sm:$0xf]
      %v1201 = vld [vmem:[%s7 + $0x28] sm:$0xf]
      %v1202 = vld [vmem:[%s7 + $0x2c] sm:$0xf]
      %v1203 = vld [vmem:[%s7 + $0x30] sm:$0xf]
      %v1204 = vld [vmem:[%s7 + $0x34] sm:$0xf]
      %v1205 = vld [vmem:[%s7 + $0x38] sm:$0xf]
      %v1206 = vld [vmem:[%s7 + $0x3c] sm:$0xf]
      %v1207 = vpack.c.bf16 %v1160, %v1159
      %v1208 = vpack.c.bf16 %v1162, %v1161
      %v1209 = vpack.c.bf16 %v1164, %v1163
      %v1210 = vpack.c.bf16 %v1166, %v1165
      %v1211 = vpack.c.bf16 %v1168, %v1167
      %v1212 = vpack.c.bf16 %v1170, %v1169
      %v1213 = vpack.c.bf16 %v1172, %v1171
      %v1214 = vpack.c.bf16 %v1174, %v1173
      %v1215 = vpack.c.bf16 %v1176, %v1175
      %v1216 = vpack.c.bf16 %v1178, %v1177
      %v1217 = vpack.c.bf16 %v1180, %v1179
      %v1218 = vpack.c.bf16 %v1182, %v1181
      %v1219 = vpack.c.bf16 %v1184, %v1183
      %v1220 = vpack.c.bf16 %v1186, %v1185
      %v1221 = vpack.c.bf16 %v1188, %v1187
      %v1222 = vpack.c.bf16 %v1190, %v1189
      %v1223 = vld [vmem:[%s8] sm:$0x1]
      %v1225 = vperm.slane %v1223, 0
      %v1243 = vunpack.c.l.b16 %v1191
      %v1244 = vunpack.c.l.b16 %v1192
      %v1245 = vunpack.c.l.b16 %v1193
      %v1246 = vunpack.c.l.b16 %v1194
      %v1247 = vunpack.c.l.b16 %v1195
      %v1248 = vunpack.c.l.b16 %v1196
      %v1249 = vunpack.c.l.b16 %v1197
      %v1250 = vunpack.c.l.b16 %v1198
      %v1251 = vunpack.c.l.b16 %v1199
      %v1252 = vunpack.c.l.b16 %v1200
      %v1253 = vunpack.c.l.b16 %v1201
      %v1254 = vunpack.c.l.b16 %v1202
      %v1255 = vunpack.c.l.b16 %v1203
      %v1256 = vunpack.c.l.b16 %v1204
      %v1257 = vunpack.c.l.b16 %v1205
      %v1258 = vunpack.c.l.b16 %v1206
      %v1259 = vpack.c.b16 %v1244, %v1243
      %v1260 = vpack.c.b16 %v1246, %v1245
      %v1261 = vpack.c.b16 %v1248, %v1247
      %v1262 = vpack.c.b16 %v1250, %v1249
      %v1263 = vpack.c.b16 %v1252, %v1251
      %v1264 = vpack.c.b16 %v1254, %v1253
      %v1265 = vpack.c.b16 %v1256, %v1255
      %v1266 = vpack.c.b16 %v1258, %v1257
      %1275 = vmatpush.bf16.msra.mxu0 %v1266
      %1276 = vmatpush.bf16.msra.mxu0 %v1265
      %1277 = vmatpush.bf16.msra.mxu0 %v1264
      %1278 = vmatpush.bf16.msra.mxu0 %v1263
      %1279 = vmatpush.bf16.msra.mxu0 %v1262
      %1280 = vmatpush.bf16.msra.mxu0 %v1261
      %1281 = vmatpush.bf16.msra.mxu0 %v1260
      %1282 = vmatpush.bf16.msra.mxu0 %v1259
      %1283 = vmatmul.bf16.gmra.mxu0 %v1207
      %v1284 = vpop.f32.mrf.mxu0
      %v1285 = vadd.f32 %v1225, %v1284
      %v1286 = vpop.f32.mrf.mxu0
      %v1287 = vadd.f32 %v1225, %v1286
      %1288 = vmatmul.bf16.gmra.mxu0 %v1208
      %v1289 = vpop.f32.mrf.mxu0
      %v1290 = vadd.f32 %v1225, %v1289
      %v1291 = vpop.f32.mrf.mxu0
      %v1292 = vadd.f32 %v1225, %v1291
      %1293 = vmatmul.bf16.gmra.mxu0 %v1209
      %v1294 = vpop.f32.mrf.mxu0
      %v1295 = vadd.f32 %v1225, %v1294
      %v1296 = vpop.f32.mrf.mxu0
      %v1297 = vadd.f32 %v1225, %v1296
      %1298 = vmatmul.bf16.gmra.mxu0 %v1210
      %v1299 = vpop.f32.mrf.mxu0
      %v1300 = vadd.f32 %v1225, %v1299
      %v1301 = vpop.f32.mrf.mxu0
      %v1302 = vadd.f32 %v1225, %v1301
      %1303 = vmatmul.bf16.gmra.mxu0 %v1211
      %v1304 = vpop.f32.mrf.mxu0
      %v1305 = vadd.f32 %v1225, %v1304
      %v1306 = vpop.f32.mrf.mxu0
      %v1307 = vadd.f32 %v1225, %v1306
      %1308 = vmatmul.bf16.gmra.mxu0 %v1212
      %v1309 = vpop.f32.mrf.mxu0
      %v1310 = vadd.f32 %v1225, %v1309
      %v1311 = vpop.f32.mrf.mxu0
      %v1312 = vadd.f32 %v1225, %v1311
      %1313 = vmatmul.bf16.gmra.mxu0 %v1213
      %v1314 = vpop.f32.mrf.mxu0
      %v1315 = vadd.f32 %v1225, %v1314
      %v1316 = vpop.f32.mrf.mxu0
      %v1317 = vadd.f32 %v1225, %v1316
      %1318 = vmatmul.bf16.gmra.mxu0 %v1214
      %v1319 = vpop.f32.mrf.mxu0
      %v1320 = vadd.f32 %v1225, %v1319
      %v1321 = vpop.f32.mrf.mxu0
      %v1322 = vadd.f32 %v1225, %v1321
      %1323 = vmatmul.bf16.gmra.mxu0 %v1215
      %v1324 = vpop.f32.mrf.mxu0
      %v1325 = vadd.f32 %v1225, %v1324
      %v1326 = vpop.f32.mrf.mxu0
      %v1327 = vadd.f32 %v1225, %v1326
      %1328 = vmatmul.bf16.gmra.mxu0 %v1216
      %v1329 = vpop.f32.mrf.mxu0
      %v1330 = vadd.f32 %v1225, %v1329
      %v1331 = vpop.f32.mrf.mxu0
      %v1332 = vadd.f32 %v1225, %v1331
      %1333 = vmatmul.bf16.gmra.mxu0 %v1217
      %v1334 = vpop.f32.mrf.mxu0
      %v1335 = vadd.f32 %v1225, %v1334
      %v1336 = vpop.f32.mrf.mxu0
      %v1337 = vadd.f32 %v1225, %v1336
      %1338 = vmatmul.bf16.gmra.mxu0 %v1218
      %v1339 = vpop.f32.mrf.mxu0
      %v1340 = vadd.f32 %v1225, %v1339
      %v1341 = vpop.f32.mrf.mxu0
      %v1342 = vadd.f32 %v1225, %v1341
      %1343 = vmatmul.bf16.gmra.mxu0 %v1219
      %v1344 = vpop.f32.mrf.mxu0
      %v1345 = vadd.f32 %v1225, %v1344
      %v1346 = vpop.f32.mrf.mxu0
      %v1347 = vadd.f32 %v1225, %v1346
      %1348 = vmatmul.bf16.gmra.mxu0 %v1220
      %v1349 = vpop.f32.mrf.mxu0
      %v1350 = vadd.f32 %v1225, %v1349
      %v1351 = vpop.f32.mrf.mxu0
      %v1352 = vadd.f32 %v1225, %v1351
      %1353 = vmatmul.bf16.gmra.mxu0 %v1221
      %v1354 = vpop.f32.mrf.mxu0
      %v1355 = vadd.f32 %v1225, %v1354
      %v1356 = vpop.f32.mrf.mxu0
      %v1357 = vadd.f32 %v1225, %v1356
      %1358 = vmatmul.bf16.gmra.mxu0 %v1222
      %v1359 = vpop.f32.mrf.mxu0
      %v1360 = vadd.f32 %v1225, %v1359
      %v1361 = vpop.f32.mrf.mxu0
      %v1362 = vadd.f32 %v1225, %v1361
      %1363 = vdwg.mxu0
      %v1364 = vld [vmem:[%s596] sm:$0xf]
      %v1365 = vld [vmem:[%s596 + $0x4] sm:$0xf]
      %v1366 = vld [vmem:[%s596 + $0x8] sm:$0xf]
      %v1367 = vld [vmem:[%s596 + $0xc] sm:$0xf]
      %v1368 = vld [vmem:[%s596 + $0x10] sm:$0xf]
      %v1369 = vld [vmem:[%s596 + $0x14] sm:$0xf]
      %v1370 = vld [vmem:[%s596 + $0x18] sm:$0xf]
      %v1371 = vld [vmem:[%s596 + $0x1c] sm:$0xf]
      %v1372 = vld [vmem:[%s596 + $0x20] sm:$0xf]
      %v1373 = vld [vmem:[%s596 + $0x24] sm:$0xf]
      %v1374 = vld [vmem:[%s596 + $0x28] sm:$0xf]
      %v1375 = vld [vmem:[%s596 + $0x2c] sm:$0xf]
      %v1376 = vld [vmem:[%s596 + $0x30] sm:$0xf]
      %v1377 = vld [vmem:[%s596 + $0x34] sm:$0xf]
      %v1378 = vld [vmem:[%s596 + $0x38] sm:$0xf]
      %v1379 = vld [vmem:[%s596 + $0x3c] sm:$0xf]
      %v1380 = vld [vmem:[%s596 + $0x40] sm:$0xf]
      %v1381 = vld [vmem:[%s596 + $0x44] sm:$0xf]
      %v1382 = vld [vmem:[%s596 + $0x48] sm:$0xf]
      %v1383 = vld [vmem:[%s596 + $0x4c] sm:$0xf]
      %v1384 = vld [vmem:[%s596 + $0x50] sm:$0xf]
      %v1385 = vld [vmem:[%s596 + $0x54] sm:$0xf]
      %v1386 = vld [vmem:[%s596 + $0x58] sm:$0xf]
      %v1387 = vld [vmem:[%s596 + $0x5c] sm:$0xf]
      %v1388 = vld [vmem:[%s596 + $0x60] sm:$0xf]
      %v1389 = vld [vmem:[%s596 + $0x64] sm:$0xf]
      %v1390 = vld [vmem:[%s596 + $0x68] sm:$0xf]
      %v1391 = vld [vmem:[%s596 + $0x6c] sm:$0xf]
      %v1392 = vld [vmem:[%s596 + $0x70] sm:$0xf]
      %v1393 = vld [vmem:[%s596 + $0x74] sm:$0xf]
      %v1394 = vld [vmem:[%s596 + $0x78] sm:$0xf]
      %v1395 = vld [vmem:[%s596 + $0x7c] sm:$0xf]
      %v1396 = vld [vmem:[%s9] sm:$0xf]
      %v1397 = vld [vmem:[%s9 + $0x4] sm:$0xf]
      %v1398 = vld [vmem:[%s9 + $0x8] sm:$0xf]
      %v1399 = vld [vmem:[%s9 + $0xc] sm:$0xf]
      %v1400 = vld [vmem:[%s9 + $0x10] sm:$0xf]
      %v1401 = vld [vmem:[%s9 + $0x14] sm:$0xf]
      %v1402 = vld [vmem:[%s9 + $0x18] sm:$0xf]
      %v1403 = vld [vmem:[%s9 + $0x1c] sm:$0xf]
      %v1404 = vld [vmem:[%s9 + $0x20] sm:$0xf]
      %v1405 = vld [vmem:[%s9 + $0x24] sm:$0xf]
      %v1406 = vld [vmem:[%s9 + $0x28] sm:$0xf]
      %v1407 = vld [vmem:[%s9 + $0x2c] sm:$0xf]
      %v1408 = vld [vmem:[%s9 + $0x30] sm:$0xf]
      %v1409 = vld [vmem:[%s9 + $0x34] sm:$0xf]
      %v1410 = vld [vmem:[%s9 + $0x38] sm:$0xf]
      %v1411 = vld [vmem:[%s9 + $0x3c] sm:$0xf]
      %v1412 = vld [vmem:[%s606] sm:$0xff]
      %v1413 = vld [vmem:[%s606 + $0x8] sm:$0xff]
      %v1414 = vld [vmem:[%s606 + $0x10] sm:$0xff]
      %v1415 = vld [vmem:[%s606 + $0x18] sm:$0xff]
      %v1416 = vld [vmem:[%s606 + $0x20] sm:$0xff]
      %v1417 = vld [vmem:[%s606 + $0x28] sm:$0xff]
      %v1418 = vld [vmem:[%s606 + $0x30] sm:$0xff]
      %v1419 = vld [vmem:[%s606 + $0x38] sm:$0xff]
      %v1420 = vld [vmem:[%s606 + $0x40] sm:$0xff]
      %v1421 = vld [vmem:[%s606 + $0x48] sm:$0xff]
      %v1422 = vld [vmem:[%s606 + $0x50] sm:$0xff]
      %v1423 = vld [vmem:[%s606 + $0x58] sm:$0xff]
      %v1424 = vld [vmem:[%s606 + $0x60] sm:$0xff]
      %v1425 = vld [vmem:[%s606 + $0x68] sm:$0xff]
      %v1426 = vld [vmem:[%s606 + $0x70] sm:$0xff]
      %v1427 = vld [vmem:[%s606 + $0x78] sm:$0xff]
      %v1428 = vld [vmem:[%s606 + $0x80] sm:$0xff]
      %v1429 = vld [vmem:[%s606 + $0x88] sm:$0xff]
      %v1430 = vld [vmem:[%s606 + $0x90] sm:$0xff]
      %v1431 = vld [vmem:[%s606 + $0x98] sm:$0xff]
      %v1432 = vld [vmem:[%s606 + $0xa0] sm:$0xff]
      %v1433 = vld [vmem:[%s606 + $0xa8] sm:$0xff]
      %v1434 = vld [vmem:[%s606 + $0xb0] sm:$0xff]
      %v1435 = vld [vmem:[%s606 + $0xb8] sm:$0xff]
      %v1436 = vld [vmem:[%s606 + $0xc0] sm:$0xff]
      %v1437 = vld [vmem:[%s606 + $0xc8] sm:$0xff]
      %v1438 = vld [vmem:[%s606 + $0xd0] sm:$0xff]
      %v1439 = vld [vmem:[%s606 + $0xd8] sm:$0xff]
      %v1440 = vld [vmem:[%s606 + $0xe0] sm:$0xff]
      %v1441 = vld [vmem:[%s606 + $0xe8] sm:$0xff]
      %v1442 = vld [vmem:[%s606 + $0xf0] sm:$0xff]
      %v1443 = vld [vmem:[%s606 + $0xf8] sm:$0xff]
      %v1444 = vld [vmem:[%s10] sm:$0x3]
      %v1445 = vpack.c.bf16 %v1413, %v1412
      %v1446 = vpack.c.bf16 %v1415, %v1414
      %v1447 = vpack.c.bf16 %v1417, %v1416
      %v1448 = vpack.c.bf16 %v1419, %v1418
      %v1449 = vpack.c.bf16 %v1421, %v1420
      %v1450 = vpack.c.bf16 %v1423, %v1422
      %v1451 = vpack.c.bf16 %v1425, %v1424
      %v1452 = vpack.c.bf16 %v1427, %v1426
      %v1453 = vpack.c.bf16 %v1429, %v1428
      %v1454 = vpack.c.bf16 %v1431, %v1430
      %v1455 = vpack.c.bf16 %v1433, %v1432
      %v1456 = vpack.c.bf16 %v1435, %v1434
      %v1457 = vpack.c.bf16 %v1437, %v1436
      %v1458 = vpack.c.bf16 %v1439, %v1438
      %v1459 = vpack.c.bf16 %v1441, %v1440
      %v1460 = vpack.c.bf16 %v1443, %v1442
      %vm1461 = vcmask 31744
      %v1463 = vsel %vm1461, %v1445, 0
      %v1466 = vsel %vm1461, %v1446, 0
      %v1469 = vsel %vm1461, %v1447, 0
      %v1472 = vsel %vm1461, %v1448, 0
      %v1475 = vsel %vm1461, %v1449, 0
      %v1478 = vsel %vm1461, %v1450, 0
      %v1481 = vsel %vm1461, %v1451, 0
      %v1484 = vsel %vm1461, %v1452, 0
      %v1487 = vsel %vm1461, %v1453, 0
      %v1490 = vsel %vm1461, %v1454, 0
      %v1493 = vsel %vm1461, %v1455, 0
      %v1496 = vsel %vm1461, %v1456, 0
      %v1499 = vsel %vm1461, %v1457, 0
      %v1502 = vsel %vm1461, %v1458, 0
      %v1505 = vsel %vm1461, %v1459, 0
      %v1508 = vsel %vm1461, %v1460, 0
      %vm1510 = vcmask 1041408
      %v1512 = vsel %vm1510, %v1444, 0
      %1514 = vmatpush.bf16.msra.mxu0 0
      %1515 = vmatpush.bf16.msra.mxu0 0
      %1516 = vmatpush.bf16.msra.mxu0 0
      %1517 = vmatpush.bf16.msra.mxu0 0
      %1518 = vmatpush.bf16.msra.mxu0 0
      %1519 = vmatpush.bf16.msra.mxu0 0
      %1520 = vmatpush.bf16.msra.mxu0 0
      %1521 = vmatpush.bf16.msra.mxu0 %v1512
      %1522 = vmatmul.bf16.gmra.mxu0 %v1463
      %v1523 = vpop.f32.mrf.mxu0
      %v1524 = vadd.f32 0.0, %v1523
      %v1525 = vpop.f32.mrf.mxu0
      %v1526 = vadd.f32 0.0, %v1525
      %1527 = vmatmul.bf16.gmra.mxu0 %v1466
      %v1528 = vpop.f32.mrf.mxu0
      %v1529 = vadd.f32 0.0, %v1528
      %v1530 = vpop.f32.mrf.mxu0
      %v1531 = vadd.f32 0.0, %v1530
      %1532 = vmatmul.bf16.gmra.mxu0 %v1469
      %v1533 = vpop.f32.mrf.mxu0
      %v1534 = vadd.f32 0.0, %v1533
      %v1535 = vpop.f32.mrf.mxu0
      %v1536 = vadd.f32 0.0, %v1535
      %1537 = vmatmul.bf16.gmra.mxu0 %v1472
      %v1538 = vpop.f32.mrf.mxu0
      %v1539 = vadd.f32 0.0, %v1538
      %v1540 = vpop.f32.mrf.mxu0
      %v1541 = vadd.f32 0.0, %v1540
      %1542 = vmatmul.bf16.gmra.mxu0 %v1475
      %v1543 = vpop.f32.mrf.mxu0
      %v1544 = vadd.f32 0.0, %v1543
      %v1545 = vpop.f32.mrf.mxu0
      %v1546 = vadd.f32 0.0, %v1545
      %1547 = vmatmul.bf16.gmra.mxu0 %v1478
      %v1548 = vpop.f32.mrf.mxu0
      %v1549 = vadd.f32 0.0, %v1548
      %v1550 = vpop.f32.mrf.mxu0
      %v1551 = vadd.f32 0.0, %v1550
      %1552 = vmatmul.bf16.gmra.mxu0 %v1481
      %v1553 = vpop.f32.mrf.mxu0
      %v1554 = vadd.f32 0.0, %v1553
      %v1555 = vpop.f32.mrf.mxu0
      %v1556 = vadd.f32 0.0, %v1555
      %1557 = vmatmul.bf16.gmra.mxu0 %v1484
      %v1558 = vpop.f32.mrf.mxu0
      %v1559 = vadd.f32 0.0, %v1558
      %v1560 = vpop.f32.mrf.mxu0
      %v1561 = vadd.f32 0.0, %v1560
      %1562 = vmatmul.bf16.gmra.mxu0 %v1487
      %v1563 = vpop.f32.mrf.mxu0
      %v1564 = vadd.f32 0.0, %v1563
      %v1565 = vpop.f32.mrf.mxu0
      %v1566 = vadd.f32 0.0, %v1565
      %1567 = vmatmul.bf16.gmra.mxu0 %v1490
      %v1568 = vpop.f32.mrf.mxu0
      %v1569 = vadd.f32 0.0, %v1568
      %v1570 = vpop.f32.mrf.mxu0
      %v1571 = vadd.f32 0.0, %v1570
      %1572 = vmatmul.bf16.gmra.mxu0 %v1493
      %v1573 = vpop.f32.mrf.mxu0
      %v1574 = vadd.f32 0.0, %v1573
      %v1575 = vpop.f32.mrf.mxu0
      %v1576 = vadd.f32 0.0, %v1575
      %1577 = vmatmul.bf16.gmra.mxu0 %v1496
      %v1578 = vpop.f32.mrf.mxu0
      %v1579 = vadd.f32 0.0, %v1578
      %v1580 = vpop.f32.mrf.mxu0
      %v1581 = vadd.f32 0.0, %v1580
      %1582 = vmatmul.bf16.gmra.mxu0 %v1499
      %v1583 = vpop.f32.mrf.mxu0
      %v1584 = vadd.f32 0.0, %v1583
      %v1585 = vpop.f32.mrf.mxu0
      %v1586 = vadd.f32 0.0, %v1585
      %1587 = vmatmul.bf16.gmra.mxu0 %v1502
      %v1588 = vpop.f32.mrf.mxu0
      %v1589 = vadd.f32 0.0, %v1588
      %v1590 = vpop.f32.mrf.mxu0
      %v1591 = vadd.f32 0.0, %v1590
      %1592 = vmatmul.bf16.gmra.mxu0 %v1505
      %v1593 = vpop.f32.mrf.mxu0
      %v1594 = vadd.f32 0.0, %v1593
      %v1595 = vpop.f32.mrf.mxu0
      %v1596 = vadd.f32 0.0, %v1595
      %1597 = vmatmul.bf16.gmra.mxu0 %v1508
      %v1598 = vpop.f32.mrf.mxu0
      %v1599 = vadd.f32 0.0, %v1598
      %v1600 = vpop.f32.mrf.mxu0
      %v1601 = vadd.f32 0.0, %v1600
      %1602 = vdwg.mxu0
      %v1635 = vunpack.c.l.b16 %v1364
      %v1636 = vunpack.c.l.b16 %v1365
      %v1637 = vunpack.c.l.b16 %v1366
      %v1638 = vunpack.c.l.b16 %v1367
      %v1639 = vunpack.c.l.b16 %v1368
      %v1640 = vunpack.c.l.b16 %v1369
      %v1641 = vunpack.c.l.b16 %v1370
      %v1642 = vunpack.c.l.b16 %v1371
      %v1643 = vunpack.c.l.b16 %v1372
      %v1644 = vunpack.c.l.b16 %v1373
      %v1645 = vunpack.c.l.b16 %v1374
      %v1646 = vunpack.c.l.b16 %v1375
      %v1647 = vunpack.c.l.b16 %v1376
      %v1648 = vunpack.c.l.b16 %v1377
      %v1649 = vunpack.c.l.b16 %v1378
      %v1650 = vunpack.c.l.b16 %v1379
      %v1651 = vunpack.c.l.b16 %v1380
      %v1652 = vunpack.c.l.b16 %v1381
      %v1653 = vunpack.c.l.b16 %v1382
      %v1654 = vunpack.c.l.b16 %v1383
      %v1655 = vunpack.c.l.b16 %v1384
      %v1656 = vunpack.c.l.b16 %v1385
      %v1657 = vunpack.c.l.b16 %v1386
      %v1658 = vunpack.c.l.b16 %v1387
      %v1659 = vunpack.c.l.b16 %v1388
      %v1660 = vunpack.c.l.b16 %v1389
      %v1661 = vunpack.c.l.b16 %v1390
      %v1662 = vunpack.c.l.b16 %v1391
      %v1663 = vunpack.c.l.b16 %v1392
      %v1664 = vunpack.c.l.b16 %v1393
      %v1665 = vunpack.c.l.b16 %v1394
      %v1666 = vunpack.c.l.b16 %v1395
      %v1667 = vpack.c.b16 %v1636, %v1635
      %v1668 = vpack.c.b16 %v1638, %v1637
      %v1669 = vpack.c.b16 %v1640, %v1639
      %v1670 = vpack.c.b16 %v1642, %v1641
      %v1671 = vpack.c.b16 %v1644, %v1643
      %v1672 = vpack.c.b16 %v1646, %v1645
      %v1673 = vpack.c.b16 %v1648, %v1647
      %v1674 = vpack.c.b16 %v1650, %v1649
      %v1675 = vpack.c.b16 %v1652, %v1651
      %v1676 = vpack.c.b16 %v1654, %v1653
      %v1677 = vpack.c.b16 %v1656, %v1655
      %v1678 = vpack.c.b16 %v1658, %v1657
      %v1679 = vpack.c.b16 %v1660, %v1659
      %v1680 = vpack.c.b16 %v1662, %v1661
      %v1681 = vpack.c.b16 %v1664, %v1663
      %v1682 = vpack.c.b16 %v1666, %v1665
      %v1715 = vunpack.c.l.b16 %v1396
      %v1716 = vunpack.c.l.b16 %v1397
      %v1717 = vunpack.c.l.b16 %v1398
      %v1718 = vunpack.c.l.b16 %v1399
      %v1719 = vunpack.c.l.b16 %v1400
      %v1720 = vunpack.c.l.b16 %v1401
      %v1721 = vunpack.c.l.b16 %v1402
      %v1722 = vunpack.c.l.b16 %v1403
      %v1723 = vunpack.c.l.b16 %v1404
      %v1724 = vunpack.c.l.b16 %v1405
      %v1725 = vunpack.c.l.b16 %v1406
      %v1726 = vunpack.c.l.b16 %v1407
      %v1727 = vunpack.c.l.b16 %v1408
      %v1728 = vunpack.c.l.b16 %v1409
      %v1729 = vunpack.c.l.b16 %v1410
      %v1730 = vunpack.c.l.b16 %v1411
      %v1731 = vpack.c.b16 %v1716, %v1715
      %v1732 = vpack.c.b16 %v1718, %v1717
      %v1733 = vpack.c.b16 %v1720, %v1719
      %v1734 = vpack.c.b16 %v1722, %v1721
      %v1735 = vpack.c.b16 %v1724, %v1723
      %v1736 = vpack.c.b16 %v1726, %v1725
      %v1737 = vpack.c.b16 %v1728, %v1727
      %v1738 = vpack.c.b16 %v1730, %v1729
      %1747 = vmatpush.bf16.msra.mxu0 %v1738
      %1748 = vmatpush.bf16.msra.mxu0 %v1737
      %1749 = vmatpush.bf16.msra.mxu0 %v1736
      %1750 = vmatpush.bf16.msra.mxu0 %v1735
      %1751 = vmatpush.bf16.msra.mxu0 %v1734
      %1752 = vmatpush.bf16.msra.mxu0 %v1733
      %1753 = vmatpush.bf16.msra.mxu0 %v1732
      %1754 = vmatpush.bf16.msra.mxu0 %v1731
      %1755 = vmatmul.bf16.gmra.mxu0 %v1667
      %v1756 = vpop.f32.mrf.mxu0
      %v1757 = vadd.f32 %v1524, %v1756
      %v1758 = vpop.f32.mrf.mxu0
      %v1759 = vadd.f32 %v1526, %v1758
      %1760 = vmatmul.bf16.gmra.mxu0 %v1668
      %v1761 = vpop.f32.mrf.mxu0
      %v1762 = vadd.f32 %v1529, %v1761
      %v1763 = vpop.f32.mrf.mxu0
      %v1764 = vadd.f32 %v1531, %v1763
      %1765 = vmatmul.bf16.gmra.mxu0 %v1669
      %v1766 = vpop.f32.mrf.mxu0
      %v1767 = vadd.f32 %v1534, %v1766
      %v1768 = vpop.f32.mrf.mxu0
      %v1769 = vadd.f32 %v1536, %v1768
      %1770 = vmatmul.bf16.gmra.mxu0 %v1670
      %v1771 = vpop.f32.mrf.mxu0
      %v1772 = vadd.f32 %v1539, %v1771
      %v1773 = vpop.f32.mrf.mxu0
      %v1774 = vadd.f32 %v1541, %v1773
      %1775 = vmatmul.bf16.gmra.mxu0 %v1671
      %v1776 = vpop.f32.mrf.mxu0
      %v1777 = vadd.f32 %v1544, %v1776
      %v1778 = vpop.f32.mrf.mxu0
      %v1779 = vadd.f32 %v1546, %v1778
      %1780 = vmatmul.bf16.gmra.mxu0 %v1672
      %v1781 = vpop.f32.mrf.mxu0
      %v1782 = vadd.f32 %v1549, %v1781
      %v1783 = vpop.f32.mrf.mxu0
      %v1784 = vadd.f32 %v1551, %v1783
      %1785 = vmatmul.bf16.gmra.mxu0 %v1673
      %v1786 = vpop.f32.mrf.mxu0
      %v1787 = vadd.f32 %v1554, %v1786
      %v1788 = vpop.f32.mrf.mxu0
      %v1789 = vadd.f32 %v1556, %v1788
      %1790 = vmatmul.bf16.gmra.mxu0 %v1674
      %v1791 = vpop.f32.mrf.mxu0
      %v1792 = vadd.f32 %v1559, %v1791
      %v1793 = vpop.f32.mrf.mxu0
      %v1794 = vadd.f32 %v1561, %v1793
      %1795 = vmatmul.bf16.gmra.mxu0 %v1675
      %v1796 = vpop.f32.mrf.mxu0
      %v1797 = vadd.f32 %v1564, %v1796
      %v1798 = vpop.f32.mrf.mxu0
      %v1799 = vadd.f32 %v1566, %v1798
      %1800 = vmatmul.bf16.gmra.mxu0 %v1676
      %v1801 = vpop.f32.mrf.mxu0
      %v1802 = vadd.f32 %v1569, %v1801
      %v1803 = vpop.f32.mrf.mxu0
      %v1804 = vadd.f32 %v1571, %v1803
      %1805 = vmatmul.bf16.gmra.mxu0 %v1677
      %v1806 = vpop.f32.mrf.mxu0
      %v1807 = vadd.f32 %v1574, %v1806
      %v1808 = vpop.f32.mrf.mxu0
      %v1809 = vadd.f32 %v1576, %v1808
      %1810 = vmatmul.bf16.gmra.mxu0 %v1678
      %v1811 = vpop.f32.mrf.mxu0
      %v1812 = vadd.f32 %v1579, %v1811
      %v1813 = vpop.f32.mrf.mxu0
      %v1814 = vadd.f32 %v1581, %v1813
      %1815 = vmatmul.bf16.gmra.mxu0 %v1679
      %v1816 = vpop.f32.mrf.mxu0
      %v1817 = vadd.f32 %v1584, %v1816
      %v1818 = vpop.f32.mrf.mxu0
      %v1819 = vadd.f32 %v1586, %v1818
      %1820 = vmatmul.bf16.gmra.mxu0 %v1680
      %v1821 = vpop.f32.mrf.mxu0
      %v1822 = vadd.f32 %v1589, %v1821
      %v1823 = vpop.f32.mrf.mxu0
      %v1824 = vadd.f32 %v1591, %v1823
      %1825 = vmatmul.bf16.gmra.mxu0 %v1681
      %v1826 = vpop.f32.mrf.mxu0
      %v1827 = vadd.f32 %v1594, %v1826
      %v1828 = vpop.f32.mrf.mxu0
      %v1829 = vadd.f32 %v1596, %v1828
      %1830 = vmatmul.bf16.gmra.mxu0 %v1682
      %v1831 = vpop.f32.mrf.mxu0
      %v1832 = vadd.f32 %v1599, %v1831
      %v1833 = vpop.f32.mrf.mxu0
      %v1834 = vadd.f32 %v1601, %v1833
      %1835 = vdwg.mxu0
      %v1836 = vld [vmem:[%s11] sm:$0x1]
      %v1838 = vperm.slane %v1836, 0
      %v1840 = vadd.f32 %v1757, %v1838
      %v1841 = vadd.f32 %v1759, %v1838
      %v1842 = vadd.f32 %v1762, %v1838
      %v1843 = vadd.f32 %v1764, %v1838
      %v1844 = vadd.f32 %v1767, %v1838
      %v1845 = vadd.f32 %v1769, %v1838
      %v1846 = vadd.f32 %v1772, %v1838
      %v1847 = vadd.f32 %v1774, %v1838
      %v1848 = vadd.f32 %v1777, %v1838
      %v1849 = vadd.f32 %v1779, %v1838
      %v1850 = vadd.f32 %v1782, %v1838
      %v1851 = vadd.f32 %v1784, %v1838
      %v1852 = vadd.f32 %v1787, %v1838
      %v1853 = vadd.f32 %v1789, %v1838
      %v1854 = vadd.f32 %v1792, %v1838
      %v1855 = vadd.f32 %v1794, %v1838
      %v1856 = vadd.f32 %v1797, %v1838
      %v1857 = vadd.f32 %v1799, %v1838
      %v1858 = vadd.f32 %v1802, %v1838
      %v1859 = vadd.f32 %v1804, %v1838
      %v1860 = vadd.f32 %v1807, %v1838
      %v1861 = vadd.f32 %v1809, %v1838
      %v1862 = vadd.f32 %v1812, %v1838
      %v1863 = vadd.f32 %v1814, %v1838
      %v1864 = vadd.f32 %v1817, %v1838
      %v1865 = vadd.f32 %v1819, %v1838
      %v1866 = vadd.f32 %v1822, %v1838
      %v1867 = vadd.f32 %v1824, %v1838
      %v1868 = vadd.f32 %v1827, %v1838
      %v1869 = vadd.f32 %v1829, %v1838
      %v1870 = vadd.f32 %v1832, %v1838
      %v1871 = vadd.f32 %v1834, %v1838
      %v1872 = vadd.f32 %v1285, %v1840
      %v1873 = vadd.f32 %v1287, %v1841
      %v1874 = vadd.f32 %v1290, %v1842
      %v1875 = vadd.f32 %v1292, %v1843
      %v1876 = vadd.f32 %v1295, %v1844
      %v1877 = vadd.f32 %v1297, %v1845
      %v1878 = vadd.f32 %v1300, %v1846
      %v1879 = vadd.f32 %v1302, %v1847
      %v1880 = vadd.f32 %v1305, %v1848
      %v1881 = vadd.f32 %v1307, %v1849
      %v1882 = vadd.f32 %v1310, %v1850
      %v1883 = vadd.f32 %v1312, %v1851
      %v1884 = vadd.f32 %v1315, %v1852
      %v1885 = vadd.f32 %v1317, %v1853
      %v1886 = vadd.f32 %v1320, %v1854
      %v1887 = vadd.f32 %v1322, %v1855
      %v1888 = vadd.f32 %v1325, %v1856
      %v1889 = vadd.f32 %v1327, %v1857
      %v1890 = vadd.f32 %v1330, %v1858
      %v1891 = vadd.f32 %v1332, %v1859
      %v1892 = vadd.f32 %v1335, %v1860
      %v1893 = vadd.f32 %v1337, %v1861
      %v1894 = vadd.f32 %v1340, %v1862
      %v1895 = vadd.f32 %v1342, %v1863
      %v1896 = vadd.f32 %v1345, %v1864
      %v1897 = vadd.f32 %v1347, %v1865
      %v1898 = vadd.f32 %v1350, %v1866
      %v1899 = vadd.f32 %v1352, %v1867
      %v1900 = vadd.f32 %v1355, %v1868
      %v1901 = vadd.f32 %v1357, %v1869
      %v1902 = vadd.f32 %v1360, %v1870
      %v1903 = vadd.f32 %v1362, %v1871
      %v1904 = vmul.f32 %v1872, 0.5
      %v1905 = vmul.f32 %v1873, 0.5
      %v1906 = vmul.f32 %v1874, 0.5
      %v1907 = vmul.f32 %v1875, 0.5
      %v1908 = vmul.f32 %v1876, 0.5
      %v1909 = vmul.f32 %v1877, 0.5
      %v1910 = vmul.f32 %v1878, 0.5
      %v1911 = vmul.f32 %v1879, 0.5
      %v1912 = vmul.f32 %v1880, 0.5
      %v1913 = vmul.f32 %v1881, 0.5
      %v1914 = vmul.f32 %v1882, 0.5
      %v1915 = vmul.f32 %v1883, 0.5
      %v1916 = vmul.f32 %v1884, 0.5
      %v1917 = vmul.f32 %v1885, 0.5
      %v1918 = vmul.f32 %v1886, 0.5
      %v1919 = vmul.f32 %v1887, 0.5
      %v1920 = vmul.f32 %v1888, 0.5
      %v1921 = vmul.f32 %v1889, 0.5
      %v1922 = vmul.f32 %v1890, 0.5
      %v1923 = vmul.f32 %v1891, 0.5
      %v1924 = vmul.f32 %v1892, 0.5
      %v1925 = vmul.f32 %v1893, 0.5
      %v1926 = vmul.f32 %v1894, 0.5
      %v1927 = vmul.f32 %v1895, 0.5
      %v1928 = vmul.f32 %v1896, 0.5
      %v1929 = vmul.f32 %v1897, 0.5
      %v1930 = vmul.f32 %v1898, 0.5
      %v1931 = vmul.f32 %v1899, 0.5
      %v1932 = vmul.f32 %v1900, 0.5
      %v1933 = vmul.f32 %v1901, 0.5
      %v1934 = vmul.f32 %v1902, 0.5
      %v1935 = vmul.f32 %v1903, 0.5
      %v1936 = vmul.f32 %v1872, 0.044715
      %v1937 = vmul.f32 %v1873, 0.044715
      %v1938 = vmul.f32 %v1874, 0.044715
      %v1939 = vmul.f32 %v1875, 0.044715
      %v1940 = vmul.f32 %v1876, 0.044715
      %v1941 = vmul.f32 %v1877, 0.044715
      %v1942 = vmul.f32 %v1878, 0.044715
      %v1943 = vmul.f32 %v1879, 0.044715
      %v1944 = vmul.f32 %v1880, 0.044715
      %v1945 = vmul.f32 %v1881, 0.044715
      %v1946 = vmul.f32 %v1882, 0.044715
      %v1947 = vmul.f32 %v1883, 0.044715
      %v1948 = vmul.f32 %v1884, 0.044715
      %v1949 = vmul.f32 %v1885, 0.044715
      %v1950 = vmul.f32 %v1886, 0.044715
      %v1951 = vmul.f32 %v1887, 0.044715
      %v1952 = vmul.f32 %v1888, 0.044715
      %v1953 = vmul.f32 %v1889, 0.044715
      %v1954 = vmul.f32 %v1890, 0.044715
      %v1955 = vmul.f32 %v1891, 0.044715
      %v1956 = vmul.f32 %v1892, 0.044715
      %v1957 = vmul.f32 %v1893, 0.044715
      %v1958 = vmul.f32 %v1894, 0.044715
      %v1959 = vmul.f32 %v1895, 0.044715
      %v1960 = vmul.f32 %v1896, 0.044715
      %v1961 = vmul.f32 %v1897, 0.044715
      %v1962 = vmul.f32 %v1898, 0.044715
      %v1963 = vmul.f32 %v1899, 0.044715
      %v1964 = vmul.f32 %v1900, 0.044715
      %v1965 = vmul.f32 %v1901, 0.044715
      %v1966 = vmul.f32 %v1902, 0.044715
      %v1967 = vmul.f32 %v1903, 0.044715
      %v1968 = vmul.f32 %v1936, %v1872
      %v1969 = vmul.f32 %v1937, %v1873
      %v1970 = vmul.f32 %v1938, %v1874
      %v1971 = vmul.f32 %v1939, %v1875
      %v1972 = vmul.f32 %v1940, %v1876
      %v1973 = vmul.f32 %v1941, %v1877
      %v1974 = vmul.f32 %v1942, %v1878
      %v1975 = vmul.f32 %v1943, %v1879
      %v1976 = vmul.f32 %v1944, %v1880
      %v1977 = vmul.f32 %v1945, %v1881
      %v1978 = vmul.f32 %v1946, %v1882
      %v1979 = vmul.f32 %v1947, %v1883
      %v1980 = vmul.f32 %v1948, %v1884
      %v1981 = vmul.f32 %v1949, %v1885
      %v1982 = vmul.f32 %v1950, %v1886
      %v1983 = vmul.f32 %v1951, %v1887
      %v1984 = vmul.f32 %v1952, %v1888
      %v1985 = vmul.f32 %v1953, %v1889
      %v1986 = vmul.f32 %v1954, %v1890
      %v1987 = vmul.f32 %v1955, %v1891
      %v1988 = vmul.f32 %v1956, %v1892
      %v1989 = vmul.f32 %v1957, %v1893
      %v1990 = vmul.f32 %v1958, %v1894
      %v1991 = vmul.f32 %v1959, %v1895
      %v1992 = vmul.f32 %v1960, %v1896
      %v1993 = vmul.f32 %v1961, %v1897
      %v1994 = vmul.f32 %v1962, %v1898
      %v1995 = vmul.f32 %v1963, %v1899
      %v1996 = vmul.f32 %v1964, %v1900
      %v1997 = vmul.f32 %v1965, %v1901
      %v1998 = vmul.f32 %v1966, %v1902
      %v1999 = vmul.f32 %v1967, %v1903
      %v2000 = vmul.f32 %v1968, %v1872
      %v2001 = vmul.f32 %v1969, %v1873
      %v2002 = vmul.f32 %v1970, %v1874
      %v2003 = vmul.f32 %v1971, %v1875
      %v2004 = vmul.f32 %v1972, %v1876
      %v2005 = vmul.f32 %v1973, %v1877
      %v2006 = vmul.f32 %v1974, %v1878
      %v2007 = vmul.f32 %v1975, %v1879
      %v2008 = vmul.f32 %v1976, %v1880
      %v2009 = vmul.f32 %v1977, %v1881
      %v2010 = vmul.f32 %v1978, %v1882
      %v2011 = vmul.f32 %v1979, %v1883
      %v2012 = vmul.f32 %v1980, %v1884
      %v2013 = vmul.f32 %v1981, %v1885
      %v2014 = vmul.f32 %v1982, %v1886
      %v2015 = vmul.f32 %v1983, %v1887
      %v2016 = vmul.f32 %v1984, %v1888
      %v2017 = vmul.f32 %v1985, %v1889
      %v2018 = vmul.f32 %v1986, %v1890
      %v2019 = vmul.f32 %v1987, %v1891
      %v2020 = vmul.f32 %v1988, %v1892
      %v2021 = vmul.f32 %v1989, %v1893
      %v2022 = vmul.f32 %v1990, %v1894
      %v2023 = vmul.f32 %v1991, %v1895
      %v2024 = vmul.f32 %v1992, %v1896
      %v2025 = vmul.f32 %v1993, %v1897
      %v2026 = vmul.f32 %v1994, %v1898
      %v2027 = vmul.f32 %v1995, %v1899
      %v2028 = vmul.f32 %v1996, %v1900
      %v2029 = vmul.f32 %v1997, %v1901
      %v2030 = vmul.f32 %v1998, %v1902
      %v2031 = vmul.f32 %v1999, %v1903
      %v2032 = vadd.f32 %v1872, %v2000
      %v2033 = vadd.f32 %v1873, %v2001
      %v2034 = vadd.f32 %v1874, %v2002
      %v2035 = vadd.f32 %v1875, %v2003
      %v2036 = vadd.f32 %v1876, %v2004
      %v2037 = vadd.f32 %v1877, %v2005
      %v2038 = vadd.f32 %v1878, %v2006
      %v2039 = vadd.f32 %v1879, %v2007
      %v2040 = vadd.f32 %v1880, %v2008
      %v2041 = vadd.f32 %v1881, %v2009
      %v2042 = vadd.f32 %v1882, %v2010
      %v2043 = vadd.f32 %v1883, %v2011
      %v2044 = vadd.f32 %v1884, %v2012
      %v2045 = vadd.f32 %v1885, %v2013
      %v2046 = vadd.f32 %v1886, %v2014
      %v2047 = vadd.f32 %v1887, %v2015
      %v2048 = vadd.f32 %v1888, %v2016
      %v2049 = vadd.f32 %v1889, %v2017
      %v2050 = vadd.f32 %v1890, %v2018
      %v2051 = vadd.f32 %v1891, %v2019
      %v2052 = vadd.f32 %v1892, %v2020
      %v2053 = vadd.f32 %v1893, %v2021
      %v2054 = vadd.f32 %v1894, %v2022
      %v2055 = vadd.f32 %v1895, %v2023
      %v2056 = vadd.f32 %v1896, %v2024
      %v2057 = vadd.f32 %v1897, %v2025
      %v2058 = vadd.f32 %v1898, %v2026
      %v2059 = vadd.f32 %v1899, %v2027
      %v2060 = vadd.f32 %v1900, %v2028
      %v2061 = vadd.f32 %v1901, %v2029
      %v2062 = vadd.f32 %v1902, %v2030
      %v2063 = vadd.f32 %v1903, %v2031
      %v2064 = vmul.f32 %v2032, 0.7978846
      %v2065 = vmul.f32 %v2033, 0.7978846
      %v2066 = vmul.f32 %v2034, 0.7978846
      %v2067 = vmul.f32 %v2035, 0.7978846
      %v2068 = vmul.f32 %v2036, 0.7978846
      %v2069 = vmul.f32 %v2037, 0.7978846
      %v2070 = vmul.f32 %v2038, 0.7978846
      %v2071 = vmul.f32 %v2039, 0.7978846
      %v2072 = vmul.f32 %v2040, 0.7978846
      %v2073 = vmul.f32 %v2041, 0.7978846
      %v2074 = vmul.f32 %v2042, 0.7978846
      %v2075 = vmul.f32 %v2043, 0.7978846
      %v2076 = vmul.f32 %v2044, 0.7978846
      %v2077 = vmul.f32 %v2045, 0.7978846
      %v2078 = vmul.f32 %v2046, 0.7978846
      %v2079 = vmul.f32 %v2047, 0.7978846
      %v2080 = vmul.f32 %v2048, 0.7978846
      %v2081 = vmul.f32 %v2049, 0.7978846
      %v2082 = vmul.f32 %v2050, 0.7978846
      %v2083 = vmul.f32 %v2051, 0.7978846
      %v2084 = vmul.f32 %v2052, 0.7978846
      %v2085 = vmul.f32 %v2053, 0.7978846
      %v2086 = vmul.f32 %v2054, 0.7978846
      %v2087 = vmul.f32 %v2055, 0.7978846
      %v2088 = vmul.f32 %v2056, 0.7978846
      %v2089 = vmul.f32 %v2057, 0.7978846
      %v2090 = vmul.f32 %v2058, 0.7978846
      %v2091 = vmul.f32 %v2059, 0.7978846
      %v2092 = vmul.f32 %v2060, 0.7978846
      %v2093 = vmul.f32 %v2061, 0.7978846
      %v2094 = vmul.f32 %v2062, 0.7978846
      %v2095 = vmul.f32 %v2063, 0.7978846
      %v2096 = vtanh.pop %v2064
      %v2097 = vtanh.pop %v2065
      %v2098 = vtanh.pop %v2066
      %v2099 = vtanh.pop %v2067
      %v2100 = vtanh.pop %v2068
      %v2101 = vtanh.pop %v2069
      %v2102 = vtanh.pop %v2070
      %v2103 = vtanh.pop %v2071
      %v2104 = vtanh.pop %v2072
      %v2105 = vtanh.pop %v2073
      %v2106 = vtanh.pop %v2074
      %v2107 = vtanh.pop %v2075
      %v2108 = vtanh.pop %v2076
      %v2109 = vtanh.pop %v2077
      %v2110 = vtanh.pop %v2078
      %v2111 = vtanh.pop %v2079
      %v2112 = vtanh.pop %v2080
      %v2113 = vtanh.pop %v2081
      %v2114 = vtanh.pop %v2082
      %v2115 = vtanh.pop %v2083
      %v2116 = vtanh.pop %v2084
      %v2117 = vtanh.pop %v2085
      %v2118 = vtanh.pop %v2086
      %v2119 = vtanh.pop %v2087
      %v2120 = vtanh.pop %v2088
      %v2121 = vtanh.pop %v2089
      %v2122 = vtanh.pop %v2090
      %v2123 = vtanh.pop %v2091
      %v2124 = vtanh.pop %v2092
      %v2125 = vtanh.pop %v2093
      %v2126 = vtanh.pop %v2094
      %v2127 = vtanh.pop %v2095
      %v2128 = vadd.f32 %v2096, 1.0
      %v2129 = vadd.f32 %v2097, 1.0
      %v2130 = vadd.f32 %v2098, 1.0
      %v2131 = vadd.f32 %v2099, 1.0
      %v2132 = vadd.f32 %v2100, 1.0
      %v2133 = vadd.f32 %v2101, 1.0
      %v2134 = vadd.f32 %v2102, 1.0
      %v2135 = vadd.f32 %v2103, 1.0
      %v2136 = vadd.f32 %v2104, 1.0
      %v2137 = vadd.f32 %v2105, 1.0
      %v2138 = vadd.f32 %v2106, 1.0
      %v2139 = vadd.f32 %v2107, 1.0
      %v2140 = vadd.f32 %v2108, 1.0
      %v2141 = vadd.f32 %v2109, 1.0
      %v2142 = vadd.f32 %v2110, 1.0
      %v2143 = vadd.f32 %v2111, 1.0
      %v2144 = vadd.f32 %v2112, 1.0
      %v2145 = vadd.f32 %v2113, 1.0
      %v2146 = vadd.f32 %v2114, 1.0
      %v2147 = vadd.f32 %v2115, 1.0
      %v2148 = vadd.f32 %v2116, 1.0
      %v2149 = vadd.f32 %v2117, 1.0
      %v2150 = vadd.f32 %v2118, 1.0
      %v2151 = vadd.f32 %v2119, 1.0
      %v2152 = vadd.f32 %v2120, 1.0
      %v2153 = vadd.f32 %v2121, 1.0
      %v2154 = vadd.f32 %v2122, 1.0
      %v2155 = vadd.f32 %v2123, 1.0
      %v2156 = vadd.f32 %v2124, 1.0
      %v2157 = vadd.f32 %v2125, 1.0
      %v2158 = vadd.f32 %v2126, 1.0
      %v2159 = vadd.f32 %v2127, 1.0
      %v2160 = vmul.f32 %v1904, %v2128
      %v2161 = vmul.f32 %v1905, %v2129
      %v2162 = vmul.f32 %v1906, %v2130
      %v2163 = vmul.f32 %v1907, %v2131
      %v2164 = vmul.f32 %v1908, %v2132
      %v2165 = vmul.f32 %v1909, %v2133
      %v2166 = vmul.f32 %v1910, %v2134
      %v2167 = vmul.f32 %v1911, %v2135
      %v2168 = vmul.f32 %v1912, %v2136
      %v2169 = vmul.f32 %v1913, %v2137
      %v2170 = vmul.f32 %v1914, %v2138
      %v2171 = vmul.f32 %v1915, %v2139
      %v2172 = vmul.f32 %v1916, %v2140
      %v2173 = vmul.f32 %v1917, %v2141
      %v2174 = vmul.f32 %v1918, %v2142
      %v2175 = vmul.f32 %v1919, %v2143
      %v2176 = vmul.f32 %v1920, %v2144
      %v2177 = vmul.f32 %v1921, %v2145
      %v2178 = vmul.f32 %v1922, %v2146
      %v2179 = vmul.f32 %v1923, %v2147
      %v2180 = vmul.f32 %v1924, %v2148
      %v2181 = vmul.f32 %v1925, %v2149
      %v2182 = vmul.f32 %v1926, %v2150
      %v2183 = vmul.f32 %v1927, %v2151
      %v2184 = vmul.f32 %v1928, %v2152
      %v2185 = vmul.f32 %v1929, %v2153
      %v2186 = vmul.f32 %v1930, %v2154
      %v2187 = vmul.f32 %v1931, %v2155
      %v2188 = vmul.f32 %v1932, %v2156
      %v2189 = vmul.f32 %v1933, %v2157
      %v2190 = vmul.f32 %v1934, %v2158
      %v2191 = vmul.f32 %v1935, %v2159
      %v2192 = vpack.c.bf16 %v2160, %v2160
      %v2193 = vpack.c.bf16 %v2161, %v2161
      %v2194 = vpack.c.bf16 %v2162, %v2162
      %v2195 = vpack.c.bf16 %v2163, %v2163
      %v2196 = vpack.c.bf16 %v2164, %v2164
      %v2197 = vpack.c.bf16 %v2165, %v2165
      %v2198 = vpack.c.bf16 %v2166, %v2166
      %v2199 = vpack.c.bf16 %v2167, %v2167
      %v2200 = vpack.c.bf16 %v2168, %v2168
      %v2201 = vpack.c.bf16 %v2169, %v2169
      %v2202 = vpack.c.bf16 %v2170, %v2170
      %v2203 = vpack.c.bf16 %v2171, %v2171
      %v2204 = vpack.c.bf16 %v2172, %v2172
      %v2205 = vpack.c.bf16 %v2173, %v2173
      %v2206 = vpack.c.bf16 %v2174, %v2174
      %v2207 = vpack.c.bf16 %v2175, %v2175
      %v2208 = vpack.c.bf16 %v2176, %v2176
      %v2209 = vpack.c.bf16 %v2177, %v2177
      %v2210 = vpack.c.bf16 %v2178, %v2178
      %v2211 = vpack.c.bf16 %v2179, %v2179
      %v2212 = vpack.c.bf16 %v2180, %v2180
      %v2213 = vpack.c.bf16 %v2181, %v2181
      %v2214 = vpack.c.bf16 %v2182, %v2182
      %v2215 = vpack.c.bf16 %v2183, %v2183
      %v2216 = vpack.c.bf16 %v2184, %v2184
      %v2217 = vpack.c.bf16 %v2185, %v2185
      %v2218 = vpack.c.bf16 %v2186, %v2186
      %v2219 = vpack.c.bf16 %v2187, %v2187
      %v2220 = vpack.c.bf16 %v2188, %v2188
      %v2221 = vpack.c.bf16 %v2189, %v2189
      %v2222 = vpack.c.bf16 %v2190, %v2190
      %v2223 = vpack.c.bf16 %v2191, %v2191
      %2224 = vst [vmem:[%s616] sm:$0xf] %v2192
      %2225 = vst [vmem:[%s616 + $0x4] sm:$0xf] %v2193
      %2226 = vst [vmem:[%s616 + $0x8] sm:$0xf] %v2194
      %2227 = vst [vmem:[%s616 + $0xc] sm:$0xf] %v2195
      %2228 = vst [vmem:[%s616 + $0x10] sm:$0xf] %v2196
      %2229 = vst [vmem:[%s616 + $0x14] sm:$0xf] %v2197
      %2230 = vst [vmem:[%s616 + $0x18] sm:$0xf] %v2198
      %2231 = vst [vmem:[%s616 + $0x1c] sm:$0xf] %v2199
      %2232 = vst [vmem:[%s616 + $0x20] sm:$0xf] %v2200
      %2233 = vst [vmem:[%s616 + $0x24] sm:$0xf] %v2201
      %2234 = vst [vmem:[%s616 + $0x28] sm:$0xf] %v2202
      %2235 = vst [vmem:[%s616 + $0x2c] sm:$0xf] %v2203
      %2236 = vst [vmem:[%s616 + $0x30] sm:$0xf] %v2204
      %2237 = vst [vmem:[%s616 + $0x34] sm:$0xf] %v2205
      %2238 = vst [vmem:[%s616 + $0x38] sm:$0xf] %v2206
      %2239 = vst [vmem:[%s616 + $0x3c] sm:$0xf] %v2207
      %2240 = vst [vmem:[%s616 + $0x40] sm:$0xf] %v2208
      %2241 = vst [vmem:[%s616 + $0x44] sm:$0xf] %v2209
      %2242 = vst [vmem:[%s616 + $0x48] sm:$0xf] %v2210
      %2243 = vst [vmem:[%s616 + $0x4c] sm:$0xf] %v2211
      %2244 = vst [vmem:[%s616 + $0x50] sm:$0xf] %v2212
      %2245 = vst [vmem:[%s616 + $0x54] sm:$0xf] %v2213
      %2246 = vst [vmem:[%s616 + $0x58] sm:$0xf] %v2214
      %2247 = vst [vmem:[%s616 + $0x5c] sm:$0xf] %v2215
      %2248 = vst [vmem:[%s616 + $0x60] sm:$0xf] %v2216
      %2249 = vst [vmem:[%s616 + $0x64] sm:$0xf] %v2217
      %2250 = vst [vmem:[%s616 + $0x68] sm:$0xf] %v2218
      %2251 = vst [vmem:[%s616 + $0x6c] sm:$0xf] %v2219
      %2252 = vst [vmem:[%s616 + $0x70] sm:$0xf] %v2220
      %2253 = vst [vmem:[%s616 + $0x74] sm:$0xf] %v2221
      %2254 = vst [vmem:[%s616 + $0x78] sm:$0xf] %v2222
      %2255 = vst [vmem:[%s616 + $0x7c] sm:$0xf] %v2223
      %p2256 = scmp.eq.s32.totalorder %s31, 0
      // Predicated region
      $region69: #{_lambda_.12} parent=67 // pred_check
        %p2257 = pneg %p2256
      $region70: #{_lambda_.12} parent=67 // pred_check_branch
        %2259 = sbr.rel (%p2257) target = $region72
      $region71: #{_lambda_.12} parent=67 // pred_region
        %2260 = vst [vmem:[%s620] sm:$0x1] 0.0
        %2261 = vst [vmem:[%s623] sm:$0x1] 0.0
      $region72: #{_lambda_.12} parent=67 // pred_fallthru
        _
      %v2262 = vld [vmem:[%s620] sm:$0x1]
      %v2263 = vadd.f32 %v2160, %v2161
      %v2264 = vadd.f32 %v2263, %v2162
      %v2265 = vadd.f32 %v2264, %v2163
      %v2266 = vadd.f32 %v2265, %v2164
      %v2267 = vadd.f32 %v2266, %v2165
      %v2268 = vadd.f32 %v2267, %v2166
      %v2269 = vadd.f32 %v2268, %v2167
      %v2270 = vadd.f32 %v2269, %v2168
      %v2271 = vadd.f32 %v2270, %v2169
      %v2272 = vadd.f32 %v2271, %v2170
      %v2273 = vadd.f32 %v2272, %v2171
      %v2274 = vadd.f32 %v2273, %v2172
      %v2275 = vadd.f32 %v2274, %v2173
      %v2276 = vadd.f32 %v2275, %v2174
      %v2277 = vadd.f32 %v2276, %v2175
      %v2278 = vadd.f32 %v2277, %v2176
      %v2279 = vadd.f32 %v2278, %v2177
      %v2280 = vadd.f32 %v2279, %v2178
      %v2281 = vadd.f32 %v2280, %v2179
      %v2282 = vadd.f32 %v2281, %v2180
      %v2283 = vadd.f32 %v2282, %v2181
      %v2284 = vadd.f32 %v2283, %v2182
      %v2285 = vadd.f32 %v2284, %v2183
      %v2286 = vadd.f32 %v2285, %v2184
      %v2287 = vadd.f32 %v2286, %v2185
      %v2288 = vadd.f32 %v2287, %v2186
      %v2289 = vadd.f32 %v2288, %v2187
      %v2290 = vadd.f32 %v2289, %v2188
      %v2291 = vadd.f32 %v2290, %v2189
      %v2292 = vadd.f32 %v2291, %v2190
      %v2293 = vadd.f32 %v2292, %v2191
      %v2294 = vrot.slane %v2293, 4
      %v2295 = vadd.f32 %v2293, %v2294
      %v2296 = vrot.slane %v2295, 2
      %v2297 = vadd.f32 %v2295, %v2296
      %v2298 = vrot.slane %v2297, 1
      %v2299 = vadd.f32 %v2297, %v2298
      %v2300 = vadd.f32 %v2262, %v2299
      %2301 = vst [vmem:[%s620] sm:$0x1] %v2300
      %v2302 = vld [vmem:[%s623] sm:$0x1]
      %v2303 = vmul.f32 %v2160, %v2160
      %v2304 = vmul.f32 %v2161, %v2161
      %v2305 = vmul.f32 %v2162, %v2162
      %v2306 = vmul.f32 %v2163, %v2163
      %v2307 = vmul.f32 %v2164, %v2164
      %v2308 = vmul.f32 %v2165, %v2165
      %v2309 = vmul.f32 %v2166, %v2166
      %v2310 = vmul.f32 %v2167, %v2167
      %v2311 = vmul.f32 %v2168, %v2168
      %v2312 = vmul.f32 %v2169, %v2169
      %v2313 = vmul.f32 %v2170, %v2170
      %v2314 = vmul.f32 %v2171, %v2171
      %v2315 = vmul.f32 %v2172, %v2172
      %v2316 = vmul.f32 %v2173, %v2173
      %v2317 = vmul.f32 %v2174, %v2174
      %v2318 = vmul.f32 %v2175, %v2175
      %v2319 = vmul.f32 %v2176, %v2176
      %v2320 = vmul.f32 %v2177, %v2177
      %v2321 = vmul.f32 %v2178, %v2178
      %v2322 = vmul.f32 %v2179, %v2179
      %v2323 = vmul.f32 %v2180, %v2180
      %v2324 = vmul.f32 %v2181, %v2181
      %v2325 = vmul.f32 %v2182, %v2182
      %v2326 = vmul.f32 %v2183, %v2183
      %v2327 = vmul.f32 %v2184, %v2184
      %v2328 = vmul.f32 %v2185, %v2185
      %v2329 = vmul.f32 %v2186, %v2186
      %v2330 = vmul.f32 %v2187, %v2187
      %v2331 = vmul.f32 %v2188, %v2188
      %v2332 = vmul.f32 %v2189, %v2189
      %v2333 = vmul.f32 %v2190, %v2190
      %v2334 = vmul.f32 %v2191, %v2191
      %v2335 = vadd.f32 %v2303, %v2304
      %v2336 = vadd.f32 %v2335, %v2305
      %v2337 = vadd.f32 %v2336, %v2306
      %v2338 = vadd.f32 %v2337, %v2307
      %v2339 = vadd.f32 %v2338, %v2308
      %v2340 = vadd.f32 %v2339, %v2309
      %v2341 = vadd.f32 %v2340, %v2310
      %v2342 = vadd.f32 %v2341, %v2311
      %v2343 = vadd.f32 %v2342, %v2312
      %v2344 = vadd.f32 %v2343, %v2313
      %v2345 = vadd.f32 %v2344, %v2314
      %v2346 = vadd.f32 %v2345, %v2315
      %v2347 = vadd.f32 %v2346, %v2316
      %v2348 = vadd.f32 %v2347, %v2317
      %v2349 = vadd.f32 %v2348, %v2318
      %v2350 = vadd.f32 %v2349, %v2319
      %v2351 = vadd.f32 %v2350, %v2320
      %v2352 = vadd.f32 %v2351, %v2321
      %v2353 = vadd.f32 %v2352, %v2322
      %v2354 = vadd.f32 %v2353, %v2323
      %v2355 = vadd.f32 %v2354, %v2324
      %v2356 = vadd.f32 %v2355, %v2325
      %v2357 = vadd.f32 %v2356, %v2326
      %v2358 = vadd.f32 %v2357, %v2327
      %v2359 = vadd.f32 %v2358, %v2328
      %v2360 = vadd.f32 %v2359, %v2329
      %v2361 = vadd.f32 %v2360, %v2330
      %v2362 = vadd.f32 %v2361, %v2331
      %v2363 = vadd.f32 %v2362, %v2332
      %v2364 = vadd.f32 %v2363, %v2333
      %v2365 = vadd.f32 %v2364, %v2334
      %v2366 = vrot.slane %v2365, 4
      %v2367 = vadd.f32 %v2365, %v2366
      %v2368 = vrot.slane %v2367, 2
      %v2369 = vadd.f32 %v2367, %v2368
      %v2370 = vrot.slane %v2369, 1
      %v2371 = vadd.f32 %v2369, %v2370
      %v2372 = vadd.f32 %v2302, %v2371
      %2373 = vst [vmem:[%s623] sm:$0x1] %v2372
      // Predicated region
      $region73: #{_lambda_.12} parent=67 // pred_check
        %p2374 = pneg %p2256
      $region74: #{_lambda_.12} parent=67 // pred_check_branch
        %2376 = sbr.rel (%p2374) target = $region76
      $region75: #{_lambda_.12} parent=67 // pred_region
        %v2377 = vld [vmem:[%s620] sm:$0x1]
        %v2378 = vmul.f32 %v2377, 0.00390625
        %v2379 = vld [vmem:[%s623] sm:$0x1]
        %v2380 = vmul.f32 %v2379, 0.00390625
        %v2381 = vmul.f32 %v2378, %v2378
        %v2382 = vsub.f32 %v2380, %v2381
        %2383 = vst [vmem:[%s620] sm:$0x1] %v2378
        %v2384 = vmax.f32 %v2382, 0.0
        %v2385 = vadd.f32 %v2384, 1e-05
        %v2386 = vrsqrt.pop %v2385
        %v2387 = vmul.f32 %v2386, %v2385
        %v2388 = vmul.f32 %v2387, %v2386
        %v2389 = vmul.f32 0.5, %v2388
        %v2390 = vsub.f32 1.5, %v2389
        %v2391 = vmul.f32 %v2386, %v2390
        %vm2392 = vweird.f32 %v2385
        %vm2393 = vweird.f32 %v2386
        %vm2394 = vmor %vm2392, %vm2393
        %v2395 = vsel %vm2394, %v2386, %v2391
        %2396 = vst [vmem:[%s623] sm:$0x1] %v2395
      $region76: #{_lambda_.12} parent=67 // pred_fallthru
        _
      %s2397 = smul.u32 32, %s31
      %p2398 = scmp.lt.s32.totalorder %s30, 1
      %s2399 = scalar_select %p2398, %s30, 1
      %p2400 = scmp.lt.s32.totalorder %s2397, 31
      %s2401 = scalar_select %p2400, %s2397, 31
      %s2402 = smul.addr %s2399, 32
      %s2403 = sadd.s32 %s2401, %s2402
      %s2404 = smul.addr %s2403, 4
      %s2405 = scalar_lea.vmem %s12, %s2404
      %p2406 = scmp.lt.s32.totalorder %s30, 1
      %s2407 = scalar_select %p2406, %s30, 1
      %s2408 = scalar_lea.vmem %s13, %s2407
      %p2409 = scmp.lt.s32.totalorder %s30, 1
      %s2410 = scalar_select %p2409, %s30, 1
      %s2411 = scalar_lea.vmem %s14, %s2410
      // Predicated region
      $region77: #{_lambda_.12} parent=67 // pred_check
        %p2412 = pneg %p341
      $region78: #{_lambda_.12} parent=67 // pred_check_branch
        %2414 = sbr.rel (%p2412) target = $region80
      $region79: #{_lambda_.12} parent=67 // pred_region
        %s2415 = smul.u32 32, %s31
      $region80: #{_lambda_.12} parent=67 // pred_fallthru
        _
      // Predicated region
      $region81: #{_lambda_.12} parent=67 // pred_check
        %p2416 = pneg %p367
      $region82: #{_lambda_.12} parent=67 // pred_check_branch
        %2418 = sbr.rel (%p2416) target = $region84
      $region83: #{_lambda_.12} parent=67 // pred_region
        _
      $region84: #{_lambda_.12} parent=67 // pred_fallthru
        _
      // Predicated region
      $region85: #{_lambda_.12} parent=67 // pred_check
        %p2419 = pneg %p393
      $region86: #{_lambda_.12} parent=67 // pred_check_branch
        %2421 = sbr.rel (%p2419) target = $region88
      $region87: #{_lambda_.12} parent=67 // pred_region
        _
      $region88: #{_lambda_.12} parent=67 // pred_fallthru
        _
    $region68: #{_lambda_.12} parent=5 // pred_fallthru
      _
    %p2422 = scmp.le.s32.totalorder 2, %s21
    // Predicated region
    $region89: #{_lambda_.12} parent=5 // pred_check
      %p2423 = pneg %p2422
    $region90: #{_lambda_.12} parent=5 // pred_check_branch
      %2425 = sbr.rel (%p2423) target = $region92
    $region91: #{_lambda_.12} parent=5 // pred_region
      %s2426 = ssub.s32 %s21, 2
      // Predicated region
      $region93: #{_lambda_.12} parent=91 // pred_check
        %p2427 = pneg %p347
      $region94: #{_lambda_.12} parent=91 // pred_check_branch
        %2429 = sbr.rel (%p2427) target = $region96
      $region95: #{_lambda_.12} parent=91 // pred_region
        %s2430 = smul.u32 32, %s33
        %p2431 = scmp.lt.s32.totalorder %s32, 1
        %s2432 = scalar_select %p2431, %s32, 1
        %p2433 = scmp.lt.s32.totalorder %s2430, 31
        %s2434 = scalar_select %p2433, %s2430, 31
        %s2435 = smul.addr %s2432, 32
        %s2436 = sadd.s32 %s2434, %s2435
        %s2437 = smul.addr %s2436, 4
        %s2438 = scalar_lea.vmem %s12, %s2437
      $region96: #{_lambda_.12} parent=91 // pred_fallthru
        _
      // Predicated region
      $region97: #{_lambda_.12} parent=91 // pred_check
        %p2439 = pneg %p373
      $region98: #{_lambda_.12} parent=91 // pred_check_branch
        %2441 = sbr.rel (%p2439) target = $region100
      $region99: #{_lambda_.12} parent=91 // pred_region
        %p2442 = scmp.lt.s32.totalorder %s32, 1
        %s2443 = scalar_select %p2442, %s32, 1
        %s2444 = scalar_lea.vmem %s13, %s2443
      $region100: #{_lambda_.12} parent=91 // pred_fallthru
        _
      // Predicated region
      $region101: #{_lambda_.12} parent=91 // pred_check
        %p2445 = pneg %p399
      $region102: #{_lambda_.12} parent=91 // pred_check_branch
        %2447 = sbr.rel (%p2445) target = $region104
      $region103: #{_lambda_.12} parent=91 // pred_region
        %p2448 = scmp.lt.s32.totalorder %s32, 1
        %s2449 = scalar_select %p2448, %s32, 1
        %s2450 = scalar_lea.vmem %s14, %s2449
      $region104: #{_lambda_.12} parent=91 // pred_fallthru
        _
    $region92: #{_lambda_.12} parent=5 // pred_fallthru
      _
  $region6: #{_lambda_.12} parent=0 // loop_footer
    %s25 = sadd.s32 1, %s21
  $region7: #{_lambda_.12} parent=0 // loop_footer_branch
    %20 = sbr.rel target = $region3
  $region8: #{_lambda_.12} parent=0 // loop_exit
    _

// kernel: _lambda_.18
$region0: #{_lambda_.18}
  #allocation0 [shape = 'u32[]', space=smem, size = 0x4, offset = 0x4, fixed_abs, tag = 'smem constant byte address 0x4 - core index']
  #allocation1 [shape = 'u32[72,128]{1,0:T(1,128)}', space=vmem, size = 0x9000, scoped, tag = 'internal scratch']
  %s0 = inlined_call_operand.vmem [shape: f32[2,256,32], index: 0, kind: input, shape index: {}]
  %s1 = inlined_call_operand.vmem [shape: f32[2,1,32], index: 1, kind: input, shape index: {}]
  %s2 = inlined_call_operand.vmem [shape: f32[2,1,32], index: 2, kind: input, shape index: {}]
  %s3 = inlined_call_operand.vmem [shape: bf16[2,256,128], index: 3, kind: input, shape index: {}]
  %s4 = inlined_call_operand.vmem [shape: f32[2,256,4], index: 4, kind: input, shape index: {}]
  %s5 = inlined_call_operand.vmem [shape: bf16[32,128], index: 5, kind: input, shape index: {}]
  %s6 = inlined_call_operand.vmem [shape: f32[1,128], index: 6, kind: input, shape index: {}]
  %s7 = inlined_call_operand.vmem [shape: bf16[128,128], index: 7, kind: input, shape index: {}]
  %s8 = inlined_call_operand.vmem [shape: f32[1,128], index: 8, kind: input, shape index: {}]
  %s9 = inlined_call_operand.vmem [shape: bf16[128,128], index: 9, kind: input, shape index: {}]
  %s10 = inlined_call_operand.vmem [shape: bf16[4,128], index: 10, kind: input, shape index: {}]
  %s11 = inlined_call_operand.vmem [shape: f32[1,128], index: 11, kind: input, shape index: {}]
  %s12 = inlined_call_operand.vmem [shape: bf16[2,256,128], index: 12, kind: output, shape index: {0}]
  %s13 = inlined_call_operand.hbm [shape: f32[2,1,128], index: 13, kind: output, shape index: {1}]
  %s14 = inlined_call_operand.hbm [shape: f32[2,1,128], index: 14, kind: output, shape index: {2}]
  %15 = xla_tuple %s12, %s13, %s14
  %s16 = sld [smem:[#allocation0]]
  $region105: #{_lambda_.18} parent=0
    _
  %s18 = ssub.s32 1, %s16
  %s19 = scalar_select 0, %s18, %s16
  $region1: #{_lambda_.18} parent=0
    #allocation2 [shape = 'u8[1024]{0}', space=vmem, size = 0x400, scoped, tag = 'output window, operand 1']
    #allocation3 [shape = 's32[2]{0}', space=sflag, size = 0x8, scoped, tag = 'scoped memory for _lambda_.18']
    #allocation4 [shape = 'u8[1024]{0}', space=vmem, size = 0x400, scoped, tag = 'output window, operand 2']
    #allocation5 [shape = 's32[2]{0}', space=sflag, size = 0x8, scoped, tag = 'scoped memory for _lambda_.18']
    %20 = vsyncpa [#allocation3], 0
    %s21 = scalar_lea.sflag [#allocation3], 1
    %22 = vsyncpa %s21, 0
    %23 = vsyncpa [#allocation5], 0
    %s24 = scalar_lea.sflag [#allocation5], 1
    %25 = vsyncpa %s24, 0
    loop: start=0, step=1, limit=4
    $region2: #{_lambda_.18} parent=1 // loop_pre_header
      _
    $region3: #{_lambda_.18} parent=1 // loop_header
      %s27 = sphi 0, %s31
      %p28 = scmp.ge.s32.totalorder %s27, 4
      %s34 = sphi 0, %s46
      %s35 = sphi 0, %s42
      %s36 = sphi 0, %s34
      %s37 = sphi 0, %s35
      %s38 = sphi 0, %s36
      %s39 = sphi 0, %s37
      %s51 = sphi 0, %s53
      %s54 = sphi 0, %s51
      %s55 = sphi 0, %s54
      %s71 = sphi 0, %s55
      %s77 = sphi 0, %s79
      %s80 = sphi 0, %s77
      %s81 = sphi 0, %s80
      %s97 = sphi 0, %s81
      %s103 = sphi 0, %s105
      %s106 = sphi 0, %s103
      %s107 = sphi 0, %s106
      %s123 = sphi 0, %s107
      %s131 = sphi 0, %s133
      %s134 = sphi 0, %s131
      %s135 = sphi 0, %s134
      %s151 = sphi 0, %s135
      %s159 = sphi 0, %s161
      %s162 = sphi 0, %s159
      %s163 = sphi 0, %s162
      %s179 = sphi 0, %s163
      %s183 = sphi 0, %s183
      %s185 = sphi 0, %s183
      %s186 = sphi 0, %s185
      %s200 = sphi 0, %s186
      %s204 = sphi 0, %s204
      %s206 = sphi 0, %s204
      %s207 = sphi 0, %s206
      %s221 = sphi 0, %s207
      %s225 = sphi 0, %s225
      %s227 = sphi 0, %s225
      %s228 = sphi 0, %s227
      %s242 = sphi 0, %s228
      %s246 = sphi 0, %s246
      %s248 = sphi 0, %s246
      %s249 = sphi 0, %s248
      %s263 = sphi 0, %s249
      %s267 = sphi 0, %s267
      %s269 = sphi 0, %s267
      %s270 = sphi 0, %s269
      %s284 = sphi 0, %s270
      %s288 = sphi 0, %s288
      %s290 = sphi 0, %s288
      %s291 = sphi 0, %s290
      %s305 = sphi 0, %s291
      %s309 = sphi 0, %s309
      %s311 = sphi 0, %s309
      %s312 = sphi 0, %s311
      %s326 = sphi 0, %s312
      %s334 = sphi 0, %s336
      %s337 = sphi 0, %s334
      %s338 = sphi 0, %s337
      %s354 = sphi 0, %s338
      %s360 = sphi 0, %s362
      %s363 = sphi 0, %s360
      %s364 = sphi 0, %s363
      %s380 = sphi 0, %s364
      %s386 = sphi 0, %s388
      %s389 = sphi 0, %s386
      %s390 = sphi 0, %s389
      %s406 = sphi 0, %s390
    $region4: #{_lambda_.18} parent=1 // loop_header_branch
      %30 = sbr.rel (%p28) target = $region8
    $region5: #{_lambda_.18} parent=1 // loop_body
      %s32 = ssub.s32 %s27, 1
      %s33 = ssub.s32 %s27, 2
      %s40 = sadd.s32 1, %s35
      %p41 = scmp.ge.s32.totalorder %s40, 1
      %s42 = scalar_select %p41, 0, %s40
      %s43 = sadd.s32 1, %s34
      %s44 = scalar_select %p41, %s43, %s34
      %p45 = scmp.ge.s32.totalorder %s44, 2
      %s46 = scalar_select %p45, 0, %s44
      %s47 = ssub.s32 %s34, %s46
      %s48 = ssub.s32 %s35, %s42
      %s49 = sor.u32 %s47, %s48
      %p50 = scmp.eq.s32.totalorder %s49, 0
      %s52 = sadd.s32 %s51, 1
      %s53 = scalar_select %p50, %s51, %s52
      %p56 = pneg %p50
      %p57 = scmp.eq.s32.totalorder %s27, 1
      %p58 = por %p56, %p57
      %p59 = scmp.ne.s32.totalorder %s51, %s54
      %p60 = scmp.eq.s32.totalorder %s27, 0
      %p61 = por %p59, %p60
      %p62 = scmp.ne.s32.totalorder %s51, %s54
      %p63 = scmp.eq.s32.totalorder %s32, 1
      %p64 = por %p62, %p63
      %p65 = scmp.ne.s32.totalorder %s54, %s55
      %p66 = scmp.eq.s32.totalorder %s32, 0
      %p67 = por %p65, %p66
      %p68 = scmp.ne.s32.totalorder %s54, %s55
      %p69 = scmp.eq.s32.totalorder %s33, 1
      %p70 = por %p68, %p69
      %p72 = scmp.ne.s32.totalorder %s55, %s71
      %p73 = scmp.eq.s32.totalorder %s33, 0
      %p74 = por %p72, %p73
      %s75 = ssub.s32 %s34, %s46
      %p76 = scmp.eq.s32.totalorder %s75, 0
      %s78 = sadd.s32 %s77, 1
      %s79 = scalar_select %p76, %s77, %s78
      %p82 = pneg %p76
      %p83 = scmp.eq.s32.totalorder %s27, 1
      %p84 = por %p82, %p83
      %p85 = scmp.ne.s32.totalorder %s77, %s80
      %p86 = scmp.eq.s32.totalorder %s27, 0
      %p87 = por %p85, %p86
      %p88 = scmp.ne.s32.totalorder %s77, %s80
      %p89 = scmp.eq.s32.totalorder %s32, 1
      %p90 = por %p88, %p89
      %p91 = scmp.ne.s32.totalorder %s80, %s81
      %p92 = scmp.eq.s32.totalorder %s32, 0
      %p93 = por %p91, %p92
      %p94 = scmp.ne.s32.totalorder %s80, %s81
      %p95 = scmp.eq.s32.totalorder %s33, 1
      %p96 = por %p94, %p95
      %p98 = scmp.ne.s32.totalorder %s81, %s97
      %p99 = scmp.eq.s32.totalorder %s33, 0
      %p100 = por %p98, %p99
      %s101 = ssub.s32 %s34, %s46
      %p102 = scmp.eq.s32.totalorder %s101, 0
      %s104 = sadd.s32 %s103, 1
      %s105 = scalar_select %p102, %s103, %s104
      %p108 = pneg %p102
      %p109 = scmp.eq.s32.totalorder %s27, 1
      %p110 = por %p108, %p109
      %p111 = scmp.ne.s32.totalorder %s103, %s106
      %p112 = scmp.eq.s32.totalorder %s27, 0
      %p113 = por %p111, %p112
      %p114 = scmp.ne.s32.totalorder %s103, %s106
      %p115 = scmp.eq.s32.totalorder %s32, 1
      %p116 = por %p114, %p115
      %p117 = scmp.ne.s32.totalorder %s106, %s107
      %p118 = scmp.eq.s32.totalorder %s32, 0
      %p119 = por %p117, %p118
      %p120 = scmp.ne.s32.totalorder %s106, %s107
      %p121 = scmp.eq.s32.totalorder %s33, 1
      %p122 = por %p120, %p121
      %p124 = scmp.ne.s32.totalorder %s107, %s123
      %p125 = scmp.eq.s32.totalorder %s33, 0
      %p126 = por %p124, %p125
      %s127 = ssub.s32 %s34, %s46
      %s128 = ssub.s32 %s35, %s42
      %s129 = sor.u32 %s127, %s128
      %p130 = scmp.eq.s32.totalorder %s129, 0
      %s132 = sadd.s32 %s131, 1
      %s133 = scalar_select %p130, %s131, %s132
      %p136 = pneg %p130
      %p137 = scmp.eq.s32.totalorder %s27, 1
      %p138 = por %p136, %p137
      %p139 = scmp.ne.s32.totalorder %s131, %s134
      %p140 = scmp.eq.s32.totalorder %s27, 0
      %p141 = por %p139, %p140
      %p142 = scmp.ne.s32.totalorder %s131, %s134
      %p143 = scmp.eq.s32.totalorder %s32, 1
      %p144 = por %p142, %p143
      %p145 = scmp.ne.s32.totalorder %s134, %s135
      %p146 = scmp.eq.s32.totalorder %s32, 0
      %p147 = por %p145, %p146
      %p148 = scmp.ne.s32.totalorder %s134, %s135
      %p149 = scmp.eq.s32.totalorder %s33, 1
      %p150 = por %p148, %p149
      %p152 = scmp.ne.s32.totalorder %s135, %s151
      %p153 = scmp.eq.s32.totalorder %s33, 0
      %p154 = por %p152, %p153
      %s155 = ssub.s32 %s34, %s46
      %s156 = ssub.s32 %s35, %s42
      %s157 = sor.u32 %s155, %s156
      %p158 = scmp.eq.s32.totalorder %s157, 0
      %s160 = sadd.s32 %s159, 1
      %s161 = scalar_select %p158, %s159, %s160
      %p164 = pneg %p158
      %p165 = scmp.eq.s32.totalorder %s27, 1
      %p166 = por %p164, %p165
      %p167 = scmp.ne.s32.totalorder %s159, %s162
      %p168 = scmp.eq.s32.totalorder %s27, 0
      %p169 = por %p167, %p168
      %p170 = scmp.ne.s32.totalorder %s159, %s162
      %p171 = scmp.eq.s32.totalorder %s32, 1
      %p172 = por %p170, %p171
      %p173 = scmp.ne.s32.totalorder %s162, %s163
      %p174 = scmp.eq.s32.totalorder %s32, 0
      %p175 = por %p173, %p174
      %p176 = scmp.ne.s32.totalorder %s162, %s163
      %p177 = scmp.eq.s32.totalorder %s33, 1
      %p178 = por %p176, %p177
      %p180 = scmp.ne.s32.totalorder %s163, %s179
      %p181 = scmp.eq.s32.totalorder %s33, 0
      %p182 = por %p180, %p181
      %s184 = sadd.s32 %s183, 1
      %p187 = scmp.eq.s32.totalorder %s27, 1
      %p188 = scmp.ne.s32.totalorder %s183, %s185
      %p189 = scmp.eq.s32.totalorder %s27, 0
      %p190 = por %p188, %p189
      %p191 = scmp.ne.s32.totalorder %s183, %s185
      %p192 = scmp.eq.s32.totalorder %s32, 1
      %p193 = por %p191, %p192
      %p194 = scmp.ne.s32.totalorder %s185, %s186
      %p195 = scmp.eq.s32.totalorder %s32, 0
      %p196 = por %p194, %p195
      %p197 = scmp.ne.s32.totalorder %s185, %s186
      %p198 = scmp.eq.s32.totalorder %s33, 1
      %p199 = por %p197, %p198
      %p201 = scmp.ne.s32.totalorder %s186, %s200
      %p202 = scmp.eq.s32.totalorder %s33, 0
      %p203 = por %p201, %p202
      %s205 = sadd.s32 %s204, 1
      %p208 = scmp.eq.s32.totalorder %s27, 1
      %p209 = scmp.ne.s32.totalorder %s204, %s206
      %p210 = scmp.eq.s32.totalorder %s27, 0
      %p211 = por %p209, %p210
      %p212 = scmp.ne.s32.totalorder %s204, %s206
      %p213 = scmp.eq.s32.totalorder %s32, 1
      %p214 = por %p212, %p213
      %p215 = scmp.ne.s32.totalorder %s206, %s207
      %p216 = scmp.eq.s32.totalorder %s32, 0
      %p217 = por %p215, %p216
      %p218 = scmp.ne.s32.totalorder %s206, %s207
      %p219 = scmp.eq.s32.totalorder %s33, 1
      %p220 = por %p218, %p219
      %p222 = scmp.ne.s32.totalorder %s207, %s221
      %p223 = scmp.eq.s32.totalorder %s33, 0
      %p224 = por %p222, %p223
      %s226 = sadd.s32 %s225, 1
      %p229 = scmp.eq.s32.totalorder %s27, 1
      %p230 = scmp.ne.s32.totalorder %s225, %s227
      %p231 = scmp.eq.s32.totalorder %s27, 0
      %p232 = por %p230, %p231
      %p233 = scmp.ne.s32.totalorder %s225, %s227
      %p234 = scmp.eq.s32.totalorder %s32, 1
      %p235 = por %p233, %p234
      %p236 = scmp.ne.s32.totalorder %s227, %s228
      %p237 = scmp.eq.s32.totalorder %s32, 0
      %p238 = por %p236, %p237
      %p239 = scmp.ne.s32.totalorder %s227, %s228
      %p240 = scmp.eq.s32.totalorder %s33, 1
      %p241 = por %p239, %p240
      %p243 = scmp.ne.s32.totalorder %s228, %s242
      %p244 = scmp.eq.s32.totalorder %s33, 0
      %p245 = por %p243, %p244
      %s247 = sadd.s32 %s246, 1
      %p250 = scmp.eq.s32.totalorder %s27, 1
      %p251 = scmp.ne.s32.totalorder %s246, %s248
      %p252 = scmp.eq.s32.totalorder %s27, 0
      %p253 = por %p251, %p252
      %p254 = scmp.ne.s32.totalorder %s246, %s248
      %p255 = scmp.eq.s32.totalorder %s32, 1
      %p256 = por %p254, %p255
      %p257 = scmp.ne.s32.totalorder %s248, %s249
      %p258 = scmp.eq.s32.totalorder %s32, 0
      %p259 = por %p257, %p258
      %p260 = scmp.ne.s32.totalorder %s248, %s249
      %p261 = scmp.eq.s32.totalorder %s33, 1
      %p262 = por %p260, %p261
      %p264 = scmp.ne.s32.totalorder %s249, %s263
      %p265 = scmp.eq.s32.totalorder %s33, 0
      %p266 = por %p264, %p265
      %s268 = sadd.s32 %s267, 1
      %p271 = scmp.eq.s32.totalorder %s27, 1
      %p272 = scmp.ne.s32.totalorder %s267, %s269
      %p273 = scmp.eq.s32.totalorder %s27, 0
      %p274 = por %p272, %p273
      %p275 = scmp.ne.s32.totalorder %s267, %s269
      %p276 = scmp.eq.s32.totalorder %s32, 1
      %p277 = por %p275, %p276
      %p278 = scmp.ne.s32.totalorder %s269, %s270
      %p279 = scmp.eq.s32.totalorder %s32, 0
      %p280 = por %p278, %p279
      %p281 = scmp.ne.s32.totalorder %s269, %s270
      %p282 = scmp.eq.s32.totalorder %s33, 1
      %p283 = por %p281, %p282
      %p285 = scmp.ne.s32.totalorder %s270, %s284
      %p286 = scmp.eq.s32.totalorder %s33, 0
      %p287 = por %p285, %p286
      %s289 = sadd.s32 %s288, 1
      %p292 = scmp.eq.s32.totalorder %s27, 1
      %p293 = scmp.ne.s32.totalorder %s288, %s290
      %p294 = scmp.eq.s32.totalorder %s27, 0
      %p295 = por %p293, %p294
      %p296 = scmp.ne.s32.totalorder %s288, %s290
      %p297 = scmp.eq.s32.totalorder %s32, 1
      %p298 = por %p296, %p297
      %p299 = scmp.ne.s32.totalorder %s290, %s291
      %p300 = scmp.eq.s32.totalorder %s32, 0
      %p301 = por %p299, %p300
      %p302 = scmp.ne.s32.totalorder %s290, %s291
      %p303 = scmp.eq.s32.totalorder %s33, 1
      %p304 = por %p302, %p303
      %p306 = scmp.ne.s32.totalorder %s291, %s305
      %p307 = scmp.eq.s32.totalorder %s33, 0
      %p308 = por %p306, %p307
      %s310 = sadd.s32 %s309, 1
      %p313 = scmp.eq.s32.totalorder %s27, 1
      %p314 = scmp.ne.s32.totalorder %s309, %s311
      %p315 = scmp.eq.s32.totalorder %s27, 0
      %p316 = por %p314, %p315
      %p317 = scmp.ne.s32.totalorder %s309, %s311
      %p318 = scmp.eq.s32.totalorder %s32, 1
      %p319 = por %p317, %p318
      %p320 = scmp.ne.s32.totalorder %s311, %s312
      %p321 = scmp.eq.s32.totalorder %s32, 0
      %p322 = por %p320, %p321
      %p323 = scmp.ne.s32.totalorder %s311, %s312
      %p324 = scmp.eq.s32.totalorder %s33, 1
      %p325 = por %p323, %p324
      %p327 = scmp.ne.s32.totalorder %s312, %s326
      %p328 = scmp.eq.s32.totalorder %s33, 0
      %p329 = por %p327, %p328
      %s330 = ssub.s32 %s34, %s46
      %s331 = ssub.s32 %s35, %s42
      %s332 = sor.u32 %s330, %s331
      %p333 = scmp.eq.s32.totalorder %s332, 0
      %s335 = sadd.s32 %s334, 1
      %s336 = scalar_select %p333, %s334, %s335
      %p339 = pneg %p333
      %p340 = scmp.eq.s32.totalorder %s27, 1
      %p341 = por %p339, %p340
      %p342 = scmp.ne.s32.totalorder %s334, %s337
      %p343 = scmp.eq.s32.totalorder %s27, 0
      %p344 = por %p342, %p343
      %p345 = scmp.ne.s32.totalorder %s334, %s337
      %p346 = scmp.eq.s32.totalorder %s32, 1
      %p347 = por %p345, %p346
      %p348 = scmp.ne.s32.totalorder %s337, %s338
      %p349 = scmp.eq.s32.totalorder %s32, 0
      %p350 = por %p348, %p349
      %p351 = scmp.ne.s32.totalorder %s337, %s338
      %p352 = scmp.eq.s32.totalorder %s33, 1
      %p353 = por %p351, %p352
      %p355 = scmp.ne.s32.totalorder %s338, %s354
      %p356 = scmp.eq.s32.totalorder %s33, 0
      %p357 = por %p355, %p356
      %s358 = ssub.s32 %s34, %s46
      %p359 = scmp.eq.s32.totalorder %s358, 0
      %s361 = sadd.s32 %s360, 1
      %s362 = scalar_select %p359, %s360, %s361
      %p365 = pneg %p359
      %p366 = scmp.eq.s32.totalorder %s27, 1
      %p367 = por %p365, %p366
      %p368 = scmp.ne.s32.totalorder %s360, %s363
      %p369 = scmp.eq.s32.totalorder %s27, 0
      %p370 = por %p368, %p369
      %p371 = scmp.ne.s32.totalorder %s360, %s363
      %p372 = scmp.eq.s32.totalorder %s32, 1
      %p373 = por %p371, %p372
      %p374 = scmp.ne.s32.totalorder %s363, %s364
      %p375 = scmp.eq.s32.totalorder %s32, 0
      %p376 = por %p374, %p375
      %p377 = scmp.ne.s32.totalorder %s363, %s364
      %p378 = scmp.eq.s32.totalorder %s33, 1
      %p379 = por %p377, %p378
      %p381 = scmp.ne.s32.totalorder %s364, %s380
      %p382 = scmp.eq.s32.totalorder %s33, 0
      %p383 = por %p381, %p382
      %s384 = ssub.s32 %s34, %s46
      %p385 = scmp.eq.s32.totalorder %s384, 0
      %s387 = sadd.s32 %s386, 1
      %s388 = scalar_select %p385, %s386, %s387
      %p391 = pneg %p385
      %p392 = scmp.eq.s32.totalorder %s27, 1
      %p393 = por %p391, %p392
      %p394 = scmp.ne.s32.totalorder %s386, %s389
      %p395 = scmp.eq.s32.totalorder %s27, 0
      %p396 = por %p394, %p395
      %p397 = scmp.ne.s32.totalorder %s386, %s389
      %p398 = scmp.eq.s32.totalorder %s32, 1
      %p399 = por %p397, %p398
      %p400 = scmp.ne.s32.totalorder %s389, %s390
      %p401 = scmp.eq.s32.totalorder %s32, 0
      %p402 = por %p400, %p401
      %p403 = scmp.ne.s32.totalorder %s389, %s390
      %p404 = scmp.eq.s32.totalorder %s33, 1
      %p405 = por %p403, %p404
      %p407 = scmp.ne.s32.totalorder %s390, %s406
      %p408 = scmp.eq.s32.totalorder %s33, 0
      %p409 = por %p407, %p408
      %p410 = scmp.le.s32.totalorder 1, %s27
      %p411 = scmp.lt.s32.totalorder %s27, 3
      %p412 = pnand %p410, %p411
      %p413 = pneg %p412
      // Predicated region
      $region9: #{_lambda_.18} parent=5 // pred_check
        _
      $region10: #{_lambda_.18} parent=5 // pred_check_branch
        %415 = sbr.rel (%p412) target = $region12
      $region11: #{_lambda_.18} parent=5 // pred_region
        %s416 = ssub.s32 %s27, 1
        // Predicated region
        $region13: #{_lambda_.18} parent=11 // pred_check
          %p417 = pneg %p196
        $region14: #{_lambda_.18} parent=11 // pred_check_branch
          %419 = sbr.rel (%p417) target = $region16
        $region15: #{_lambda_.18} parent=11 // pred_region
          _
        $region16: #{_lambda_.18} parent=11 // pred_fallthru
          _
        // Predicated region
        $region17: #{_lambda_.18} parent=11 // pred_check
          %p420 = pneg %p217
        $region18: #{_lambda_.18} parent=11 // pred_check_branch
          %422 = sbr.rel (%p420) target = $region20
        $region19: #{_lambda_.18} parent=11 // pred_region
          _
        $region20: #{_lambda_.18} parent=11 // pred_fallthru
          _
        // Predicated region
        $region21: #{_lambda_.18} parent=11 // pred_check
          %p423 = pneg %p238
        $region22: #{_lambda_.18} parent=11 // pred_check_branch
          %425 = sbr.rel (%p423) target = $region24
        $region23: #{_lambda_.18} parent=11 // pred_region
          _
        $region24: #{_lambda_.18} parent=11 // pred_fallthru
          _
        // Predicated region
        $region25: #{_lambda_.18} parent=11 // pred_check
          %p426 = pneg %p259
        $region26: #{_lambda_.18} parent=11 // pred_check_branch
          %428 = sbr.rel (%p426) target = $region28
        $region27: #{_lambda_.18} parent=11 // pred_region
          _
        $region28: #{_lambda_.18} parent=11 // pred_fallthru
          _
        // Predicated region
        $region29: #{_lambda_.18} parent=11 // pred_check
          %p429 = pneg %p280
        $region30: #{_lambda_.18} parent=11 // pred_check_branch
          %431 = sbr.rel (%p429) target = $region32
        $region31: #{_lambda_.18} parent=11 // pred_region
          _
        $region32: #{_lambda_.18} parent=11 // pred_fallthru
          _
        // Predicated region
        $region33: #{_lambda_.18} parent=11 // pred_check
          %p432 = pneg %p301
        $region34: #{_lambda_.18} parent=11 // pred_check_branch
          %434 = sbr.rel (%p432) target = $region36
        $region35: #{_lambda_.18} parent=11 // pred_region
          _
        $region36: #{_lambda_.18} parent=11 // pred_fallthru
          _
        // Predicated region
        $region37: #{_lambda_.18} parent=11 // pred_check
          %p435 = pneg %p322
        $region38: #{_lambda_.18} parent=11 // pred_check_branch
          %437 = sbr.rel (%p435) target = $region40
        $region39: #{_lambda_.18} parent=11 // pred_region
          _
        $region40: #{_lambda_.18} parent=11 // pred_fallthru
          _
      $region12: #{_lambda_.18} parent=5 // pred_fallthru
        _
      %p438 = scmp.lt.s32.totalorder %s27, 2
      // Predicated region
      $region41: #{_lambda_.18} parent=5 // pred_check
        %p439 = pneg %p438
      $region42: #{_lambda_.18} parent=5 // pred_check_branch
        %441 = sbr.rel (%p439) target = $region44
      $region43: #{_lambda_.18} parent=5 // pred_region
        // Predicated region
        $region45: #{_lambda_.18} parent=43 // pred_check
          %p442 = pneg %p61
        $region46: #{_lambda_.18} parent=43 // pred_check_branch
          %444 = sbr.rel (%p442) target = $region48
        $region47: #{_lambda_.18} parent=43 // pred_region
          %s445 = smul.u32 32, %s35
          %p446 = scmp.lt.s32.totalorder %s34, 1
          %s447 = scalar_select %p446, %s34, 1
          %p448 = scmp.lt.s32.totalorder %s445, 31
          %s449 = scalar_select %p448, %s445, 31
          %s450 = smul.addr %s447, 32
          %s451 = sadd.s32 %s449, %s450
          %s452 = smul.addr %s451, 8
          %s453 = scalar_lea.vmem %s0, %s452
          %s454 = smul.u32 32, %s35
        $region48: #{_lambda_.18} parent=43 // pred_fallthru
          _
        // Predicated region
        $region49: #{_lambda_.18} parent=43 // pred_check
          %p455 = pneg %p87
        $region50: #{_lambda_.18} parent=43 // pred_check_branch
          %457 = sbr.rel (%p455) target = $region52
        $region51: #{_lambda_.18} parent=43 // pred_region
          %p458 = scmp.lt.s32.totalorder %s34, 1
          %s459 = scalar_select %p458, %s34, 1
          %s460 = scalar_lea.vmem %s1, %s459
        $region52: #{_lambda_.18} parent=43 // pred_fallthru
          _
        // Predicated region
        $region53: #{_lambda_.18} parent=43 // pred_check
          %p461 = pneg %p113
        $region54: #{_lambda_.18} parent=43 // pred_check_branch
          %463 = sbr.rel (%p461) target = $region56
        $region55: #{_lambda_.18} parent=43 // pred_region
          %p464 = scmp.lt.s32.totalorder %s34, 1
          %s465 = scalar_select %p464, %s34, 1
          %s466 = scalar_lea.vmem %s2, %s465
        $region56: #{_lambda_.18} parent=43 // pred_fallthru
          _
        // Predicated region
        $region57: #{_lambda_.18} parent=43 // pred_check
          %p467 = pneg %p141
        $region58: #{_lambda_.18} parent=43 // pred_check_branch
          %469 = sbr.rel (%p467) target = $region60
        $region59: #{_lambda_.18} parent=43 // pred_region
          %s470 = smul.u32 32, %s35
          %p471 = scmp.lt.s32.totalorder %s34, 1
          %s472 = scalar_select %p471, %s34, 1
          %p473 = scmp.lt.s32.totalorder %s470, 31
          %s474 = scalar_select %p473, %s470, 31
          %s475 = smul.addr %s472, 32
          %s476 = sadd.s32 %s474, %s475
          %s477 = smul.addr %s476, 4
          %s478 = scalar_lea.vmem %s3, %s477
          %s479 = smul.u32 32, %s35
        $region60: #{_lambda_.18} parent=43 // pred_fallthru
          _
        // Predicated region
        $region61: #{_lambda_.18} parent=43 // pred_check
          %p480 = pneg %p169
        $region62: #{_lambda_.18} parent=43 // pred_check_branch
          %482 = sbr.rel (%p480) target = $region64
        $region63: #{_lambda_.18} parent=43 // pred_region
          %s483 = smul.u32 32, %s35
          %p484 = scmp.lt.s32.totalorder %s34, 1
          %s485 = scalar_select %p484, %s34, 1
          %p486 = scmp.lt.s32.totalorder %s483, 31
          %s487 = scalar_select %p486, %s483, 31
          %s488 = smul.addr %s485, 32
          %s489 = sadd.s32 %s487, %s488
          %s490 = smul.addr %s489, 8
          %s491 = scalar_lea.vmem %s4, %s490
          %s492 = smul.u32 32, %s35
        $region64: #{_lambda_.18} parent=43 // pred_fallthru
          _
      $region44: #{_lambda_.18} parent=5 // pred_fallthru
        _
      %p493 = scmp.le.s32.totalorder 1, %s27
      %p494 = scmp.lt.s32.totalorder %s27, 3
      %p495 = pnand %p493, %p494
      %p496 = pneg %p495
      // Predicated region
      $region65: #{_lambda_.18} parent=5 // pred_check
        _
      $region66: #{_lambda_.18} parent=5 // pred_check_branch
        %498 = sbr.rel (%p495) target = $region68
      $region67: #{_lambda_.18} parent=5 // pred_region
        %s499 = ssub.s32 %s27, 1
        %s500 = smul.u32 32, %s37
        %p501 = scmp.lt.s32.totalorder %s36, 1
        %s502 = scalar_select %p501, %s36, 1
        %p503 = scmp.lt.s32.totalorder %s500, 31
        %s504 = scalar_select %p503, %s500, 31
        %s505 = smul.addr %s502, 32
        %s506 = sadd.s32 %s504, %s505
        %s507 = smul.addr %s506, 8
        %s508 = scalar_lea.vmem %s0, %s507
        %p509 = pneg %p67
        %p510 = pneg %p64
        %p511 = scmp.lt.s32.totalorder %s36, 1
        %s512 = scalar_select %p511, %s36, 1
        %s513 = scalar_lea.vmem %s1, %s512
        %p514 = pneg %p93
        %p515 = pneg %p90
        %p516 = scmp.lt.s32.totalorder %s36, 1
        %s517 = scalar_select %p516, %s36, 1
        %s518 = scalar_lea.vmem %s2, %s517
        %p519 = pneg %p119
        %p520 = pneg %p116
        %s521 = smul.u32 32, %s37
        %p522 = scmp.lt.s32.totalorder %s36, 1
        %s523 = scalar_select %p522, %s36, 1
        %p524 = scmp.lt.s32.totalorder %s521, 31
        %s525 = scalar_select %p524, %s521, 31
        %s526 = smul.addr %s523, 32
        %s527 = sadd.s32 %s525, %s526
        %s528 = smul.addr %s527, 4
        %s529 = scalar_lea.vmem %s3, %s528
        %p530 = pneg %p147
        %p531 = pneg %p144
        %s532 = smul.u32 32, %s37
        %p533 = scmp.lt.s32.totalorder %s36, 1
        %s534 = scalar_select %p533, %s36, 1
        %p535 = scmp.lt.s32.totalorder %s532, 31
        %s536 = scalar_select %p535, %s532, 31
        %s537 = smul.addr %s534, 32
        %s538 = sadd.s32 %s536, %s537
        %s539 = smul.addr %s538, 8
        %s540 = scalar_lea.vmem %s4, %s539
        %p541 = pneg %p175
        %p542 = pneg %p172
        %p543 = pneg %p196
        %p544 = pneg %p193
        %p545 = pneg %p217
        %p546 = pneg %p214
        %p547 = pneg %p238
        %p548 = pneg %p235
        %p549 = pneg %p259
        %p550 = pneg %p256
        %p551 = pneg %p280
        %p552 = pneg %p277
        %p553 = pneg %p301
        %p554 = pneg %p298
        %p555 = pneg %p322
        %p556 = pneg %p319
        %p557 = pneg %p350
        %p558 = pneg %p347
        %s559 = smul.u32 32, %s37
        %p560 = scmp.lt.s32.totalorder %s36, 1
        %s561 = scalar_select %p560, %s36, 1
        %p562 = scmp.lt.s32.totalorder %s559, 31
        %s563 = scalar_select %p562, %s559, 31
        %s564 = smul.addr %s561, 32
        %s565 = sadd.s32 %s563, %s564
        %s566 = smul.addr %s565, 4
        %s567 = scalar_lea.vmem %s12, %s566
        %p568 = pneg %p376
        %p569 = pneg %p373
        %s570 = sand.u32 %s363, 1
        %s571 = scalar_lea.sflag [#allocation3], %s570
        %s572 = sand.u32 %s363, 1
        %s573 = scalar_lea.vmem [#allocation2], %s572
        %p574 = pneg %p402
        %p575 = pneg %p399
        %s576 = sand.u32 %s389, 1
        %s577 = scalar_lea.sflag [#allocation5], %s576
        %s578 = sand.u32 %s389, 1
        %s579 = scalar_lea.vmem [#allocation4], %s578
        %s580 = smul.u32 32, %s37
        %p581 = scmp.lt.s32.totalorder %s36, 1
        %s582 = scalar_select %p581, %s36, 1
        %p583 = scmp.lt.s32.totalorder %s580, 31
        %s584 = scalar_select %p583, %s580, 31
        %s585 = smul.addr %s582, 32
        %s586 = sadd.s32 %s584, %s585
        %s587 = smul.addr %s586, 8
        %s588 = scalar_lea.vmem %s0, %s587
        %s589 = smul.u32 32, %s37
        %p590 = scmp.lt.s32.totalorder %s36, 1
        %s591 = scalar_select %p590, %s36, 1
        %s592 = scalar_lea.vmem %s1, %s591
        %p593 = scmp.lt.s32.totalorder %s36, 1
        %s594 = scalar_select %p593, %s36, 1
        %s595 = scalar_lea.vmem %s2, %s594
        %s596 = smul.u32 32, %s37
        %p597 = scmp.lt.s32.totalorder %s36, 1
        %s598 = scalar_select %p597, %s36, 1
        %p599 = scmp.lt.s32.totalorder %s596, 31
        %s600 = scalar_select %p599, %s596, 31
        %s601 = smul.addr %s598, 32
        %s602 = sadd.s32 %s600, %s601
        %s603 = smul.addr %s602, 4
        %s604 = scalar_lea.vmem %s3, %s603
        %s605 = smul.u32 32, %s37
        %s606 = smul.u32 32, %s37
        %p607 = scmp.lt.s32.totalorder %s36, 1
        %s608 = scalar_select %p607, %s36, 1
        %p609 = scmp.lt.s32.totalorder %s606, 31
        %s610 = scalar_select %p609, %s606, 31
        %s611 = smul.addr %s608, 32
        %s612 = sadd.s32 %s610, %s611
        %s613 = smul.addr %s612, 8
        %s614 = scalar_lea.vmem %s4, %s613
        %s615 = smul.u32 32, %s37
        %s616 = smul.u32 32, %s37
        %p617 = scmp.lt.s32.totalorder %s36, 1
        %s618 = scalar_select %p617, %s36, 1
        %p619 = scmp.lt.s32.totalorder %s616, 31
        %s620 = scalar_select %p619, %s616, 31
        %s621 = smul.addr %s618, 32
        %s622 = sadd.s32 %s620, %s621
        %s623 = smul.addr %s622, 4
        %s624 = scalar_lea.vmem %s12, %s623
        %s625 = smul.u32 32, %s37
        %v627 = vld [vmem:[%s588] sm:$0xff]
        %v628 = vld [vmem:[%s588 + $0x8] sm:$0xff]
        %v629 = vld [vmem:[%s588 + $0x10] sm:$0xff]
        %v630 = vld [vmem:[%s588 + $0x18] sm:$0xff]
        %v631 = vld [vmem:[%s588 + $0x20] sm:$0xff]
        %v632 = vld [vmem:[%s588 + $0x28] sm:$0xff]
        %v633 = vld [vmem:[%s588 + $0x30] sm:$0xff]
        %v634 = vld [vmem:[%s588 + $0x38] sm:$0xff]
        %v635 = vld [vmem:[%s588 + $0x40] sm:$0xff]
        %v636 = vld [vmem:[%s588 + $0x48] sm:$0xff]
        %v637 = vld [vmem:[%s588 + $0x50] sm:$0xff]
        %v638 = vld [vmem:[%s588 + $0x58] sm:$0xff]
        %v639 = vld [vmem:[%s588 + $0x60] sm:$0xff]
        %v640 = vld [vmem:[%s588 + $0x68] sm:$0xff]
        %v641 = vld [vmem:[%s588 + $0x70] sm:$0xff]
        %v642 = vld [vmem:[%s588 + $0x78] sm:$0xff]
        %v643 = vld [vmem:[%s588 + $0x80] sm:$0xff]
        %v644 = vld [vmem:[%s588 + $0x88] sm:$0xff]
        %v645 = vld [vmem:[%s588 + $0x90] sm:$0xff]
        %v646 = vld [vmem:[%s588 + $0x98] sm:$0xff]
        %v647 = vld [vmem:[%s588 + $0xa0] sm:$0xff]
        %v648 = vld [vmem:[%s588 + $0xa8] sm:$0xff]
        %v649 = vld [vmem:[%s588 + $0xb0] sm:$0xff]
        %v650 = vld [vmem:[%s588 + $0xb8] sm:$0xff]
        %v651 = vld [vmem:[%s588 + $0xc0] sm:$0xff]
        %v652 = vld [vmem:[%s588 + $0xc8] sm:$0xff]
        %v653 = vld [vmem:[%s588 + $0xd0] sm:$0xff]
        %v654 = vld [vmem:[%s588 + $0xd8] sm:$0xff]
        %v655 = vld [vmem:[%s588 + $0xe0] sm:$0xff]
        %v656 = vld [vmem:[%s588 + $0xe8] sm:$0xff]
        %v657 = vld [vmem:[%s588 + $0xf0] sm:$0xff]
        %v658 = vld [vmem:[%s588 + $0xf8] sm:$0xff]
        %v659 = vld [vmem:[%s592] sm:$0x1]
        %v661 = vperm.slane %v659, 0
        %v663 = vsub.f32 %v627, %v661
        %v664 = vsub.f32 %v628, %v661
        %v665 = vsub.f32 %v629, %v661
        %v666 = vsub.f32 %v630, %v661
        %v667 = vsub.f32 %v631, %v661
        %v668 = vsub.f32 %v632, %v661
        %v669 = vsub.f32 %v633, %v661
        %v670 = vsub.f32 %v634, %v661
        %v671 = vsub.f32 %v635, %v661
        %v672 = vsub.f32 %v636, %v661
        %v673 = vsub.f32 %v637, %v661
        %v674 = vsub.f32 %v638, %v661
        %v675 = vsub.f32 %v639, %v661
        %v676 = vsub.f32 %v640, %v661
        %v677 = vsub.f32 %v641, %v661
        %v678 = vsub.f32 %v642, %v661
        %v679 = vsub.f32 %v643, %v661
        %v680 = vsub.f32 %v644, %v661
        %v681 = vsub.f32 %v645, %v661
        %v682 = vsub.f32 %v646, %v661
        %v683 = vsub.f32 %v647, %v661
        %v684 = vsub.f32 %v648, %v661
        %v685 = vsub.f32 %v649, %v661
        %v686 = vsub.f32 %v650, %v661
        %v687 = vsub.f32 %v651, %v661
        %v688 = vsub.f32 %v652, %v661
        %v689 = vsub.f32 %v653, %v661
        %v690 = vsub.f32 %v654, %v661
        %v691 = vsub.f32 %v655, %v661
        %v692 = vsub.f32 %v656, %v661
        %v693 = vsub.f32 %v657, %v661
        %v694 = vsub.f32 %v658, %v661
        %v695 = vld [vmem:[%s595] sm:$0x1]
        %v697 = vperm.slane %v695, 0
        %v699 = vmul.f32 %v663, %v697
        %v700 = vmul.f32 %v664, %v697
        %v701 = vmul.f32 %v665, %v697
        %v702 = vmul.f32 %v666, %v697
        %v703 = vmul.f32 %v667, %v697
        %v704 = vmul.f32 %v668, %v697
        %v705 = vmul.f32 %v669, %v697
        %v706 = vmul.f32 %v670, %v697
        %v707 = vmul.f32 %v671, %v697
        %v708 = vmul.f32 %v672, %v697
        %v709 = vmul.f32 %v673, %v697
        %v710 = vmul.f32 %v674, %v697
        %v711 = vmul.f32 %v675, %v697
        %v712 = vmul.f32 %v676, %v697
        %v713 = vmul.f32 %v677, %v697
        %v714 = vmul.f32 %v678, %v697
        %v715 = vmul.f32 %v679, %v697
        %v716 = vmul.f32 %v680, %v697
        %v717 = vmul.f32 %v681, %v697
        %v718 = vmul.f32 %v682, %v697
        %v719 = vmul.f32 %v683, %v697
        %v720 = vmul.f32 %v684, %v697
        %v721 = vmul.f32 %v685, %v697
        %v722 = vmul.f32 %v686, %v697
        %v723 = vmul.f32 %v687, %v697
        %v724 = vmul.f32 %v688, %v697
        %v725 = vmul.f32 %v689, %v697
        %v726 = vmul.f32 %v690, %v697
        %v727 = vmul.f32 %v691, %v697
        %v728 = vmul.f32 %v692, %v697
        %v729 = vmul.f32 %v693, %v697
        %v730 = vmul.f32 %v694, %v697
        %v731 = vld [vmem:[%s5] sm:$0xf]
        %v732 = vld [vmem:[%s5 + $0x4] sm:$0xf]
        %v733 = vld [vmem:[%s5 + $0x8] sm:$0xf]
        %v734 = vld [vmem:[%s5 + $0xc] sm:$0xf]
        %v735 = vpack.c.bf16 %v700, %v699
        %v736 = vpack.c.bf16 %v702, %v701
        %v737 = vpack.c.bf16 %v704, %v703
        %v738 = vpack.c.bf16 %v706, %v705
        %v739 = vpack.c.bf16 %v708, %v707
        %v740 = vpack.c.bf16 %v710, %v709
        %v741 = vpack.c.bf16 %v712, %v711
        %v742 = vpack.c.bf16 %v714, %v713
        %v743 = vpack.c.bf16 %v716, %v715
        %v744 = vpack.c.bf16 %v718, %v717
        %v745 = vpack.c.bf16 %v720, %v719
        %v746 = vpack.c.bf16 %v722, %v721
        %v747 = vpack.c.bf16 %v724, %v723
        %v748 = vpack.c.bf16 %v726, %v725
        %v749 = vpack.c.bf16 %v728, %v727
        %v750 = vpack.c.bf16 %v730, %v729
        %v751 = vld [vmem:[%s6] sm:$0x1]
        %v753 = vperm.slane %v751, 0
        %v759 = vunpack.c.l.b16 %v731
        %v760 = vunpack.c.l.b16 %v732
        %v761 = vunpack.c.l.b16 %v733
        %v762 = vunpack.c.l.b16 %v734
        %v763 = vpack.c.b16 %v760, %v759
        %v764 = vpack.c.b16 %v762, %v761
        %vm767 = vcmask 261120
        %v769 = vsel %vm767, %v735, 0
        %v772 = vsel %vm767, %v736, 0
        %v775 = vsel %vm767, %v737, 0
        %v778 = vsel %vm767, %v738, 0
        %v781 = vsel %vm767, %v739, 0
        %v784 = vsel %vm767, %v740, 0
        %v787 = vsel %vm767, %v741, 0
        %v790 = vsel %vm767, %v742, 0
        %v793 = vsel %vm767, %v743, 0
        %v796 = vsel %vm767, %v744, 0
        %v799 = vsel %vm767, %v745, 0
        %v802 = vsel %vm767, %v746, 0
        %v805 = vsel %vm767, %v747, 0
        %v808 = vsel %vm767, %v748, 0
        %v811 = vsel %vm767, %v749, 0
        %v814 = vsel %vm767, %v750, 0
        %816 = vmatpush.bf16.msra.mxu0 0
        %817 = vmatpush.bf16.msra.mxu0 0
        %818 = vmatpush.bf16.msra.mxu0 0
        %819 = vmatpush.bf16.msra.mxu0 0
        %820 = vmatpush.bf16.msra.mxu0 0
        %821 = vmatpush.bf16.msra.mxu0 0
        %822 = vmatpush.bf16.msra.mxu0 %v764
        %823 = vmatpush.bf16.msra.mxu0 %v763
        %824 = vmatmul.bf16.gmra.mxu0 %v769
        %v825 = vpop.f32.mrf.mxu0
        %v826 = vadd.f32 %v753, %v825
        %v827 = vpop.f32.mrf.mxu0
        %v828 = vadd.f32 %v753, %v827
        %829 = vmatmul.bf16.gmra.mxu0 %v772
        %v830 = vpop.f32.mrf.mxu0
        %v831 = vadd.f32 %v753, %v830
        %v832 = vpop.f32.mrf.mxu0
        %v833 = vadd.f32 %v753, %v832
        %834 = vmatmul.bf16.gmra.mxu0 %v775
        %v835 = vpop.f32.mrf.mxu0
        %v836 = vadd.f32 %v753, %v835
        %v837 = vpop.f32.mrf.mxu0
        %v838 = vadd.f32 %v753, %v837
        %839 = vmatmul.bf16.gmra.mxu0 %v778
        %v840 = vpop.f32.mrf.mxu0
        %v841 = vadd.f32 %v753, %v840
        %v842 = vpop.f32.mrf.mxu0
        %v843 = vadd.f32 %v753, %v842
        %844 = vmatmul.bf16.gmra.mxu0 %v781
        %v845 = vpop.f32.mrf.mxu0
        %v846 = vadd.f32 %v753, %v845
        %v847 = vpop.f32.mrf.mxu0
        %v848 = vadd.f32 %v753, %v847
        %849 = vmatmul.bf16.gmra.mxu0 %v784
        %v850 = vpop.f32.mrf.mxu0
        %v851 = vadd.f32 %v753, %v850
        %v852 = vpop.f32.mrf.mxu0
        %v853 = vadd.f32 %v753, %v852
        %854 = vmatmul.bf16.gmra.mxu0 %v787
        %v855 = vpop.f32.mrf.mxu0
        %v856 = vadd.f32 %v753, %v855
        %v857 = vpop.f32.mrf.mxu0
        %v858 = vadd.f32 %v753, %v857
        %859 = vmatmul.bf16.gmra.mxu0 %v790
        %v860 = vpop.f32.mrf.mxu0
        %v861 = vadd.f32 %v753, %v860
        %v862 = vpop.f32.mrf.mxu0
        %v863 = vadd.f32 %v753, %v862
        %864 = vmatmul.bf16.gmra.mxu0 %v793
        %v865 = vpop.f32.mrf.mxu0
        %v866 = vadd.f32 %v753, %v865
        %v867 = vpop.f32.mrf.mxu0
        %v868 = vadd.f32 %v753, %v867
        %869 = vmatmul.bf16.gmra.mxu0 %v796
        %v870 = vpop.f32.mrf.mxu0
        %v871 = vadd.f32 %v753, %v870
        %v872 = vpop.f32.mrf.mxu0
        %v873 = vadd.f32 %v753, %v872
        %874 = vmatmul.bf16.gmra.mxu0 %v799
        %v875 = vpop.f32.mrf.mxu0
        %v876 = vadd.f32 %v753, %v875
        %v877 = vpop.f32.mrf.mxu0
        %v878 = vadd.f32 %v753, %v877
        %879 = vmatmul.bf16.gmra.mxu0 %v802
        %v880 = vpop.f32.mrf.mxu0
        %v881 = vadd.f32 %v753, %v880
        %v882 = vpop.f32.mrf.mxu0
        %v883 = vadd.f32 %v753, %v882
        %884 = vmatmul.bf16.gmra.mxu0 %v805
        %v885 = vpop.f32.mrf.mxu0
        %v886 = vadd.f32 %v753, %v885
        %v887 = vpop.f32.mrf.mxu0
        %v888 = vadd.f32 %v753, %v887
        %889 = vmatmul.bf16.gmra.mxu0 %v808
        %v890 = vpop.f32.mrf.mxu0
        %v891 = vadd.f32 %v753, %v890
        %v892 = vpop.f32.mrf.mxu0
        %v893 = vadd.f32 %v753, %v892
        %894 = vmatmul.bf16.gmra.mxu0 %v811
        %v895 = vpop.f32.mrf.mxu0
        %v896 = vadd.f32 %v753, %v895
        %v897 = vpop.f32.mrf.mxu0
        %v898 = vadd.f32 %v753, %v897
        %899 = vmatmul.bf16.gmra.mxu0 %v814
        %v900 = vpop.f32.mrf.mxu0
        %v901 = vadd.f32 %v753, %v900
        %v902 = vpop.f32.mrf.mxu0
        %v903 = vadd.f32 %v753, %v902
        %904 = vdwg.mxu0
        %v905 = vmul.f32 %v826, 0.5
        %v906 = vmul.f32 %v828, 0.5
        %v907 = vmul.f32 %v831, 0.5
        %v908 = vmul.f32 %v833, 0.5
        %v909 = vmul.f32 %v836, 0.5
        %v910 = vmul.f32 %v838, 0.5
        %v911 = vmul.f32 %v841, 0.5
        %v912 = vmul.f32 %v843, 0.5
        %v913 = vmul.f32 %v846, 0.5
        %v914 = vmul.f32 %v848, 0.5
        %v915 = vmul.f32 %v851, 0.5
        %v916 = vmul.f32 %v853, 0.5
        %v917 = vmul.f32 %v856, 0.5
        %v918 = vmul.f32 %v858, 0.5
        %v919 = vmul.f32 %v861, 0.5
        %v920 = vmul.f32 %v863, 0.5
        %v921 = vmul.f32 %v866, 0.5
        %v922 = vmul.f32 %v868, 0.5
        %v923 = vmul.f32 %v871, 0.5
        %v924 = vmul.f32 %v873, 0.5
        %v925 = vmul.f32 %v876, 0.5
        %v926 = vmul.f32 %v878, 0.5
        %v927 = vmul.f32 %v881, 0.5
        %v928 = vmul.f32 %v883, 0.5
        %v929 = vmul.f32 %v886, 0.5
        %v930 = vmul.f32 %v888, 0.5
        %v931 = vmul.f32 %v891, 0.5
        %v932 = vmul.f32 %v893, 0.5
        %v933 = vmul.f32 %v896, 0.5
        %v934 = vmul.f32 %v898, 0.5
        %v935 = vmul.f32 %v901, 0.5
        %v936 = vmul.f32 %v903, 0.5
        %v937 = vmul.f32 %v826, 0.044715
        %v938 = vmul.f32 %v828, 0.044715
        %v939 = vmul.f32 %v831, 0.044715
        %v940 = vmul.f32 %v833, 0.044715
        %v941 = vmul.f32 %v836, 0.044715
        %v942 = vmul.f32 %v838, 0.044715
        %v943 = vmul.f32 %v841, 0.044715
        %v944 = vmul.f32 %v843, 0.044715
        %v945 = vmul.f32 %v846, 0.044715
        %v946 = vmul.f32 %v848, 0.044715
        %v947 = vmul.f32 %v851, 0.044715
        %v948 = vmul.f32 %v853, 0.044715
        %v949 = vmul.f32 %v856, 0.044715
        %v950 = vmul.f32 %v858, 0.044715
        %v951 = vmul.f32 %v861, 0.044715
        %v952 = vmul.f32 %v863, 0.044715
        %v953 = vmul.f32 %v866, 0.044715
        %v954 = vmul.f32 %v868, 0.044715
        %v955 = vmul.f32 %v871, 0.044715
        %v956 = vmul.f32 %v873, 0.044715
        %v957 = vmul.f32 %v876, 0.044715
        %v958 = vmul.f32 %v878, 0.044715
        %v959 = vmul.f32 %v881, 0.044715
        %v960 = vmul.f32 %v883, 0.044715
        %v961 = vmul.f32 %v886, 0.044715
        %v962 = vmul.f32 %v888, 0.044715
        %v963 = vmul.f32 %v891, 0.044715
        %v964 = vmul.f32 %v893, 0.044715
        %v965 = vmul.f32 %v896, 0.044715
        %v966 = vmul.f32 %v898, 0.044715
        %v967 = vmul.f32 %v901, 0.044715
        %v968 = vmul.f32 %v903, 0.044715
        %v969 = vmul.f32 %v937, %v826
        %v970 = vmul.f32 %v938, %v828
        %v971 = vmul.f32 %v939, %v831
        %v972 = vmul.f32 %v940, %v833
        %v973 = vmul.f32 %v941, %v836
        %v974 = vmul.f32 %v942, %v838
        %v975 = vmul.f32 %v943, %v841
        %v976 = vmul.f32 %v944, %v843
        %v977 = vmul.f32 %v945, %v846
        %v978 = vmul.f32 %v946, %v848
        %v979 = vmul.f32 %v947, %v851
        %v980 = vmul.f32 %v948, %v853
        %v981 = vmul.f32 %v949, %v856
        %v982 = vmul.f32 %v950, %v858
        %v983 = vmul.f32 %v951, %v861
        %v984 = vmul.f32 %v952, %v863
        %v985 = vmul.f32 %v953, %v866
        %v986 = vmul.f32 %v954, %v868
        %v987 = vmul.f32 %v955, %v871
        %v988 = vmul.f32 %v956, %v873
        %v989 = vmul.f32 %v957, %v876
        %v990 = vmul.f32 %v958, %v878
        %v991 = vmul.f32 %v959, %v881
        %v992 = vmul.f32 %v960, %v883
        %v993 = vmul.f32 %v961, %v886
        %v994 = vmul.f32 %v962, %v888
        %v995 = vmul.f32 %v963, %v891
        %v996 = vmul.f32 %v964, %v893
        %v997 = vmul.f32 %v965, %v896
        %v998 = vmul.f32 %v966, %v898
        %v999 = vmul.f32 %v967, %v901
        %v1000 = vmul.f32 %v968, %v903
        %v1001 = vmul.f32 %v969, %v826
        %v1002 = vmul.f32 %v970, %v828
        %v1003 = vmul.f32 %v971, %v831
        %v1004 = vmul.f32 %v972, %v833
        %v1005 = vmul.f32 %v973, %v836
        %v1006 = vmul.f32 %v974, %v838
        %v1007 = vmul.f32 %v975, %v841
        %v1008 = vmul.f32 %v976, %v843
        %v1009 = vmul.f32 %v977, %v846
        %v1010 = vmul.f32 %v978, %v848
        %v1011 = vmul.f32 %v979, %v851
        %v1012 = vmul.f32 %v980, %v853
        %v1013 = vmul.f32 %v981, %v856
        %v1014 = vmul.f32 %v982, %v858
        %v1015 = vmul.f32 %v983, %v861
        %v1016 = vmul.f32 %v984, %v863
        %v1017 = vmul.f32 %v985, %v866
        %v1018 = vmul.f32 %v986, %v868
        %v1019 = vmul.f32 %v987, %v871
        %v1020 = vmul.f32 %v988, %v873
        %v1021 = vmul.f32 %v989, %v876
        %v1022 = vmul.f32 %v990, %v878
        %v1023 = vmul.f32 %v991, %v881
        %v1024 = vmul.f32 %v992, %v883
        %v1025 = vmul.f32 %v993, %v886
        %v1026 = vmul.f32 %v994, %v888
        %v1027 = vmul.f32 %v995, %v891
        %v1028 = vmul.f32 %v996, %v893
        %v1029 = vmul.f32 %v997, %v896
        %v1030 = vmul.f32 %v998, %v898
        %v1031 = vmul.f32 %v999, %v901
        %v1032 = vmul.f32 %v1000, %v903
        %v1033 = vadd.f32 %v826, %v1001
        %v1034 = vadd.f32 %v828, %v1002
        %v1035 = vadd.f32 %v831, %v1003
        %v1036 = vadd.f32 %v833, %v1004
        %v1037 = vadd.f32 %v836, %v1005
        %v1038 = vadd.f32 %v838, %v1006
        %v1039 = vadd.f32 %v841, %v1007
        %v1040 = vadd.f32 %v843, %v1008
        %v1041 = vadd.f32 %v846, %v1009
        %v1042 = vadd.f32 %v848, %v1010
        %v1043 = vadd.f32 %v851, %v1011
        %v1044 = vadd.f32 %v853, %v1012
        %v1045 = vadd.f32 %v856, %v1013
        %v1046 = vadd.f32 %v858, %v1014
        %v1047 = vadd.f32 %v861, %v1015
        %v1048 = vadd.f32 %v863, %v1016
        %v1049 = vadd.f32 %v866, %v1017
        %v1050 = vadd.f32 %v868, %v1018
        %v1051 = vadd.f32 %v871, %v1019
        %v1052 = vadd.f32 %v873, %v1020
        %v1053 = vadd.f32 %v876, %v1021
        %v1054 = vadd.f32 %v878, %v1022
        %v1055 = vadd.f32 %v881, %v1023
        %v1056 = vadd.f32 %v883, %v1024
        %v1057 = vadd.f32 %v886, %v1025
        %v1058 = vadd.f32 %v888, %v1026
        %v1059 = vadd.f32 %v891, %v1027
        %v1060 = vadd.f32 %v893, %v1028
        %v1061 = vadd.f32 %v896, %v1029
        %v1062 = vadd.f32 %v898, %v1030
        %v1063 = vadd.f32 %v901, %v1031
        %v1064 = vadd.f32 %v903, %v1032
        %v1065 = vmul.f32 %v1033, 0.7978846
        %v1066 = vmul.f32 %v1034, 0.7978846
        %v1067 = vmul.f32 %v1035, 0.7978846
        %v1068 = vmul.f32 %v1036, 0.7978846
        %v1069 = vmul.f32 %v1037, 0.7978846
        %v1070 = vmul.f32 %v1038, 0.7978846
        %v1071 = vmul.f32 %v1039, 0.7978846
        %v1072 = vmul.f32 %v1040, 0.7978846
        %v1073 = vmul.f32 %v1041, 0.7978846
        %v1074 = vmul.f32 %v1042, 0.7978846
        %v1075 = vmul.f32 %v1043, 0.7978846
        %v1076 = vmul.f32 %v1044, 0.7978846
        %v1077 = vmul.f32 %v1045, 0.7978846
        %v1078 = vmul.f32 %v1046, 0.7978846
        %v1079 = vmul.f32 %v1047, 0.7978846
        %v1080 = vmul.f32 %v1048, 0.7978846
        %v1081 = vmul.f32 %v1049, 0.7978846
        %v1082 = vmul.f32 %v1050, 0.7978846
        %v1083 = vmul.f32 %v1051, 0.7978846
        %v1084 = vmul.f32 %v1052, 0.7978846
        %v1085 = vmul.f32 %v1053, 0.7978846
        %v1086 = vmul.f32 %v1054, 0.7978846
        %v1087 = vmul.f32 %v1055, 0.7978846
        %v1088 = vmul.f32 %v1056, 0.7978846
        %v1089 = vmul.f32 %v1057, 0.7978846
        %v1090 = vmul.f32 %v1058, 0.7978846
        %v1091 = vmul.f32 %v1059, 0.7978846
        %v1092 = vmul.f32 %v1060, 0.7978846
        %v1093 = vmul.f32 %v1061, 0.7978846
        %v1094 = vmul.f32 %v1062, 0.7978846
        %v1095 = vmul.f32 %v1063, 0.7978846
        %v1096 = vmul.f32 %v1064, 0.7978846
        %v1097 = vtanh.pop %v1065
        %v1098 = vtanh.pop %v1066
        %v1099 = vtanh.pop %v1067
        %v1100 = vtanh.pop %v1068
        %v1101 = vtanh.pop %v1069
        %v1102 = vtanh.pop %v1070
        %v1103 = vtanh.pop %v1071
        %v1104 = vtanh.pop %v1072
        %v1105 = vtanh.pop %v1073
        %v1106 = vtanh.pop %v1074
        %v1107 = vtanh.pop %v1075
        %v1108 = vtanh.pop %v1076
        %v1109 = vtanh.pop %v1077
        %v1110 = vtanh.pop %v1078
        %v1111 = vtanh.pop %v1079
        %v1112 = vtanh.pop %v1080
        %v1113 = vtanh.pop %v1081
        %v1114 = vtanh.pop %v1082
        %v1115 = vtanh.pop %v1083
        %v1116 = vtanh.pop %v1084
        %v1117 = vtanh.pop %v1085
        %v1118 = vtanh.pop %v1086
        %v1119 = vtanh.pop %v1087
        %v1120 = vtanh.pop %v1088
        %v1121 = vtanh.pop %v1089
        %v1122 = vtanh.pop %v1090
        %v1123 = vtanh.pop %v1091
        %v1124 = vtanh.pop %v1092
        %v1125 = vtanh.pop %v1093
        %v1126 = vtanh.pop %v1094
        %v1127 = vtanh.pop %v1095
        %v1128 = vtanh.pop %v1096
        %v1129 = vadd.f32 %v1097, 1.0
        %v1130 = vadd.f32 %v1098, 1.0
        %v1131 = vadd.f32 %v1099, 1.0
        %v1132 = vadd.f32 %v1100, 1.0
        %v1133 = vadd.f32 %v1101, 1.0
        %v1134 = vadd.f32 %v1102, 1.0
        %v1135 = vadd.f32 %v1103, 1.0
        %v1136 = vadd.f32 %v1104, 1.0
        %v1137 = vadd.f32 %v1105, 1.0
        %v1138 = vadd.f32 %v1106, 1.0
        %v1139 = vadd.f32 %v1107, 1.0
        %v1140 = vadd.f32 %v1108, 1.0
        %v1141 = vadd.f32 %v1109, 1.0
        %v1142 = vadd.f32 %v1110, 1.0
        %v1143 = vadd.f32 %v1111, 1.0
        %v1144 = vadd.f32 %v1112, 1.0
        %v1145 = vadd.f32 %v1113, 1.0
        %v1146 = vadd.f32 %v1114, 1.0
        %v1147 = vadd.f32 %v1115, 1.0
        %v1148 = vadd.f32 %v1116, 1.0
        %v1149 = vadd.f32 %v1117, 1.0
        %v1150 = vadd.f32 %v1118, 1.0
        %v1151 = vadd.f32 %v1119, 1.0
        %v1152 = vadd.f32 %v1120, 1.0
        %v1153 = vadd.f32 %v1121, 1.0
        %v1154 = vadd.f32 %v1122, 1.0
        %v1155 = vadd.f32 %v1123, 1.0
        %v1156 = vadd.f32 %v1124, 1.0
        %v1157 = vadd.f32 %v1125, 1.0
        %v1158 = vadd.f32 %v1126, 1.0
        %v1159 = vadd.f32 %v1127, 1.0
        %v1160 = vadd.f32 %v1128, 1.0
        %v1161 = vmul.f32 %v905, %v1129
        %v1162 = vmul.f32 %v906, %v1130
        %v1163 = vmul.f32 %v907, %v1131
        %v1164 = vmul.f32 %v908, %v1132
        %v1165 = vmul.f32 %v909, %v1133
        %v1166 = vmul.f32 %v910, %v1134
        %v1167 = vmul.f32 %v911, %v1135
        %v1168 = vmul.f32 %v912, %v1136
        %v1169 = vmul.f32 %v913, %v1137
        %v1170 = vmul.f32 %v914, %v1138
        %v1171 = vmul.f32 %v915, %v1139
        %v1172 = vmul.f32 %v916, %v1140
        %v1173 = vmul.f32 %v917, %v1141
        %v1174 = vmul.f32 %v918, %v1142
        %v1175 = vmul.f32 %v919, %v1143
        %v1176 = vmul.f32 %v920, %v1144
        %v1177 = vmul.f32 %v921, %v1145
        %v1178 = vmul.f32 %v922, %v1146
        %v1179 = vmul.f32 %v923, %v1147
        %v1180 = vmul.f32 %v924, %v1148
        %v1181 = vmul.f32 %v925, %v1149
        %v1182 = vmul.f32 %v926, %v1150
        %v1183 = vmul.f32 %v927, %v1151
        %v1184 = vmul.f32 %v928, %v1152
        %v1185 = vmul.f32 %v929, %v1153
        %v1186 = vmul.f32 %v930, %v1154
        %v1187 = vmul.f32 %v931, %v1155
        %v1188 = vmul.f32 %v932, %v1156
        %v1189 = vmul.f32 %v933, %v1157
        %v1190 = vmul.f32 %v934, %v1158
        %v1191 = vmul.f32 %v935, %v1159
        %v1192 = vmul.f32 %v936, %v1160
        %v1193 = vld [vmem:[%s7] sm:$0xf]
        %v1194 = vld [vmem:[%s7 + $0x4] sm:$0xf]
        %v1195 = vld [vmem:[%s7 + $0x8] sm:$0xf]
        %v1196 = vld [vmem:[%s7 + $0xc] sm:$0xf]
        %v1197 = vld [vmem:[%s7 + $0x10] sm:$0xf]
        %v1198 = vld [vmem:[%s7 + $0x14] sm:$0xf]
        %v1199 = vld [vmem:[%s7 + $0x18] sm:$0xf]
        %v1200 = vld [vmem:[%s7 + $0x1c] sm:$0xf]
        %v1201 = vld [vmem:[%s7 + $0x20] sm:$0xf]
        %v1202 = vld [vmem:[%s7 + $0x24] sm:$0xf]
        %v1203 = vld [vmem:[%s7 + $0x28] sm:$0xf]
        %v1204 = vld [vmem:[%s7 + $0x2c] sm:$0xf]
        %v1205 = vld [vmem:[%s7 + $0x30] sm:$0xf]
        %v1206 = vld [vmem:[%s7 + $0x34] sm:$0xf]
        %v1207 = vld [vmem:[%s7 + $0x38] sm:$0xf]
        %v1208 = vld [vmem:[%s7 + $0x3c] sm:$0xf]
        %v1209 = vpack.c.bf16 %v1162, %v1161
        %v1210 = vpack.c.bf16 %v1164, %v1163
        %v1211 = vpack.c.bf16 %v1166, %v1165
        %v1212 = vpack.c.bf16 %v1168, %v1167
        %v1213 = vpack.c.bf16 %v1170, %v1169
        %v1214 = vpack.c.bf16 %v1172, %v1171
        %v1215 = vpack.c.bf16 %v1174, %v1173
        %v1216 = vpack.c.bf16 %v1176, %v1175
        %v1217 = vpack.c.bf16 %v1178, %v1177
        %v1218 = vpack.c.bf16 %v1180, %v1179
        %v1219 = vpack.c.bf16 %v1182, %v1181
        %v1220 = vpack.c.bf16 %v1184, %v1183
        %v1221 = vpack.c.bf16 %v1186, %v1185
        %v1222 = vpack.c.bf16 %v1188, %v1187
        %v1223 = vpack.c.bf16 %v1190, %v1189
        %v1224 = vpack.c.bf16 %v1192, %v1191
        %v1225 = vld [vmem:[%s8] sm:$0x1]
        %v1227 = vperm.slane %v1225, 0
        %v1245 = vunpack.c.l.b16 %v1193
        %v1246 = vunpack.c.l.b16 %v1194
        %v1247 = vunpack.c.l.b16 %v1195
        %v1248 = vunpack.c.l.b16 %v1196
        %v1249 = vunpack.c.l.b16 %v1197
        %v1250 = vunpack.c.l.b16 %v1198
        %v1251 = vunpack.c.l.b16 %v1199
        %v1252 = vunpack.c.l.b16 %v1200
        %v1253 = vunpack.c.l.b16 %v1201
        %v1254 = vunpack.c.l.b16 %v1202
        %v1255 = vunpack.c.l.b16 %v1203
        %v1256 = vunpack.c.l.b16 %v1204
        %v1257 = vunpack.c.l.b16 %v1205
        %v1258 = vunpack.c.l.b16 %v1206
        %v1259 = vunpack.c.l.b16 %v1207
        %v1260 = vunpack.c.l.b16 %v1208
        %v1261 = vpack.c.b16 %v1246, %v1245
        %v1262 = vpack.c.b16 %v1248, %v1247
        %v1263 = vpack.c.b16 %v1250, %v1249
        %v1264 = vpack.c.b16 %v1252, %v1251
        %v1265 = vpack.c.b16 %v1254, %v1253
        %v1266 = vpack.c.b16 %v1256, %v1255
        %v1267 = vpack.c.b16 %v1258, %v1257
        %v1268 = vpack.c.b16 %v1260, %v1259
        %1277 = vmatpush.bf16.msra.mxu0 %v1268
        %1278 = vmatpush.bf16.msra.mxu0 %v1267
        %1279 = vmatpush.bf16.msra.mxu0 %v1266
        %1280 = vmatpush.bf16.msra.mxu0 %v1265
        %1281 = vmatpush.bf16.msra.mxu0 %v1264
        %1282 = vmatpush.bf16.msra.mxu0 %v1263
        %1283 = vmatpush.bf16.msra.mxu0 %v1262
        %1284 = vmatpush.bf16.msra.mxu0 %v1261
        %1285 = vmatmul.bf16.gmra.mxu0 %v1209
        %v1286 = vpop.f32.mrf.mxu0
        %v1287 = vadd.f32 %v1227, %v1286
        %v1288 = vpop.f32.mrf.mxu0
        %v1289 = vadd.f32 %v1227, %v1288
        %1290 = vmatmul.bf16.gmra.mxu0 %v1210
        %v1291 = vpop.f32.mrf.mxu0
        %v1292 = vadd.f32 %v1227, %v1291
        %v1293 = vpop.f32.mrf.mxu0
        %v1294 = vadd.f32 %v1227, %v1293
        %1295 = vmatmul.bf16.gmra.mxu0 %v1211
        %v1296 = vpop.f32.mrf.mxu0
        %v1297 = vadd.f32 %v1227, %v1296
        %v1298 = vpop.f32.mrf.mxu0
        %v1299 = vadd.f32 %v1227, %v1298
        %1300 = vmatmul.bf16.gmra.mxu0 %v1212
        %v1301 = vpop.f32.mrf.mxu0
        %v1302 = vadd.f32 %v1227, %v1301
        %v1303 = vpop.f32.mrf.mxu0
        %v1304 = vadd.f32 %v1227, %v1303
        %1305 = vmatmul.bf16.gmra.mxu0 %v1213
        %v1306 = vpop.f32.mrf.mxu0
        %v1307 = vadd.f32 %v1227, %v1306
        %v1308 = vpop.f32.mrf.mxu0
        %v1309 = vadd.f32 %v1227, %v1308
        %1310 = vmatmul.bf16.gmra.mxu0 %v1214
        %v1311 = vpop.f32.mrf.mxu0
        %v1312 = vadd.f32 %v1227, %v1311
        %v1313 = vpop.f32.mrf.mxu0
        %v1314 = vadd.f32 %v1227, %v1313
        %1315 = vmatmul.bf16.gmra.mxu0 %v1215
        %v1316 = vpop.f32.mrf.mxu0
        %v1317 = vadd.f32 %v1227, %v1316
        %v1318 = vpop.f32.mrf.mxu0
        %v1319 = vadd.f32 %v1227, %v1318
        %1320 = vmatmul.bf16.gmra.mxu0 %v1216
        %v1321 = vpop.f32.mrf.mxu0
        %v1322 = vadd.f32 %v1227, %v1321
        %v1323 = vpop.f32.mrf.mxu0
        %v1324 = vadd.f32 %v1227, %v1323
        %1325 = vmatmul.bf16.gmra.mxu0 %v1217
        %v1326 = vpop.f32.mrf.mxu0
        %v1327 = vadd.f32 %v1227, %v1326
        %v1328 = vpop.f32.mrf.mxu0
        %v1329 = vadd.f32 %v1227, %v1328
        %1330 = vmatmul.bf16.gmra.mxu0 %v1218
        %v1331 = vpop.f32.mrf.mxu0
        %v1332 = vadd.f32 %v1227, %v1331
        %v1333 = vpop.f32.mrf.mxu0
        %v1334 = vadd.f32 %v1227, %v1333
        %1335 = vmatmul.bf16.gmra.mxu0 %v1219
        %v1336 = vpop.f32.mrf.mxu0
        %v1337 = vadd.f32 %v1227, %v1336
        %v1338 = vpop.f32.mrf.mxu0
        %v1339 = vadd.f32 %v1227, %v1338
        %1340 = vmatmul.bf16.gmra.mxu0 %v1220
        %v1341 = vpop.f32.mrf.mxu0
        %v1342 = vadd.f32 %v1227, %v1341
        %v1343 = vpop.f32.mrf.mxu0
        %v1344 = vadd.f32 %v1227, %v1343
        %1345 = vmatmul.bf16.gmra.mxu0 %v1221
        %v1346 = vpop.f32.mrf.mxu0
        %v1347 = vadd.f32 %v1227, %v1346
        %v1348 = vpop.f32.mrf.mxu0
        %v1349 = vadd.f32 %v1227, %v1348
        %1350 = vmatmul.bf16.gmra.mxu0 %v1222
        %v1351 = vpop.f32.mrf.mxu0
        %v1352 = vadd.f32 %v1227, %v1351
        %v1353 = vpop.f32.mrf.mxu0
        %v1354 = vadd.f32 %v1227, %v1353
        %1355 = vmatmul.bf16.gmra.mxu0 %v1223
        %v1356 = vpop.f32.mrf.mxu0
        %v1357 = vadd.f32 %v1227, %v1356
        %v1358 = vpop.f32.mrf.mxu0
        %v1359 = vadd.f32 %v1227, %v1358
        %1360 = vmatmul.bf16.gmra.mxu0 %v1224
        %v1361 = vpop.f32.mrf.mxu0
        %v1362 = vadd.f32 %v1227, %v1361
        %v1363 = vpop.f32.mrf.mxu0
        %v1364 = vadd.f32 %v1227, %v1363
        %1365 = vdwg.mxu0
        %v1366 = vld [vmem:[%s604] sm:$0xf]
        %v1367 = vld [vmem:[%s604 + $0x4] sm:$0xf]
        %v1368 = vld [vmem:[%s604 + $0x8] sm:$0xf]
        %v1369 = vld [vmem:[%s604 + $0xc] sm:$0xf]
        %v1370 = vld [vmem:[%s604 + $0x10] sm:$0xf]
        %v1371 = vld [vmem:[%s604 + $0x14] sm:$0xf]
        %v1372 = vld [vmem:[%s604 + $0x18] sm:$0xf]
        %v1373 = vld [vmem:[%s604 + $0x1c] sm:$0xf]
        %v1374 = vld [vmem:[%s604 + $0x20] sm:$0xf]
        %v1375 = vld [vmem:[%s604 + $0x24] sm:$0xf]
        %v1376 = vld [vmem:[%s604 + $0x28] sm:$0xf]
        %v1377 = vld [vmem:[%s604 + $0x2c] sm:$0xf]
        %v1378 = vld [vmem:[%s604 + $0x30] sm:$0xf]
        %v1379 = vld [vmem:[%s604 + $0x34] sm:$0xf]
        %v1380 = vld [vmem:[%s604 + $0x38] sm:$0xf]
        %v1381 = vld [vmem:[%s604 + $0x3c] sm:$0xf]
        %v1382 = vld [vmem:[%s604 + $0x40] sm:$0xf]
        %v1383 = vld [vmem:[%s604 + $0x44] sm:$0xf]
        %v1384 = vld [vmem:[%s604 + $0x48] sm:$0xf]
        %v1385 = vld [vmem:[%s604 + $0x4c] sm:$0xf]
        %v1386 = vld [vmem:[%s604 + $0x50] sm:$0xf]
        %v1387 = vld [vmem:[%s604 + $0x54] sm:$0xf]
        %v1388 = vld [vmem:[%s604 + $0x58] sm:$0xf]
        %v1389 = vld [vmem:[%s604 + $0x5c] sm:$0xf]
        %v1390 = vld [vmem:[%s604 + $0x60] sm:$0xf]
        %v1391 = vld [vmem:[%s604 + $0x64] sm:$0xf]
        %v1392 = vld [vmem:[%s604 + $0x68] sm:$0xf]
        %v1393 = vld [vmem:[%s604 + $0x6c] sm:$0xf]
        %v1394 = vld [vmem:[%s604 + $0x70] sm:$0xf]
        %v1395 = vld [vmem:[%s604 + $0x74] sm:$0xf]
        %v1396 = vld [vmem:[%s604 + $0x78] sm:$0xf]
        %v1397 = vld [vmem:[%s604 + $0x7c] sm:$0xf]
        %v1398 = vld [vmem:[%s9] sm:$0xf]
        %v1399 = vld [vmem:[%s9 + $0x4] sm:$0xf]
        %v1400 = vld [vmem:[%s9 + $0x8] sm:$0xf]
        %v1401 = vld [vmem:[%s9 + $0xc] sm:$0xf]
        %v1402 = vld [vmem:[%s9 + $0x10] sm:$0xf]
        %v1403 = vld [vmem:[%s9 + $0x14] sm:$0xf]
        %v1404 = vld [vmem:[%s9 + $0x18] sm:$0xf]
        %v1405 = vld [vmem:[%s9 + $0x1c] sm:$0xf]
        %v1406 = vld [vmem:[%s9 + $0x20] sm:$0xf]
        %v1407 = vld [vmem:[%s9 + $0x24] sm:$0xf]
        %v1408 = vld [vmem:[%s9 + $0x28] sm:$0xf]
        %v1409 = vld [vmem:[%s9 + $0x2c] sm:$0xf]
        %v1410 = vld [vmem:[%s9 + $0x30] sm:$0xf]
        %v1411 = vld [vmem:[%s9 + $0x34] sm:$0xf]
        %v1412 = vld [vmem:[%s9 + $0x38] sm:$0xf]
        %v1413 = vld [vmem:[%s9 + $0x3c] sm:$0xf]
        %v1414 = vld [vmem:[%s614] sm:$0xff]
        %v1415 = vld [vmem:[%s614 + $0x8] sm:$0xff]
        %v1416 = vld [vmem:[%s614 + $0x10] sm:$0xff]
        %v1417 = vld [vmem:[%s614 + $0x18] sm:$0xff]
        %v1418 = vld [vmem:[%s614 + $0x20] sm:$0xff]
        %v1419 = vld [vmem:[%s614 + $0x28] sm:$0xff]
        %v1420 = vld [vmem:[%s614 + $0x30] sm:$0xff]
        %v1421 = vld [vmem:[%s614 + $0x38] sm:$0xff]
        %v1422 = vld [vmem:[%s614 + $0x40] sm:$0xff]
        %v1423 = vld [vmem:[%s614 + $0x48] sm:$0xff]
        %v1424 = vld [vmem:[%s614 + $0x50] sm:$0xff]
        %v1425 = vld [vmem:[%s614 + $0x58] sm:$0xff]
        %v1426 = vld [vmem:[%s614 + $0x60] sm:$0xff]
        %v1427 = vld [vmem:[%s614 + $0x68] sm:$0xff]
        %v1428 = vld [vmem:[%s614 + $0x70] sm:$0xff]
        %v1429 = vld [vmem:[%s614 + $0x78] sm:$0xff]
        %v1430 = vld [vmem:[%s614 + $0x80] sm:$0xff]
        %v1431 = vld [vmem:[%s614 + $0x88] sm:$0xff]
        %v1432 = vld [vmem:[%s614 + $0x90] sm:$0xff]
        %v1433 = vld [vmem:[%s614 + $0x98] sm:$0xff]
        %v1434 = vld [vmem:[%s614 + $0xa0] sm:$0xff]
        %v1435 = vld [vmem:[%s614 + $0xa8] sm:$0xff]
        %v1436 = vld [vmem:[%s614 + $0xb0] sm:$0xff]
        %v1437 = vld [vmem:[%s614 + $0xb8] sm:$0xff]
        %v1438 = vld [vmem:[%s614 + $0xc0] sm:$0xff]
        %v1439 = vld [vmem:[%s614 + $0xc8] sm:$0xff]
        %v1440 = vld [vmem:[%s614 + $0xd0] sm:$0xff]
        %v1441 = vld [vmem:[%s614 + $0xd8] sm:$0xff]
        %v1442 = vld [vmem:[%s614 + $0xe0] sm:$0xff]
        %v1443 = vld [vmem:[%s614 + $0xe8] sm:$0xff]
        %v1444 = vld [vmem:[%s614 + $0xf0] sm:$0xff]
        %v1445 = vld [vmem:[%s614 + $0xf8] sm:$0xff]
        %v1446 = vld [vmem:[%s10] sm:$0x3]
        %v1447 = vpack.c.bf16 %v1415, %v1414
        %v1448 = vpack.c.bf16 %v1417, %v1416
        %v1449 = vpack.c.bf16 %v1419, %v1418
        %v1450 = vpack.c.bf16 %v1421, %v1420
        %v1451 = vpack.c.bf16 %v1423, %v1422
        %v1452 = vpack.c.bf16 %v1425, %v1424
        %v1453 = vpack.c.bf16 %v1427, %v1426
        %v1454 = vpack.c.bf16 %v1429, %v1428
        %v1455 = vpack.c.bf16 %v1431, %v1430
        %v1456 = vpack.c.bf16 %v1433, %v1432
        %v1457 = vpack.c.bf16 %v1435, %v1434
        %v1458 = vpack.c.bf16 %v1437, %v1436
        %v1459 = vpack.c.bf16 %v1439, %v1438
        %v1460 = vpack.c.bf16 %v1441, %v1440
        %v1461 = vpack.c.bf16 %v1443, %v1442
        %v1462 = vpack.c.bf16 %v1445, %v1444
        %vm1463 = vcmask 31744
        %v1465 = vsel %vm1463, %v1447, 0
        %v1468 = vsel %vm1463, %v1448, 0
        %v1471 = vsel %vm1463, %v1449, 0
        %v1474 = vsel %vm1463, %v1450, 0
        %v1477 = vsel %vm1463, %v1451, 0
        %v1480 = vsel %vm1463, %v1452, 0
        %v1483 = vsel %vm1463, %v1453, 0
        %v1486 = vsel %vm1463, %v1454, 0
        %v1489 = vsel %vm1463, %v1455, 0
        %v1492 = vsel %vm1463, %v1456, 0
        %v1495 = vsel %vm1463, %v1457, 0
        %v1498 = vsel %vm1463, %v1458, 0
        %v1501 = vsel %vm1463, %v1459, 0
        %v1504 = vsel %vm1463, %v1460, 0
        %v1507 = vsel %vm1463, %v1461, 0
        %v1510 = vsel %vm1463, %v1462, 0
        %vm1512 = vcmask 1041408
        %v1514 = vsel %vm1512, %v1446, 0
        %1516 = vmatpush.bf16.msra.mxu0 0
        %1517 = vmatpush.bf16.msra.mxu0 0
        %1518 = vmatpush.bf16.msra.mxu0 0
        %1519 = vmatpush.bf16.msra.mxu0 0
        %1520 = vmatpush.bf16.msra.mxu0 0
        %1521 = vmatpush.bf16.msra.mxu0 0
        %1522 = vmatpush.bf16.msra.mxu0 0
        %1523 = vmatpush.bf16.msra.mxu0 %v1514
        %1524 = vmatmul.bf16.gmra.mxu0 %v1465
        %v1525 = vpop.f32.mrf.mxu0
        %v1526 = vadd.f32 0.0, %v1525
        %v1527 = vpop.f32.mrf.mxu0
        %v1528 = vadd.f32 0.0, %v1527
        %1529 = vmatmul.bf16.gmra.mxu0 %v1468
        %v1530 = vpop.f32.mrf.mxu0
        %v1531 = vadd.f32 0.0, %v1530
        %v1532 = vpop.f32.mrf.mxu0
        %v1533 = vadd.f32 0.0, %v1532
        %1534 = vmatmul.bf16.gmra.mxu0 %v1471
        %v1535 = vpop.f32.mrf.mxu0
        %v1536 = vadd.f32 0.0, %v1535
        %v1537 = vpop.f32.mrf.mxu0
        %v1538 = vadd.f32 0.0, %v1537
        %1539 = vmatmul.bf16.gmra.mxu0 %v1474
        %v1540 = vpop.f32.mrf.mxu0
        %v1541 = vadd.f32 0.0, %v1540
        %v1542 = vpop.f32.mrf.mxu0
        %v1543 = vadd.f32 0.0, %v1542
        %1544 = vmatmul.bf16.gmra.mxu0 %v1477
        %v1545 = vpop.f32.mrf.mxu0
        %v1546 = vadd.f32 0.0, %v1545
        %v1547 = vpop.f32.mrf.mxu0
        %v1548 = vadd.f32 0.0, %v1547
        %1549 = vmatmul.bf16.gmra.mxu0 %v1480
        %v1550 = vpop.f32.mrf.mxu0
        %v1551 = vadd.f32 0.0, %v1550
        %v1552 = vpop.f32.mrf.mxu0
        %v1553 = vadd.f32 0.0, %v1552
        %1554 = vmatmul.bf16.gmra.mxu0 %v1483
        %v1555 = vpop.f32.mrf.mxu0
        %v1556 = vadd.f32 0.0, %v1555
        %v1557 = vpop.f32.mrf.mxu0
        %v1558 = vadd.f32 0.0, %v1557
        %1559 = vmatmul.bf16.gmra.mxu0 %v1486
        %v1560 = vpop.f32.mrf.mxu0
        %v1561 = vadd.f32 0.0, %v1560
        %v1562 = vpop.f32.mrf.mxu0
        %v1563 = vadd.f32 0.0, %v1562
        %1564 = vmatmul.bf16.gmra.mxu0 %v1489
        %v1565 = vpop.f32.mrf.mxu0
        %v1566 = vadd.f32 0.0, %v1565
        %v1567 = vpop.f32.mrf.mxu0
        %v1568 = vadd.f32 0.0, %v1567
        %1569 = vmatmul.bf16.gmra.mxu0 %v1492
        %v1570 = vpop.f32.mrf.mxu0
        %v1571 = vadd.f32 0.0, %v1570
        %v1572 = vpop.f32.mrf.mxu0
        %v1573 = vadd.f32 0.0, %v1572
        %1574 = vmatmul.bf16.gmra.mxu0 %v1495
        %v1575 = vpop.f32.mrf.mxu0
        %v1576 = vadd.f32 0.0, %v1575
        %v1577 = vpop.f32.mrf.mxu0
        %v1578 = vadd.f32 0.0, %v1577
        %1579 = vmatmul.bf16.gmra.mxu0 %v1498
        %v1580 = vpop.f32.mrf.mxu0
        %v1581 = vadd.f32 0.0, %v1580
        %v1582 = vpop.f32.mrf.mxu0
        %v1583 = vadd.f32 0.0, %v1582
        %1584 = vmatmul.bf16.gmra.mxu0 %v1501
        %v1585 = vpop.f32.mrf.mxu0
        %v1586 = vadd.f32 0.0, %v1585
        %v1587 = vpop.f32.mrf.mxu0
        %v1588 = vadd.f32 0.0, %v1587
        %1589 = vmatmul.bf16.gmra.mxu0 %v1504
        %v1590 = vpop.f32.mrf.mxu0
        %v1591 = vadd.f32 0.0, %v1590
        %v1592 = vpop.f32.mrf.mxu0
        %v1593 = vadd.f32 0.0, %v1592
        %1594 = vmatmul.bf16.gmra.mxu0 %v1507
        %v1595 = vpop.f32.mrf.mxu0
        %v1596 = vadd.f32 0.0, %v1595
        %v1597 = vpop.f32.mrf.mxu0
        %v1598 = vadd.f32 0.0, %v1597
        %1599 = vmatmul.bf16.gmra.mxu0 %v1510
        %v1600 = vpop.f32.mrf.mxu0
        %v1601 = vadd.f32 0.0, %v1600
        %v1602 = vpop.f32.mrf.mxu0
        %v1603 = vadd.f32 0.0, %v1602
        %1604 = vdwg.mxu0
        %v1637 = vunpack.c.l.b16 %v1366
        %v1638 = vunpack.c.l.b16 %v1367
        %v1639 = vunpack.c.l.b16 %v1368
        %v1640 = vunpack.c.l.b16 %v1369
        %v1641 = vunpack.c.l.b16 %v1370
        %v1642 = vunpack.c.l.b16 %v1371
        %v1643 = vunpack.c.l.b16 %v1372
        %v1644 = vunpack.c.l.b16 %v1373
        %v1645 = vunpack.c.l.b16 %v1374
        %v1646 = vunpack.c.l.b16 %v1375
        %v1647 = vunpack.c.l.b16 %v1376
        %v1648 = vunpack.c.l.b16 %v1377
        %v1649 = vunpack.c.l.b16 %v1378
        %v1650 = vunpack.c.l.b16 %v1379
        %v1651 = vunpack.c.l.b16 %v1380
        %v1652 = vunpack.c.l.b16 %v1381
        %v1653 = vunpack.c.l.b16 %v1382
        %v1654 = vunpack.c.l.b16 %v1383
        %v1655 = vunpack.c.l.b16 %v1384
        %v1656 = vunpack.c.l.b16 %v1385
        %v1657 = vunpack.c.l.b16 %v1386
        %v1658 = vunpack.c.l.b16 %v1387
        %v1659 = vunpack.c.l.b16 %v1388
        %v1660 = vunpack.c.l.b16 %v1389
        %v1661 = vunpack.c.l.b16 %v1390
        %v1662 = vunpack.c.l.b16 %v1391
        %v1663 = vunpack.c.l.b16 %v1392
        %v1664 = vunpack.c.l.b16 %v1393
        %v1665 = vunpack.c.l.b16 %v1394
        %v1666 = vunpack.c.l.b16 %v1395
        %v1667 = vunpack.c.l.b16 %v1396
        %v1668 = vunpack.c.l.b16 %v1397
        %v1669 = vpack.c.b16 %v1638, %v1637
        %v1670 = vpack.c.b16 %v1640, %v1639
        %v1671 = vpack.c.b16 %v1642, %v1641
        %v1672 = vpack.c.b16 %v1644, %v1643
        %v1673 = vpack.c.b16 %v1646, %v1645
        %v1674 = vpack.c.b16 %v1648, %v1647
        %v1675 = vpack.c.b16 %v1650, %v1649
        %v1676 = vpack.c.b16 %v1652, %v1651
        %v1677 = vpack.c.b16 %v1654, %v1653
        %v1678 = vpack.c.b16 %v1656, %v1655
        %v1679 = vpack.c.b16 %v1658, %v1657
        %v1680 = vpack.c.b16 %v1660, %v1659
        %v1681 = vpack.c.b16 %v1662, %v1661
        %v1682 = vpack.c.b16 %v1664, %v1663
        %v1683 = vpack.c.b16 %v1666, %v1665
        %v1684 = vpack.c.b16 %v1668, %v1667
        %v1717 = vunpack.c.l.b16 %v1398
        %v1718 = vunpack.c.l.b16 %v1399
        %v1719 = vunpack.c.l.b16 %v1400
        %v1720 = vunpack.c.l.b16 %v1401
        %v1721 = vunpack.c.l.b16 %v1402
        %v1722 = vunpack.c.l.b16 %v1403
        %v1723 = vunpack.c.l.b16 %v1404
        %v1724 = vunpack.c.l.b16 %v1405
        %v1725 = vunpack.c.l.b16 %v1406
        %v1726 = vunpack.c.l.b16 %v1407
        %v1727 = vunpack.c.l.b16 %v1408
        %v1728 = vunpack.c.l.b16 %v1409
        %v1729 = vunpack.c.l.b16 %v1410
        %v1730 = vunpack.c.l.b16 %v1411
        %v1731 = vunpack.c.l.b16 %v1412
        %v1732 = vunpack.c.l.b16 %v1413
        %v1733 = vpack.c.b16 %v1718, %v1717
        %v1734 = vpack.c.b16 %v1720, %v1719
        %v1735 = vpack.c.b16 %v1722, %v1721
        %v1736 = vpack.c.b16 %v1724, %v1723
        %v1737 = vpack.c.b16 %v1726, %v1725
        %v1738 = vpack.c.b16 %v1728, %v1727
        %v1739 = vpack.c.b16 %v1730, %v1729
        %v1740 = vpack.c.b16 %v1732, %v1731
        %1749 = vmatpush.bf16.msra.mxu0 %v1740
        %1750 = vmatpush.bf16.msra.mxu0 %v1739
        %1751 = vmatpush.bf16.msra.mxu0 %v1738
        %1752 = vmatpush.bf16.msra.mxu0 %v1737
        %1753 = vmatpush.bf16.msra.mxu0 %v1736
        %1754 = vmatpush.bf16.msra.mxu0 %v1735
        %1755 = vmatpush.bf16.msra.mxu0 %v1734
        %1756 = vmatpush.bf16.msra.mxu0 %v1733
        %1757 = vmatmul.bf16.gmra.mxu0 %v1669
        %v1758 = vpop.f32.mrf.mxu0
        %v1759 = vadd.f32 %v1526, %v1758
        %v1760 = vpop.f32.mrf.mxu0
        %v1761 = vadd.f32 %v1528, %v1760
        %1762 = vmatmul.bf16.gmra.mxu0 %v1670
        %v1763 = vpop.f32.mrf.mxu0
        %v1764 = vadd.f32 %v1531, %v1763
        %v1765 = vpop.f32.mrf.mxu0
        %v1766 = vadd.f32 %v1533, %v1765
        %1767 = vmatmul.bf16.gmra.mxu0 %v1671
        %v1768 = vpop.f32.mrf.mxu0
        %v1769 = vadd.f32 %v1536, %v1768
        %v1770 = vpop.f32.mrf.mxu0
        %v1771 = vadd.f32 %v1538, %v1770
        %1772 = vmatmul.bf16.gmra.mxu0 %v1672
        %v1773 = vpop.f32.mrf.mxu0
        %v1774 = vadd.f32 %v1541, %v1773
        %v1775 = vpop.f32.mrf.mxu0
        %v1776 = vadd.f32 %v1543, %v1775
        %1777 = vmatmul.bf16.gmra.mxu0 %v1673
        %v1778 = vpop.f32.mrf.mxu0
        %v1779 = vadd.f32 %v1546, %v1778
        %v1780 = vpop.f32.mrf.mxu0
        %v1781 = vadd.f32 %v1548, %v1780
        %1782 = vmatmul.bf16.gmra.mxu0 %v1674
        %v1783 = vpop.f32.mrf.mxu0
        %v1784 = vadd.f32 %v1551, %v1783
        %v1785 = vpop.f32.mrf.mxu0
        %v1786 = vadd.f32 %v1553, %v1785
        %1787 = vmatmul.bf16.gmra.mxu0 %v1675
        %v1788 = vpop.f32.mrf.mxu0
        %v1789 = vadd.f32 %v1556, %v1788
        %v1790 = vpop.f32.mrf.mxu0
        %v1791 = vadd.f32 %v1558, %v1790
        %1792 = vmatmul.bf16.gmra.mxu0 %v1676
        %v1793 = vpop.f32.mrf.mxu0
        %v1794 = vadd.f32 %v1561, %v1793
        %v1795 = vpop.f32.mrf.mxu0
        %v1796 = vadd.f32 %v1563, %v1795
        %1797 = vmatmul.bf16.gmra.mxu0 %v1677
        %v1798 = vpop.f32.mrf.mxu0
        %v1799 = vadd.f32 %v1566, %v1798
        %v1800 = vpop.f32.mrf.mxu0
        %v1801 = vadd.f32 %v1568, %v1800
        %1802 = vmatmul.bf16.gmra.mxu0 %v1678
        %v1803 = vpop.f32.mrf.mxu0
        %v1804 = vadd.f32 %v1571, %v1803
        %v1805 = vpop.f32.mrf.mxu0
        %v1806 = vadd.f32 %v1573, %v1805
        %1807 = vmatmul.bf16.gmra.mxu0 %v1679
        %v1808 = vpop.f32.mrf.mxu0
        %v1809 = vadd.f32 %v1576, %v1808
        %v1810 = vpop.f32.mrf.mxu0
        %v1811 = vadd.f32 %v1578, %v1810
        %1812 = vmatmul.bf16.gmra.mxu0 %v1680
        %v1813 = vpop.f32.mrf.mxu0
        %v1814 = vadd.f32 %v1581, %v1813
        %v1815 = vpop.f32.mrf.mxu0
        %v1816 = vadd.f32 %v1583, %v1815
        %1817 = vmatmul.bf16.gmra.mxu0 %v1681
        %v1818 = vpop.f32.mrf.mxu0
        %v1819 = vadd.f32 %v1586, %v1818
        %v1820 = vpop.f32.mrf.mxu0
        %v1821 = vadd.f32 %v1588, %v1820
        %1822 = vmatmul.bf16.gmra.mxu0 %v1682
        %v1823 = vpop.f32.mrf.mxu0
        %v1824 = vadd.f32 %v1591, %v1823
        %v1825 = vpop.f32.mrf.mxu0
        %v1826 = vadd.f32 %v1593, %v1825
        %1827 = vmatmul.bf16.gmra.mxu0 %v1683
        %v1828 = vpop.f32.mrf.mxu0
        %v1829 = vadd.f32 %v1596, %v1828
        %v1830 = vpop.f32.mrf.mxu0
        %v1831 = vadd.f32 %v1598, %v1830
        %1832 = vmatmul.bf16.gmra.mxu0 %v1684
        %v1833 = vpop.f32.mrf.mxu0
        %v1834 = vadd.f32 %v1601, %v1833
        %v1835 = vpop.f32.mrf.mxu0
        %v1836 = vadd.f32 %v1603, %v1835
        %1837 = vdwg.mxu0
        %v1838 = vld [vmem:[%s11] sm:$0x1]
        %v1840 = vperm.slane %v1838, 0
        %v1842 = vadd.f32 %v1759, %v1840
        %v1843 = vadd.f32 %v1761, %v1840
        %v1844 = vadd.f32 %v1764, %v1840
        %v1845 = vadd.f32 %v1766, %v1840
        %v1846 = vadd.f32 %v1769, %v1840
        %v1847 = vadd.f32 %v1771, %v1840
        %v1848 = vadd.f32 %v1774, %v1840
        %v1849 = vadd.f32 %v1776, %v1840
        %v1850 = vadd.f32 %v1779, %v1840
        %v1851 = vadd.f32 %v1781, %v1840
        %v1852 = vadd.f32 %v1784, %v1840
        %v1853 = vadd.f32 %v1786, %v1840
        %v1854 = vadd.f32 %v1789, %v1840
        %v1855 = vadd.f32 %v1791, %v1840
        %v1856 = vadd.f32 %v1794, %v1840
        %v1857 = vadd.f32 %v1796, %v1840
        %v1858 = vadd.f32 %v1799, %v1840
        %v1859 = vadd.f32 %v1801, %v1840
        %v1860 = vadd.f32 %v1804, %v1840
        %v1861 = vadd.f32 %v1806, %v1840
        %v1862 = vadd.f32 %v1809, %v1840
        %v1863 = vadd.f32 %v1811, %v1840
        %v1864 = vadd.f32 %v1814, %v1840
        %v1865 = vadd.f32 %v1816, %v1840
        %v1866 = vadd.f32 %v1819, %v1840
        %v1867 = vadd.f32 %v1821, %v1840
        %v1868 = vadd.f32 %v1824, %v1840
        %v1869 = vadd.f32 %v1826, %v1840
        %v1870 = vadd.f32 %v1829, %v1840
        %v1871 = vadd.f32 %v1831, %v1840
        %v1872 = vadd.f32 %v1834, %v1840
        %v1873 = vadd.f32 %v1836, %v1840
        %v1874 = vadd.f32 %v1287, %v1842
        %v1875 = vadd.f32 %v1289, %v1843
        %v1876 = vadd.f32 %v1292, %v1844
        %v1877 = vadd.f32 %v1294, %v1845
        %v1878 = vadd.f32 %v1297, %v1846
        %v1879 = vadd.f32 %v1299, %v1847
        %v1880 = vadd.f32 %v1302, %v1848
        %v1881 = vadd.f32 %v1304, %v1849
        %v1882 = vadd.f32 %v1307, %v1850
        %v1883 = vadd.f32 %v1309, %v1851
        %v1884 = vadd.f32 %v1312, %v1852
        %v1885 = vadd.f32 %v1314, %v1853
        %v1886 = vadd.f32 %v1317, %v1854
        %v1887 = vadd.f32 %v1319, %v1855
        %v1888 = vadd.f32 %v1322, %v1856
        %v1889 = vadd.f32 %v1324, %v1857
        %v1890 = vadd.f32 %v1327, %v1858
        %v1891 = vadd.f32 %v1329, %v1859
        %v1892 = vadd.f32 %v1332, %v1860
        %v1893 = vadd.f32 %v1334, %v1861
        %v1894 = vadd.f32 %v1337, %v1862
        %v1895 = vadd.f32 %v1339, %v1863
        %v1896 = vadd.f32 %v1342, %v1864
        %v1897 = vadd.f32 %v1344, %v1865
        %v1898 = vadd.f32 %v1347, %v1866
        %v1899 = vadd.f32 %v1349, %v1867
        %v1900 = vadd.f32 %v1352, %v1868
        %v1901 = vadd.f32 %v1354, %v1869
        %v1902 = vadd.f32 %v1357, %v1870
        %v1903 = vadd.f32 %v1359, %v1871
        %v1904 = vadd.f32 %v1362, %v1872
        %v1905 = vadd.f32 %v1364, %v1873
        %v1906 = vpack.c.bf16 %v1874, %v1874
        %v1907 = vpack.c.bf16 %v1875, %v1875
        %v1908 = vpack.c.bf16 %v1876, %v1876
        %v1909 = vpack.c.bf16 %v1877, %v1877
        %v1910 = vpack.c.bf16 %v1878, %v1878
        %v1911 = vpack.c.bf16 %v1879, %v1879
        %v1912 = vpack.c.bf16 %v1880, %v1880
        %v1913 = vpack.c.bf16 %v1881, %v1881
        %v1914 = vpack.c.bf16 %v1882, %v1882
        %v1915 = vpack.c.bf16 %v1883, %v1883
        %v1916 = vpack.c.bf16 %v1884, %v1884
        %v1917 = vpack.c.bf16 %v1885, %v1885
        %v1918 = vpack.c.bf16 %v1886, %v1886
        %v1919 = vpack.c.bf16 %v1887, %v1887
        %v1920 = vpack.c.bf16 %v1888, %v1888
        %v1921 = vpack.c.bf16 %v1889, %v1889
        %v1922 = vpack.c.bf16 %v1890, %v1890
        %v1923 = vpack.c.bf16 %v1891, %v1891
        %v1924 = vpack.c.bf16 %v1892, %v1892
        %v1925 = vpack.c.bf16 %v1893, %v1893
        %v1926 = vpack.c.bf16 %v1894, %v1894
        %v1927 = vpack.c.bf16 %v1895, %v1895
        %v1928 = vpack.c.bf16 %v1896, %v1896
        %v1929 = vpack.c.bf16 %v1897, %v1897
        %v1930 = vpack.c.bf16 %v1898, %v1898
        %v1931 = vpack.c.bf16 %v1899, %v1899
        %v1932 = vpack.c.bf16 %v1900, %v1900
        %v1933 = vpack.c.bf16 %v1901, %v1901
        %v1934 = vpack.c.bf16 %v1902, %v1902
        %v1935 = vpack.c.bf16 %v1903, %v1903
        %v1936 = vpack.c.bf16 %v1904, %v1904
        %v1937 = vpack.c.bf16 %v1905, %v1905
        %1938 = vst [vmem:[%s624] sm:$0xf] %v1906
        %1939 = vst [vmem:[%s624 + $0x4] sm:$0xf] %v1907
        %1940 = vst [vmem:[%s624 + $0x8] sm:$0xf] %v1908
        %1941 = vst [vmem:[%s624 + $0xc] sm:$0xf] %v1909
        %1942 = vst [vmem:[%s624 + $0x10] sm:$0xf] %v1910
        %1943 = vst [vmem:[%s624 + $0x14] sm:$0xf] %v1911
        %1944 = vst [vmem:[%s624 + $0x18] sm:$0xf] %v1912
        %1945 = vst [vmem:[%s624 + $0x1c] sm:$0xf] %v1913
        %1946 = vst [vmem:[%s624 + $0x20] sm:$0xf] %v1914
        %1947 = vst [vmem:[%s624 + $0x24] sm:$0xf] %v1915
        %1948 = vst [vmem:[%s624 + $0x28] sm:$0xf] %v1916
        %1949 = vst [vmem:[%s624 + $0x2c] sm:$0xf] %v1917
        %1950 = vst [vmem:[%s624 + $0x30] sm:$0xf] %v1918
        %1951 = vst [vmem:[%s624 + $0x34] sm:$0xf] %v1919
        %1952 = vst [vmem:[%s624 + $0x38] sm:$0xf] %v1920
        %1953 = vst [vmem:[%s624 + $0x3c] sm:$0xf] %v1921
        %1954 = vst [vmem:[%s624 + $0x40] sm:$0xf] %v1922
        %1955 = vst [vmem:[%s624 + $0x44] sm:$0xf] %v1923
        %1956 = vst [vmem:[%s624 + $0x48] sm:$0xf] %v1924
        %1957 = vst [vmem:[%s624 + $0x4c] sm:$0xf] %v1925
        %1958 = vst [vmem:[%s624 + $0x50] sm:$0xf] %v1926
        %1959 = vst [vmem:[%s624 + $0x54] sm:$0xf] %v1927
        %1960 = vst [vmem:[%s624 + $0x58] sm:$0xf] %v1928
        %1961 = vst [vmem:[%s624 + $0x5c] sm:$0xf] %v1929
        %1962 = vst [vmem:[%s624 + $0x60] sm:$0xf] %v1930
        %1963 = vst [vmem:[%s624 + $0x64] sm:$0xf] %v1931
        %1964 = vst [vmem:[%s624 + $0x68] sm:$0xf] %v1932
        %1965 = vst [vmem:[%s624 + $0x6c] sm:$0xf] %v1933
        %1966 = vst [vmem:[%s624 + $0x70] sm:$0xf] %v1934
        %1967 = vst [vmem:[%s624 + $0x74] sm:$0xf] %v1935
        %1968 = vst [vmem:[%s624 + $0x78] sm:$0xf] %v1936
        %1969 = vst [vmem:[%s624 + $0x7c] sm:$0xf] %v1937
        %p1970 = scmp.eq.s32.totalorder %s37, 0
        // Predicated region
        $region69: #{_lambda_.18} parent=67 // pred_check
          %p1971 = pneg %p1970
        $region70: #{_lambda_.18} parent=67 // pred_check_branch
          %1973 = sbr.rel (%p1971) target = $region72
        $region71: #{_lambda_.18} parent=67 // pred_region
          %1974 = vst [vmem:[%s573] sm:$0x1] 0.0
          %1975 = vst [vmem:[%s579] sm:$0x1] 0.0
        $region72: #{_lambda_.18} parent=67 // pred_fallthru
          _
        %v1976 = vld [vmem:[%s573] sm:$0x1]
        %v1977 = vadd.f32 %v1874, %v1875
        %v1978 = vadd.f32 %v1977, %v1876
        %v1979 = vadd.f32 %v1978, %v1877
        %v1980 = vadd.f32 %v1979, %v1878
        %v1981 = vadd.f32 %v1980, %v1879
        %v1982 = vadd.f32 %v1981, %v1880
        %v1983 = vadd.f32 %v1982, %v1881
        %v1984 = vadd.f32 %v1983, %v1882
        %v1985 = vadd.f32 %v1984, %v1883
        %v1986 = vadd.f32 %v1985, %v1884
        %v1987 = vadd.f32 %v1986, %v1885
        %v1988 = vadd.f32 %v1987, %v1886
        %v1989 = vadd.f32 %v1988, %v1887
        %v1990 = vadd.f32 %v1989, %v1888
        %v1991 = vadd.f32 %v1990, %v1889
        %v1992 = vadd.f32 %v1991, %v1890
        %v1993 = vadd.f32 %v1992, %v1891
        %v1994 = vadd.f32 %v1993, %v1892
        %v1995 = vadd.f32 %v1994, %v1893
        %v1996 = vadd.f32 %v1995, %v1894
        %v1997 = vadd.f32 %v1996, %v1895
        %v1998 = vadd.f32 %v1997, %v1896
        %v1999 = vadd.f32 %v1998, %v1897
        %v2000 = vadd.f32 %v1999, %v1898
        %v2001 = vadd.f32 %v2000, %v1899
        %v2002 = vadd.f32 %v2001, %v1900
        %v2003 = vadd.f32 %v2002, %v1901
        %v2004 = vadd.f32 %v2003, %v1902
        %v2005 = vadd.f32 %v2004, %v1903
        %v2006 = vadd.f32 %v2005, %v1904
        %v2007 = vadd.f32 %v2006, %v1905
        %v2008 = vrot.slane %v2007, 4
        %v2009 = vadd.f32 %v2007, %v2008
        %v2010 = vrot.slane %v2009, 2
        %v2011 = vadd.f32 %v2009, %v2010
        %v2012 = vrot.slane %v2011, 1
        %v2013 = vadd.f32 %v2011, %v2012
        %v2014 = vadd.f32 %v1976, %v2013
        %2015 = vst [vmem:[%s573] sm:$0x1] %v2014
        %v2016 = vld [vmem:[%s579] sm:$0x1]
        %v2017 = vmul.f32 %v1874, %v1874
        %v2018 = vmul.f32 %v1875, %v1875
        %v2019 = vmul.f32 %v1876, %v1876
        %v2020 = vmul.f32 %v1877, %v1877
        %v2021 = vmul.f32 %v1878, %v1878
        %v2022 = vmul.f32 %v1879, %v1879
        %v2023 = vmul.f32 %v1880, %v1880
        %v2024 = vmul.f32 %v1881, %v1881
        %v2025 = vmul.f32 %v1882, %v1882
        %v2026 = vmul.f32 %v1883, %v1883
        %v2027 = vmul.f32 %v1884, %v1884
        %v2028 = vmul.f32 %v1885, %v1885
        %v2029 = vmul.f32 %v1886, %v1886
        %v2030 = vmul.f32 %v1887, %v1887
        %v2031 = vmul.f32 %v1888, %v1888
        %v2032 = vmul.f32 %v1889, %v1889
        %v2033 = vmul.f32 %v1890, %v1890
        %v2034 = vmul.f32 %v1891, %v1891
        %v2035 = vmul.f32 %v1892, %v1892
        %v2036 = vmul.f32 %v1893, %v1893
        %v2037 = vmul.f32 %v1894, %v1894
        %v2038 = vmul.f32 %v1895, %v1895
        %v2039 = vmul.f32 %v1896, %v1896
        %v2040 = vmul.f32 %v1897, %v1897
        %v2041 = vmul.f32 %v1898, %v1898
        %v2042 = vmul.f32 %v1899, %v1899
        %v2043 = vmul.f32 %v1900, %v1900
        %v2044 = vmul.f32 %v1901, %v1901
        %v2045 = vmul.f32 %v1902, %v1902
        %v2046 = vmul.f32 %v1903, %v1903
        %v2047 = vmul.f32 %v1904, %v1904
        %v2048 = vmul.f32 %v1905, %v1905
        %v2049 = vadd.f32 %v2017, %v2018
        %v2050 = vadd.f32 %v2049, %v2019
        %v2051 = vadd.f32 %v2050, %v2020
        %v2052 = vadd.f32 %v2051, %v2021
        %v2053 = vadd.f32 %v2052, %v2022
        %v2054 = vadd.f32 %v2053, %v2023
        %v2055 = vadd.f32 %v2054, %v2024
        %v2056 = vadd.f32 %v2055, %v2025
        %v2057 = vadd.f32 %v2056, %v2026
        %v2058 = vadd.f32 %v2057, %v2027
        %v2059 = vadd.f32 %v2058, %v2028
        %v2060 = vadd.f32 %v2059, %v2029
        %v2061 = vadd.f32 %v2060, %v2030
        %v2062 = vadd.f32 %v2061, %v2031
        %v2063 = vadd.f32 %v2062, %v2032
        %v2064 = vadd.f32 %v2063, %v2033
        %v2065 = vadd.f32 %v2064, %v2034
        %v2066 = vadd.f32 %v2065, %v2035
        %v2067 = vadd.f32 %v2066, %v2036
        %v2068 = vadd.f32 %v2067, %v2037
        %v2069 = vadd.f32 %v2068, %v2038
        %v2070 = vadd.f32 %v2069, %v2039
        %v2071 = vadd.f32 %v2070, %v2040
        %v2072 = vadd.f32 %v2071, %v2041
        %v2073 = vadd.f32 %v2072, %v2042
        %v2074 = vadd.f32 %v2073, %v2043
        %v2075 = vadd.f32 %v2074, %v2044
        %v2076 = vadd.f32 %v2075, %v2045
        %v2077 = vadd.f32 %v2076, %v2046
        %v2078 = vadd.f32 %v2077, %v2047
        %v2079 = vadd.f32 %v2078, %v2048
        %v2080 = vrot.slane %v2079, 4
        %v2081 = vadd.f32 %v2079, %v2080
        %v2082 = vrot.slane %v2081, 2
        %v2083 = vadd.f32 %v2081, %v2082
        %v2084 = vrot.slane %v2083, 1
        %v2085 = vadd.f32 %v2083, %v2084
        %v2086 = vadd.f32 %v2016, %v2085
        %2087 = vst [vmem:[%s579] sm:$0x1] %v2086
        // Predicated region
        $region73: #{_lambda_.18} parent=67 // pred_check
          %p2088 = pneg %p1970
        $region74: #{_lambda_.18} parent=67 // pred_check_branch
          %2090 = sbr.rel (%p2088) target = $region76
        $region75: #{_lambda_.18} parent=67 // pred_region
          %v2091 = vld [vmem:[%s573] sm:$0x1]
          %v2092 = vmul.f32 %v2091, 0.00390625
          %v2093 = vld [vmem:[%s579] sm:$0x1]
          %v2094 = vmul.f32 %v2093, 0.00390625
          %v2095 = vmul.f32 %v2092, %v2092
          %v2096 = vsub.f32 %v2094, %v2095
          %2097 = vst [vmem:[%s573] sm:$0x1] %v2092
          %v2098 = vmax.f32 %v2096, 0.0
          %v2099 = vadd.f32 %v2098, 1e-05
          %v2100 = vrsqrt.pop %v2099
          %v2101 = vmul.f32 %v2100, %v2099
          %v2102 = vmul.f32 %v2101, %v2100
          %v2103 = vmul.f32 0.5, %v2102
          %v2104 = vsub.f32 1.5, %v2103
          %v2105 = vmul.f32 %v2100, %v2104
          %vm2106 = vweird.f32 %v2099
          %vm2107 = vweird.f32 %v2100
          %vm2108 = vmor %vm2106, %vm2107
          %v2109 = vsel %vm2108, %v2100, %v2105
          %2110 = vst [vmem:[%s579] sm:$0x1] %v2109
        $region76: #{_lambda_.18} parent=67 // pred_fallthru
          _
        %s2111 = smul.u32 32, %s37
        %p2112 = scmp.lt.s32.totalorder %s36, 1
        %s2113 = scalar_select %p2112, %s36, 1
        %p2114 = scmp.lt.s32.totalorder %s2111, 31
        %s2115 = scalar_select %p2114, %s2111, 31
        %s2116 = smul.addr %s2113, 32
        %s2117 = sadd.s32 %s2115, %s2116
        %s2118 = smul.addr %s2117, 4
        %s2119 = scalar_lea.vmem %s12, %s2118
        %s2120 = sand.u32 %s363, 1
        %s2121 = scalar_lea.sflag [#allocation3], %s2120
        %s2122 = sand.u32 %s363, 1
        %s2123 = scalar_lea.vmem [#allocation2], %s2122
        %s2124 = sand.u32 %s389, 1
        %s2125 = scalar_lea.sflag [#allocation5], %s2124
        %s2126 = sand.u32 %s389, 1
        %s2127 = scalar_lea.vmem [#allocation4], %s2126
        // Predicated region
        $region77: #{_lambda_.18} parent=67 // pred_check
          %p2128 = pneg %p347
        $region78: #{_lambda_.18} parent=67 // pred_check_branch
          %2130 = sbr.rel (%p2128) target = $region80
        $region79: #{_lambda_.18} parent=67 // pred_region
          %s2131 = smul.u32 32, %s37
        $region80: #{_lambda_.18} parent=67 // pred_fallthru
          _
        // Predicated region
        $region81: #{_lambda_.18} parent=67 // pred_check
          %p2132 = pneg %p373
        $region82: #{_lambda_.18} parent=67 // pred_check_branch
          %2134 = sbr.rel (%p2132) target = $region84
        $region83: #{_lambda_.18} parent=67 // pred_region
          %2136 = vsyncadd %s2121, 0
          %s2137 = scalar_lea.hbm %s13, %s36
          %s2139 = sshll.u32 %s2123, 4
          %s2140 = int_to_ptr.vmem [resolvable:$true] %s2139
          %s2141 = sshll.u32 %s2137, 4
          %s2142 = int_to_ptr.hbm [resolvable:$true] %s2141
          %2144 = dma.vmem_to_hbm [thread:$0]  %s2140, 16, %s2142, %s2121
        $region84: #{_lambda_.18} parent=67 // pred_fallthru
          _
        // Predicated region
        $region85: #{_lambda_.18} parent=67 // pred_check
          %p2145 = pneg %p399
        $region86: #{_lambda_.18} parent=67 // pred_check_branch
          %2147 = sbr.rel (%p2145) target = $region88
        $region87: #{_lambda_.18} parent=67 // pred_region
          %2149 = vsyncadd %s2125, 0
          %s2150 = scalar_lea.hbm %s14, %s36
          %s2152 = sshll.u32 %s2127, 4
          %s2153 = int_to_ptr.vmem [resolvable:$true] %s2152
          %s2154 = sshll.u32 %s2150, 4
          %s2155 = int_to_ptr.hbm [resolvable:$true] %s2154
          %2157 = dma.vmem_to_hbm [thread:$0]  %s2153, 16, %s2155, %s2125
        $region88: #{_lambda_.18} parent=67 // pred_fallthru
          _
      $region68: #{_lambda_.18} parent=5 // pred_fallthru
        _
      %p2158 = scmp.le.s32.totalorder 2, %s27
      // Predicated region
      $region89: #{_lambda_.18} parent=5 // pred_check
        %p2159 = pneg %p2158
      $region90: #{_lambda_.18} parent=5 // pred_check_branch
        %2161 = sbr.rel (%p2159) target = $region92
      $region91: #{_lambda_.18} parent=5 // pred_region
        %s2162 = ssub.s32 %s27, 2
        // Predicated region
        $region93: #{_lambda_.18} parent=91 // pred_check
          %p2163 = pneg %p353
        $region94: #{_lambda_.18} parent=91 // pred_check_branch
          %2165 = sbr.rel (%p2163) target = $region96
        $region95: #{_lambda_.18} parent=91 // pred_region
          %s2166 = smul.u32 32, %s39
          %p2167 = scmp.lt.s32.totalorder %s38, 1
          %s2168 = scalar_select %p2167, %s38, 1
          %p2169 = scmp.lt.s32.totalorder %s2166, 31
          %s2170 = scalar_select %p2169, %s2166, 31
          %s2171 = smul.addr %s2168, 32
          %s2172 = sadd.s32 %s2170, %s2171
          %s2173 = smul.addr %s2172, 4
          %s2174 = scalar_lea.vmem %s12, %s2173
        $region96: #{_lambda_.18} parent=91 // pred_fallthru
          _
        // Predicated region
        $region97: #{_lambda_.18} parent=91 // pred_check
          %p2175 = pneg %p379
        $region98: #{_lambda_.18} parent=91 // pred_check_branch
          %2177 = sbr.rel (%p2175) target = $region100
        $region99: #{_lambda_.18} parent=91 // pred_region
          %s2178 = sand.u32 %s364, 1
          %s2179 = scalar_lea.sflag [#allocation3], %s2178
          %s2180 = sand.u32 %s364, 1
          %s2181 = scalar_lea.vmem [#allocation2], %s2180
          %2183 = dma.done %s2179, 16
        $region100: #{_lambda_.18} parent=91 // pred_fallthru
          _
        // Predicated region
        $region101: #{_lambda_.18} parent=91 // pred_check
          %p2184 = pneg %p405
        $region102: #{_lambda_.18} parent=91 // pred_check_branch
          %2186 = sbr.rel (%p2184) target = $region104
        $region103: #{_lambda_.18} parent=91 // pred_region
          %s2187 = sand.u32 %s390, 1
          %s2188 = scalar_lea.sflag [#allocation5], %s2187
          %s2189 = sand.u32 %s390, 1
          %s2190 = scalar_lea.vmem [#allocation4], %s2189
          %2192 = dma.done %s2188, 16
        $region104: #{_lambda_.18} parent=91 // pred_fallthru
          _
      $region92: #{_lambda_.18} parent=5 // pred_fallthru
        _
    $region6: #{_lambda_.18} parent=1 // loop_footer
      %s31 = sadd.s32 1, %s27
    $region7: #{_lambda_.18} parent=1 // loop_footer_branch
      %26 = sbr.rel target = $region3
    $region8: #{_lambda_.18} parent=1 // loop_exit
      _
    %2193 = vsyncpa [#allocation3], 1
    %s2194 = scalar_lea.sflag [#allocation3], 1
    %2195 = vsyncpa %s2194, 1
    %2196 = vsyncpa [#allocation5], 1
    %s2197 = scalar_lea.sflag [#allocation5], 1
    %2198 = vsyncpa %s2197, 1

</llo_original>
